<compile_context>
chip_gen: v7x
topology: tpu7x:2x2x1
jax: 0.10.0
libtpu: 0.0.40
codegen_flags: <defaults>
</compile_context>

<pallas_src>
import functools
import math

import jax
import jax.numpy as jnp
import numpy as np
from jax import lax
from jax.experimental import pallas as pl
from jax.experimental.pallas import tpu as pltpu

GRID_SIZE = 5
GRID_VALS = tuple(float(v) for v in np.linspace(-2.0, 2.0, GRID_SIZE))
_INV_SQRT2 = 1.0 / math.sqrt(2.0)


# ---------------------------------------------------------------------------
# Elementwise helpers (only ops with Mosaic lowerings: abs / div / exp / select)
# ---------------------------------------------------------------------------
def _erf_approx(z):
    """Abramowitz & Stegun 7.1.26 erf, max abs error ~1.5e-7 (matches exact-erf GELU)."""
    p = 0.3275911
    a1, a2, a3, a4, a5 = 0.254829592, -0.284496736, 1.421413741, -1.453152027, 1.061405429
    za = jnp.abs(z)
    t = 1.0 / (1.0 + p * za)
    poly = t * (a1 + t * (a2 + t * (a3 + t * (a4 + t * a5))))
    y = 1.0 - poly * jnp.exp(-(za * za))
    return jnp.where(z >= 0.0, y, -y)


def _gelu_exact(x):
    """torch.nn.GELU() default (exact erf form)."""
    return 0.5 * x * (1.0 + _erf_approx(x * _INV_SQRT2))


# ---------------------------------------------------------------------------
# Fused Pallas kernel: the whole EnhancedReasoningNetwork forward
# ---------------------------------------------------------------------------
def fused_kan_network_kernel(x_ref, *refs, num_layers, douts, grid_vals):
    # refs layout (6 weight refs per layer l, flat index = j*Dout + o, F = Din*Dout):
    #   R      (Din, F)   0/1 lane-replication matrix
    #   scl    (1,  F)    spline_scaler, flattened
    #   basef  (1,  F)    base_activation, flattened
    #   cA     (G,  F)    spline_weight * exp(+g*scaler)   (used when xn >= g)
    #   cB     (G,  F)    spline_weight * exp(-g*scaler)   (used when xn <  g)
    #   S      (F, Dout)  0/1 segment-sum matrix (reduce over j)
    # followed by 2*num_layers output refs: (block_b, Dout) raw / activated per layer.
    w_refs = refs[: 6 * num_layers]
    out_refs = refs[6 * num_layers:]
    hp = lax.Precision.HIGHEST        # multi-pass f32 on the (otherwise idle) MXU

    cur = x_ref[...].astype(jnp.float32)                      # (Bt, D0)

    for l in range(num_layers):                                # static unroll (4 layers)
        R = w_refs[6 * l + 0][...]
        scl = w_refs[6 * l + 1][...]
        basef = w_refs[6 * l + 2][...]
        cA = w_refs[6 * l + 3][...]
        cB = w_refs[6 * l + 4][...]
        dout = douts[l]

        xn = jnp.tanh(cur)                                     # (Bt, Din)
        if dout == 1:
            xn_rep = xn                                        # F == Din, R == I: skip MXU
        else:
            xn_rep = jnp.dot(xn, R, precision=hp,
                             preferred_element_type=jnp.float32)        # (Bt, F)

        xs = xn_rep * scl                                      # (Bt, F)
        u = jnp.exp(xs)                                        # EUP
        v = jnp.exp(-xs)                                       # EUP
        acc = xn_rep * basef                                   # base-activation term (VPU)

        for g, gval in enumerate(grid_vals):                   # static unroll, G == 5
            c_ge = cA[g:g + 1, :]                              # (1, F)
            c_lt = cB[g:g + 1, :]
            if gval <= -1.0:      # xn = tanh(.) >= -1 >= g always -> "xn >= g" branch
                acc = acc + v * c_ge
            elif gval >= 1.0:     # xn <= 1 <= g always        -> "xn <  g" branch
                acc = acc + u * c_lt
            else:                 # only the interior grid point needs a runtime select
                acc = acc + jnp.where(xn_rep >= gval, v * c_ge, u * c_lt)

        if dout == 1:
            raw = jnp.sum(acc, axis=-1, keepdims=True)         # head: plain lane reduce
        else:
            S = w_refs[6 * l + 5][...]
            raw = jnp.dot(acc, S, precision=hp,
                          preferred_element_type=jnp.float32)            # (Bt, Dout)

        act = jnp.tanh(raw) if l == num_layers - 1 else _gelu_exact(raw)

        out_refs[2 * l][...] = raw
        out_refs[2 * l + 1][...] = act
        cur = act


# ---------------------------------------------------------------------------
# Wrapper: constant precomputation, batch tiling, cost estimate, output unpack
# ---------------------------------------------------------------------------
def _prepare_layer_constants(p):
    """Batch-independent per-layer constants, laid out lane-dense (flat index j*Dout+o)."""
    w = jnp.asarray(p["spline_weight"], jnp.float32)           # (Dout, Din, G) torch layout
    scaler = jnp.asarray(p["spline_scaler"], jnp.float32)      # (Dout, Din)
    base = jnp.asarray(p["base_activation"], jnp.float32)      # (Dout, Din)
    dout, din, gsz = w.shape
    f = din * dout
    grid = jnp.asarray(GRID_VALS, jnp.float32)

    w_flat = jnp.transpose(w, (2, 1, 0)).reshape(gsz, f)       # [g, j*Dout+o] = w[o, j, g]
    scl_flat = jnp.transpose(scaler).reshape(1, f)             # [0, j*Dout+o] = scaler[o, j]
    base_flat = jnp.transpose(base).reshape(1, f)

    c_ge = w_flat * jnp.exp(grid[:, None] * scl_flat)          # exp(+g*s)*w  (xn >= g)
    c_lt = w_flat * jnp.exp(-grid[:, None] * scl_flat)         # exp(-g*s)*w  (xn <  g)

    rep = jnp.repeat(jnp.eye(din, dtype=jnp.float32), dout, axis=1)   # (Din, F) 0/1
    seg = jnp.tile(jnp.eye(dout, dtype=jnp.float32), (din, 1))        # (F, Dout) 0/1
    return [rep, scl_flat, base_flat, c_ge, c_lt, seg]


def enhanced_reasoning_network(x, params_list, *, block_b=512):
    """Fused forward pass of EnhancedReasoningNetwork -> (output, interpretability)."""
    b, d0 = x.shape
    num_layers = len(params_list)
    douts = tuple(int(p["spline_weight"].shape[0]) for p in params_list)
    dins = (int(d0),) + douts[:-1]

    # Batch tile: multiple of 8 (sublane), capped so per-block VMEM temporaries stay a few
    # MiB even under v7x's smaller VMEM / 32 MiB scoped limit.
    bt = int(min(block_b, max(8, ((b + 7) // 8) * 8)))
    bt = ((bt + 7) // 8) * 8
    nblk = pl.cdiv(b, bt)
    bp = nblk * bt
    if bp != b:
        x = jnp.pad(x, ((0, bp - b), (0, 0)))
    x = x.astype(jnp.float32)

    weight_args = []
    for p in params_list:
        weight_args += _prepare_layer_constants(p)

    def _full_spec(a):                                         # resident, constant block
        return pl.BlockSpec(a.shape, lambda i: (0, 0))

    in_specs = [pl.BlockSpec((bt, d0), lambda i: (i, 0))]
    in_specs += [_full_spec(a) for a in weight_args]

    out_shapes, out_specs = [], []
    for do in douts:
        for _ in range(2):                                     # raw, activated
            out_shapes.append(jax.ShapeDtypeStruct((bp, do), jnp.float32))
            out_specs.append(pl.BlockSpec((bt, do), lambda i: (i, 0)))

    # Advisory cost estimate (the factored exp stream on the EUP dominates).
    flops = 0
    transcendentals = 0
    bytes_accessed = bp * d0 * 4
    for di, do in zip(dins, douts):
        f = di * do
        transcendentals += bp * di                 # tanh of layer input
        transcendentals += 2 * bp * f              # u = exp(xs), v = exp(-xs)
        transcendentals += bp * do                 # GELU exp / output tanh
        flops += 2 * bp * di * f                   # lane-replication matmul
        flops += (2 * GRID_SIZE + 4) * bp * f      # per-g mul/add, select, xs, base term
        flops += 2 * bp * f * do                   # segment-sum matmul
        bytes_accessed += (di * f + 2 * f + 2 * GRID_SIZE * f + f * do) * 4
        bytes_accessed += 2 * bp * do * 4
    cost = pl.CostEstimate(flops=int(flops), transcendentals=int(transcendentals),
                           bytes_accessed=int(bytes_accessed))

    kern = functools.partial(fused_kan_network_kernel, num_layers=num_layers,
                             douts=douts, grid_vals=GRID_VALS)

    outs = pl.pallas_call(
        kern,
        out_shape=tuple(out_shapes),
        grid=(nblk,),
        in_specs=in_specs,
        out_specs=tuple(out_specs),
        compiler_params=pltpu.CompilerParams(
            dimension_semantics=("parallel",),       # independent batch blocks (megacore)
            vmem_limit_bytes=32 * 1024 * 1024,       # valid on v5e/v6e/v7x, ample headroom
        ),
        cost_estimate=cost,
    )(x, *weight_args)

    outs = [o[:b] for o in outs]                               # drop batch padding

    interpretability = {}
    for i in range(num_layers - 1):
        interpretability[f"kan_layer_{i}_raw"] = outs[2 * i]
        interpretability[f"kan_layer_{i}_activated"] = outs[2 * i + 1]
    interpretability["final_raw"] = outs[-2]
    interpretability["final_output"] = outs[-1]
    return outs[-1], interpretability


# ---------------------------------------------------------------------------
# Parameter init (UniversalKANLayer shapes, torch layout).  torch's
# _initialize_weights sets scaler=1, base=0; we perturb them slightly so the
# self-check exercises every term of the forward math.
# ---------------------------------------------------------------------------
def init_kan_params(key, in_f, out_f, grid_size=GRID_SIZE):
    k1, k2, k3 = jax.random.split(key, 3)
    fan_in, fan_out = in_f * grid_size, out_f * grid_size
    a = math.sqrt(6.0 / (fan_in + fan_out))                    # xavier_uniform bound
    w = jax.random.uniform(k1, (out_f, in_f, grid_size), jnp.float32, -a, a)
    scaler = 1.0 + 0.1 * jax.random.normal(k2, (out_f, in_f), dtype=jnp.float32)
    base = 0.1 * jax.random.normal(k3, (out_f, in_f), dtype=jnp.float32)
    return {"spline_weight": w, "spline_scaler": scaler, "base_activation": base}


# ---------------------------------------------------------------------------
# Pure-JAX reference mirroring the PyTorch math exactly (sanity check)
# ---------------------------------------------------------------------------
def _kan_layer_ref(x, p):
    w, scaler, base = p["spline_weight"], p["spline_scaler"], p["base_activation"]
    grid = jnp.asarray(GRID_VALS, jnp.float32)
    xn = jnp.tanh(x)
    dist = jnp.abs(xn[:, None, :, None] - grid[None, None, None, :])
    basis = jnp.exp(-dist * scaler[None, :, :, None])
    spline = jnp.sum(basis * w[None], axis=-1)
    out = spline + base[None] * xn[:, None, :]
    return jnp.sum(out, axis=-1)


def _reference_forward(x, params_list):
    interp = {}
    cur = x
    for i, p in enumerate(params_list[:-1]):
        raw = _kan_layer_ref(cur, p)
        act = 0.5 * raw * (1.0 + jax.scipy.special.erf(raw * _INV_SQRT2))   # exact GELU
        interp[f"kan_layer_{i}_raw"] = raw
        interp[f"kan_layer_{i}_activated"] = act
        cur = act
    final_raw = _kan_layer_ref(cur, params_list[-1])
    out = jnp.tanh(final_raw)
    interp["final_raw"] = final_raw
    interp["final_output"] = out
    return out, interp


if __name__ == "__main__":
    key = jax.random.PRNGKey(0)

    batch = 4
    input_dim = 8
    hidden_dims = [32, 16, 8]
    output_dim = 1
    dims = [input_dim] + hidden_dims + [output_dim]

    keys = jax.random.split(key, len(dims) + 1)
    x = jax.random.normal(keys[0], (batch, input_dim), dtype=jnp.float32)
    params = [init_kan_params(keys[i + 1], dims[i], dims[i + 1])
              for i in range(len(dims) - 1)]

    out, interp = enhanced_reasoning_network(x, params)
    out = jax.block_until_ready(out)

    ref_out, ref_interp = _reference_forward(x, params)
    assert out.shape == (batch, output_dim)

    # Tolerances cover the factored-exp rewrite, the A&S erf (<=1.5e-7) and multi-pass-f32
    # MXU passes; any semantic bug would be orders of magnitude larger.
    err = float(np.max(np.abs(np.asarray(out) - np.asarray(ref_out))))
    assert err < 5e-4, f"Pallas kernel diverged from reference (max abs err {err})"

    expected_keys = {
        "kan_layer_0_raw", "kan_layer_0_activated",
        "kan_layer_1_raw", "kan_layer_1_activated",
        "kan_layer_2_raw", "kan_layer_2_activated",
        "final_raw", "final_output",
    }
    assert set(interp.keys()) == expected_keys
    for i, d in enumerate(hidden_dims):
        assert interp[f"kan_layer_{i}_raw"].shape == (batch, d)
        assert interp[f"kan_layer_{i}_activated"].shape == (batch, d)
    for k in expected_keys:
        assert np.allclose(np.asarray(interp[k]), np.asarray(ref_interp[k]),
                           rtol=1e-3, atol=1e-3), f"interpretability mismatch for {k}"
    assert np.allclose(np.asarray(interp["final_output"]), np.asarray(out))

    print("KERNEL_OK")
</pallas_src>

<mosaic_0001>
module attributes {stable_mosaic.version = 11 : i64} {
  func.func @fused_kan_network_kernel(%arg0: i32, %arg1: memref<8x8xf32, #tpu.memory_space<vmem>>, %arg2: memref<8x256xf32, #tpu.memory_space<vmem>>, %arg3: memref<1x256xf32, #tpu.memory_space<vmem>>, %arg4: memref<1x256xf32, #tpu.memory_space<vmem>>, %arg5: memref<5x256xf32, #tpu.memory_space<vmem>>, %arg6: memref<5x256xf32, #tpu.memory_space<vmem>>, %arg7: memref<256x32xf32, #tpu.memory_space<vmem>>, %arg8: memref<32x512xf32, #tpu.memory_space<vmem>>, %arg9: memref<1x512xf32, #tpu.memory_space<vmem>>, %arg10: memref<1x512xf32, #tpu.memory_space<vmem>>, %arg11: memref<5x512xf32, #tpu.memory_space<vmem>>, %arg12: memref<5x512xf32, #tpu.memory_space<vmem>>, %arg13: memref<512x16xf32, #tpu.memory_space<vmem>>, %arg14: memref<16x128xf32, #tpu.memory_space<vmem>>, %arg15: memref<1x128xf32, #tpu.memory_space<vmem>>, %arg16: memref<1x128xf32, #tpu.memory_space<vmem>>, %arg17: memref<5x128xf32, #tpu.memory_space<vmem>>, %arg18: memref<5x128xf32, #tpu.memory_space<vmem>>, %arg19: memref<128x8xf32, #tpu.memory_space<vmem>>, %arg20: memref<8x8xf32, #tpu.memory_space<vmem>>, %arg21: memref<1x8xf32, #tpu.memory_space<vmem>>, %arg22: memref<1x8xf32, #tpu.memory_space<vmem>>, %arg23: memref<5x8xf32, #tpu.memory_space<vmem>>, %arg24: memref<5x8xf32, #tpu.memory_space<vmem>>, %arg25: memref<8x1xf32, #tpu.memory_space<vmem>>, %arg26: memref<8x32xf32, #tpu.memory_space<vmem>>, %arg27: memref<8x32xf32, #tpu.memory_space<vmem>>, %arg28: memref<8x16xf32, #tpu.memory_space<vmem>>, %arg29: memref<8x16xf32, #tpu.memory_space<vmem>>, %arg30: memref<8x8xf32, #tpu.memory_space<vmem>>, %arg31: memref<8x8xf32, #tpu.memory_space<vmem>>, %arg32: memref<8x1xf32, #tpu.memory_space<vmem>>, %arg33: memref<8x1xf32, #tpu.memory_space<vmem>>) attributes {dimension_semantics = [#tpu.dimension_semantics<parallel>], iteration_bounds = array<i64: 1>, scalar_prefetch = 0 : i64, scratch_operands = 0 : i64, tpu.core_type = #tpu.core_type<tc>, window_params = [{transform_indices = @transform_0, window_bounds = array<i64: 8, 8>}, {pipeline_mode = #tpu.pipeline_mode<synchronous>, transform_indices = @transform_1, window_bounds = array<i64: 8, 256>}, {pipeline_mode = #tpu.pipeline_mode<synchronous>, transform_indices = @transform_2, window_bounds = array<i64: 1, 256>}, {pipeline_mode = #tpu.pipeline_mode<synchronous>, transform_indices = @transform_3, window_bounds = array<i64: 1, 256>}, {pipeline_mode = #tpu.pipeline_mode<synchronous>, transform_indices = @transform_4, window_bounds = array<i64: 5, 256>}, {pipeline_mode = #tpu.pipeline_mode<synchronous>, transform_indices = @transform_5, window_bounds = array<i64: 5, 256>}, {pipeline_mode = #tpu.pipeline_mode<synchronous>, transform_indices = @transform_6, window_bounds = array<i64: 256, 32>}, {pipeline_mode = #tpu.pipeline_mode<synchronous>, transform_indices = @transform_7, window_bounds = array<i64: 32, 512>}, {pipeline_mode = #tpu.pipeline_mode<synchronous>, transform_indices = @transform_8, window_bounds = array<i64: 1, 512>}, {pipeline_mode = #tpu.pipeline_mode<synchronous>, transform_indices = @transform_9, window_bounds = array<i64: 1, 512>}, {pipeline_mode = #tpu.pipeline_mode<synchronous>, transform_indices = @transform_10, window_bounds = array<i64: 5, 512>}, {pipeline_mode = #tpu.pipeline_mode<synchronous>, transform_indices = @transform_11, window_bounds = array<i64: 5, 512>}, {pipeline_mode = #tpu.pipeline_mode<synchronous>, transform_indices = @transform_12, window_bounds = array<i64: 512, 16>}, {pipeline_mode = #tpu.pipeline_mode<synchronous>, transform_indices = @transform_13, window_bounds = array<i64: 16, 128>}, {pipeline_mode = #tpu.pipeline_mode<synchronous>, transform_indices = @transform_14, window_bounds = array<i64: 1, 128>}, {pipeline_mode = #tpu.pipeline_mode<synchronous>, transform_indices = @transform_15, window_bounds = array<i64: 1, 128>}, {pipeline_mode = #tpu.pipeline_mode<synchronous>, transform_indices = @transform_16, window_bounds = array<i64: 5, 128>}, {pipeline_mode = #tpu.pipeline_mode<synchronous>, transform_indices = @transform_17, window_bounds = array<i64: 5, 128>}, {pipeline_mode = #tpu.pipeline_mode<synchronous>, transform_indices = @transform_18, window_bounds = array<i64: 128, 8>}, {pipeline_mode = #tpu.pipeline_mode<synchronous>, transform_indices = @transform_19, window_bounds = array<i64: 8, 8>}, {pipeline_mode = #tpu.pipeline_mode<synchronous>, transform_indices = @transform_20, window_bounds = array<i64: 1, 8>}, {pipeline_mode = #tpu.pipeline_mode<synchronous>, transform_indices = @transform_21, window_bounds = array<i64: 1, 8>}, {pipeline_mode = #tpu.pipeline_mode<synchronous>, transform_indices = @transform_22, window_bounds = array<i64: 5, 8>}, {pipeline_mode = #tpu.pipeline_mode<synchronous>, transform_indices = @transform_23, window_bounds = array<i64: 5, 8>}, {pipeline_mode = #tpu.pipeline_mode<synchronous>, transform_indices = @transform_24, window_bounds = array<i64: 8, 1>}, {transform_indices = @transform_25, window_bounds = array<i64: 8, 32>}, {transform_indices = @transform_26, window_bounds = array<i64: 8, 32>}, {transform_indices = @transform_27, window_bounds = array<i64: 8, 16>}, {transform_indices = @transform_28, window_bounds = array<i64: 8, 16>}, {transform_indices = @transform_29, window_bounds = array<i64: 8, 8>}, {transform_indices = @transform_30, window_bounds = array<i64: 8, 8>}, {transform_indices = @transform_31, window_bounds = array<i64: 8, 1>}, {transform_indices = @transform_32, window_bounds = array<i64: 8, 1>}]} {
    %c0 = arith.constant 0 : index
    %c0_0 = arith.constant 0 : index
    %0 = vector.load %arg1[%c0, %c0_0] : memref<8x8xf32, #tpu.memory_space<vmem>>, vector<8x8xf32>
    %c0_1 = arith.constant 0 : index
    %c0_2 = arith.constant 0 : index
    %1 = vector.load %arg2[%c0_1, %c0_2] : memref<8x256xf32, #tpu.memory_space<vmem>>, vector<8x256xf32>
    %c0_3 = arith.constant 0 : index
    %c0_4 = arith.constant 0 : index
    %2 = vector.load %arg3[%c0_3, %c0_4] : memref<1x256xf32, #tpu.memory_space<vmem>>, vector<1x256xf32>
    %c0_5 = arith.constant 0 : index
    %c0_6 = arith.constant 0 : index
    %3 = vector.load %arg4[%c0_5, %c0_6] : memref<1x256xf32, #tpu.memory_space<vmem>>, vector<1x256xf32>
    %c0_7 = arith.constant 0 : index
    %c0_8 = arith.constant 0 : index
    %4 = vector.load %arg5[%c0_7, %c0_8] : memref<5x256xf32, #tpu.memory_space<vmem>>, vector<5x256xf32>
    %c0_9 = arith.constant 0 : index
    %c0_10 = arith.constant 0 : index
    %5 = vector.load %arg6[%c0_9, %c0_10] : memref<5x256xf32, #tpu.memory_space<vmem>>, vector<5x256xf32>
    %6 = math.tanh %0 : vector<8x8xf32>
    %cst = arith.constant dense<0.000000e+00> : vector<8x256xf32>
    %7 = tpu.matmul %6, %1, %cst {dimension_numbers = #tpu.dot_dimension_numbers<[1], [0], [0], [1], [0, 0, 1, 1], [], []>, precision = #tpu.contract_precision<fp32>} : vector<8x8xf32>, vector<8x256xf32>, vector<8x256xf32> -> vector<8x256xf32>
    %8 = vector.broadcast %2 : vector<1x256xf32> to vector<8x256xf32>
    %9 = arith.mulf %7, %8 : vector<8x256xf32>
    %10 = math.exp %9 : vector<8x256xf32>
    %cst_11 = arith.constant 0.000000e+00 : f32
    %11 = vector.broadcast %cst_11 : f32 to vector<8x256xf32>
    %12 = arith.subf %11, %9 : vector<8x256xf32>
    %13 = math.exp %12 : vector<8x256xf32>
    %14 = vector.broadcast %3 : vector<1x256xf32> to vector<8x256xf32>
    %15 = arith.mulf %7, %14 : vector<8x256xf32>
    %16 = vector.extract_strided_slice %4 {offsets = [0, 0], sizes = [1, 256], strides = [1, 1]} : vector<5x256xf32> to vector<1x256xf32>
    %17 = vector.broadcast %16 : vector<1x256xf32> to vector<8x256xf32>
    %18 = arith.mulf %13, %17 : vector<8x256xf32>
    %19 = arith.addf %15, %18 : vector<8x256xf32>
    %20 = vector.extract_strided_slice %4 {offsets = [1, 0], sizes = [1, 256], strides = [1, 1]} : vector<5x256xf32> to vector<1x256xf32>
    %21 = vector.broadcast %20 : vector<1x256xf32> to vector<8x256xf32>
    %22 = arith.mulf %13, %21 : vector<8x256xf32>
    %23 = arith.addf %19, %22 : vector<8x256xf32>
    %24 = vector.extract_strided_slice %4 {offsets = [2, 0], sizes = [1, 256], strides = [1, 1]} : vector<5x256xf32> to vector<1x256xf32>
    %25 = vector.extract_strided_slice %5 {offsets = [2, 0], sizes = [1, 256], strides = [1, 1]} : vector<5x256xf32> to vector<1x256xf32>
    %cst_12 = arith.constant 0.000000e+00 : f32
    %26 = vector.broadcast %cst_12 : f32 to vector<8x256xf32>
    %27 = arith.cmpf oge, %7, %26 : vector<8x256xf32>
    %28 = vector.broadcast %24 : vector<1x256xf32> to vector<8x256xf32>
    %29 = arith.mulf %13, %28 : vector<8x256xf32>
    %30 = vector.broadcast %25 : vector<1x256xf32> to vector<8x256xf32>
    %31 = arith.mulf %10, %30 : vector<8x256xf32>
    %32 = arith.select %27, %29, %31 : vector<8x256xi1>, vector<8x256xf32>
    %33 = arith.addf %23, %32 : vector<8x256xf32>
    %34 = vector.extract_strided_slice %5 {offsets = [3, 0], sizes = [1, 256], strides = [1, 1]} : vector<5x256xf32> to vector<1x256xf32>
    %35 = vector.broadcast %34 : vector<1x256xf32> to vector<8x256xf32>
    %36 = arith.mulf %10, %35 : vector<8x256xf32>
    %37 = arith.addf %33, %36 : vector<8x256xf32>
    %38 = vector.extract_strided_slice %5 {offsets = [4, 0], sizes = [1, 256], strides = [1, 1]} : vector<5x256xf32> to vector<1x256xf32>
    %39 = vector.broadcast %38 : vector<1x256xf32> to vector<8x256xf32>
    %40 = arith.mulf %10, %39 : vector<8x256xf32>
    %41 = arith.addf %37, %40 : vector<8x256xf32>
    %c0_13 = arith.constant 0 : index
    %c0_14 = arith.constant 0 : index
    %42 = vector.load %arg7[%c0_13, %c0_14] : memref<256x32xf32, #tpu.memory_space<vmem>>, vector<256x32xf32>
    %cst_15 = arith.constant dense<0.000000e+00> : vector<8x32xf32>
    %43 = tpu.matmul %41, %42, %cst_15 {dimension_numbers = #tpu.dot_dimension_numbers<[1], [0], [0], [1], [0, 0, 1, 1], [], []>, precision = #tpu.contract_precision<fp32>} : vector<8x256xf32>, vector<256x32xf32>, vector<8x32xf32> -> vector<8x32xf32>
    %cst_16 = arith.constant 5.000000e-01 : f32
    %44 = vector.broadcast %cst_16 : f32 to vector<8x32xf32>
    %45 = arith.mulf %44, %43 : vector<8x32xf32>
    %cst_17 = arith.constant 0.707106769 : f32
    %46 = vector.broadcast %cst_17 : f32 to vector<8x32xf32>
    %47 = arith.mulf %43, %46 : vector<8x32xf32>
    %48 = math.absf %47 : vector<8x32xf32>
    %cst_18 = arith.constant 0.327591091 : f32
    %49 = vector.broadcast %cst_18 : f32 to vector<8x32xf32>
    %50 = arith.mulf %49, %48 : vector<8x32xf32>
    %cst_19 = arith.constant 1.000000e+00 : f32
    %51 = vector.broadcast %cst_19 : f32 to vector<8x32xf32>
    %52 = arith.addf %51, %50 : vector<8x32xf32>
    %cst_20 = arith.constant 1.000000e+00 : f32
    %53 = vector.broadcast %cst_20 : f32 to vector<8x32xf32>
    %54 = arith.divf %53, %52 : vector<8x32xf32>
    %cst_21 = arith.constant 1.06140542 : f32
    %55 = vector.broadcast %cst_21 : f32 to vector<8x32xf32>
    %56 = arith.mulf %54, %55 : vector<8x32xf32>
    %cst_22 = arith.constant -1.45315206 : f32
    %57 = vector.broadcast %cst_22 : f32 to vector<8x32xf32>
    %58 = arith.addf %57, %56 : vector<8x32xf32>
    %59 = arith.mulf %54, %58 : vector<8x32xf32>
    %cst_23 = arith.constant 1.42141378 : f32
    %60 = vector.broadcast %cst_23 : f32 to vector<8x32xf32>
    %61 = arith.addf %60, %59 : vector<8x32xf32>
    %62 = arith.mulf %54, %61 : vector<8x32xf32>
    %cst_24 = arith.constant -0.284496725 : f32
    %63 = vector.broadcast %cst_24 : f32 to vector<8x32xf32>
    %64 = arith.addf %63, %62 : vector<8x32xf32>
    %65 = arith.mulf %54, %64 : vector<8x32xf32>
    %cst_25 = arith.constant 0.254829586 : f32
    %66 = vector.broadcast %cst_25 : f32 to vector<8x32xf32>
    %67 = arith.addf %66, %65 : vector<8x32xf32>
    %68 = arith.mulf %54, %67 : vector<8x32xf32>
    %69 = arith.mulf %48, %48 : vector<8x32xf32>
    %cst_26 = arith.constant 0.000000e+00 : f32
    %70 = vector.broadcast %cst_26 : f32 to vector<8x32xf32>
    %71 = arith.subf %70, %69 : vector<8x32xf32>
    %72 = math.exp %71 : vector<8x32xf32>
    %73 = arith.mulf %68, %72 : vector<8x32xf32>
    %cst_27 = arith.constant 1.000000e+00 : f32
    %74 = vector.broadcast %cst_27 : f32 to vector<8x32xf32>
    %75 = arith.subf %74, %73 : vector<8x32xf32>
    %cst_28 = arith.constant 0.000000e+00 : f32
    %76 = vector.broadcast %cst_28 : f32 to vector<8x32xf32>
    %77 = arith.cmpf oge, %47, %76 : vector<8x32xf32>
    %cst_29 = arith.constant 0.000000e+00 : f32
    %78 = vector.broadcast %cst_29 : f32 to vector<8x32xf32>
    %79 = arith.subf %78, %75 : vector<8x32xf32>
    %80 = arith.select %77, %75, %79 : vector<8x32xi1>, vector<8x32xf32>
    %cst_30 = arith.constant 1.000000e+00 : f32
    %81 = vector.broadcast %cst_30 : f32 to vector<8x32xf32>
    %82 = arith.addf %81, %80 : vector<8x32xf32>
    %83 = arith.mulf %45, %82 : vector<8x32xf32>
    %c0_31 = arith.constant 0 : index
    %c0_32 = arith.constant 0 : index
    %84 = vector.load %arg26[%c0_31, %c0_32] : memref<8x32xf32, #tpu.memory_space<vmem>>, vector<8x32xf32>
    tpu.vector_store %arg26[%c0_31, %c0_32], %43 {strides = array<i32>} : memref<8x32xf32, #tpu.memory_space<vmem>>, vector<8x32xf32>,
    %c0_33 = arith.constant 0 : index
    %c0_34 = arith.constant 0 : index
    %85 = vector.load %arg27[%c0_33, %c0_34] : memref<8x32xf32, #tpu.memory_space<vmem>>, vector<8x32xf32>
    tpu.vector_store %arg27[%c0_33, %c0_34], %83 {strides = array<i32>} : memref<8x32xf32, #tpu.memory_space<vmem>>, vector<8x32xf32>,
    %c0_35 = arith.constant 0 : index
    %c0_36 = arith.constant 0 : index
    %86 = vector.load %arg8[%c0_35, %c0_36] : memref<32x512xf32, #tpu.memory_space<vmem>>, vector<32x512xf32>
    %c0_37 = arith.constant 0 : index
    %c0_38 = arith.constant 0 : index
    %87 = vector.load %arg9[%c0_37, %c0_38] : memref<1x512xf32, #tpu.memory_space<vmem>>, vector<1x512xf32>
    %c0_39 = arith.constant 0 : index
    %c0_40 = arith.constant 0 : index
    %88 = vector.load %arg10[%c0_39, %c0_40] : memref<1x512xf32, #tpu.memory_space<vmem>>, vector<1x512xf32>
    %c0_41 = arith.constant 0 : index
    %c0_42 = arith.constant 0 : index
    %89 = vector.load %arg11[%c0_41, %c0_42] : memref<5x512xf32, #tpu.memory_space<vmem>>, vector<5x512xf32>
    %c0_43 = arith.constant 0 : index
    %c0_44 = arith.constant 0 : index
    %90 = vector.load %arg12[%c0_43, %c0_44] : memref<5x512xf32, #tpu.memory_space<vmem>>, vector<5x512xf32>
    %91 = math.tanh %83 : vector<8x32xf32>
    %cst_45 = arith.constant dense<0.000000e+00> : vector<8x512xf32>
    %92 = tpu.matmul %91, %86, %cst_45 {dimension_numbers = #tpu.dot_dimension_numbers<[1], [0], [0], [1], [0, 0, 1, 1], [], []>, precision = #tpu.contract_precision<fp32>} : vector<8x32xf32>, vector<32x512xf32>, vector<8x512xf32> -> vector<8x512xf32>
    %93 = vector.broadcast %87 : vector<1x512xf32> to vector<8x512xf32>
    %94 = arith.mulf %92, %93 : vector<8x512xf32>
    %95 = math.exp %94 : vector<8x512xf32>
    %cst_46 = arith.constant 0.000000e+00 : f32
    %96 = vector.broadcast %cst_46 : f32 to vector<8x512xf32>
    %97 = arith.subf %96, %94 : vector<8x512xf32>
    %98 = math.exp %97 : vector<8x512xf32>
    %99 = vector.broadcast %88 : vector<1x512xf32> to vector<8x512xf32>
    %100 = arith.mulf %92, %99 : vector<8x512xf32>
    %101 = vector.extract_strided_slice %89 {offsets = [0, 0], sizes = [1, 512], strides = [1, 1]} : vector<5x512xf32> to vector<1x512xf32>
    %102 = vector.broadcast %101 : vector<1x512xf32> to vector<8x512xf32>
    %103 = arith.mulf %98, %102 : vector<8x512xf32>
    %104 = arith.addf %100, %103 : vector<8x512xf32>
    %105 = vector.extract_strided_slice %89 {offsets = [1, 0], sizes = [1, 512], strides = [1, 1]} : vector<5x512xf32> to vector<1x512xf32>
    %106 = vector.broadcast %105 : vector<1x512xf32> to vector<8x512xf32>
    %107 = arith.mulf %98, %106 : vector<8x512xf32>
    %108 = arith.addf %104, %107 : vector<8x512xf32>
    %109 = vector.extract_strided_slice %89 {offsets = [2, 0], sizes = [1, 512], strides = [1, 1]} : vector<5x512xf32> to vector<1x512xf32>
    %110 = vector.extract_strided_slice %90 {offsets = [2, 0], sizes = [1, 512], strides = [1, 1]} : vector<5x512xf32> to vector<1x512xf32>
    %cst_47 = arith.constant 0.000000e+00 : f32
    %111 = vector.broadcast %cst_47 : f32 to vector<8x512xf32>
    %112 = arith.cmpf oge, %92, %111 : vector<8x512xf32>
    %113 = vector.broadcast %109 : vector<1x512xf32> to vector<8x512xf32>
    %114 = arith.mulf %98, %113 : vector<8x512xf32>
    %115 = vector.broadcast %110 : vector<1x512xf32> to vector<8x512xf32>
    %116 = arith.mulf %95, %115 : vector<8x512xf32>
    %117 = arith.select %112, %114, %116 : vector<8x512xi1>, vector<8x512xf32>
    %118 = arith.addf %108, %117 : vector<8x512xf32>
    %119 = vector.extract_strided_slice %90 {offsets = [3, 0], sizes = [1, 512], strides = [1, 1]} : vector<5x512xf32> to vector<1x512xf32>
    %120 = vector.broadcast %119 : vector<1x512xf32> to vector<8x512xf32>
    %121 = arith.mulf %95, %120 : vector<8x512xf32>
    %122 = arith.addf %118, %121 : vector<8x512xf32>
    %123 = vector.extract_strided_slice %90 {offsets = [4, 0], sizes = [1, 512], strides = [1, 1]} : vector<5x512xf32> to vector<1x512xf32>
    %124 = vector.broadcast %123 : vector<1x512xf32> to vector<8x512xf32>
    %125 = arith.mulf %95, %124 : vector<8x512xf32>
    %126 = arith.addf %122, %125 : vector<8x512xf32>
    %c0_48 = arith.constant 0 : index
    %c0_49 = arith.constant 0 : index
    %127 = vector.load %arg13[%c0_48, %c0_49] : memref<512x16xf32, #tpu.memory_space<vmem>>, vector<512x16xf32>
    %cst_50 = arith.constant dense<0.000000e+00> : vector<8x16xf32>
    %128 = tpu.matmul %126, %127, %cst_50 {dimension_numbers = #tpu.dot_dimension_numbers<[1], [0], [0], [1], [0, 0, 1, 1], [], []>, precision = #tpu.contract_precision<fp32>} : vector<8x512xf32>, vector<512x16xf32>, vector<8x16xf32> -> vector<8x16xf32>
    %cst_51 = arith.constant 5.000000e-01 : f32
    %129 = vector.broadcast %cst_51 : f32 to vector<8x16xf32>
    %130 = arith.mulf %129, %128 : vector<8x16xf32>
    %cst_52 = arith.constant 0.707106769 : f32
    %131 = vector.broadcast %cst_52 : f32 to vector<8x16xf32>
    %132 = arith.mulf %128, %131 : vector<8x16xf32>
    %133 = math.absf %132 : vector<8x16xf32>
    %cst_53 = arith.constant 0.327591091 : f32
    %134 = vector.broadcast %cst_53 : f32 to vector<8x16xf32>
    %135 = arith.mulf %134, %133 : vector<8x16xf32>
    %cst_54 = arith.constant 1.000000e+00 : f32
    %136 = vector.broadcast %cst_54 : f32 to vector<8x16xf32>
    %137 = arith.addf %136, %135 : vector<8x16xf32>
    %cst_55 = arith.constant 1.000000e+00 : f32
    %138 = vector.broadcast %cst_55 : f32 to vector<8x16xf32>
    %139 = arith.divf %138, %137 : vector<8x16xf32>
    %cst_56 = arith.constant 1.06140542 : f32
    %140 = vector.broadcast %cst_56 : f32 to vector<8x16xf32>
    %141 = arith.mulf %139, %140 : vector<8x16xf32>
    %cst_57 = arith.constant -1.45315206 : f32
    %142 = vector.broadcast %cst_57 : f32 to vector<8x16xf32>
    %143 = arith.addf %142, %141 : vector<8x16xf32>
    %144 = arith.mulf %139, %143 : vector<8x16xf32>
    %cst_58 = arith.constant 1.42141378 : f32
    %145 = vector.broadcast %cst_58 : f32 to vector<8x16xf32>
    %146 = arith.addf %145, %144 : vector<8x16xf32>
    %147 = arith.mulf %139, %146 : vector<8x16xf32>
    %cst_59 = arith.constant -0.284496725 : f32
    %148 = vector.broadcast %cst_59 : f32 to vector<8x16xf32>
    %149 = arith.addf %148, %147 : vector<8x16xf32>
    %150 = arith.mulf %139, %149 : vector<8x16xf32>
    %cst_60 = arith.constant 0.254829586 : f32
    %151 = vector.broadcast %cst_60 : f32 to vector<8x16xf32>
    %152 = arith.addf %151, %150 : vector<8x16xf32>
    %153 = arith.mulf %139, %152 : vector<8x16xf32>
    %154 = arith.mulf %133, %133 : vector<8x16xf32>
    %cst_61 = arith.constant 0.000000e+00 : f32
    %155 = vector.broadcast %cst_61 : f32 to vector<8x16xf32>
    %156 = arith.subf %155, %154 : vector<8x16xf32>
    %157 = math.exp %156 : vector<8x16xf32>
    %158 = arith.mulf %153, %157 : vector<8x16xf32>
    %cst_62 = arith.constant 1.000000e+00 : f32
    %159 = vector.broadcast %cst_62 : f32 to vector<8x16xf32>
    %160 = arith.subf %159, %158 : vector<8x16xf32>
    %cst_63 = arith.constant 0.000000e+00 : f32
    %161 = vector.broadcast %cst_63 : f32 to vector<8x16xf32>
    %162 = arith.cmpf oge, %132, %161 : vector<8x16xf32>
    %cst_64 = arith.constant 0.000000e+00 : f32
    %163 = vector.broadcast %cst_64 : f32 to vector<8x16xf32>
    %164 = arith.subf %163, %160 : vector<8x16xf32>
    %165 = arith.select %162, %160, %164 : vector<8x16xi1>, vector<8x16xf32>
    %cst_65 = arith.constant 1.000000e+00 : f32
    %166 = vector.broadcast %cst_65 : f32 to vector<8x16xf32>
    %167 = arith.addf %166, %165 : vector<8x16xf32>
    %168 = arith.mulf %130, %167 : vector<8x16xf32>
    %c0_66 = arith.constant 0 : index
    %c0_67 = arith.constant 0 : index
    %169 = vector.load %arg28[%c0_66, %c0_67] : memref<8x16xf32, #tpu.memory_space<vmem>>, vector<8x16xf32>
    tpu.vector_store %arg28[%c0_66, %c0_67], %128 {strides = array<i32>} : memref<8x16xf32, #tpu.memory_space<vmem>>, vector<8x16xf32>,
    %c0_68 = arith.constant 0 : index
    %c0_69 = arith.constant 0 : index
    %170 = vector.load %arg29[%c0_68, %c0_69] : memref<8x16xf32, #tpu.memory_space<vmem>>, vector<8x16xf32>
    tpu.vector_store %arg29[%c0_68, %c0_69], %168 {strides = array<i32>} : memref<8x16xf32, #tpu.memory_space<vmem>>, vector<8x16xf32>,
    %c0_70 = arith.constant 0 : index
    %c0_71 = arith.constant 0 : index
    %171 = vector.load %arg14[%c0_70, %c0_71] : memref<16x128xf32, #tpu.memory_space<vmem>>, vector<16x128xf32>
    %c0_72 = arith.constant 0 : index
    %c0_73 = arith.constant 0 : index
    %172 = vector.load %arg15[%c0_72, %c0_73] : memref<1x128xf32, #tpu.memory_space<vmem>>, vector<1x128xf32>
    %c0_74 = arith.constant 0 : index
    %c0_75 = arith.constant 0 : index
    %173 = vector.load %arg16[%c0_74, %c0_75] : memref<1x128xf32, #tpu.memory_space<vmem>>, vector<1x128xf32>
    %c0_76 = arith.constant 0 : index
    %c0_77 = arith.constant 0 : index
    %174 = vector.load %arg17[%c0_76, %c0_77] : memref<5x128xf32, #tpu.memory_space<vmem>>, vector<5x128xf32>
    %c0_78 = arith.constant 0 : index
    %c0_79 = arith.constant 0 : index
    %175 = vector.load %arg18[%c0_78, %c0_79] : memref<5x128xf32, #tpu.memory_space<vmem>>, vector<5x128xf32>
    %176 = math.tanh %168 : vector<8x16xf32>
    %cst_80 = arith.constant dense<0.000000e+00> : vector<8x128xf32>
    %177 = tpu.matmul %176, %171, %cst_80 {dimension_numbers = #tpu.dot_dimension_numbers<[1], [0], [0], [1], [0, 0, 1, 1], [], []>, precision = #tpu.contract_precision<fp32>} : vector<8x16xf32>, vector<16x128xf32>, vector<8x128xf32> -> vector<8x128xf32>
    %178 = vector.broadcast %172 : vector<1x128xf32> to vector<8x128xf32>
    %179 = arith.mulf %177, %178 : vector<8x128xf32>
    %180 = math.exp %179 : vector<8x128xf32>
    %cst_81 = arith.constant 0.000000e+00 : f32
    %181 = vector.broadcast %cst_81 : f32 to vector<8x128xf32>
    %182 = arith.subf %181, %179 : vector<8x128xf32>
    %183 = math.exp %182 : vector<8x128xf32>
    %184 = vector.broadcast %173 : vector<1x128xf32> to vector<8x128xf32>
    %185 = arith.mulf %177, %184 : vector<8x128xf32>
    %186 = vector.extract_strided_slice %174 {offsets = [0, 0], sizes = [1, 128], strides = [1, 1]} : vector<5x128xf32> to vector<1x128xf32>
    %187 = vector.broadcast %186 : vector<1x128xf32> to vector<8x128xf32>
    %188 = arith.mulf %183, %187 : vector<8x128xf32>
    %189 = arith.addf %185, %188 : vector<8x128xf32>
    %190 = vector.extract_strided_slice %174 {offsets = [1, 0], sizes = [1, 128], strides = [1, 1]} : vector<5x128xf32> to vector<1x128xf32>
    %191 = vector.broadcast %190 : vector<1x128xf32> to vector<8x128xf32>
    %192 = arith.mulf %183, %191 : vector<8x128xf32>
    %193 = arith.addf %189, %192 : vector<8x128xf32>
    %194 = vector.extract_strided_slice %174 {offsets = [2, 0], sizes = [1, 128], strides = [1, 1]} : vector<5x128xf32> to vector<1x128xf32>
    %195 = vector.extract_strided_slice %175 {offsets = [2, 0], sizes = [1, 128], strides = [1, 1]} : vector<5x128xf32> to vector<1x128xf32>
    %cst_82 = arith.constant 0.000000e+00 : f32
    %196 = vector.broadcast %cst_82 : f32 to vector<8x128xf32>
    %197 = arith.cmpf oge, %177, %196 : vector<8x128xf32>
    %198 = vector.broadcast %194 : vector<1x128xf32> to vector<8x128xf32>
    %199 = arith.mulf %183, %198 : vector<8x128xf32>
    %200 = vector.broadcast %195 : vector<1x128xf32> to vector<8x128xf32>
    %201 = arith.mulf %180, %200 : vector<8x128xf32>
    %202 = arith.select %197, %199, %201 : vector<8x128xi1>, vector<8x128xf32>
    %203 = arith.addf %193, %202 : vector<8x128xf32>
    %204 = vector.extract_strided_slice %175 {offsets = [3, 0], sizes = [1, 128], strides = [1, 1]} : vector<5x128xf32> to vector<1x128xf32>
    %205 = vector.broadcast %204 : vector<1x128xf32> to vector<8x128xf32>
    %206 = arith.mulf %180, %205 : vector<8x128xf32>
    %207 = arith.addf %203, %206 : vector<8x128xf32>
    %208 = vector.extract_strided_slice %175 {offsets = [4, 0], sizes = [1, 128], strides = [1, 1]} : vector<5x128xf32> to vector<1x128xf32>
    %209 = vector.broadcast %208 : vector<1x128xf32> to vector<8x128xf32>
    %210 = arith.mulf %180, %209 : vector<8x128xf32>
    %211 = arith.addf %207, %210 : vector<8x128xf32>
    %c0_83 = arith.constant 0 : index
    %c0_84 = arith.constant 0 : index
    %212 = vector.load %arg19[%c0_83, %c0_84] : memref<128x8xf32, #tpu.memory_space<vmem>>, vector<128x8xf32>
    %cst_85 = arith.constant dense<0.000000e+00> : vector<8x8xf32>
    %213 = tpu.matmul %211, %212, %cst_85 {dimension_numbers = #tpu.dot_dimension_numbers<[1], [0], [0], [1], [0, 0, 1, 1], [], []>, precision = #tpu.contract_precision<fp32>} : vector<8x128xf32>, vector<128x8xf32>, vector<8x8xf32> -> vector<8x8xf32>
    %cst_86 = arith.constant 5.000000e-01 : f32
    %214 = vector.broadcast %cst_86 : f32 to vector<8x8xf32>
    %215 = arith.mulf %214, %213 : vector<8x8xf32>
    %cst_87 = arith.constant 0.707106769 : f32
    %216 = vector.broadcast %cst_87 : f32 to vector<8x8xf32>
    %217 = arith.mulf %213, %216 : vector<8x8xf32>
    %218 = math.absf %217 : vector<8x8xf32>
    %cst_88 = arith.constant 0.327591091 : f32
    %219 = vector.broadcast %cst_88 : f32 to vector<8x8xf32>
    %220 = arith.mulf %219, %218 : vector<8x8xf32>
    %cst_89 = arith.constant 1.000000e+00 : f32
    %221 = vector.broadcast %cst_89 : f32 to vector<8x8xf32>
    %222 = arith.addf %221, %220 : vector<8x8xf32>
    %cst_90 = arith.constant 1.000000e+00 : f32
    %223 = vector.broadcast %cst_90 : f32 to vector<8x8xf32>
    %224 = arith.divf %223, %222 : vector<8x8xf32>
    %cst_91 = arith.constant 1.06140542 : f32
    %225 = vector.broadcast %cst_91 : f32 to vector<8x8xf32>
    %226 = arith.mulf %224, %225 : vector<8x8xf32>
    %cst_92 = arith.constant -1.45315206 : f32
    %227 = vector.broadcast %cst_92 : f32 to vector<8x8xf32>
    %228 = arith.addf %227, %226 : vector<8x8xf32>
    %229 = arith.mulf %224, %228 : vector<8x8xf32>
    %cst_93 = arith.constant 1.42141378 : f32
    %230 = vector.broadcast %cst_93 : f32 to vector<8x8xf32>
    %231 = arith.addf %230, %229 : vector<8x8xf32>
    %232 = arith.mulf %224, %231 : vector<8x8xf32>
    %cst_94 = arith.constant -0.284496725 : f32
    %233 = vector.broadcast %cst_94 : f32 to vector<8x8xf32>
    %234 = arith.addf %233, %232 : vector<8x8xf32>
    %235 = arith.mulf %224, %234 : vector<8x8xf32>
    %cst_95 = arith.constant 0.254829586 : f32
    %236 = vector.broadcast %cst_95 : f32 to vector<8x8xf32>
    %237 = arith.addf %236, %235 : vector<8x8xf32>
    %238 = arith.mulf %224, %237 : vector<8x8xf32>
    %239 = arith.mulf %218, %218 : vector<8x8xf32>
    %cst_96 = arith.constant 0.000000e+00 : f32
    %240 = vector.broadcast %cst_96 : f32 to vector<8x8xf32>
    %241 = arith.subf %240, %239 : vector<8x8xf32>
    %242 = math.exp %241 : vector<8x8xf32>
    %243 = arith.mulf %238, %242 : vector<8x8xf32>
    %cst_97 = arith.constant 1.000000e+00 : f32
    %244 = vector.broadcast %cst_97 : f32 to vector<8x8xf32>
    %245 = arith.subf %244, %243 : vector<8x8xf32>
    %cst_98 = arith.constant 0.000000e+00 : f32
    %246 = vector.broadcast %cst_98 : f32 to vector<8x8xf32>
    %247 = arith.cmpf oge, %217, %246 : vector<8x8xf32>
    %cst_99 = arith.constant 0.000000e+00 : f32
    %248 = vector.broadcast %cst_99 : f32 to vector<8x8xf32>
    %249 = arith.subf %248, %245 : vector<8x8xf32>
    %250 = arith.select %247, %245, %249 : vector<8x8xi1>, vector<8x8xf32>
    %cst_100 = arith.constant 1.000000e+00 : f32
    %251 = vector.broadcast %cst_100 : f32 to vector<8x8xf32>
    %252 = arith.addf %251, %250 : vector<8x8xf32>
    %253 = arith.mulf %215, %252 : vector<8x8xf32>
    %c0_101 = arith.constant 0 : index
    %c0_102 = arith.constant 0 : index
    %254 = vector.load %arg30[%c0_101, %c0_102] : memref<8x8xf32, #tpu.memory_space<vmem>>, vector<8x8xf32>
    tpu.vector_store %arg30[%c0_101, %c0_102], %213 {strides = array<i32>} : memref<8x8xf32, #tpu.memory_space<vmem>>, vector<8x8xf32>,
    %c0_103 = arith.constant 0 : index
    %c0_104 = arith.constant 0 : index
    %255 = vector.load %arg31[%c0_103, %c0_104] : memref<8x8xf32, #tpu.memory_space<vmem>>, vector<8x8xf32>
    tpu.vector_store %arg31[%c0_103, %c0_104], %253 {strides = array<i32>} : memref<8x8xf32, #tpu.memory_space<vmem>>, vector<8x8xf32>,
    %c0_105 = arith.constant 0 : index
    %c0_106 = arith.constant 0 : index
    %256 = vector.load %arg21[%c0_105, %c0_106] : memref<1x8xf32, #tpu.memory_space<vmem>>, vector<1x8xf32>
    %c0_107 = arith.constant 0 : index
    %c0_108 = arith.constant 0 : index
    %257 = vector.load %arg22[%c0_107, %c0_108] : memref<1x8xf32, #tpu.memory_space<vmem>>, vector<1x8xf32>
    %c0_109 = arith.constant 0 : index
    %c0_110 = arith.constant 0 : index
    %258 = vector.load %arg23[%c0_109, %c0_110] : memref<5x8xf32, #tpu.memory_space<vmem>>, vector<5x8xf32>
    %c0_111 = arith.constant 0 : index
    %c0_112 = arith.constant 0 : index
    %259 = vector.load %arg24[%c0_111, %c0_112] : memref<5x8xf32, #tpu.memory_space<vmem>>, vector<5x8xf32>
    %260 = math.tanh %253 : vector<8x8xf32>
    %261 = vector.broadcast %256 : vector<1x8xf32> to vector<8x8xf32>
    %262 = arith.mulf %260, %261 : vector<8x8xf32>
    %263 = math.exp %262 : vector<8x8xf32>
    %cst_113 = arith.constant 0.000000e+00 : f32
    %264 = vector.broadcast %cst_113 : f32 to vector<8x8xf32>
    %265 = arith.subf %264, %262 : vector<8x8xf32>
    %266 = math.exp %265 : vector<8x8xf32>
    %267 = vector.broadcast %257 : vector<1x8xf32> to vector<8x8xf32>
    %268 = arith.mulf %260, %267 : vector<8x8xf32>
    %269 = vector.extract_strided_slice %258 {offsets = [0, 0], sizes = [1, 8], strides = [1, 1]} : vector<5x8xf32> to vector<1x8xf32>
    %270 = vector.broadcast %269 : vector<1x8xf32> to vector<8x8xf32>
    %271 = arith.mulf %266, %270 : vector<8x8xf32>
    %272 = arith.addf %268, %271 : vector<8x8xf32>
    %273 = vector.extract_strided_slice %258 {offsets = [1, 0], sizes = [1, 8], strides = [1, 1]} : vector<5x8xf32> to vector<1x8xf32>
    %274 = vector.broadcast %273 : vector<1x8xf32> to vector<8x8xf32>
    %275 = arith.mulf %266, %274 : vector<8x8xf32>
    %276 = arith.addf %272, %275 : vector<8x8xf32>
    %277 = vector.extract_strided_slice %258 {offsets = [2, 0], sizes = [1, 8], strides = [1, 1]} : vector<5x8xf32> to vector<1x8xf32>
    %278 = vector.extract_strided_slice %259 {offsets = [2, 0], sizes = [1, 8], strides = [1, 1]} : vector<5x8xf32> to vector<1x8xf32>
    %cst_114 = arith.constant 0.000000e+00 : f32
    %279 = vector.broadcast %cst_114 : f32 to vector<8x8xf32>
    %280 = arith.cmpf oge, %260, %279 : vector<8x8xf32>
    %281 = vector.broadcast %277 : vector<1x8xf32> to vector<8x8xf32>
    %282 = arith.mulf %266, %281 : vector<8x8xf32>
    %283 = vector.broadcast %278 : vector<1x8xf32> to vector<8x8xf32>
    %284 = arith.mulf %263, %283 : vector<8x8xf32>
    %285 = arith.select %280, %282, %284 : vector<8x8xi1>, vector<8x8xf32>
    %286 = arith.addf %276, %285 : vector<8x8xf32>
    %287 = vector.extract_strided_slice %259 {offsets = [3, 0], sizes = [1, 8], strides = [1, 1]} : vector<5x8xf32> to vector<1x8xf32>
    %288 = vector.broadcast %287 : vector<1x8xf32> to vector<8x8xf32>
    %289 = arith.mulf %263, %288 : vector<8x8xf32>
    %290 = arith.addf %286, %289 : vector<8x8xf32>
    %291 = vector.extract_strided_slice %259 {offsets = [4, 0], sizes = [1, 8], strides = [1, 1]} : vector<5x8xf32> to vector<1x8xf32>
    %292 = vector.broadcast %291 : vector<1x8xf32> to vector<8x8xf32>
    %293 = arith.mulf %263, %292 : vector<8x8xf32>
    %294 = arith.addf %290, %293 : vector<8x8xf32>
    %cst_115 = arith.constant dense<0.000000e+00> : vector<8xf32>
    %295 = vector.multi_reduction <add>, %294, %cst_115 [1] : vector<8x8xf32> to vector<8xf32>
    %296 = vector.shape_cast %295 : vector<8xf32> to vector<8x1xf32>
    %297 = math.tanh %296 : vector<8x1xf32>
    %c0_116 = arith.constant 0 : index
    %c0_117 = arith.constant 0 : index
    %298 = vector.load %arg32[%c0_116, %c0_117] : memref<8x1xf32, #tpu.memory_space<vmem>>, vector<8x1xf32>
    tpu.vector_store %arg32[%c0_116, %c0_117], %296 {strides = array<i32>} : memref<8x1xf32, #tpu.memory_space<vmem>>, vector<8x1xf32>,
    %c0_118 = arith.constant 0 : index
    %c0_119 = arith.constant 0 : index
    %299 = vector.load %arg33[%c0_118, %c0_119] : memref<8x1xf32, #tpu.memory_space<vmem>>, vector<8x1xf32>
    tpu.vector_store %arg33[%c0_118, %c0_119], %297 {strides = array<i32>} : memref<8x1xf32, #tpu.memory_space<vmem>>, vector<8x1xf32>,
    return
  }
  func.func @transform_0(%arg0: i32) -> (i32, i32) {
    %c0_i32 = arith.constant 0 : i32
    %c0_i32_0 = arith.constant 0 : i32
    return %arg0, %c0_i32 : i32, i32
  }
  func.func @transform_1(%arg0: i32) -> (i32, i32) {
    %c0_i32 = arith.constant 0 : i32
    %c0_i32_0 = arith.constant 0 : i32
    %c0_i32_1 = arith.constant 0 : i32
    return %c0_i32, %c0_i32_0 : i32, i32
  }
  func.func @transform_2(%arg0: i32) -> (i32, i32) {
    %c0_i32 = arith.constant 0 : i32
    %c0_i32_0 = arith.constant 0 : i32
    %c0_i32_1 = arith.constant 0 : i32
    return %c0_i32, %c0_i32_0 : i32, i32
  }
  func.func @transform_3(%arg0: i32) -> (i32, i32) {
    %c0_i32 = arith.constant 0 : i32
    %c0_i32_0 = arith.constant 0 : i32
    %c0_i32_1 = arith.constant 0 : i32
    return %c0_i32, %c0_i32_0 : i32, i32
  }
  func.func @transform_4(%arg0: i32) -> (i32, i32) {
    %c0_i32 = arith.constant 0 : i32
    %c0_i32_0 = arith.constant 0 : i32
    %c0_i32_1 = arith.constant 0 : i32
    return %c0_i32, %c0_i32_0 : i32, i32
  }
  func.func @transform_5(%arg0: i32) -> (i32, i32) {
    %c0_i32 = arith.constant 0 : i32
    %c0_i32_0 = arith.constant 0 : i32
    %c0_i32_1 = arith.constant 0 : i32
    return %c0_i32, %c0_i32_0 : i32, i32
  }
  func.func @transform_6(%arg0: i32) -> (i32, i32) {
    %c0_i32 = arith.constant 0 : i32
    %c0_i32_0 = arith.constant 0 : i32
    %c0_i32_1 = arith.constant 0 : i32
    return %c0_i32, %c0_i32_0 : i32, i32
  }
  func.func @transform_7(%arg0: i32) -> (i32, i32) {
    %c0_i32 = arith.constant 0 : i32
    %c0_i32_0 = arith.constant 0 : i32
    %c0_i32_1 = arith.constant 0 : i32
    return %c0_i32, %c0_i32_0 : i32, i32
  }
  func.func @transform_8(%arg0: i32) -> (i32, i32) {
    %c0_i32 = arith.constant 0 : i32
    %c0_i32_0 = arith.constant 0 : i32
    %c0_i32_1 = arith.constant 0 : i32
    return %c0_i32, %c0_i32_0 : i32, i32
  }
  func.func @transform_9(%arg0: i32) -> (i32, i32) {
    %c0_i32 = arith.constant 0 : i32
    %c0_i32_0 = arith.constant 0 : i32
    %c0_i32_1 = arith.constant 0 : i32
    return %c0_i32, %c0_i32_0 : i32, i32
  }
  func.func @transform_10(%arg0: i32) -> (i32, i32) {
    %c0_i32 = arith.constant 0 : i32
    %c0_i32_0 = arith.constant 0 : i32
    %c0_i32_1 = arith.constant 0 : i32
    return %c0_i32, %c0_i32_0 : i32, i32
  }
  func.func @transform_11(%arg0: i32) -> (i32, i32) {
    %c0_i32 = arith.constant 0 : i32
    %c0_i32_0 = arith.constant 0 : i32
    %c0_i32_1 = arith.constant 0 : i32
    return %c0_i32, %c0_i32_0 : i32, i32
  }
  func.func @transform_12(%arg0: i32) -> (i32, i32) {
    %c0_i32 = arith.constant 0 : i32
    %c0_i32_0 = arith.constant 0 : i32
    %c0_i32_1 = arith.constant 0 : i32
    return %c0_i32, %c0_i32_0 : i32, i32
  }
  func.func @transform_13(%arg0: i32) -> (i32, i32) {
    %c0_i32 = arith.constant 0 : i32
    %c0_i32_0 = arith.constant 0 : i32
    %c0_i32_1 = arith.constant 0 : i32
    return %c0_i32, %c0_i32_0 : i32, i32
  }
  func.func @transform_14(%arg0: i32) -> (i32, i32) {
    %c0_i32 = arith.constant 0 : i32
    %c0_i32_0 = arith.constant 0 : i32
    %c0_i32_1 = arith.constant 0 : i32
    return %c0_i32, %c0_i32_0 : i32, i32
  }
  func.func @transform_15(%arg0: i32) -> (i32, i32) {
    %c0_i32 = arith.constant 0 : i32
    %c0_i32_0 = arith.constant 0 : i32
    %c0_i32_1 = arith.constant 0 : i32
    return %c0_i32, %c0_i32_0 : i32, i32
  }
  func.func @transform_16(%arg0: i32) -> (i32, i32) {
    %c0_i32 = arith.constant 0 : i32
    %c0_i32_0 = arith.constant 0 : i32
    %c0_i32_1 = arith.constant 0 : i32
    return %c0_i32, %c0_i32_0 : i32, i32
  }
  func.func @transform_17(%arg0: i32) -> (i32, i32) {
    %c0_i32 = arith.constant 0 : i32
    %c0_i32_0 = arith.constant 0 : i32
    %c0_i32_1 = arith.constant 0 : i32
    return %c0_i32, %c0_i32_0 : i32, i32
  }
  func.func @transform_18(%arg0: i32) -> (i32, i32) {
    %c0_i32 = arith.constant 0 : i32
    %c0_i32_0 = arith.constant 0 : i32
    %c0_i32_1 = arith.constant 0 : i32
    return %c0_i32, %c0_i32_0 : i32, i32
  }
  func.func @transform_19(%arg0: i32) -> (i32, i32) {
    %c0_i32 = arith.constant 0 : i32
    %c0_i32_0 = arith.constant 0 : i32
    %c0_i32_1 = arith.constant 0 : i32
    return %c0_i32, %c0_i32_0 : i32, i32
  }
  func.func @transform_20(%arg0: i32) -> (i32, i32) {
    %c0_i32 = arith.constant 0 : i32
    %c0_i32_0 = arith.constant 0 : i32
    %c0_i32_1 = arith.constant 0 : i32
    return %c0_i32, %c0_i32_0 : i32, i32
  }
  func.func @transform_21(%arg0: i32) -> (i32, i32) {
    %c0_i32 = arith.constant 0 : i32
    %c0_i32_0 = arith.constant 0 : i32
    %c0_i32_1 = arith.constant 0 : i32
    return %c0_i32, %c0_i32_0 : i32, i32
  }
  func.func @transform_22(%arg0: i32) -> (i32, i32) {
    %c0_i32 = arith.constant 0 : i32
    %c0_i32_0 = arith.constant 0 : i32
    %c0_i32_1 = arith.constant 0 : i32
    return %c0_i32, %c0_i32_0 : i32, i32
  }
  func.func @transform_23(%arg0: i32) -> (i32, i32) {
    %c0_i32 = arith.constant 0 : i32
    %c0_i32_0 = arith.constant 0 : i32
    %c0_i32_1 = arith.constant 0 : i32
    return %c0_i32, %c0_i32_0 : i32, i32
  }
  func.func @transform_24(%arg0: i32) -> (i32, i32) {
    %c0_i32 = arith.constant 0 : i32
    %c0_i32_0 = arith.constant 0 : i32
    %c0_i32_1 = arith.constant 0 : i32
    return %c0_i32, %c0_i32_0 : i32, i32
  }
  func.func @transform_25(%arg0: i32) -> (i32, i32) {
    %c0_i32 = arith.constant 0 : i32
    %c0_i32_0 = arith.constant 0 : i32
    return %arg0, %c0_i32 : i32, i32
  }
  func.func @transform_26(%arg0: i32) -> (i32, i32) {
    %c0_i32 = arith.constant 0 : i32
    %c0_i32_0 = arith.constant 0 : i32
    return %arg0, %c0_i32 : i32, i32
  }
  func.func @transform_27(%arg0: i32) -> (i32, i32) {
    %c0_i32 = arith.constant 0 : i32
    %c0_i32_0 = arith.constant 0 : i32
    return %arg0, %c0_i32 : i32, i32
  }
  func.func @transform_28(%arg0: i32) -> (i32, i32) {
    %c0_i32 = arith.constant 0 : i32
    %c0_i32_0 = arith.constant 0 : i32
    return %arg0, %c0_i32 : i32, i32
  }
  func.func @transform_29(%arg0: i32) -> (i32, i32) {
    %c0_i32 = arith.constant 0 : i32
    %c0_i32_0 = arith.constant 0 : i32
    return %arg0, %c0_i32 : i32, i32
  }
  func.func @transform_30(%arg0: i32) -> (i32, i32) {
    %c0_i32 = arith.constant 0 : i32
    %c0_i32_0 = arith.constant 0 : i32
    return %arg0, %c0_i32 : i32, i32
  }
  func.func @transform_31(%arg0: i32) -> (i32, i32) {
    %c0_i32 = arith.constant 0 : i32
    %c0_i32_0 = arith.constant 0 : i32
    return %arg0, %c0_i32 : i32, i32
  }
  func.func @transform_32(%arg0: i32) -> (i32, i32) {
    %c0_i32 = arith.constant 0 : i32
    %c0_i32_0 = arith.constant 0 : i32
    return %arg0, %c0_i32 : i32, i32
  }
}

</mosaic_0001>

<llo_original>
// kernel: tpu_custom_call.1
$region0: #{tpu_custom_call.1}
  #allocation0 [shape = 'u32[]', space=smem, size = 0x4, offset = 0x4, fixed_abs, tag = 'smem constant byte address 0x4 - core index']
  #allocation1 [shape = 'u32[144,128]{1,0:T(1,128)}', space=vmem, size = 0x12000, scoped, tag = 'internal scratch']
  %s0 = inlined_call_operand.smem [shape: u32[33], index: -1, kind: input, shape index: {}]
  %s1 = sld [smem:[%s0]]
  %s2 = scalar_lea.smem %s0, 1
  %s3 = sld [smem:[%s2]]
  %s4 = scalar_lea.smem %s0, 2
  %s5 = sld [smem:[%s4]]
  %s6 = scalar_lea.smem %s0, 3
  %s7 = sld [smem:[%s6]]
  %s8 = scalar_lea.smem %s0, 4
  %s9 = sld [smem:[%s8]]
  %s10 = scalar_lea.smem %s0, 5
  %s11 = sld [smem:[%s10]]
  %s12 = scalar_lea.smem %s0, 6
  %s13 = sld [smem:[%s12]]
  %s14 = scalar_lea.smem %s0, 7
  %s15 = sld [smem:[%s14]]
  %s16 = scalar_lea.smem %s0, 8
  %s17 = sld [smem:[%s16]]
  %s18 = scalar_lea.smem %s0, 9
  %s19 = sld [smem:[%s18]]
  %s20 = scalar_lea.smem %s0, 10
  %s21 = sld [smem:[%s20]]
  %s22 = scalar_lea.smem %s0, 11
  %s23 = sld [smem:[%s22]]
  %s24 = scalar_lea.smem %s0, 12
  %s25 = sld [smem:[%s24]]
  %s26 = scalar_lea.smem %s0, 13
  %s27 = sld [smem:[%s26]]
  %s28 = scalar_lea.smem %s0, 14
  %s29 = sld [smem:[%s28]]
  %s30 = scalar_lea.smem %s0, 15
  %s31 = sld [smem:[%s30]]
  %s32 = scalar_lea.smem %s0, 16
  %s33 = sld [smem:[%s32]]
  %s34 = scalar_lea.smem %s0, 17
  %s35 = sld [smem:[%s34]]
  %s36 = scalar_lea.smem %s0, 18
  %s37 = sld [smem:[%s36]]
  %s38 = scalar_lea.smem %s0, 19
  %s39 = sld [smem:[%s38]]
  %s40 = scalar_lea.smem %s0, 20
  %s41 = sld [smem:[%s40]]
  %s42 = scalar_lea.smem %s0, 21
  %s43 = sld [smem:[%s42]]
  %s44 = scalar_lea.smem %s0, 22
  %s45 = sld [smem:[%s44]]
  %s46 = scalar_lea.smem %s0, 23
  %s47 = sld [smem:[%s46]]
  %s48 = scalar_lea.smem %s0, 24
  %s49 = sld [smem:[%s48]]
  %s50 = scalar_lea.smem %s0, 25
  %s51 = sld [smem:[%s50]]
  %s52 = scalar_lea.smem %s0, 26
  %s53 = sld [smem:[%s52]]
  %s54 = scalar_lea.smem %s0, 27
  %s55 = sld [smem:[%s54]]
  %s56 = scalar_lea.smem %s0, 28
  %s57 = sld [smem:[%s56]]
  %s58 = scalar_lea.smem %s0, 29
  %s59 = sld [smem:[%s58]]
  %s60 = scalar_lea.smem %s0, 30
  %s61 = sld [smem:[%s60]]
  %s62 = scalar_lea.smem %s0, 31
  %s63 = sld [smem:[%s62]]
  %s64 = scalar_lea.smem %s0, 32
  %s65 = sld [smem:[%s64]]
  %66 = xla_tuple %s51, %s53, %s55, %s57, %s59, %s61, %s63, %s65
  %s67 = sld [smem:[#allocation0]]
  $region166: #{tpu_custom_call.1} parent=0
    _
  %s69 = ssub.s32 1, %s67
  %s70 = scalar_select 0, %s69, %s67
  $region1: #{tpu_custom_call.1} parent=0
    #allocation2 [shape = 'u8[4096]{0}', space=vmem, size = 0x1000, scoped, tag = 'output window, operand 0, single buffered']
    #allocation3 [shape = 's32[1]{0}', space=sflag, size = 0x4, scoped, tag = 'scoped memory for tpu_custom_call.1']
    #allocation4 [shape = 'u8[4096]{0}', space=vmem, size = 0x1000, scoped, tag = 'output window, operand 1, single buffered']
    #allocation5 [shape = 's32[1]{0}', space=sflag, size = 0x4, scoped, tag = 'scoped memory for tpu_custom_call.1']
    #allocation6 [shape = 'u8[4096]{0}', space=vmem, size = 0x1000, scoped, tag = 'output window, operand 2, single buffered']
    #allocation7 [shape = 'u8[4096]{0}', space=vmem, size = 0x1000, scoped, tag = 'output window, operand 3, single buffered']
    #allocation8 [shape = 's32[1]{0}', space=sflag, size = 0x4, scoped, tag = 'scoped memory for tpu_custom_call.1']
    #allocation9 [shape = 'u8[4096]{0}', space=vmem, size = 0x1000, scoped, tag = 'output window, operand 4, single buffered']
    #allocation10 [shape = 'u8[4096]{0}', space=vmem, size = 0x1000, scoped, tag = 'output window, operand 5, single buffered']
    #allocation11 [shape = 's32[1]{0}', space=sflag, size = 0x4, scoped, tag = 'scoped memory for tpu_custom_call.1']
    %71 = vsyncpa [#allocation3], 0
    %72 = vsyncpa [#allocation5], 0
    %73 = vsyncpa [#allocation8], 0
    %74 = vsyncpa [#allocation11], 0
    // Predicated region
    $region2: #{tpu_custom_call.1} parent=1 // pred_check
      _
    $region3: #{tpu_custom_call.1} parent=1 // pred_check_branch
      %76 = sbr.rel (0) target = $region5
    $region4: #{tpu_custom_call.1} parent=1 // pred_region
      _
    $region5: #{tpu_custom_call.1} parent=1 // pred_fallthru
      _
    // Predicated region
    $region6: #{tpu_custom_call.1} parent=1 // pred_check
      _
    $region7: #{tpu_custom_call.1} parent=1 // pred_check_branch
      %78 = sbr.rel (0) target = $region9
    $region8: #{tpu_custom_call.1} parent=1 // pred_region
      _
    $region9: #{tpu_custom_call.1} parent=1 // pred_fallthru
      _
    // Predicated region
    $region10: #{tpu_custom_call.1} parent=1 // pred_check
      _
    $region11: #{tpu_custom_call.1} parent=1 // pred_check_branch
      %80 = sbr.rel (0) target = $region13
    $region12: #{tpu_custom_call.1} parent=1 // pred_region
      _
    $region13: #{tpu_custom_call.1} parent=1 // pred_fallthru
      _
    // Predicated region
    $region14: #{tpu_custom_call.1} parent=1 // pred_check
      _
    $region15: #{tpu_custom_call.1} parent=1 // pred_check_branch
      %82 = sbr.rel (0) target = $region17
    $region16: #{tpu_custom_call.1} parent=1 // pred_region
      _
    $region17: #{tpu_custom_call.1} parent=1 // pred_fallthru
      _
    // Predicated region
    $region18: #{tpu_custom_call.1} parent=1 // pred_check
      _
    $region19: #{tpu_custom_call.1} parent=1 // pred_check_branch
      %84 = sbr.rel (0) target = $region21
    $region20: #{tpu_custom_call.1} parent=1 // pred_region
      _
    $region21: #{tpu_custom_call.1} parent=1 // pred_fallthru
      _
    // Predicated region
    $region22: #{tpu_custom_call.1} parent=1 // pred_check
      _
    $region23: #{tpu_custom_call.1} parent=1 // pred_check_branch
      %86 = sbr.rel (0) target = $region25
    $region24: #{tpu_custom_call.1} parent=1 // pred_region
      _
    $region25: #{tpu_custom_call.1} parent=1 // pred_fallthru
      _
    // Predicated region
    $region26: #{tpu_custom_call.1} parent=1 // pred_check
      _
    $region27: #{tpu_custom_call.1} parent=1 // pred_check_branch
      %88 = sbr.rel (0) target = $region29
    $region28: #{tpu_custom_call.1} parent=1 // pred_region
      _
    $region29: #{tpu_custom_call.1} parent=1 // pred_fallthru
      _
    // Predicated region
    $region30: #{tpu_custom_call.1} parent=1 // pred_check
      _
    $region31: #{tpu_custom_call.1} parent=1 // pred_check_branch
      %90 = sbr.rel (0) target = $region33
    $region32: #{tpu_custom_call.1} parent=1 // pred_region
      _
    $region33: #{tpu_custom_call.1} parent=1 // pred_fallthru
      _
    // Predicated region
    $region34: #{tpu_custom_call.1} parent=1 // pred_check
      _
    $region35: #{tpu_custom_call.1} parent=1 // pred_check_branch
      %92 = sbr.rel (0) target = $region37
    $region36: #{tpu_custom_call.1} parent=1 // pred_region
      _
    $region37: #{tpu_custom_call.1} parent=1 // pred_fallthru
      _
    // Predicated region
    $region38: #{tpu_custom_call.1} parent=1 // pred_check
      _
    $region39: #{tpu_custom_call.1} parent=1 // pred_check_branch
      %94 = sbr.rel (0) target = $region41
    $region40: #{tpu_custom_call.1} parent=1 // pred_region
      _
    $region41: #{tpu_custom_call.1} parent=1 // pred_fallthru
      _
    // Predicated region
    $region42: #{tpu_custom_call.1} parent=1 // pred_check
      _
    $region43: #{tpu_custom_call.1} parent=1 // pred_check_branch
      %96 = sbr.rel (0) target = $region45
    $region44: #{tpu_custom_call.1} parent=1 // pred_region
      _
    $region45: #{tpu_custom_call.1} parent=1 // pred_fallthru
      _
    // Predicated region
    $region46: #{tpu_custom_call.1} parent=1 // pred_check
      _
    $region47: #{tpu_custom_call.1} parent=1 // pred_check_branch
      %98 = sbr.rel (0) target = $region49
    $region48: #{tpu_custom_call.1} parent=1 // pred_region
      _
    $region49: #{tpu_custom_call.1} parent=1 // pred_fallthru
      _
    // Predicated region
    $region50: #{tpu_custom_call.1} parent=1 // pred_check
      _
    $region51: #{tpu_custom_call.1} parent=1 // pred_check_branch
      %100 = sbr.rel (0) target = $region53
    $region52: #{tpu_custom_call.1} parent=1 // pred_region
      _
    $region53: #{tpu_custom_call.1} parent=1 // pred_fallthru
      _
    // Predicated region
    $region54: #{tpu_custom_call.1} parent=1 // pred_check
      _
    $region55: #{tpu_custom_call.1} parent=1 // pred_check_branch
      %102 = sbr.rel (0) target = $region57
    $region56: #{tpu_custom_call.1} parent=1 // pred_region
      _
    $region57: #{tpu_custom_call.1} parent=1 // pred_fallthru
      _
    // Predicated region
    $region58: #{tpu_custom_call.1} parent=1 // pred_check
      _
    $region59: #{tpu_custom_call.1} parent=1 // pred_check_branch
      %104 = sbr.rel (0) target = $region61
    $region60: #{tpu_custom_call.1} parent=1 // pred_region
      _
    $region61: #{tpu_custom_call.1} parent=1 // pred_fallthru
      _
    // Predicated region
    $region62: #{tpu_custom_call.1} parent=1 // pred_check
      _
    $region63: #{tpu_custom_call.1} parent=1 // pred_check_branch
      %106 = sbr.rel (0) target = $region65
    $region64: #{tpu_custom_call.1} parent=1 // pred_region
      _
    $region65: #{tpu_custom_call.1} parent=1 // pred_fallthru
      _
    // Predicated region
    $region66: #{tpu_custom_call.1} parent=1 // pred_check
      _
    $region67: #{tpu_custom_call.1} parent=1 // pred_check_branch
      %108 = sbr.rel (0) target = $region69
    $region68: #{tpu_custom_call.1} parent=1 // pred_region
      _
    $region69: #{tpu_custom_call.1} parent=1 // pred_fallthru
      _
    // Predicated region
    $region70: #{tpu_custom_call.1} parent=1 // pred_check
      _
    $region71: #{tpu_custom_call.1} parent=1 // pred_check_branch
      %110 = sbr.rel (0) target = $region73
    $region72: #{tpu_custom_call.1} parent=1 // pred_region
      _
    $region73: #{tpu_custom_call.1} parent=1 // pred_fallthru
      _
    // Predicated region
    $region74: #{tpu_custom_call.1} parent=1 // pred_check
      _
    $region75: #{tpu_custom_call.1} parent=1 // pred_check_branch
      %112 = sbr.rel (0) target = $region77
    $region76: #{tpu_custom_call.1} parent=1 // pred_region
      _
    $region77: #{tpu_custom_call.1} parent=1 // pred_fallthru
      _
    // Predicated region
    $region78: #{tpu_custom_call.1} parent=1 // pred_check
      _
    $region79: #{tpu_custom_call.1} parent=1 // pred_check_branch
      %114 = sbr.rel (0) target = $region81
    $region80: #{tpu_custom_call.1} parent=1 // pred_region
      _
    $region81: #{tpu_custom_call.1} parent=1 // pred_fallthru
      _
    // Predicated region
    $region82: #{tpu_custom_call.1} parent=1 // pred_check
      _
    $region83: #{tpu_custom_call.1} parent=1 // pred_check_branch
      %116 = sbr.rel (0) target = $region85
    $region84: #{tpu_custom_call.1} parent=1 // pred_region
      _
    $region85: #{tpu_custom_call.1} parent=1 // pred_fallthru
      _
    // Predicated region
    $region86: #{tpu_custom_call.1} parent=1 // pred_check
      _
    $region87: #{tpu_custom_call.1} parent=1 // pred_check_branch
      %118 = sbr.rel (0) target = $region89
    $region88: #{tpu_custom_call.1} parent=1 // pred_region
      _
    $region89: #{tpu_custom_call.1} parent=1 // pred_fallthru
      _
    // Predicated region
    $region90: #{tpu_custom_call.1} parent=1 // pred_check
      _
    $region91: #{tpu_custom_call.1} parent=1 // pred_check_branch
      %120 = sbr.rel (0) target = $region93
    $region92: #{tpu_custom_call.1} parent=1 // pred_region
      _
    $region93: #{tpu_custom_call.1} parent=1 // pred_fallthru
      _
    // Predicated region
    $region94: #{tpu_custom_call.1} parent=1 // pred_check
      _
    $region95: #{tpu_custom_call.1} parent=1 // pred_check_branch
      %122 = sbr.rel (0) target = $region97
    $region96: #{tpu_custom_call.1} parent=1 // pred_region
      _
    $region97: #{tpu_custom_call.1} parent=1 // pred_fallthru
      _
    // Predicated region
    $region98: #{tpu_custom_call.1} parent=1 // pred_check
      _
    $region99: #{tpu_custom_call.1} parent=1 // pred_check_branch
      %124 = sbr.rel (0) target = $region101
    $region100: #{tpu_custom_call.1} parent=1 // pred_region
      _
    $region101: #{tpu_custom_call.1} parent=1 // pred_fallthru
      _
    %v125 = vld [vmem:[%s1] sm:$0xff]
    %v126 = vld [vmem:[%s3] sm:$0xff]
    %v127 = vld [vmem:[%s3 + $0x8] sm:$0xff]
    %v128 = vld [vmem:[%s5] sm:$0x3]
    %v129 = vld [vmem:[%s7] sm:$0x3]
    %v130 = vld [vmem:[%s9] sm:$0x1f]
    %v131 = vld [vmem:[%s9 + $0x8] sm:$0x1f]
    %v132 = vld [vmem:[%s11] sm:$0x1f]
    %v133 = vld [vmem:[%s11 + $0x8] sm:$0x1f]
    %v134 = vtanh.pop %v125
    %vm135 = vcmask 64512
    %v137 = vsel %vm135, %v134, 0
    %v139 = vand.u32 %v127, 4294901760
    %140 = vmatprep.subr.mxu0 %v139
    %v141 = vand.u32 %v126, 4294901760
    %142 = vmatpush1.msra.mxu0 %v141
    %143 = vmatprep.subr.mxu0 0.0
    %144 = vmatpush1.msra.mxu0 0.0
    %145 = vmatprep.subr.mxu0 0.0
    %146 = vmatpush1.msra.mxu0 0.0
    %147 = vmatprep.subr.mxu0 0.0
    %148 = vmatpush1.msra.mxu0 0.0
    %149 = vmatprep.subr.mxu0 0.0
    %150 = vmatpush1.msra.mxu0 0.0
    %151 = vmatprep.subr.mxu0 0.0
    %152 = vmatpush1.msra.mxu0 0.0
    %153 = vmatprep.subr.mxu0 0.0
    %154 = vmatpush1.msra.mxu0 0.0
    %155 = vmatprep.subr.mxu0 0.0
    %156 = vmatpush1.msra.mxu0 0.0
    %157 = vmatprep.subr.mxu0 0.0
    %158 = vmatpush1.msra.mxu0 0.0
    %159 = vmatprep.subr.mxu0 0.0
    %160 = vmatpush1.msra.mxu0 0.0
    %161 = vmatprep.subr.mxu0 0.0
    %162 = vmatpush1.msra.mxu0 0.0
    %163 = vmatprep.subr.mxu0 0.0
    %164 = vmatpush1.msra.mxu0 0.0
    %165 = vmatprep.subr.mxu0 0.0
    %166 = vmatpush1.msra.mxu0 0.0
    %167 = vmatprep.subr.mxu0 0.0
    %168 = vmatpush1.msra.mxu0 0.0
    %169 = vmatprep.subr.mxu0 0.0
    %170 = vmatpush1.msra.mxu0 0.0
    %171 = vmatprep.subr.mxu0 0.0
    %172 = vmatpush1.msra.mxu0 0.0
    %173 = vmatprep.subr.mxu0 0.0
    %174 = vmatpush1.msra.mxu0 0.0
    %175 = vmatprep.subr.mxu0 0.0
    %176 = vmatpush1.msra.mxu0 0.0
    %177 = vmatprep.subr.mxu0 0.0
    %178 = vmatpush1.msra.mxu0 0.0
    %179 = vmatprep.subr.mxu0 0.0
    %180 = vmatpush1.msra.mxu0 0.0
    %181 = vmatprep.subr.mxu0 0.0
    %182 = vmatpush1.msra.mxu0 0.0
    %183 = vmatprep.subr.mxu0 0.0
    %184 = vmatpush1.msra.mxu0 0.0
    %185 = vmatprep.subr.mxu0 0.0
    %186 = vmatpush1.msra.mxu0 0.0
    %187 = vmatprep.subr.mxu0 0.0
    %188 = vmatpush1.msra.mxu0 0.0
    %189 = vmatprep.subr.mxu0 0.0
    %190 = vmatpush1.msra.mxu0 0.0
    %191 = vmatprep.subr.mxu0 0.0
    %192 = vmatpush1.msra.mxu0 0.0
    %193 = vmatprep.subr.mxu0 0.0
    %194 = vmatpush1.msra.mxu0 0.0
    %195 = vmatprep.subr.mxu0 0.0
    %196 = vmatpush1.msra.mxu0 0.0
    %197 = vmatprep.subr.mxu0 0.0
    %198 = vmatpush1.msra.mxu0 0.0
    %199 = vmatprep.subr.mxu0 0.0
    %200 = vmatpush1.msra.mxu0 0.0
    %201 = vmatprep.subr.mxu0 0.0
    %202 = vmatpush1.msra.mxu0 0.0
    %203 = vmatprep.subr.mxu0 0.0
    %204 = vmatpush1.msra.mxu0 0.0
    %205 = vmatprep.mubr.f32.mxu0 0.0
    %v206 = vand.u32 %v137, 4294901760
    %v207 = vsub.f32 %v137, %v206
    %v208 = vand.u32 %v207, 4294901760
    %v209 = vsub.f32 %v207, %v208
    %v210 = vand.u32 %v209, 4294901760
    %211 = vmatmul.mubr.f32.gmra.mrb[0].mxu0 %v210
    %v212 = vpop.f32.mrb[0].mxu0
    %v213 = vadd.f32 0.0, %v212
    %v214 = vpop.f32.mrb[0].mxu0
    %v215 = vadd.f32 0.0, %v214
    %216 = vdwg.mxu0
    %v217 = vand.u32 %v127, 4294901760
    %v218 = vsub.f32 %v127, %v217
    %v219 = vand.u32 %v218, 4294901760
    %v220 = vsub.f32 %v218, %v219
    %v221 = vand.u32 %v220, 4294901760
    %222 = vmatprep.subr.mxu0 %v221
    %v223 = vand.u32 %v126, 4294901760
    %v224 = vsub.f32 %v126, %v223
    %v225 = vand.u32 %v224, 4294901760
    %v226 = vsub.f32 %v224, %v225
    %v227 = vand.u32 %v226, 4294901760
    %228 = vmatpush1.msra.mxu0 %v227
    %229 = vmatprep.subr.mxu0 0.0
    %230 = vmatpush1.msra.mxu0 0.0
    %231 = vmatprep.subr.mxu0 0.0
    %232 = vmatpush1.msra.mxu0 0.0
    %233 = vmatprep.subr.mxu0 0.0
    %234 = vmatpush1.msra.mxu0 0.0
    %235 = vmatprep.subr.mxu0 0.0
    %236 = vmatpush1.msra.mxu0 0.0
    %237 = vmatprep.subr.mxu0 0.0
    %238 = vmatpush1.msra.mxu0 0.0
    %239 = vmatprep.subr.mxu0 0.0
    %240 = vmatpush1.msra.mxu0 0.0
    %241 = vmatprep.subr.mxu0 0.0
    %242 = vmatpush1.msra.mxu0 0.0
    %243 = vmatprep.subr.mxu0 0.0
    %244 = vmatpush1.msra.mxu0 0.0
    %245 = vmatprep.subr.mxu0 0.0
    %246 = vmatpush1.msra.mxu0 0.0
    %247 = vmatprep.subr.mxu0 0.0
    %248 = vmatpush1.msra.mxu0 0.0
    %249 = vmatprep.subr.mxu0 0.0
    %250 = vmatpush1.msra.mxu0 0.0
    %251 = vmatprep.subr.mxu0 0.0
    %252 = vmatpush1.msra.mxu0 0.0
    %253 = vmatprep.subr.mxu0 0.0
    %254 = vmatpush1.msra.mxu0 0.0
    %255 = vmatprep.subr.mxu0 0.0
    %256 = vmatpush1.msra.mxu0 0.0
    %257 = vmatprep.subr.mxu0 0.0
    %258 = vmatpush1.msra.mxu0 0.0
    %259 = vmatprep.subr.mxu0 0.0
    %260 = vmatpush1.msra.mxu0 0.0
    %261 = vmatprep.subr.mxu0 0.0
    %262 = vmatpush1.msra.mxu0 0.0
    %263 = vmatprep.subr.mxu0 0.0
    %264 = vmatpush1.msra.mxu0 0.0
    %265 = vmatprep.subr.mxu0 0.0
    %266 = vmatpush1.msra.mxu0 0.0
    %267 = vmatprep.subr.mxu0 0.0
    %268 = vmatpush1.msra.mxu0 0.0
    %269 = vmatprep.subr.mxu0 0.0
    %270 = vmatpush1.msra.mxu0 0.0
    %271 = vmatprep.subr.mxu0 0.0
    %272 = vmatpush1.msra.mxu0 0.0
    %273 = vmatprep.subr.mxu0 0.0
    %274 = vmatpush1.msra.mxu0 0.0
    %275 = vmatprep.subr.mxu0 0.0
    %276 = vmatpush1.msra.mxu0 0.0
    %277 = vmatprep.subr.mxu0 0.0
    %278 = vmatpush1.msra.mxu0 0.0
    %279 = vmatprep.subr.mxu0 0.0
    %280 = vmatpush1.msra.mxu0 0.0
    %281 = vmatprep.subr.mxu0 0.0
    %282 = vmatpush1.msra.mxu0 0.0
    %283 = vmatprep.subr.mxu0 0.0
    %284 = vmatpush1.msra.mxu0 0.0
    %285 = vmatprep.subr.mxu0 0.0
    %286 = vmatpush1.msra.mxu0 0.0
    %287 = vmatprep.subr.mxu0 0.0
    %288 = vmatpush1.msra.mxu0 0.0
    %289 = vmatprep.subr.mxu0 0.0
    %290 = vmatpush1.msra.mxu0 0.0
    %291 = vmatprep.mubr.f32.mxu0 0.0
    %v292 = vand.u32 %v137, 4294901760
    %293 = vmatmul.mubr.f32.gmra.mrb[0].mxu0 %v292
    %v294 = vpop.f32.mrb[0].mxu0
    %v295 = vadd.f32 %v213, %v294
    %v296 = vpop.f32.mrb[0].mxu0
    %v297 = vadd.f32 %v215, %v296
    %298 = vdwg.mxu0
    %v299 = vand.u32 %v127, 4294901760
    %v300 = vsub.f32 %v127, %v299
    %301 = vmatprep.subr.mxu0 %v300
    %v302 = vand.u32 %v126, 4294901760
    %v303 = vsub.f32 %v126, %v302
    %304 = vmatpush1.msra.mxu0 %v303
    %305 = vmatprep.subr.mxu0 0.0
    %306 = vmatpush1.msra.mxu0 0.0
    %307 = vmatprep.subr.mxu0 0.0
    %308 = vmatpush1.msra.mxu0 0.0
    %309 = vmatprep.subr.mxu0 0.0
    %310 = vmatpush1.msra.mxu0 0.0
    %311 = vmatprep.subr.mxu0 0.0
    %312 = vmatpush1.msra.mxu0 0.0
    %313 = vmatprep.subr.mxu0 0.0
    %314 = vmatpush1.msra.mxu0 0.0
    %315 = vmatprep.subr.mxu0 0.0
    %316 = vmatpush1.msra.mxu0 0.0
    %317 = vmatprep.subr.mxu0 0.0
    %318 = vmatpush1.msra.mxu0 0.0
    %319 = vmatprep.subr.mxu0 0.0
    %320 = vmatpush1.msra.mxu0 0.0
    %321 = vmatprep.subr.mxu0 0.0
    %322 = vmatpush1.msra.mxu0 0.0
    %323 = vmatprep.subr.mxu0 0.0
    %324 = vmatpush1.msra.mxu0 0.0
    %325 = vmatprep.subr.mxu0 0.0
    %326 = vmatpush1.msra.mxu0 0.0
    %327 = vmatprep.subr.mxu0 0.0
    %328 = vmatpush1.msra.mxu0 0.0
    %329 = vmatprep.subr.mxu0 0.0
    %330 = vmatpush1.msra.mxu0 0.0
    %331 = vmatprep.subr.mxu0 0.0
    %332 = vmatpush1.msra.mxu0 0.0
    %333 = vmatprep.subr.mxu0 0.0
    %334 = vmatpush1.msra.mxu0 0.0
    %335 = vmatprep.subr.mxu0 0.0
    %336 = vmatpush1.msra.mxu0 0.0
    %337 = vmatprep.subr.mxu0 0.0
    %338 = vmatpush1.msra.mxu0 0.0
    %339 = vmatprep.subr.mxu0 0.0
    %340 = vmatpush1.msra.mxu0 0.0
    %341 = vmatprep.subr.mxu0 0.0
    %342 = vmatpush1.msra.mxu0 0.0
    %343 = vmatprep.subr.mxu0 0.0
    %344 = vmatpush1.msra.mxu0 0.0
    %345 = vmatprep.subr.mxu0 0.0
    %346 = vmatpush1.msra.mxu0 0.0
    %347 = vmatprep.subr.mxu0 0.0
    %348 = vmatpush1.msra.mxu0 0.0
    %349 = vmatprep.subr.mxu0 0.0
    %350 = vmatpush1.msra.mxu0 0.0
    %351 = vmatprep.subr.mxu0 0.0
    %352 = vmatpush1.msra.mxu0 0.0
    %353 = vmatprep.subr.mxu0 0.0
    %354 = vmatpush1.msra.mxu0 0.0
    %355 = vmatprep.subr.mxu0 0.0
    %356 = vmatpush1.msra.mxu0 0.0
    %357 = vmatprep.subr.mxu0 0.0
    %358 = vmatpush1.msra.mxu0 0.0
    %359 = vmatprep.subr.mxu0 0.0
    %360 = vmatpush1.msra.mxu0 0.0
    %361 = vmatprep.subr.mxu0 0.0
    %362 = vmatpush1.msra.mxu0 0.0
    %363 = vmatprep.subr.mxu0 0.0
    %364 = vmatpush1.msra.mxu0 0.0
    %365 = vmatprep.subr.mxu0 0.0
    %366 = vmatpush1.msra.mxu0 0.0
    %367 = vmatprep.mubr.f32.mxu0 0.0
    %v368 = vand.u32 %v137, 4294901760
    %v369 = vsub.f32 %v137, %v368
    %370 = vmatmul.mubr.f32.gmra.mrb[0].mxu0 %v369
    %v371 = vpop.f32.mrb[0].mxu0
    %v372 = vadd.f32 %v295, %v371
    %v373 = vpop.f32.mrb[0].mxu0
    %v374 = vadd.f32 %v297, %v373
    %375 = vdwg.mxu0
    %v376 = vand.u32 %v127, 4294901760
    %377 = vmatprep.subr.mxu0 %v376
    %v378 = vand.u32 %v126, 4294901760
    %379 = vmatpush1.msra.mxu0 %v378
    %380 = vmatprep.subr.mxu0 0.0
    %381 = vmatpush1.msra.mxu0 0.0
    %382 = vmatprep.subr.mxu0 0.0
    %383 = vmatpush1.msra.mxu0 0.0
    %384 = vmatprep.subr.mxu0 0.0
    %385 = vmatpush1.msra.mxu0 0.0
    %386 = vmatprep.subr.mxu0 0.0
    %387 = vmatpush1.msra.mxu0 0.0
    %388 = vmatprep.subr.mxu0 0.0
    %389 = vmatpush1.msra.mxu0 0.0
    %390 = vmatprep.subr.mxu0 0.0
    %391 = vmatpush1.msra.mxu0 0.0
    %392 = vmatprep.subr.mxu0 0.0
    %393 = vmatpush1.msra.mxu0 0.0
    %394 = vmatprep.subr.mxu0 0.0
    %395 = vmatpush1.msra.mxu0 0.0
    %396 = vmatprep.subr.mxu0 0.0
    %397 = vmatpush1.msra.mxu0 0.0
    %398 = vmatprep.subr.mxu0 0.0
    %399 = vmatpush1.msra.mxu0 0.0
    %400 = vmatprep.subr.mxu0 0.0
    %401 = vmatpush1.msra.mxu0 0.0
    %402 = vmatprep.subr.mxu0 0.0
    %403 = vmatpush1.msra.mxu0 0.0
    %404 = vmatprep.subr.mxu0 0.0
    %405 = vmatpush1.msra.mxu0 0.0
    %406 = vmatprep.subr.mxu0 0.0
    %407 = vmatpush1.msra.mxu0 0.0
    %408 = vmatprep.subr.mxu0 0.0
    %409 = vmatpush1.msra.mxu0 0.0
    %410 = vmatprep.subr.mxu0 0.0
    %411 = vmatpush1.msra.mxu0 0.0
    %412 = vmatprep.subr.mxu0 0.0
    %413 = vmatpush1.msra.mxu0 0.0
    %414 = vmatprep.subr.mxu0 0.0
    %415 = vmatpush1.msra.mxu0 0.0
    %416 = vmatprep.subr.mxu0 0.0
    %417 = vmatpush1.msra.mxu0 0.0
    %418 = vmatprep.subr.mxu0 0.0
    %419 = vmatpush1.msra.mxu0 0.0
    %420 = vmatprep.subr.mxu0 0.0
    %421 = vmatpush1.msra.mxu0 0.0
    %422 = vmatprep.subr.mxu0 0.0
    %423 = vmatpush1.msra.mxu0 0.0
    %424 = vmatprep.subr.mxu0 0.0
    %425 = vmatpush1.msra.mxu0 0.0
    %426 = vmatprep.subr.mxu0 0.0
    %427 = vmatpush1.msra.mxu0 0.0
    %428 = vmatprep.subr.mxu0 0.0
    %429 = vmatpush1.msra.mxu0 0.0
    %430 = vmatprep.subr.mxu0 0.0
    %431 = vmatpush1.msra.mxu0 0.0
    %432 = vmatprep.subr.mxu0 0.0
    %433 = vmatpush1.msra.mxu0 0.0
    %434 = vmatprep.subr.mxu0 0.0
    %435 = vmatpush1.msra.mxu0 0.0
    %436 = vmatprep.subr.mxu0 0.0
    %437 = vmatpush1.msra.mxu0 0.0
    %438 = vmatprep.subr.mxu0 0.0
    %439 = vmatpush1.msra.mxu0 0.0
    %440 = vmatprep.subr.mxu0 0.0
    %441 = vmatpush1.msra.mxu0 0.0
    %442 = vmatprep.mubr.f32.mxu0 0.0
    %v443 = vand.u32 %v137, 4294901760
    %v444 = vsub.f32 %v137, %v443
    %v445 = vand.u32 %v444, 4294901760
    %446 = vmatmul.mubr.f32.gmra.mrb[0].mxu0 %v445
    %v447 = vpop.f32.mrb[0].mxu0
    %v448 = vadd.f32 %v372, %v447
    %v449 = vpop.f32.mrb[0].mxu0
    %v450 = vadd.f32 %v374, %v449
    %451 = vdwg.mxu0
    %v452 = vand.u32 %v127, 4294901760
    %v453 = vsub.f32 %v127, %v452
    %v454 = vand.u32 %v453, 4294901760
    %455 = vmatprep.subr.mxu0 %v454
    %v456 = vand.u32 %v126, 4294901760
    %v457 = vsub.f32 %v126, %v456
    %v458 = vand.u32 %v457, 4294901760
    %459 = vmatpush1.msra.mxu0 %v458
    %460 = vmatprep.subr.mxu0 0.0
    %461 = vmatpush1.msra.mxu0 0.0
    %462 = vmatprep.subr.mxu0 0.0
    %463 = vmatpush1.msra.mxu0 0.0
    %464 = vmatprep.subr.mxu0 0.0
    %465 = vmatpush1.msra.mxu0 0.0
    %466 = vmatprep.subr.mxu0 0.0
    %467 = vmatpush1.msra.mxu0 0.0
    %468 = vmatprep.subr.mxu0 0.0
    %469 = vmatpush1.msra.mxu0 0.0
    %470 = vmatprep.subr.mxu0 0.0
    %471 = vmatpush1.msra.mxu0 0.0
    %472 = vmatprep.subr.mxu0 0.0
    %473 = vmatpush1.msra.mxu0 0.0
    %474 = vmatprep.subr.mxu0 0.0
    %475 = vmatpush1.msra.mxu0 0.0
    %476 = vmatprep.subr.mxu0 0.0
    %477 = vmatpush1.msra.mxu0 0.0
    %478 = vmatprep.subr.mxu0 0.0
    %479 = vmatpush1.msra.mxu0 0.0
    %480 = vmatprep.subr.mxu0 0.0
    %481 = vmatpush1.msra.mxu0 0.0
    %482 = vmatprep.subr.mxu0 0.0
    %483 = vmatpush1.msra.mxu0 0.0
    %484 = vmatprep.subr.mxu0 0.0
    %485 = vmatpush1.msra.mxu0 0.0
    %486 = vmatprep.subr.mxu0 0.0
    %487 = vmatpush1.msra.mxu0 0.0
    %488 = vmatprep.subr.mxu0 0.0
    %489 = vmatpush1.msra.mxu0 0.0
    %490 = vmatprep.subr.mxu0 0.0
    %491 = vmatpush1.msra.mxu0 0.0
    %492 = vmatprep.subr.mxu0 0.0
    %493 = vmatpush1.msra.mxu0 0.0
    %494 = vmatprep.subr.mxu0 0.0
    %495 = vmatpush1.msra.mxu0 0.0
    %496 = vmatprep.subr.mxu0 0.0
    %497 = vmatpush1.msra.mxu0 0.0
    %498 = vmatprep.subr.mxu0 0.0
    %499 = vmatpush1.msra.mxu0 0.0
    %500 = vmatprep.subr.mxu0 0.0
    %501 = vmatpush1.msra.mxu0 0.0
    %502 = vmatprep.subr.mxu0 0.0
    %503 = vmatpush1.msra.mxu0 0.0
    %504 = vmatprep.subr.mxu0 0.0
    %505 = vmatpush1.msra.mxu0 0.0
    %506 = vmatprep.subr.mxu0 0.0
    %507 = vmatpush1.msra.mxu0 0.0
    %508 = vmatprep.subr.mxu0 0.0
    %509 = vmatpush1.msra.mxu0 0.0
    %510 = vmatprep.subr.mxu0 0.0
    %511 = vmatpush1.msra.mxu0 0.0
    %512 = vmatprep.subr.mxu0 0.0
    %513 = vmatpush1.msra.mxu0 0.0
    %514 = vmatprep.subr.mxu0 0.0
    %515 = vmatpush1.msra.mxu0 0.0
    %516 = vmatprep.subr.mxu0 0.0
    %517 = vmatpush1.msra.mxu0 0.0
    %518 = vmatprep.subr.mxu0 0.0
    %519 = vmatpush1.msra.mxu0 0.0
    %520 = vmatprep.subr.mxu0 0.0
    %521 = vmatpush1.msra.mxu0 0.0
    %522 = vmatprep.mubr.f32.mxu0 0.0
    %v523 = vand.u32 %v137, 4294901760
    %524 = vmatmul.mubr.f32.gmra.mrb[0].mxu0 %v523
    %v525 = vpop.f32.mrb[0].mxu0
    %v526 = vadd.f32 %v448, %v525
    %v527 = vpop.f32.mrb[0].mxu0
    %v528 = vadd.f32 %v450, %v527
    %529 = vdwg.mxu0
    %v530 = vand.u32 %v127, 4294901760
    %531 = vmatprep.subr.mxu0 %v530
    %v532 = vand.u32 %v126, 4294901760
    %533 = vmatpush1.msra.mxu0 %v532
    %534 = vmatprep.subr.mxu0 0.0
    %535 = vmatpush1.msra.mxu0 0.0
    %536 = vmatprep.subr.mxu0 0.0
    %537 = vmatpush1.msra.mxu0 0.0
    %538 = vmatprep.subr.mxu0 0.0
    %539 = vmatpush1.msra.mxu0 0.0
    %540 = vmatprep.subr.mxu0 0.0
    %541 = vmatpush1.msra.mxu0 0.0
    %542 = vmatprep.subr.mxu0 0.0
    %543 = vmatpush1.msra.mxu0 0.0
    %544 = vmatprep.subr.mxu0 0.0
    %545 = vmatpush1.msra.mxu0 0.0
    %546 = vmatprep.subr.mxu0 0.0
    %547 = vmatpush1.msra.mxu0 0.0
    %548 = vmatprep.subr.mxu0 0.0
    %549 = vmatpush1.msra.mxu0 0.0
    %550 = vmatprep.subr.mxu0 0.0
    %551 = vmatpush1.msra.mxu0 0.0
    %552 = vmatprep.subr.mxu0 0.0
    %553 = vmatpush1.msra.mxu0 0.0
    %554 = vmatprep.subr.mxu0 0.0
    %555 = vmatpush1.msra.mxu0 0.0
    %556 = vmatprep.subr.mxu0 0.0
    %557 = vmatpush1.msra.mxu0 0.0
    %558 = vmatprep.subr.mxu0 0.0
    %559 = vmatpush1.msra.mxu0 0.0
    %560 = vmatprep.subr.mxu0 0.0
    %561 = vmatpush1.msra.mxu0 0.0
    %562 = vmatprep.subr.mxu0 0.0
    %563 = vmatpush1.msra.mxu0 0.0
    %564 = vmatprep.subr.mxu0 0.0
    %565 = vmatpush1.msra.mxu0 0.0
    %566 = vmatprep.subr.mxu0 0.0
    %567 = vmatpush1.msra.mxu0 0.0
    %568 = vmatprep.subr.mxu0 0.0
    %569 = vmatpush1.msra.mxu0 0.0
    %570 = vmatprep.subr.mxu0 0.0
    %571 = vmatpush1.msra.mxu0 0.0
    %572 = vmatprep.subr.mxu0 0.0
    %573 = vmatpush1.msra.mxu0 0.0
    %574 = vmatprep.subr.mxu0 0.0
    %575 = vmatpush1.msra.mxu0 0.0
    %576 = vmatprep.subr.mxu0 0.0
    %577 = vmatpush1.msra.mxu0 0.0
    %578 = vmatprep.subr.mxu0 0.0
    %579 = vmatpush1.msra.mxu0 0.0
    %580 = vmatprep.subr.mxu0 0.0
    %581 = vmatpush1.msra.mxu0 0.0
    %582 = vmatprep.subr.mxu0 0.0
    %583 = vmatpush1.msra.mxu0 0.0
    %584 = vmatprep.subr.mxu0 0.0
    %585 = vmatpush1.msra.mxu0 0.0
    %586 = vmatprep.subr.mxu0 0.0
    %587 = vmatpush1.msra.mxu0 0.0
    %588 = vmatprep.subr.mxu0 0.0
    %589 = vmatpush1.msra.mxu0 0.0
    %590 = vmatprep.subr.mxu0 0.0
    %591 = vmatpush1.msra.mxu0 0.0
    %592 = vmatprep.subr.mxu0 0.0
    %593 = vmatpush1.msra.mxu0 0.0
    %594 = vmatprep.subr.mxu0 0.0
    %595 = vmatpush1.msra.mxu0 0.0
    %596 = vmatprep.mubr.f32.mxu0 0.0
    %v597 = vand.u32 %v137, 4294901760
    %598 = vmatmul.mubr.f32.gmra.mrb[0].mxu0 %v597
    %v599 = vpop.f32.mrb[0].mxu0
    %v600 = vadd.f32 %v526, %v599
    %v601 = vpop.f32.mrb[0].mxu0
    %v602 = vadd.f32 %v528, %v601
    %603 = vdwg.mxu0
    %v605 = vlaneseq
    %v606 = vshrl.u32 %v605, 7
    %v607 = vsub.s32 0, %v606
    %v608 = vrot.slane %v128, %v607
    %v609 = vlaneseq
    %v610 = vshrl.u32 %v609, 7
    %v611 = vsub.s32 1, %v610
    %v612 = vrot.slane %v128, %v611
    %v615 = vmul.f32 %v600, %v608
    %v616 = vmul.f32 %v602, %v612
    %v617 = vmul.f32 %v615, 1.442695
    %v618 = vpow.pop %v617
    %v619 = vmul.f32 %v616, 1.442695
    %v620 = vpow.pop %v619
    %v621 = vsub.f32 0.0, %v615
    %v622 = vsub.f32 0.0, %v616
    %v623 = vmul.f32 %v621, 1.442695
    %v624 = vpow.pop %v623
    %v625 = vmul.f32 %v622, 1.442695
    %v626 = vpow.pop %v625
    %v628 = vlaneseq
    %v629 = vshrl.u32 %v628, 7
    %v630 = vsub.s32 0, %v629
    %v631 = vrot.slane %v129, %v630
    %v632 = vlaneseq
    %v633 = vshrl.u32 %v632, 7
    %v634 = vsub.s32 1, %v633
    %v635 = vrot.slane %v129, %v634
    %v638 = vmul.f32 %v600, %v631
    %v639 = vmul.f32 %v602, %v635
    %v640 = vlaneseq
    %v641 = vshrl.u32 %v640, 7
    %v642 = vsub.s32 0, %v641
    %v643 = vrot.slane %v130, %v642
    %v644 = vlaneseq
    %v645 = vshrl.u32 %v644, 7
    %v646 = vsub.s32 0, %v645
    %v647 = vrot.slane %v131, %v646
    %v648 = vmul.f32 %v624, %v643
    %v649 = vmul.f32 %v626, %v647
    %v650 = vadd.f32 %v638, %v648
    %v651 = vadd.f32 %v639, %v649
    %v652 = vlaneseq
    %v653 = vshrl.u32 %v652, 7
    %v654 = vsub.s32 1, %v653
    %v655 = vrot.slane %v130, %v654
    %v656 = vlaneseq
    %v657 = vshrl.u32 %v656, 7
    %v658 = vsub.s32 1, %v657
    %v659 = vrot.slane %v131, %v658
    %v660 = vmul.f32 %v624, %v655
    %v661 = vmul.f32 %v626, %v659
    %v662 = vadd.f32 %v650, %v660
    %v663 = vadd.f32 %v651, %v661
    %vm664 = vcmp.ge.f32.partialorder %v600, 0.0
    %vm665 = vcmp.ge.f32.partialorder %v602, 0.0
    %v666 = vlaneseq
    %v667 = vshrl.u32 %v666, 7
    %v668 = vsub.s32 2, %v667
    %v669 = vrot.slane %v130, %v668
    %v670 = vlaneseq
    %v671 = vshrl.u32 %v670, 7
    %v672 = vsub.s32 2, %v671
    %v673 = vrot.slane %v131, %v672
    %v674 = vmul.f32 %v624, %v669
    %v675 = vmul.f32 %v626, %v673
    %v676 = vlaneseq
    %v677 = vshrl.u32 %v676, 7
    %v678 = vsub.s32 2, %v677
    %v679 = vrot.slane %v132, %v678
    %v680 = vlaneseq
    %v681 = vshrl.u32 %v680, 7
    %v682 = vsub.s32 2, %v681
    %v683 = vrot.slane %v133, %v682
    %v684 = vmul.f32 %v618, %v679
    %v685 = vmul.f32 %v620, %v683
    %v686 = vsel %vm664, %v674, %v684
    %v687 = vsel %vm665, %v675, %v685
    %v688 = vadd.f32 %v662, %v686
    %v689 = vadd.f32 %v663, %v687
    %v690 = vlaneseq
    %v691 = vshrl.u32 %v690, 7
    %v692 = vsub.s32 3, %v691
    %v693 = vrot.slane %v132, %v692
    %v694 = vlaneseq
    %v695 = vshrl.u32 %v694, 7
    %v696 = vsub.s32 3, %v695
    %v697 = vrot.slane %v133, %v696
    %v698 = vmul.f32 %v618, %v693
    %v699 = vmul.f32 %v620, %v697
    %v700 = vadd.f32 %v688, %v698
    %v701 = vadd.f32 %v689, %v699
    %v702 = vlaneseq
    %v703 = vshrl.u32 %v702, 7
    %v704 = vsub.s32 4, %v703
    %v705 = vrot.slane %v132, %v704
    %v706 = vlaneseq
    %v707 = vshrl.u32 %v706, 7
    %v708 = vsub.s32 4, %v707
    %v709 = vrot.slane %v133, %v708
    %v710 = vmul.f32 %v618, %v705
    %v711 = vmul.f32 %v620, %v709
    %v712 = vadd.f32 %v700, %v710
    %v713 = vadd.f32 %v701, %v711
    %v714 = vld [vmem:[%s13] sm:$0xff]
    %v715 = vld [vmem:[%s13 + $0x8] sm:$0xff]
    %v716 = vld [vmem:[%s13 + $0x10] sm:$0xff]
    %v717 = vld [vmem:[%s13 + $0x18] sm:$0xff]
    %v718 = vld [vmem:[%s13 + $0x20] sm:$0xff]
    %v719 = vld [vmem:[%s13 + $0x28] sm:$0xff]
    %v720 = vld [vmem:[%s13 + $0x30] sm:$0xff]
    %v721 = vld [vmem:[%s13 + $0x38] sm:$0xff]
    %v722 = vld [vmem:[%s13 + $0x40] sm:$0xff]
    %v723 = vld [vmem:[%s13 + $0x48] sm:$0xff]
    %v724 = vld [vmem:[%s13 + $0x50] sm:$0xff]
    %v725 = vld [vmem:[%s13 + $0x58] sm:$0xff]
    %v726 = vld [vmem:[%s13 + $0x60] sm:$0xff]
    %v727 = vld [vmem:[%s13 + $0x68] sm:$0xff]
    %v728 = vld [vmem:[%s13 + $0x70] sm:$0xff]
    %v729 = vld [vmem:[%s13 + $0x78] sm:$0xff]
    %v730 = vld [vmem:[%s13 + $0x80] sm:$0xff]
    %v731 = vld [vmem:[%s13 + $0x88] sm:$0xff]
    %v732 = vld [vmem:[%s13 + $0x90] sm:$0xff]
    %v733 = vld [vmem:[%s13 + $0x98] sm:$0xff]
    %v734 = vld [vmem:[%s13 + $0xa0] sm:$0xff]
    %v735 = vld [vmem:[%s13 + $0xa8] sm:$0xff]
    %v736 = vld [vmem:[%s13 + $0xb0] sm:$0xff]
    %v737 = vld [vmem:[%s13 + $0xb8] sm:$0xff]
    %v738 = vld [vmem:[%s13 + $0xc0] sm:$0xff]
    %v739 = vld [vmem:[%s13 + $0xc8] sm:$0xff]
    %v740 = vld [vmem:[%s13 + $0xd0] sm:$0xff]
    %v741 = vld [vmem:[%s13 + $0xd8] sm:$0xff]
    %v742 = vld [vmem:[%s13 + $0xe0] sm:$0xff]
    %v743 = vld [vmem:[%s13 + $0xe8] sm:$0xff]
    %v744 = vld [vmem:[%s13 + $0xf0] sm:$0xff]
    %v745 = vld [vmem:[%s13 + $0xf8] sm:$0xff]
    %746 = vmatprep.subr.mxu0 0.0
    %v747 = vand.u32 %v714, 4294901760
    %748 = vmatpush1.msra.mxu0 %v747
    %749 = vmatprep.subr.mxu0 0.0
    %v750 = vand.u32 %v715, 4294901760
    %751 = vmatpush1.msra.mxu0 %v750
    %752 = vmatprep.subr.mxu0 0.0
    %v753 = vand.u32 %v716, 4294901760
    %754 = vmatpush1.msra.mxu0 %v753
    %755 = vmatprep.subr.mxu0 0.0
    %v756 = vand.u32 %v717, 4294901760
    %757 = vmatpush1.msra.mxu0 %v756
    %758 = vmatprep.subr.mxu0 0.0
    %v759 = vand.u32 %v718, 4294901760
    %760 = vmatpush1.msra.mxu0 %v759
    %761 = vmatprep.subr.mxu0 0.0
    %v762 = vand.u32 %v719, 4294901760
    %763 = vmatpush1.msra.mxu0 %v762
    %764 = vmatprep.subr.mxu0 0.0
    %v765 = vand.u32 %v720, 4294901760
    %766 = vmatpush1.msra.mxu0 %v765
    %767 = vmatprep.subr.mxu0 0.0
    %v768 = vand.u32 %v721, 4294901760
    %769 = vmatpush1.msra.mxu0 %v768
    %770 = vmatprep.subr.mxu0 0.0
    %v771 = vand.u32 %v722, 4294901760
    %772 = vmatpush1.msra.mxu0 %v771
    %773 = vmatprep.subr.mxu0 0.0
    %v774 = vand.u32 %v723, 4294901760
    %775 = vmatpush1.msra.mxu0 %v774
    %776 = vmatprep.subr.mxu0 0.0
    %v777 = vand.u32 %v724, 4294901760
    %778 = vmatpush1.msra.mxu0 %v777
    %779 = vmatprep.subr.mxu0 0.0
    %v780 = vand.u32 %v725, 4294901760
    %781 = vmatpush1.msra.mxu0 %v780
    %782 = vmatprep.subr.mxu0 0.0
    %v783 = vand.u32 %v726, 4294901760
    %784 = vmatpush1.msra.mxu0 %v783
    %785 = vmatprep.subr.mxu0 0.0
    %v786 = vand.u32 %v727, 4294901760
    %787 = vmatpush1.msra.mxu0 %v786
    %788 = vmatprep.subr.mxu0 0.0
    %v789 = vand.u32 %v728, 4294901760
    %790 = vmatpush1.msra.mxu0 %v789
    %791 = vmatprep.subr.mxu0 0.0
    %v792 = vand.u32 %v729, 4294901760
    %793 = vmatpush1.msra.mxu0 %v792
    %794 = vmatprep.subr.mxu0 0.0
    %v795 = vand.u32 %v730, 4294901760
    %796 = vmatpush1.msra.mxu0 %v795
    %797 = vmatprep.subr.mxu0 0.0
    %v798 = vand.u32 %v731, 4294901760
    %799 = vmatpush1.msra.mxu0 %v798
    %800 = vmatprep.subr.mxu0 0.0
    %v801 = vand.u32 %v732, 4294901760
    %802 = vmatpush1.msra.mxu0 %v801
    %803 = vmatprep.subr.mxu0 0.0
    %v804 = vand.u32 %v733, 4294901760
    %805 = vmatpush1.msra.mxu0 %v804
    %806 = vmatprep.subr.mxu0 0.0
    %v807 = vand.u32 %v734, 4294901760
    %808 = vmatpush1.msra.mxu0 %v807
    %809 = vmatprep.subr.mxu0 0.0
    %v810 = vand.u32 %v735, 4294901760
    %811 = vmatpush1.msra.mxu0 %v810
    %812 = vmatprep.subr.mxu0 0.0
    %v813 = vand.u32 %v736, 4294901760
    %814 = vmatpush1.msra.mxu0 %v813
    %815 = vmatprep.subr.mxu0 0.0
    %v816 = vand.u32 %v737, 4294901760
    %817 = vmatpush1.msra.mxu0 %v816
    %818 = vmatprep.subr.mxu0 0.0
    %v819 = vand.u32 %v738, 4294901760
    %820 = vmatpush1.msra.mxu0 %v819
    %821 = vmatprep.subr.mxu0 0.0
    %v822 = vand.u32 %v739, 4294901760
    %823 = vmatpush1.msra.mxu0 %v822
    %824 = vmatprep.subr.mxu0 0.0
    %v825 = vand.u32 %v740, 4294901760
    %826 = vmatpush1.msra.mxu0 %v825
    %827 = vmatprep.subr.mxu0 0.0
    %v828 = vand.u32 %v741, 4294901760
    %829 = vmatpush1.msra.mxu0 %v828
    %830 = vmatprep.subr.mxu0 0.0
    %v831 = vand.u32 %v742, 4294901760
    %832 = vmatpush1.msra.mxu0 %v831
    %833 = vmatprep.subr.mxu0 0.0
    %v834 = vand.u32 %v743, 4294901760
    %835 = vmatpush1.msra.mxu0 %v834
    %836 = vmatprep.subr.mxu0 0.0
    %v837 = vand.u32 %v744, 4294901760
    %838 = vmatpush1.msra.mxu0 %v837
    %839 = vmatprep.subr.mxu0 0.0
    %v840 = vand.u32 %v745, 4294901760
    %841 = vmatpush1.msra.mxu0 %v840
    %v842 = vand.u32 %v713, 4294901760
    %v843 = vsub.f32 %v713, %v842
    %v844 = vand.u32 %v843, 4294901760
    %v845 = vsub.f32 %v843, %v844
    %v846 = vand.u32 %v845, 4294901760
    %847 = vmatprep.mubr.f32.mxu0 %v846
    %v848 = vand.u32 %v712, 4294901760
    %v849 = vsub.f32 %v712, %v848
    %v850 = vand.u32 %v849, 4294901760
    %v851 = vsub.f32 %v849, %v850
    %v852 = vand.u32 %v851, 4294901760
    %853 = vmatmul.mubr.f32.gmra.mrb[0].mxu0 %v852
    %v854 = vpop.f32.mrb[0].mxu0
    %v855 = vadd.f32 0.0, %v854
    %v856 = vpop.f32.mrb[0].mxu0
    %857 = vdwg.mxu0
    %858 = vmatprep.subr.mxu0 0.0
    %v859 = vand.u32 %v714, 4294901760
    %v860 = vsub.f32 %v714, %v859
    %v861 = vand.u32 %v860, 4294901760
    %v862 = vsub.f32 %v860, %v861
    %v863 = vand.u32 %v862, 4294901760
    %864 = vmatpush1.msra.mxu0 %v863
    %865 = vmatprep.subr.mxu0 0.0
    %v866 = vand.u32 %v715, 4294901760
    %v867 = vsub.f32 %v715, %v866
    %v868 = vand.u32 %v867, 4294901760
    %v869 = vsub.f32 %v867, %v868
    %v870 = vand.u32 %v869, 4294901760
    %871 = vmatpush1.msra.mxu0 %v870
    %872 = vmatprep.subr.mxu0 0.0
    %v873 = vand.u32 %v716, 4294901760
    %v874 = vsub.f32 %v716, %v873
    %v875 = vand.u32 %v874, 4294901760
    %v876 = vsub.f32 %v874, %v875
    %v877 = vand.u32 %v876, 4294901760
    %878 = vmatpush1.msra.mxu0 %v877
    %879 = vmatprep.subr.mxu0 0.0
    %v880 = vand.u32 %v717, 4294901760
    %v881 = vsub.f32 %v717, %v880
    %v882 = vand.u32 %v881, 4294901760
    %v883 = vsub.f32 %v881, %v882
    %v884 = vand.u32 %v883, 4294901760
    %885 = vmatpush1.msra.mxu0 %v884
    %886 = vmatprep.subr.mxu0 0.0
    %v887 = vand.u32 %v718, 4294901760
    %v888 = vsub.f32 %v718, %v887
    %v889 = vand.u32 %v888, 4294901760
    %v890 = vsub.f32 %v888, %v889
    %v891 = vand.u32 %v890, 4294901760
    %892 = vmatpush1.msra.mxu0 %v891
    %893 = vmatprep.subr.mxu0 0.0
    %v894 = vand.u32 %v719, 4294901760
    %v895 = vsub.f32 %v719, %v894
    %v896 = vand.u32 %v895, 4294901760
    %v897 = vsub.f32 %v895, %v896
    %v898 = vand.u32 %v897, 4294901760
    %899 = vmatpush1.msra.mxu0 %v898
    %900 = vmatprep.subr.mxu0 0.0
    %v901 = vand.u32 %v720, 4294901760
    %v902 = vsub.f32 %v720, %v901
    %v903 = vand.u32 %v902, 4294901760
    %v904 = vsub.f32 %v902, %v903
    %v905 = vand.u32 %v904, 4294901760
    %906 = vmatpush1.msra.mxu0 %v905
    %907 = vmatprep.subr.mxu0 0.0
    %v908 = vand.u32 %v721, 4294901760
    %v909 = vsub.f32 %v721, %v908
    %v910 = vand.u32 %v909, 4294901760
    %v911 = vsub.f32 %v909, %v910
    %v912 = vand.u32 %v911, 4294901760
    %913 = vmatpush1.msra.mxu0 %v912
    %914 = vmatprep.subr.mxu0 0.0
    %v915 = vand.u32 %v722, 4294901760
    %v916 = vsub.f32 %v722, %v915
    %v917 = vand.u32 %v916, 4294901760
    %v918 = vsub.f32 %v916, %v917
    %v919 = vand.u32 %v918, 4294901760
    %920 = vmatpush1.msra.mxu0 %v919
    %921 = vmatprep.subr.mxu0 0.0
    %v922 = vand.u32 %v723, 4294901760
    %v923 = vsub.f32 %v723, %v922
    %v924 = vand.u32 %v923, 4294901760
    %v925 = vsub.f32 %v923, %v924
    %v926 = vand.u32 %v925, 4294901760
    %927 = vmatpush1.msra.mxu0 %v926
    %928 = vmatprep.subr.mxu0 0.0
    %v929 = vand.u32 %v724, 4294901760
    %v930 = vsub.f32 %v724, %v929
    %v931 = vand.u32 %v930, 4294901760
    %v932 = vsub.f32 %v930, %v931
    %v933 = vand.u32 %v932, 4294901760
    %934 = vmatpush1.msra.mxu0 %v933
    %935 = vmatprep.subr.mxu0 0.0
    %v936 = vand.u32 %v725, 4294901760
    %v937 = vsub.f32 %v725, %v936
    %v938 = vand.u32 %v937, 4294901760
    %v939 = vsub.f32 %v937, %v938
    %v940 = vand.u32 %v939, 4294901760
    %941 = vmatpush1.msra.mxu0 %v940
    %942 = vmatprep.subr.mxu0 0.0
    %v943 = vand.u32 %v726, 4294901760
    %v944 = vsub.f32 %v726, %v943
    %v945 = vand.u32 %v944, 4294901760
    %v946 = vsub.f32 %v944, %v945
    %v947 = vand.u32 %v946, 4294901760
    %948 = vmatpush1.msra.mxu0 %v947
    %949 = vmatprep.subr.mxu0 0.0
    %v950 = vand.u32 %v727, 4294901760
    %v951 = vsub.f32 %v727, %v950
    %v952 = vand.u32 %v951, 4294901760
    %v953 = vsub.f32 %v951, %v952
    %v954 = vand.u32 %v953, 4294901760
    %955 = vmatpush1.msra.mxu0 %v954
    %956 = vmatprep.subr.mxu0 0.0
    %v957 = vand.u32 %v728, 4294901760
    %v958 = vsub.f32 %v728, %v957
    %v959 = vand.u32 %v958, 4294901760
    %v960 = vsub.f32 %v958, %v959
    %v961 = vand.u32 %v960, 4294901760
    %962 = vmatpush1.msra.mxu0 %v961
    %963 = vmatprep.subr.mxu0 0.0
    %v964 = vand.u32 %v729, 4294901760
    %v965 = vsub.f32 %v729, %v964
    %v966 = vand.u32 %v965, 4294901760
    %v967 = vsub.f32 %v965, %v966
    %v968 = vand.u32 %v967, 4294901760
    %969 = vmatpush1.msra.mxu0 %v968
    %970 = vmatprep.subr.mxu0 0.0
    %v971 = vand.u32 %v730, 4294901760
    %v972 = vsub.f32 %v730, %v971
    %v973 = vand.u32 %v972, 4294901760
    %v974 = vsub.f32 %v972, %v973
    %v975 = vand.u32 %v974, 4294901760
    %976 = vmatpush1.msra.mxu0 %v975
    %977 = vmatprep.subr.mxu0 0.0
    %v978 = vand.u32 %v731, 4294901760
    %v979 = vsub.f32 %v731, %v978
    %v980 = vand.u32 %v979, 4294901760
    %v981 = vsub.f32 %v979, %v980
    %v982 = vand.u32 %v981, 4294901760
    %983 = vmatpush1.msra.mxu0 %v982
    %984 = vmatprep.subr.mxu0 0.0
    %v985 = vand.u32 %v732, 4294901760
    %v986 = vsub.f32 %v732, %v985
    %v987 = vand.u32 %v986, 4294901760
    %v988 = vsub.f32 %v986, %v987
    %v989 = vand.u32 %v988, 4294901760
    %990 = vmatpush1.msra.mxu0 %v989
    %991 = vmatprep.subr.mxu0 0.0
    %v992 = vand.u32 %v733, 4294901760
    %v993 = vsub.f32 %v733, %v992
    %v994 = vand.u32 %v993, 4294901760
    %v995 = vsub.f32 %v993, %v994
    %v996 = vand.u32 %v995, 4294901760
    %997 = vmatpush1.msra.mxu0 %v996
    %998 = vmatprep.subr.mxu0 0.0
    %v999 = vand.u32 %v734, 4294901760
    %v1000 = vsub.f32 %v734, %v999
    %v1001 = vand.u32 %v1000, 4294901760
    %v1002 = vsub.f32 %v1000, %v1001
    %v1003 = vand.u32 %v1002, 4294901760
    %1004 = vmatpush1.msra.mxu0 %v1003
    %1005 = vmatprep.subr.mxu0 0.0
    %v1006 = vand.u32 %v735, 4294901760
    %v1007 = vsub.f32 %v735, %v1006
    %v1008 = vand.u32 %v1007, 4294901760
    %v1009 = vsub.f32 %v1007, %v1008
    %v1010 = vand.u32 %v1009, 4294901760
    %1011 = vmatpush1.msra.mxu0 %v1010
    %1012 = vmatprep.subr.mxu0 0.0
    %v1013 = vand.u32 %v736, 4294901760
    %v1014 = vsub.f32 %v736, %v1013
    %v1015 = vand.u32 %v1014, 4294901760
    %v1016 = vsub.f32 %v1014, %v1015
    %v1017 = vand.u32 %v1016, 4294901760
    %1018 = vmatpush1.msra.mxu0 %v1017
    %1019 = vmatprep.subr.mxu0 0.0
    %v1020 = vand.u32 %v737, 4294901760
    %v1021 = vsub.f32 %v737, %v1020
    %v1022 = vand.u32 %v1021, 4294901760
    %v1023 = vsub.f32 %v1021, %v1022
    %v1024 = vand.u32 %v1023, 4294901760
    %1025 = vmatpush1.msra.mxu0 %v1024
    %1026 = vmatprep.subr.mxu0 0.0
    %v1027 = vand.u32 %v738, 4294901760
    %v1028 = vsub.f32 %v738, %v1027
    %v1029 = vand.u32 %v1028, 4294901760
    %v1030 = vsub.f32 %v1028, %v1029
    %v1031 = vand.u32 %v1030, 4294901760
    %1032 = vmatpush1.msra.mxu0 %v1031
    %1033 = vmatprep.subr.mxu0 0.0
    %v1034 = vand.u32 %v739, 4294901760
    %v1035 = vsub.f32 %v739, %v1034
    %v1036 = vand.u32 %v1035, 4294901760
    %v1037 = vsub.f32 %v1035, %v1036
    %v1038 = vand.u32 %v1037, 4294901760
    %1039 = vmatpush1.msra.mxu0 %v1038
    %1040 = vmatprep.subr.mxu0 0.0
    %v1041 = vand.u32 %v740, 4294901760
    %v1042 = vsub.f32 %v740, %v1041
    %v1043 = vand.u32 %v1042, 4294901760
    %v1044 = vsub.f32 %v1042, %v1043
    %v1045 = vand.u32 %v1044, 4294901760
    %1046 = vmatpush1.msra.mxu0 %v1045
    %1047 = vmatprep.subr.mxu0 0.0
    %v1048 = vand.u32 %v741, 4294901760
    %v1049 = vsub.f32 %v741, %v1048
    %v1050 = vand.u32 %v1049, 4294901760
    %v1051 = vsub.f32 %v1049, %v1050
    %v1052 = vand.u32 %v1051, 4294901760
    %1053 = vmatpush1.msra.mxu0 %v1052
    %1054 = vmatprep.subr.mxu0 0.0
    %v1055 = vand.u32 %v742, 4294901760
    %v1056 = vsub.f32 %v742, %v1055
    %v1057 = vand.u32 %v1056, 4294901760
    %v1058 = vsub.f32 %v1056, %v1057
    %v1059 = vand.u32 %v1058, 4294901760
    %1060 = vmatpush1.msra.mxu0 %v1059
    %1061 = vmatprep.subr.mxu0 0.0
    %v1062 = vand.u32 %v743, 4294901760
    %v1063 = vsub.f32 %v743, %v1062
    %v1064 = vand.u32 %v1063, 4294901760
    %v1065 = vsub.f32 %v1063, %v1064
    %v1066 = vand.u32 %v1065, 4294901760
    %1067 = vmatpush1.msra.mxu0 %v1066
    %1068 = vmatprep.subr.mxu0 0.0
    %v1069 = vand.u32 %v744, 4294901760
    %v1070 = vsub.f32 %v744, %v1069
    %v1071 = vand.u32 %v1070, 4294901760
    %v1072 = vsub.f32 %v1070, %v1071
    %v1073 = vand.u32 %v1072, 4294901760
    %1074 = vmatpush1.msra.mxu0 %v1073
    %1075 = vmatprep.subr.mxu0 0.0
    %v1076 = vand.u32 %v745, 4294901760
    %v1077 = vsub.f32 %v745, %v1076
    %v1078 = vand.u32 %v1077, 4294901760
    %v1079 = vsub.f32 %v1077, %v1078
    %v1080 = vand.u32 %v1079, 4294901760
    %1081 = vmatpush1.msra.mxu0 %v1080
    %v1082 = vand.u32 %v713, 4294901760
    %1083 = vmatprep.mubr.f32.mxu0 %v1082
    %v1084 = vand.u32 %v712, 4294901760
    %1085 = vmatmul.mubr.f32.gmra.mrb[0].mxu0 %v1084
    %v1086 = vpop.f32.mrb[0].mxu0
    %v1087 = vadd.f32 %v855, %v1086
    %v1088 = vpop.f32.mrb[0].mxu0
    %1089 = vdwg.mxu0
    %1090 = vmatprep.subr.mxu0 0.0
    %v1091 = vand.u32 %v714, 4294901760
    %v1092 = vsub.f32 %v714, %v1091
    %1093 = vmatpush1.msra.mxu0 %v1092
    %1094 = vmatprep.subr.mxu0 0.0
    %v1095 = vand.u32 %v715, 4294901760
    %v1096 = vsub.f32 %v715, %v1095
    %1097 = vmatpush1.msra.mxu0 %v1096
    %1098 = vmatprep.subr.mxu0 0.0
    %v1099 = vand.u32 %v716, 4294901760
    %v1100 = vsub.f32 %v716, %v1099
    %1101 = vmatpush1.msra.mxu0 %v1100
    %1102 = vmatprep.subr.mxu0 0.0
    %v1103 = vand.u32 %v717, 4294901760
    %v1104 = vsub.f32 %v717, %v1103
    %1105 = vmatpush1.msra.mxu0 %v1104
    %1106 = vmatprep.subr.mxu0 0.0
    %v1107 = vand.u32 %v718, 4294901760
    %v1108 = vsub.f32 %v718, %v1107
    %1109 = vmatpush1.msra.mxu0 %v1108
    %1110 = vmatprep.subr.mxu0 0.0
    %v1111 = vand.u32 %v719, 4294901760
    %v1112 = vsub.f32 %v719, %v1111
    %1113 = vmatpush1.msra.mxu0 %v1112
    %1114 = vmatprep.subr.mxu0 0.0
    %v1115 = vand.u32 %v720, 4294901760
    %v1116 = vsub.f32 %v720, %v1115
    %1117 = vmatpush1.msra.mxu0 %v1116
    %1118 = vmatprep.subr.mxu0 0.0
    %v1119 = vand.u32 %v721, 4294901760
    %v1120 = vsub.f32 %v721, %v1119
    %1121 = vmatpush1.msra.mxu0 %v1120
    %1122 = vmatprep.subr.mxu0 0.0
    %v1123 = vand.u32 %v722, 4294901760
    %v1124 = vsub.f32 %v722, %v1123
    %1125 = vmatpush1.msra.mxu0 %v1124
    %1126 = vmatprep.subr.mxu0 0.0
    %v1127 = vand.u32 %v723, 4294901760
    %v1128 = vsub.f32 %v723, %v1127
    %1129 = vmatpush1.msra.mxu0 %v1128
    %1130 = vmatprep.subr.mxu0 0.0
    %v1131 = vand.u32 %v724, 4294901760
    %v1132 = vsub.f32 %v724, %v1131
    %1133 = vmatpush1.msra.mxu0 %v1132
    %1134 = vmatprep.subr.mxu0 0.0
    %v1135 = vand.u32 %v725, 4294901760
    %v1136 = vsub.f32 %v725, %v1135
    %1137 = vmatpush1.msra.mxu0 %v1136
    %1138 = vmatprep.subr.mxu0 0.0
    %v1139 = vand.u32 %v726, 4294901760
    %v1140 = vsub.f32 %v726, %v1139
    %1141 = vmatpush1.msra.mxu0 %v1140
    %1142 = vmatprep.subr.mxu0 0.0
    %v1143 = vand.u32 %v727, 4294901760
    %v1144 = vsub.f32 %v727, %v1143
    %1145 = vmatpush1.msra.mxu0 %v1144
    %1146 = vmatprep.subr.mxu0 0.0
    %v1147 = vand.u32 %v728, 4294901760
    %v1148 = vsub.f32 %v728, %v1147
    %1149 = vmatpush1.msra.mxu0 %v1148
    %1150 = vmatprep.subr.mxu0 0.0
    %v1151 = vand.u32 %v729, 4294901760
    %v1152 = vsub.f32 %v729, %v1151
    %1153 = vmatpush1.msra.mxu0 %v1152
    %1154 = vmatprep.subr.mxu0 0.0
    %v1155 = vand.u32 %v730, 4294901760
    %v1156 = vsub.f32 %v730, %v1155
    %1157 = vmatpush1.msra.mxu0 %v1156
    %1158 = vmatprep.subr.mxu0 0.0
    %v1159 = vand.u32 %v731, 4294901760
    %v1160 = vsub.f32 %v731, %v1159
    %1161 = vmatpush1.msra.mxu0 %v1160
    %1162 = vmatprep.subr.mxu0 0.0
    %v1163 = vand.u32 %v732, 4294901760
    %v1164 = vsub.f32 %v732, %v1163
    %1165 = vmatpush1.msra.mxu0 %v1164
    %1166 = vmatprep.subr.mxu0 0.0
    %v1167 = vand.u32 %v733, 4294901760
    %v1168 = vsub.f32 %v733, %v1167
    %1169 = vmatpush1.msra.mxu0 %v1168
    %1170 = vmatprep.subr.mxu0 0.0
    %v1171 = vand.u32 %v734, 4294901760
    %v1172 = vsub.f32 %v734, %v1171
    %1173 = vmatpush1.msra.mxu0 %v1172
    %1174 = vmatprep.subr.mxu0 0.0
    %v1175 = vand.u32 %v735, 4294901760
    %v1176 = vsub.f32 %v735, %v1175
    %1177 = vmatpush1.msra.mxu0 %v1176
    %1178 = vmatprep.subr.mxu0 0.0
    %v1179 = vand.u32 %v736, 4294901760
    %v1180 = vsub.f32 %v736, %v1179
    %1181 = vmatpush1.msra.mxu0 %v1180
    %1182 = vmatprep.subr.mxu0 0.0
    %v1183 = vand.u32 %v737, 4294901760
    %v1184 = vsub.f32 %v737, %v1183
    %1185 = vmatpush1.msra.mxu0 %v1184
    %1186 = vmatprep.subr.mxu0 0.0
    %v1187 = vand.u32 %v738, 4294901760
    %v1188 = vsub.f32 %v738, %v1187
    %1189 = vmatpush1.msra.mxu0 %v1188
    %1190 = vmatprep.subr.mxu0 0.0
    %v1191 = vand.u32 %v739, 4294901760
    %v1192 = vsub.f32 %v739, %v1191
    %1193 = vmatpush1.msra.mxu0 %v1192
    %1194 = vmatprep.subr.mxu0 0.0
    %v1195 = vand.u32 %v740, 4294901760
    %v1196 = vsub.f32 %v740, %v1195
    %1197 = vmatpush1.msra.mxu0 %v1196
    %1198 = vmatprep.subr.mxu0 0.0
    %v1199 = vand.u32 %v741, 4294901760
    %v1200 = vsub.f32 %v741, %v1199
    %1201 = vmatpush1.msra.mxu0 %v1200
    %1202 = vmatprep.subr.mxu0 0.0
    %v1203 = vand.u32 %v742, 4294901760
    %v1204 = vsub.f32 %v742, %v1203
    %1205 = vmatpush1.msra.mxu0 %v1204
    %1206 = vmatprep.subr.mxu0 0.0
    %v1207 = vand.u32 %v743, 4294901760
    %v1208 = vsub.f32 %v743, %v1207
    %1209 = vmatpush1.msra.mxu0 %v1208
    %1210 = vmatprep.subr.mxu0 0.0
    %v1211 = vand.u32 %v744, 4294901760
    %v1212 = vsub.f32 %v744, %v1211
    %1213 = vmatpush1.msra.mxu0 %v1212
    %1214 = vmatprep.subr.mxu0 0.0
    %v1215 = vand.u32 %v745, 4294901760
    %v1216 = vsub.f32 %v745, %v1215
    %1217 = vmatpush1.msra.mxu0 %v1216
    %v1218 = vand.u32 %v713, 4294901760
    %v1219 = vsub.f32 %v713, %v1218
    %1220 = vmatprep.mubr.f32.mxu0 %v1219
    %v1221 = vand.u32 %v712, 4294901760
    %v1222 = vsub.f32 %v712, %v1221
    %1223 = vmatmul.mubr.f32.gmra.mrb[0].mxu0 %v1222
    %v1224 = vpop.f32.mrb[0].mxu0
    %v1225 = vadd.f32 %v1087, %v1224
    %v1226 = vpop.f32.mrb[0].mxu0
    %1227 = vdwg.mxu0
    %1228 = vmatprep.subr.mxu0 0.0
    %v1229 = vand.u32 %v714, 4294901760
    %1230 = vmatpush1.msra.mxu0 %v1229
    %1231 = vmatprep.subr.mxu0 0.0
    %v1232 = vand.u32 %v715, 4294901760
    %1233 = vmatpush1.msra.mxu0 %v1232
    %1234 = vmatprep.subr.mxu0 0.0
    %v1235 = vand.u32 %v716, 4294901760
    %1236 = vmatpush1.msra.mxu0 %v1235
    %1237 = vmatprep.subr.mxu0 0.0
    %v1238 = vand.u32 %v717, 4294901760
    %1239 = vmatpush1.msra.mxu0 %v1238
    %1240 = vmatprep.subr.mxu0 0.0
    %v1241 = vand.u32 %v718, 4294901760
    %1242 = vmatpush1.msra.mxu0 %v1241
    %1243 = vmatprep.subr.mxu0 0.0
    %v1244 = vand.u32 %v719, 4294901760
    %1245 = vmatpush1.msra.mxu0 %v1244
    %1246 = vmatprep.subr.mxu0 0.0
    %v1247 = vand.u32 %v720, 4294901760
    %1248 = vmatpush1.msra.mxu0 %v1247
    %1249 = vmatprep.subr.mxu0 0.0
    %v1250 = vand.u32 %v721, 4294901760
    %1251 = vmatpush1.msra.mxu0 %v1250
    %1252 = vmatprep.subr.mxu0 0.0
    %v1253 = vand.u32 %v722, 4294901760
    %1254 = vmatpush1.msra.mxu0 %v1253
    %1255 = vmatprep.subr.mxu0 0.0
    %v1256 = vand.u32 %v723, 4294901760
    %1257 = vmatpush1.msra.mxu0 %v1256
    %1258 = vmatprep.subr.mxu0 0.0
    %v1259 = vand.u32 %v724, 4294901760
    %1260 = vmatpush1.msra.mxu0 %v1259
    %1261 = vmatprep.subr.mxu0 0.0
    %v1262 = vand.u32 %v725, 4294901760
    %1263 = vmatpush1.msra.mxu0 %v1262
    %1264 = vmatprep.subr.mxu0 0.0
    %v1265 = vand.u32 %v726, 4294901760
    %1266 = vmatpush1.msra.mxu0 %v1265
    %1267 = vmatprep.subr.mxu0 0.0
    %v1268 = vand.u32 %v727, 4294901760
    %1269 = vmatpush1.msra.mxu0 %v1268
    %1270 = vmatprep.subr.mxu0 0.0
    %v1271 = vand.u32 %v728, 4294901760
    %1272 = vmatpush1.msra.mxu0 %v1271
    %1273 = vmatprep.subr.mxu0 0.0
    %v1274 = vand.u32 %v729, 4294901760
    %1275 = vmatpush1.msra.mxu0 %v1274
    %1276 = vmatprep.subr.mxu0 0.0
    %v1277 = vand.u32 %v730, 4294901760
    %1278 = vmatpush1.msra.mxu0 %v1277
    %1279 = vmatprep.subr.mxu0 0.0
    %v1280 = vand.u32 %v731, 4294901760
    %1281 = vmatpush1.msra.mxu0 %v1280
    %1282 = vmatprep.subr.mxu0 0.0
    %v1283 = vand.u32 %v732, 4294901760
    %1284 = vmatpush1.msra.mxu0 %v1283
    %1285 = vmatprep.subr.mxu0 0.0
    %v1286 = vand.u32 %v733, 4294901760
    %1287 = vmatpush1.msra.mxu0 %v1286
    %1288 = vmatprep.subr.mxu0 0.0
    %v1289 = vand.u32 %v734, 4294901760
    %1290 = vmatpush1.msra.mxu0 %v1289
    %1291 = vmatprep.subr.mxu0 0.0
    %v1292 = vand.u32 %v735, 4294901760
    %1293 = vmatpush1.msra.mxu0 %v1292
    %1294 = vmatprep.subr.mxu0 0.0
    %v1295 = vand.u32 %v736, 4294901760
    %1296 = vmatpush1.msra.mxu0 %v1295
    %1297 = vmatprep.subr.mxu0 0.0
    %v1298 = vand.u32 %v737, 4294901760
    %1299 = vmatpush1.msra.mxu0 %v1298
    %1300 = vmatprep.subr.mxu0 0.0
    %v1301 = vand.u32 %v738, 4294901760
    %1302 = vmatpush1.msra.mxu0 %v1301
    %1303 = vmatprep.subr.mxu0 0.0
    %v1304 = vand.u32 %v739, 4294901760
    %1305 = vmatpush1.msra.mxu0 %v1304
    %1306 = vmatprep.subr.mxu0 0.0
    %v1307 = vand.u32 %v740, 4294901760
    %1308 = vmatpush1.msra.mxu0 %v1307
    %1309 = vmatprep.subr.mxu0 0.0
    %v1310 = vand.u32 %v741, 4294901760
    %1311 = vmatpush1.msra.mxu0 %v1310
    %1312 = vmatprep.subr.mxu0 0.0
    %v1313 = vand.u32 %v742, 4294901760
    %1314 = vmatpush1.msra.mxu0 %v1313
    %1315 = vmatprep.subr.mxu0 0.0
    %v1316 = vand.u32 %v743, 4294901760
    %1317 = vmatpush1.msra.mxu0 %v1316
    %1318 = vmatprep.subr.mxu0 0.0
    %v1319 = vand.u32 %v744, 4294901760
    %1320 = vmatpush1.msra.mxu0 %v1319
    %1321 = vmatprep.subr.mxu0 0.0
    %v1322 = vand.u32 %v745, 4294901760
    %1323 = vmatpush1.msra.mxu0 %v1322
    %v1324 = vand.u32 %v713, 4294901760
    %v1325 = vsub.f32 %v713, %v1324
    %v1326 = vand.u32 %v1325, 4294901760
    %1327 = vmatprep.mubr.f32.mxu0 %v1326
    %v1328 = vand.u32 %v712, 4294901760
    %v1329 = vsub.f32 %v712, %v1328
    %v1330 = vand.u32 %v1329, 4294901760
    %1331 = vmatmul.mubr.f32.gmra.mrb[0].mxu0 %v1330
    %v1332 = vpop.f32.mrb[0].mxu0
    %v1333 = vadd.f32 %v1225, %v1332
    %v1334 = vpop.f32.mrb[0].mxu0
    %1335 = vdwg.mxu0
    %1336 = vmatprep.subr.mxu0 0.0
    %v1337 = vand.u32 %v714, 4294901760
    %v1338 = vsub.f32 %v714, %v1337
    %v1339 = vand.u32 %v1338, 4294901760
    %1340 = vmatpush1.msra.mxu0 %v1339
    %1341 = vmatprep.subr.mxu0 0.0
    %v1342 = vand.u32 %v715, 4294901760
    %v1343 = vsub.f32 %v715, %v1342
    %v1344 = vand.u32 %v1343, 4294901760
    %1345 = vmatpush1.msra.mxu0 %v1344
    %1346 = vmatprep.subr.mxu0 0.0
    %v1347 = vand.u32 %v716, 4294901760
    %v1348 = vsub.f32 %v716, %v1347
    %v1349 = vand.u32 %v1348, 4294901760
    %1350 = vmatpush1.msra.mxu0 %v1349
    %1351 = vmatprep.subr.mxu0 0.0
    %v1352 = vand.u32 %v717, 4294901760
    %v1353 = vsub.f32 %v717, %v1352
    %v1354 = vand.u32 %v1353, 4294901760
    %1355 = vmatpush1.msra.mxu0 %v1354
    %1356 = vmatprep.subr.mxu0 0.0
    %v1357 = vand.u32 %v718, 4294901760
    %v1358 = vsub.f32 %v718, %v1357
    %v1359 = vand.u32 %v1358, 4294901760
    %1360 = vmatpush1.msra.mxu0 %v1359
    %1361 = vmatprep.subr.mxu0 0.0
    %v1362 = vand.u32 %v719, 4294901760
    %v1363 = vsub.f32 %v719, %v1362
    %v1364 = vand.u32 %v1363, 4294901760
    %1365 = vmatpush1.msra.mxu0 %v1364
    %1366 = vmatprep.subr.mxu0 0.0
    %v1367 = vand.u32 %v720, 4294901760
    %v1368 = vsub.f32 %v720, %v1367
    %v1369 = vand.u32 %v1368, 4294901760
    %1370 = vmatpush1.msra.mxu0 %v1369
    %1371 = vmatprep.subr.mxu0 0.0
    %v1372 = vand.u32 %v721, 4294901760
    %v1373 = vsub.f32 %v721, %v1372
    %v1374 = vand.u32 %v1373, 4294901760
    %1375 = vmatpush1.msra.mxu0 %v1374
    %1376 = vmatprep.subr.mxu0 0.0
    %v1377 = vand.u32 %v722, 4294901760
    %v1378 = vsub.f32 %v722, %v1377
    %v1379 = vand.u32 %v1378, 4294901760
    %1380 = vmatpush1.msra.mxu0 %v1379
    %1381 = vmatprep.subr.mxu0 0.0
    %v1382 = vand.u32 %v723, 4294901760
    %v1383 = vsub.f32 %v723, %v1382
    %v1384 = vand.u32 %v1383, 4294901760
    %1385 = vmatpush1.msra.mxu0 %v1384
    %1386 = vmatprep.subr.mxu0 0.0
    %v1387 = vand.u32 %v724, 4294901760
    %v1388 = vsub.f32 %v724, %v1387
    %v1389 = vand.u32 %v1388, 4294901760
    %1390 = vmatpush1.msra.mxu0 %v1389
    %1391 = vmatprep.subr.mxu0 0.0
    %v1392 = vand.u32 %v725, 4294901760
    %v1393 = vsub.f32 %v725, %v1392
    %v1394 = vand.u32 %v1393, 4294901760
    %1395 = vmatpush1.msra.mxu0 %v1394
    %1396 = vmatprep.subr.mxu0 0.0
    %v1397 = vand.u32 %v726, 4294901760
    %v1398 = vsub.f32 %v726, %v1397
    %v1399 = vand.u32 %v1398, 4294901760
    %1400 = vmatpush1.msra.mxu0 %v1399
    %1401 = vmatprep.subr.mxu0 0.0
    %v1402 = vand.u32 %v727, 4294901760
    %v1403 = vsub.f32 %v727, %v1402
    %v1404 = vand.u32 %v1403, 4294901760
    %1405 = vmatpush1.msra.mxu0 %v1404
    %1406 = vmatprep.subr.mxu0 0.0
    %v1407 = vand.u32 %v728, 4294901760
    %v1408 = vsub.f32 %v728, %v1407
    %v1409 = vand.u32 %v1408, 4294901760
    %1410 = vmatpush1.msra.mxu0 %v1409
    %1411 = vmatprep.subr.mxu0 0.0
    %v1412 = vand.u32 %v729, 4294901760
    %v1413 = vsub.f32 %v729, %v1412
    %v1414 = vand.u32 %v1413, 4294901760
    %1415 = vmatpush1.msra.mxu0 %v1414
    %1416 = vmatprep.subr.mxu0 0.0
    %v1417 = vand.u32 %v730, 4294901760
    %v1418 = vsub.f32 %v730, %v1417
    %v1419 = vand.u32 %v1418, 4294901760
    %1420 = vmatpush1.msra.mxu0 %v1419
    %1421 = vmatprep.subr.mxu0 0.0
    %v1422 = vand.u32 %v731, 4294901760
    %v1423 = vsub.f32 %v731, %v1422
    %v1424 = vand.u32 %v1423, 4294901760
    %1425 = vmatpush1.msra.mxu0 %v1424
    %1426 = vmatprep.subr.mxu0 0.0
    %v1427 = vand.u32 %v732, 4294901760
    %v1428 = vsub.f32 %v732, %v1427
    %v1429 = vand.u32 %v1428, 4294901760
    %1430 = vmatpush1.msra.mxu0 %v1429
    %1431 = vmatprep.subr.mxu0 0.0
    %v1432 = vand.u32 %v733, 4294901760
    %v1433 = vsub.f32 %v733, %v1432
    %v1434 = vand.u32 %v1433, 4294901760
    %1435 = vmatpush1.msra.mxu0 %v1434
    %1436 = vmatprep.subr.mxu0 0.0
    %v1437 = vand.u32 %v734, 4294901760
    %v1438 = vsub.f32 %v734, %v1437
    %v1439 = vand.u32 %v1438, 4294901760
    %1440 = vmatpush1.msra.mxu0 %v1439
    %1441 = vmatprep.subr.mxu0 0.0
    %v1442 = vand.u32 %v735, 4294901760
    %v1443 = vsub.f32 %v735, %v1442
    %v1444 = vand.u32 %v1443, 4294901760
    %1445 = vmatpush1.msra.mxu0 %v1444
    %1446 = vmatprep.subr.mxu0 0.0
    %v1447 = vand.u32 %v736, 4294901760
    %v1448 = vsub.f32 %v736, %v1447
    %v1449 = vand.u32 %v1448, 4294901760
    %1450 = vmatpush1.msra.mxu0 %v1449
    %1451 = vmatprep.subr.mxu0 0.0
    %v1452 = vand.u32 %v737, 4294901760
    %v1453 = vsub.f32 %v737, %v1452
    %v1454 = vand.u32 %v1453, 4294901760
    %1455 = vmatpush1.msra.mxu0 %v1454
    %1456 = vmatprep.subr.mxu0 0.0
    %v1457 = vand.u32 %v738, 4294901760
    %v1458 = vsub.f32 %v738, %v1457
    %v1459 = vand.u32 %v1458, 4294901760
    %1460 = vmatpush1.msra.mxu0 %v1459
    %1461 = vmatprep.subr.mxu0 0.0
    %v1462 = vand.u32 %v739, 4294901760
    %v1463 = vsub.f32 %v739, %v1462
    %v1464 = vand.u32 %v1463, 4294901760
    %1465 = vmatpush1.msra.mxu0 %v1464
    %1466 = vmatprep.subr.mxu0 0.0
    %v1467 = vand.u32 %v740, 4294901760
    %v1468 = vsub.f32 %v740, %v1467
    %v1469 = vand.u32 %v1468, 4294901760
    %1470 = vmatpush1.msra.mxu0 %v1469
    %1471 = vmatprep.subr.mxu0 0.0
    %v1472 = vand.u32 %v741, 4294901760
    %v1473 = vsub.f32 %v741, %v1472
    %v1474 = vand.u32 %v1473, 4294901760
    %1475 = vmatpush1.msra.mxu0 %v1474
    %1476 = vmatprep.subr.mxu0 0.0
    %v1477 = vand.u32 %v742, 4294901760
    %v1478 = vsub.f32 %v742, %v1477
    %v1479 = vand.u32 %v1478, 4294901760
    %1480 = vmatpush1.msra.mxu0 %v1479
    %1481 = vmatprep.subr.mxu0 0.0
    %v1482 = vand.u32 %v743, 4294901760
    %v1483 = vsub.f32 %v743, %v1482
    %v1484 = vand.u32 %v1483, 4294901760
    %1485 = vmatpush1.msra.mxu0 %v1484
    %1486 = vmatprep.subr.mxu0 0.0
    %v1487 = vand.u32 %v744, 4294901760
    %v1488 = vsub.f32 %v744, %v1487
    %v1489 = vand.u32 %v1488, 4294901760
    %1490 = vmatpush1.msra.mxu0 %v1489
    %1491 = vmatprep.subr.mxu0 0.0
    %v1492 = vand.u32 %v745, 4294901760
    %v1493 = vsub.f32 %v745, %v1492
    %v1494 = vand.u32 %v1493, 4294901760
    %1495 = vmatpush1.msra.mxu0 %v1494
    %v1496 = vand.u32 %v713, 4294901760
    %1497 = vmatprep.mubr.f32.mxu0 %v1496
    %v1498 = vand.u32 %v712, 4294901760
    %1499 = vmatmul.mubr.f32.gmra.mrb[0].mxu0 %v1498
    %v1500 = vpop.f32.mrb[0].mxu0
    %v1501 = vadd.f32 %v1333, %v1500
    %v1502 = vpop.f32.mrb[0].mxu0
    %1503 = vdwg.mxu0
    %1504 = vmatprep.subr.mxu0 0.0
    %v1505 = vand.u32 %v714, 4294901760
    %1506 = vmatpush1.msra.mxu0 %v1505
    %1507 = vmatprep.subr.mxu0 0.0
    %v1508 = vand.u32 %v715, 4294901760
    %1509 = vmatpush1.msra.mxu0 %v1508
    %1510 = vmatprep.subr.mxu0 0.0
    %v1511 = vand.u32 %v716, 4294901760
    %1512 = vmatpush1.msra.mxu0 %v1511
    %1513 = vmatprep.subr.mxu0 0.0
    %v1514 = vand.u32 %v717, 4294901760
    %1515 = vmatpush1.msra.mxu0 %v1514
    %1516 = vmatprep.subr.mxu0 0.0
    %v1517 = vand.u32 %v718, 4294901760
    %1518 = vmatpush1.msra.mxu0 %v1517
    %1519 = vmatprep.subr.mxu0 0.0
    %v1520 = vand.u32 %v719, 4294901760
    %1521 = vmatpush1.msra.mxu0 %v1520
    %1522 = vmatprep.subr.mxu0 0.0
    %v1523 = vand.u32 %v720, 4294901760
    %1524 = vmatpush1.msra.mxu0 %v1523
    %1525 = vmatprep.subr.mxu0 0.0
    %v1526 = vand.u32 %v721, 4294901760
    %1527 = vmatpush1.msra.mxu0 %v1526
    %1528 = vmatprep.subr.mxu0 0.0
    %v1529 = vand.u32 %v722, 4294901760
    %1530 = vmatpush1.msra.mxu0 %v1529
    %1531 = vmatprep.subr.mxu0 0.0
    %v1532 = vand.u32 %v723, 4294901760
    %1533 = vmatpush1.msra.mxu0 %v1532
    %1534 = vmatprep.subr.mxu0 0.0
    %v1535 = vand.u32 %v724, 4294901760
    %1536 = vmatpush1.msra.mxu0 %v1535
    %1537 = vmatprep.subr.mxu0 0.0
    %v1538 = vand.u32 %v725, 4294901760
    %1539 = vmatpush1.msra.mxu0 %v1538
    %1540 = vmatprep.subr.mxu0 0.0
    %v1541 = vand.u32 %v726, 4294901760
    %1542 = vmatpush1.msra.mxu0 %v1541
    %1543 = vmatprep.subr.mxu0 0.0
    %v1544 = vand.u32 %v727, 4294901760
    %1545 = vmatpush1.msra.mxu0 %v1544
    %1546 = vmatprep.subr.mxu0 0.0
    %v1547 = vand.u32 %v728, 4294901760
    %1548 = vmatpush1.msra.mxu0 %v1547
    %1549 = vmatprep.subr.mxu0 0.0
    %v1550 = vand.u32 %v729, 4294901760
    %1551 = vmatpush1.msra.mxu0 %v1550
    %1552 = vmatprep.subr.mxu0 0.0
    %v1553 = vand.u32 %v730, 4294901760
    %1554 = vmatpush1.msra.mxu0 %v1553
    %1555 = vmatprep.subr.mxu0 0.0
    %v1556 = vand.u32 %v731, 4294901760
    %1557 = vmatpush1.msra.mxu0 %v1556
    %1558 = vmatprep.subr.mxu0 0.0
    %v1559 = vand.u32 %v732, 4294901760
    %1560 = vmatpush1.msra.mxu0 %v1559
    %1561 = vmatprep.subr.mxu0 0.0
    %v1562 = vand.u32 %v733, 4294901760
    %1563 = vmatpush1.msra.mxu0 %v1562
    %1564 = vmatprep.subr.mxu0 0.0
    %v1565 = vand.u32 %v734, 4294901760
    %1566 = vmatpush1.msra.mxu0 %v1565
    %1567 = vmatprep.subr.mxu0 0.0
    %v1568 = vand.u32 %v735, 4294901760
    %1569 = vmatpush1.msra.mxu0 %v1568
    %1570 = vmatprep.subr.mxu0 0.0
    %v1571 = vand.u32 %v736, 4294901760
    %1572 = vmatpush1.msra.mxu0 %v1571
    %1573 = vmatprep.subr.mxu0 0.0
    %v1574 = vand.u32 %v737, 4294901760
    %1575 = vmatpush1.msra.mxu0 %v1574
    %1576 = vmatprep.subr.mxu0 0.0
    %v1577 = vand.u32 %v738, 4294901760
    %1578 = vmatpush1.msra.mxu0 %v1577
    %1579 = vmatprep.subr.mxu0 0.0
    %v1580 = vand.u32 %v739, 4294901760
    %1581 = vmatpush1.msra.mxu0 %v1580
    %1582 = vmatprep.subr.mxu0 0.0
    %v1583 = vand.u32 %v740, 4294901760
    %1584 = vmatpush1.msra.mxu0 %v1583
    %1585 = vmatprep.subr.mxu0 0.0
    %v1586 = vand.u32 %v741, 4294901760
    %1587 = vmatpush1.msra.mxu0 %v1586
    %1588 = vmatprep.subr.mxu0 0.0
    %v1589 = vand.u32 %v742, 4294901760
    %1590 = vmatpush1.msra.mxu0 %v1589
    %1591 = vmatprep.subr.mxu0 0.0
    %v1592 = vand.u32 %v743, 4294901760
    %1593 = vmatpush1.msra.mxu0 %v1592
    %1594 = vmatprep.subr.mxu0 0.0
    %v1595 = vand.u32 %v744, 4294901760
    %1596 = vmatpush1.msra.mxu0 %v1595
    %1597 = vmatprep.subr.mxu0 0.0
    %v1598 = vand.u32 %v745, 4294901760
    %1599 = vmatpush1.msra.mxu0 %v1598
    %v1600 = vand.u32 %v713, 4294901760
    %1601 = vmatprep.mubr.f32.mxu0 %v1600
    %v1602 = vand.u32 %v712, 4294901760
    %1603 = vmatmul.mubr.f32.gmra.mrb[0].mxu0 %v1602
    %v1604 = vpop.f32.mrb[0].mxu0
    %v1605 = vadd.f32 %v1501, %v1604
    %v1606 = vpop.f32.mrb[0].mxu0
    %1607 = vdwg.mxu0
    %v1608 = vmul.f32 %v1605, 0.5
    %v1609 = vmul.f32 %v1605, 0.70710677
    %v1610 = vand.u32 2147483647, %v1609
    %v1611 = vmul.f32 %v1610, 0.3275911
    %v1612 = vadd.f32 %v1611, 1.0
    %v1613 = vrcp.pop %v1612
    %v1614 = vmul.f32 1.0, %v1613
    %v1615 = vmul.f32 %v1614, 1.0614054
    %v1616 = vadd.f32 %v1615, -1.4531521
    %v1617 = vmul.f32 %v1614, %v1616
    %v1618 = vadd.f32 %v1617, 1.4214138
    %v1619 = vmul.f32 %v1614, %v1618
    %v1620 = vadd.f32 %v1619, -0.28449672
    %v1621 = vmul.f32 %v1614, %v1620
    %v1622 = vadd.f32 %v1621, 0.2548296
    %v1623 = vmul.f32 %v1614, %v1622
    %v1624 = vmul.f32 %v1610, %v1610
    %v1625 = vsub.f32 0.0, %v1624
    %v1626 = vmul.f32 %v1625, 1.442695
    %v1627 = vpow.pop %v1626
    %v1628 = vmul.f32 %v1623, %v1627
    %v1629 = vsub.f32 1.0, %v1628
    %vm1630 = vcmp.ge.f32.partialorder %v1609, 0.0
    %v1631 = vsub.f32 0.0, %v1629
    %v1632 = vsel %vm1630, %v1629, %v1631
    %v1633 = vadd.f32 %v1632, 1.0
    %v1634 = vmul.f32 %v1608, %v1633
    %vm1635 = vcmask 261120
    %1636 = vst.msk [vmem:[#allocation2] sm:$0xff] %vm1635, %v1605
    %1637 = vst.msk [vmem:[#allocation4] sm:$0xff] %vm1635, %v1634
    %v1638 = vld [vmem:[%s15] sm:$0xff]
    %v1639 = vld [vmem:[%s15 + $0x8] sm:$0xff]
    %v1640 = vld [vmem:[%s15 + $0x10] sm:$0xff]
    %v1641 = vld [vmem:[%s15 + $0x18] sm:$0xff]
    %v1642 = vld [vmem:[%s15 + $0x20] sm:$0xff]
    %v1643 = vld [vmem:[%s15 + $0x28] sm:$0xff]
    %v1644 = vld [vmem:[%s15 + $0x30] sm:$0xff]
    %v1645 = vld [vmem:[%s15 + $0x38] sm:$0xff]
    %v1646 = vld [vmem:[%s15 + $0x40] sm:$0xff]
    %v1647 = vld [vmem:[%s15 + $0x48] sm:$0xff]
    %v1648 = vld [vmem:[%s15 + $0x50] sm:$0xff]
    %v1649 = vld [vmem:[%s15 + $0x58] sm:$0xff]
    %v1650 = vld [vmem:[%s15 + $0x60] sm:$0xff]
    %v1651 = vld [vmem:[%s15 + $0x68] sm:$0xff]
    %v1652 = vld [vmem:[%s15 + $0x70] sm:$0xff]
    %v1653 = vld [vmem:[%s15 + $0x78] sm:$0xff]
    %v1654 = vld [vmem:[%s17] sm:$0xf]
    %v1655 = vld [vmem:[%s19] sm:$0xf]
    %v1656 = vld [vmem:[%s21] sm:$0x1f]
    %v1657 = vld [vmem:[%s21 + $0x8] sm:$0x1f]
    %v1658 = vld [vmem:[%s21 + $0x10] sm:$0x1f]
    %v1659 = vld [vmem:[%s21 + $0x18] sm:$0x1f]
    %v1660 = vld [vmem:[%s23] sm:$0x1f]
    %v1661 = vld [vmem:[%s23 + $0x8] sm:$0x1f]
    %v1662 = vld [vmem:[%s23 + $0x10] sm:$0x1f]
    %v1663 = vld [vmem:[%s23 + $0x18] sm:$0x1f]
    %v1664 = vtanh.pop %v1634
    %v1666 = vsel %vm1635, %v1664, 0
    %v1668 = vand.u32 %v1639, 4294901760
    %1669 = vmatprep.subr.mxu0 %v1668
    %v1670 = vand.u32 %v1638, 4294901760
    %1671 = vmatpush1.msra.mxu0 %v1670
    %v1672 = vand.u32 %v1643, 4294901760
    %1673 = vmatprep.subr.mxu0 %v1672
    %v1674 = vand.u32 %v1642, 4294901760
    %1675 = vmatpush1.msra.mxu0 %v1674
    %v1676 = vand.u32 %v1647, 4294901760
    %1677 = vmatprep.subr.mxu0 %v1676
    %v1678 = vand.u32 %v1646, 4294901760
    %1679 = vmatpush1.msra.mxu0 %v1678
    %v1680 = vand.u32 %v1651, 4294901760
    %1681 = vmatprep.subr.mxu0 %v1680
    %v1682 = vand.u32 %v1650, 4294901760
    %1683 = vmatpush1.msra.mxu0 %v1682
    %1684 = vmatprep.subr.mxu0 0.0
    %1685 = vmatpush1.msra.mxu0 0.0
    %1686 = vmatprep.subr.mxu0 0.0
    %1687 = vmatpush1.msra.mxu0 0.0
    %1688 = vmatprep.subr.mxu0 0.0
    %1689 = vmatpush1.msra.mxu0 0.0
    %1690 = vmatprep.subr.mxu0 0.0
    %1691 = vmatpush1.msra.mxu0 0.0
    %1692 = vmatprep.subr.mxu0 0.0
    %1693 = vmatpush1.msra.mxu0 0.0
    %1694 = vmatprep.subr.mxu0 0.0
    %1695 = vmatpush1.msra.mxu0 0.0
    %1696 = vmatprep.subr.mxu0 0.0
    %1697 = vmatpush1.msra.mxu0 0.0
    %1698 = vmatprep.subr.mxu0 0.0
    %1699 = vmatpush1.msra.mxu0 0.0
    %1700 = vmatprep.subr.mxu0 0.0
    %1701 = vmatpush1.msra.mxu0 0.0
    %1702 = vmatprep.subr.mxu0 0.0
    %1703 = vmatpush1.msra.mxu0 0.0
    %1704 = vmatprep.subr.mxu0 0.0
    %1705 = vmatpush1.msra.mxu0 0.0
    %1706 = vmatprep.subr.mxu0 0.0
    %1707 = vmatpush1.msra.mxu0 0.0
    %1708 = vmatprep.subr.mxu0 0.0
    %1709 = vmatpush1.msra.mxu0 0.0
    %1710 = vmatprep.subr.mxu0 0.0
    %1711 = vmatpush1.msra.mxu0 0.0
    %1712 = vmatprep.subr.mxu0 0.0
    %1713 = vmatpush1.msra.mxu0 0.0
    %1714 = vmatprep.subr.mxu0 0.0
    %1715 = vmatpush1.msra.mxu0 0.0
    %1716 = vmatprep.subr.mxu0 0.0
    %1717 = vmatpush1.msra.mxu0 0.0
    %1718 = vmatprep.subr.mxu0 0.0
    %1719 = vmatpush1.msra.mxu0 0.0
    %1720 = vmatprep.subr.mxu0 0.0
    %1721 = vmatpush1.msra.mxu0 0.0
    %1722 = vmatprep.subr.mxu0 0.0
    %1723 = vmatpush1.msra.mxu0 0.0
    %1724 = vmatprep.subr.mxu0 0.0
    %1725 = vmatpush1.msra.mxu0 0.0
    %1726 = vmatprep.subr.mxu0 0.0
    %1727 = vmatpush1.msra.mxu0 0.0
    %1728 = vmatprep.subr.mxu0 0.0
    %1729 = vmatpush1.msra.mxu0 0.0
    %1730 = vmatprep.subr.mxu0 0.0
    %1731 = vmatpush1.msra.mxu0 0.0
    %1732 = vmatprep.subr.mxu0 0.0
    %1733 = vmatpush1.msra.mxu0 0.0
    %1734 = vmatprep.subr.mxu0 0.0
    %1735 = vmatpush1.msra.mxu0 0.0
    %1736 = vmatprep.subr.mxu0 0.0
    %1737 = vmatpush1.msra.mxu0 0.0
    %1738 = vmatprep.subr.mxu0 0.0
    %1739 = vmatpush1.msra.mxu0 0.0
    %1740 = vmatprep.mubr.f32.mxu0 0.0
    %v1741 = vand.u32 %v1666, 4294901760
    %v1742 = vsub.f32 %v1666, %v1741
    %v1743 = vand.u32 %v1742, 4294901760
    %v1744 = vsub.f32 %v1742, %v1743
    %v1745 = vand.u32 %v1744, 4294901760
    %1746 = vmatmul.mubr.f32.gmra.mrb[0].mxu0 %v1745
    %v1747 = vpop.f32.mrb[0].mxu0
    %v1748 = vadd.f32 0.0, %v1747
    %v1749 = vpop.f32.mrb[0].mxu0
    %v1750 = vadd.f32 0.0, %v1749
    %1751 = vdwg.mxu0
    %v1752 = vand.u32 %v1639, 4294901760
    %v1753 = vsub.f32 %v1639, %v1752
    %v1754 = vand.u32 %v1753, 4294901760
    %v1755 = vsub.f32 %v1753, %v1754
    %v1756 = vand.u32 %v1755, 4294901760
    %1757 = vmatprep.subr.mxu0 %v1756
    %v1758 = vand.u32 %v1638, 4294901760
    %v1759 = vsub.f32 %v1638, %v1758
    %v1760 = vand.u32 %v1759, 4294901760
    %v1761 = vsub.f32 %v1759, %v1760
    %v1762 = vand.u32 %v1761, 4294901760
    %1763 = vmatpush1.msra.mxu0 %v1762
    %v1764 = vand.u32 %v1643, 4294901760
    %v1765 = vsub.f32 %v1643, %v1764
    %v1766 = vand.u32 %v1765, 4294901760
    %v1767 = vsub.f32 %v1765, %v1766
    %v1768 = vand.u32 %v1767, 4294901760
    %1769 = vmatprep.subr.mxu0 %v1768
    %v1770 = vand.u32 %v1642, 4294901760
    %v1771 = vsub.f32 %v1642, %v1770
    %v1772 = vand.u32 %v1771, 4294901760
    %v1773 = vsub.f32 %v1771, %v1772
    %v1774 = vand.u32 %v1773, 4294901760
    %1775 = vmatpush1.msra.mxu0 %v1774
    %v1776 = vand.u32 %v1647, 4294901760
    %v1777 = vsub.f32 %v1647, %v1776
    %v1778 = vand.u32 %v1777, 4294901760
    %v1779 = vsub.f32 %v1777, %v1778
    %v1780 = vand.u32 %v1779, 4294901760
    %1781 = vmatprep.subr.mxu0 %v1780
    %v1782 = vand.u32 %v1646, 4294901760
    %v1783 = vsub.f32 %v1646, %v1782
    %v1784 = vand.u32 %v1783, 4294901760
    %v1785 = vsub.f32 %v1783, %v1784
    %v1786 = vand.u32 %v1785, 4294901760
    %1787 = vmatpush1.msra.mxu0 %v1786
    %v1788 = vand.u32 %v1651, 4294901760
    %v1789 = vsub.f32 %v1651, %v1788
    %v1790 = vand.u32 %v1789, 4294901760
    %v1791 = vsub.f32 %v1789, %v1790
    %v1792 = vand.u32 %v1791, 4294901760
    %1793 = vmatprep.subr.mxu0 %v1792
    %v1794 = vand.u32 %v1650, 4294901760
    %v1795 = vsub.f32 %v1650, %v1794
    %v1796 = vand.u32 %v1795, 4294901760
    %v1797 = vsub.f32 %v1795, %v1796
    %v1798 = vand.u32 %v1797, 4294901760
    %1799 = vmatpush1.msra.mxu0 %v1798
    %1800 = vmatprep.subr.mxu0 0.0
    %1801 = vmatpush1.msra.mxu0 0.0
    %1802 = vmatprep.subr.mxu0 0.0
    %1803 = vmatpush1.msra.mxu0 0.0
    %1804 = vmatprep.subr.mxu0 0.0
    %1805 = vmatpush1.msra.mxu0 0.0
    %1806 = vmatprep.subr.mxu0 0.0
    %1807 = vmatpush1.msra.mxu0 0.0
    %1808 = vmatprep.subr.mxu0 0.0
    %1809 = vmatpush1.msra.mxu0 0.0
    %1810 = vmatprep.subr.mxu0 0.0
    %1811 = vmatpush1.msra.mxu0 0.0
    %1812 = vmatprep.subr.mxu0 0.0
    %1813 = vmatpush1.msra.mxu0 0.0
    %1814 = vmatprep.subr.mxu0 0.0
    %1815 = vmatpush1.msra.mxu0 0.0
    %1816 = vmatprep.subr.mxu0 0.0
    %1817 = vmatpush1.msra.mxu0 0.0
    %1818 = vmatprep.subr.mxu0 0.0
    %1819 = vmatpush1.msra.mxu0 0.0
    %1820 = vmatprep.subr.mxu0 0.0
    %1821 = vmatpush1.msra.mxu0 0.0
    %1822 = vmatprep.subr.mxu0 0.0
    %1823 = vmatpush1.msra.mxu0 0.0
    %1824 = vmatprep.subr.mxu0 0.0
    %1825 = vmatpush1.msra.mxu0 0.0
    %1826 = vmatprep.subr.mxu0 0.0
    %1827 = vmatpush1.msra.mxu0 0.0
    %1828 = vmatprep.subr.mxu0 0.0
    %1829 = vmatpush1.msra.mxu0 0.0
    %1830 = vmatprep.subr.mxu0 0.0
    %1831 = vmatpush1.msra.mxu0 0.0
    %1832 = vmatprep.subr.mxu0 0.0
    %1833 = vmatpush1.msra.mxu0 0.0
    %1834 = vmatprep.subr.mxu0 0.0
    %1835 = vmatpush1.msra.mxu0 0.0
    %1836 = vmatprep.subr.mxu0 0.0
    %1837 = vmatpush1.msra.mxu0 0.0
    %1838 = vmatprep.subr.mxu0 0.0
    %1839 = vmatpush1.msra.mxu0 0.0
    %1840 = vmatprep.subr.mxu0 0.0
    %1841 = vmatpush1.msra.mxu0 0.0
    %1842 = vmatprep.subr.mxu0 0.0
    %1843 = vmatpush1.msra.mxu0 0.0
    %1844 = vmatprep.subr.mxu0 0.0
    %1845 = vmatpush1.msra.mxu0 0.0
    %1846 = vmatprep.subr.mxu0 0.0
    %1847 = vmatpush1.msra.mxu0 0.0
    %1848 = vmatprep.subr.mxu0 0.0
    %1849 = vmatpush1.msra.mxu0 0.0
    %1850 = vmatprep.subr.mxu0 0.0
    %1851 = vmatpush1.msra.mxu0 0.0
    %1852 = vmatprep.subr.mxu0 0.0
    %1853 = vmatpush1.msra.mxu0 0.0
    %1854 = vmatprep.subr.mxu0 0.0
    %1855 = vmatpush1.msra.mxu0 0.0
    %1856 = vmatprep.mubr.f32.mxu0 0.0
    %v1857 = vand.u32 %v1666, 4294901760
    %1858 = vmatmul.mubr.f32.gmra.mrb[0].mxu0 %v1857
    %v1859 = vpop.f32.mrb[0].mxu0
    %v1860 = vadd.f32 %v1748, %v1859
    %v1861 = vpop.f32.mrb[0].mxu0
    %v1862 = vadd.f32 %v1750, %v1861
    %1863 = vdwg.mxu0
    %v1864 = vand.u32 %v1639, 4294901760
    %v1865 = vsub.f32 %v1639, %v1864
    %1866 = vmatprep.subr.mxu0 %v1865
    %v1867 = vand.u32 %v1638, 4294901760
    %v1868 = vsub.f32 %v1638, %v1867
    %1869 = vmatpush1.msra.mxu0 %v1868
    %v1870 = vand.u32 %v1643, 4294901760
    %v1871 = vsub.f32 %v1643, %v1870
    %1872 = vmatprep.subr.mxu0 %v1871
    %v1873 = vand.u32 %v1642, 4294901760
    %v1874 = vsub.f32 %v1642, %v1873
    %1875 = vmatpush1.msra.mxu0 %v1874
    %v1876 = vand.u32 %v1647, 4294901760
    %v1877 = vsub.f32 %v1647, %v1876
    %1878 = vmatprep.subr.mxu0 %v1877
    %v1879 = vand.u32 %v1646, 4294901760
    %v1880 = vsub.f32 %v1646, %v1879
    %1881 = vmatpush1.msra.mxu0 %v1880
    %v1882 = vand.u32 %v1651, 4294901760
    %v1883 = vsub.f32 %v1651, %v1882
    %1884 = vmatprep.subr.mxu0 %v1883
    %v1885 = vand.u32 %v1650, 4294901760
    %v1886 = vsub.f32 %v1650, %v1885
    %1887 = vmatpush1.msra.mxu0 %v1886
    %1888 = vmatprep.subr.mxu0 0.0
    %1889 = vmatpush1.msra.mxu0 0.0
    %1890 = vmatprep.subr.mxu0 0.0
    %1891 = vmatpush1.msra.mxu0 0.0
    %1892 = vmatprep.subr.mxu0 0.0
    %1893 = vmatpush1.msra.mxu0 0.0
    %1894 = vmatprep.subr.mxu0 0.0
    %1895 = vmatpush1.msra.mxu0 0.0
    %1896 = vmatprep.subr.mxu0 0.0
    %1897 = vmatpush1.msra.mxu0 0.0
    %1898 = vmatprep.subr.mxu0 0.0
    %1899 = vmatpush1.msra.mxu0 0.0
    %1900 = vmatprep.subr.mxu0 0.0
    %1901 = vmatpush1.msra.mxu0 0.0
    %1902 = vmatprep.subr.mxu0 0.0
    %1903 = vmatpush1.msra.mxu0 0.0
    %1904 = vmatprep.subr.mxu0 0.0
    %1905 = vmatpush1.msra.mxu0 0.0
    %1906 = vmatprep.subr.mxu0 0.0
    %1907 = vmatpush1.msra.mxu0 0.0
    %1908 = vmatprep.subr.mxu0 0.0
    %1909 = vmatpush1.msra.mxu0 0.0
    %1910 = vmatprep.subr.mxu0 0.0
    %1911 = vmatpush1.msra.mxu0 0.0
    %1912 = vmatprep.subr.mxu0 0.0
    %1913 = vmatpush1.msra.mxu0 0.0
    %1914 = vmatprep.subr.mxu0 0.0
    %1915 = vmatpush1.msra.mxu0 0.0
    %1916 = vmatprep.subr.mxu0 0.0
    %1917 = vmatpush1.msra.mxu0 0.0
    %1918 = vmatprep.subr.mxu0 0.0
    %1919 = vmatpush1.msra.mxu0 0.0
    %1920 = vmatprep.subr.mxu0 0.0
    %1921 = vmatpush1.msra.mxu0 0.0
    %1922 = vmatprep.subr.mxu0 0.0
    %1923 = vmatpush1.msra.mxu0 0.0
    %1924 = vmatprep.subr.mxu0 0.0
    %1925 = vmatpush1.msra.mxu0 0.0
    %1926 = vmatprep.subr.mxu0 0.0
    %1927 = vmatpush1.msra.mxu0 0.0
    %1928 = vmatprep.subr.mxu0 0.0
    %1929 = vmatpush1.msra.mxu0 0.0
    %1930 = vmatprep.subr.mxu0 0.0
    %1931 = vmatpush1.msra.mxu0 0.0
    %1932 = vmatprep.subr.mxu0 0.0
    %1933 = vmatpush1.msra.mxu0 0.0
    %1934 = vmatprep.subr.mxu0 0.0
    %1935 = vmatpush1.msra.mxu0 0.0
    %1936 = vmatprep.subr.mxu0 0.0
    %1937 = vmatpush1.msra.mxu0 0.0
    %1938 = vmatprep.subr.mxu0 0.0
    %1939 = vmatpush1.msra.mxu0 0.0
    %1940 = vmatprep.subr.mxu0 0.0
    %1941 = vmatpush1.msra.mxu0 0.0
    %1942 = vmatprep.subr.mxu0 0.0
    %1943 = vmatpush1.msra.mxu0 0.0
    %1944 = vmatprep.mubr.f32.mxu0 0.0
    %v1945 = vand.u32 %v1666, 4294901760
    %v1946 = vsub.f32 %v1666, %v1945
    %1947 = vmatmul.mubr.f32.gmra.mrb[0].mxu0 %v1946
    %v1948 = vpop.f32.mrb[0].mxu0
    %v1949 = vadd.f32 %v1860, %v1948
    %v1950 = vpop.f32.mrb[0].mxu0
    %v1951 = vadd.f32 %v1862, %v1950
    %1952 = vdwg.mxu0
    %v1953 = vand.u32 %v1639, 4294901760
    %1954 = vmatprep.subr.mxu0 %v1953
    %v1955 = vand.u32 %v1638, 4294901760
    %1956 = vmatpush1.msra.mxu0 %v1955
    %v1957 = vand.u32 %v1643, 4294901760
    %1958 = vmatprep.subr.mxu0 %v1957
    %v1959 = vand.u32 %v1642, 4294901760
    %1960 = vmatpush1.msra.mxu0 %v1959
    %v1961 = vand.u32 %v1647, 4294901760
    %1962 = vmatprep.subr.mxu0 %v1961
    %v1963 = vand.u32 %v1646, 4294901760
    %1964 = vmatpush1.msra.mxu0 %v1963
    %v1965 = vand.u32 %v1651, 4294901760
    %1966 = vmatprep.subr.mxu0 %v1965
    %v1967 = vand.u32 %v1650, 4294901760
    %1968 = vmatpush1.msra.mxu0 %v1967
    %1969 = vmatprep.subr.mxu0 0.0
    %1970 = vmatpush1.msra.mxu0 0.0
    %1971 = vmatprep.subr.mxu0 0.0
    %1972 = vmatpush1.msra.mxu0 0.0
    %1973 = vmatprep.subr.mxu0 0.0
    %1974 = vmatpush1.msra.mxu0 0.0
    %1975 = vmatprep.subr.mxu0 0.0
    %1976 = vmatpush1.msra.mxu0 0.0
    %1977 = vmatprep.subr.mxu0 0.0
    %1978 = vmatpush1.msra.mxu0 0.0
    %1979 = vmatprep.subr.mxu0 0.0
    %1980 = vmatpush1.msra.mxu0 0.0
    %1981 = vmatprep.subr.mxu0 0.0
    %1982 = vmatpush1.msra.mxu0 0.0
    %1983 = vmatprep.subr.mxu0 0.0
    %1984 = vmatpush1.msra.mxu0 0.0
    %1985 = vmatprep.subr.mxu0 0.0
    %1986 = vmatpush1.msra.mxu0 0.0
    %1987 = vmatprep.subr.mxu0 0.0
    %1988 = vmatpush1.msra.mxu0 0.0
    %1989 = vmatprep.subr.mxu0 0.0
    %1990 = vmatpush1.msra.mxu0 0.0
    %1991 = vmatprep.subr.mxu0 0.0
    %1992 = vmatpush1.msra.mxu0 0.0
    %1993 = vmatprep.subr.mxu0 0.0
    %1994 = vmatpush1.msra.mxu0 0.0
    %1995 = vmatprep.subr.mxu0 0.0
    %1996 = vmatpush1.msra.mxu0 0.0
    %1997 = vmatprep.subr.mxu0 0.0
    %1998 = vmatpush1.msra.mxu0 0.0
    %1999 = vmatprep.subr.mxu0 0.0
    %2000 = vmatpush1.msra.mxu0 0.0
    %2001 = vmatprep.subr.mxu0 0.0
    %2002 = vmatpush1.msra.mxu0 0.0
    %2003 = vmatprep.subr.mxu0 0.0
    %2004 = vmatpush1.msra.mxu0 0.0
    %2005 = vmatprep.subr.mxu0 0.0
    %2006 = vmatpush1.msra.mxu0 0.0
    %2007 = vmatprep.subr.mxu0 0.0
    %2008 = vmatpush1.msra.mxu0 0.0
    %2009 = vmatprep.subr.mxu0 0.0
    %2010 = vmatpush1.msra.mxu0 0.0
    %2011 = vmatprep.subr.mxu0 0.0
    %2012 = vmatpush1.msra.mxu0 0.0
    %2013 = vmatprep.subr.mxu0 0.0
    %2014 = vmatpush1.msra.mxu0 0.0
    %2015 = vmatprep.subr.mxu0 0.0
    %2016 = vmatpush1.msra.mxu0 0.0
    %2017 = vmatprep.subr.mxu0 0.0
    %2018 = vmatpush1.msra.mxu0 0.0
    %2019 = vmatprep.subr.mxu0 0.0
    %2020 = vmatpush1.msra.mxu0 0.0
    %2021 = vmatprep.subr.mxu0 0.0
    %2022 = vmatpush1.msra.mxu0 0.0
    %2023 = vmatprep.subr.mxu0 0.0
    %2024 = vmatpush1.msra.mxu0 0.0
    %2025 = vmatprep.mubr.f32.mxu0 0.0
    %v2026 = vand.u32 %v1666, 4294901760
    %v2027 = vsub.f32 %v1666, %v2026
    %v2028 = vand.u32 %v2027, 4294901760
    %2029 = vmatmul.mubr.f32.gmra.mrb[0].mxu0 %v2028
    %v2030 = vpop.f32.mrb[0].mxu0
    %v2031 = vadd.f32 %v1949, %v2030
    %v2032 = vpop.f32.mrb[0].mxu0
    %v2033 = vadd.f32 %v1951, %v2032
    %2034 = vdwg.mxu0
    %v2035 = vand.u32 %v1639, 4294901760
    %v2036 = vsub.f32 %v1639, %v2035
    %v2037 = vand.u32 %v2036, 4294901760
    %2038 = vmatprep.subr.mxu0 %v2037
    %v2039 = vand.u32 %v1638, 4294901760
    %v2040 = vsub.f32 %v1638, %v2039
    %v2041 = vand.u32 %v2040, 4294901760
    %2042 = vmatpush1.msra.mxu0 %v2041
    %v2043 = vand.u32 %v1643, 4294901760
    %v2044 = vsub.f32 %v1643, %v2043
    %v2045 = vand.u32 %v2044, 4294901760
    %2046 = vmatprep.subr.mxu0 %v2045
    %v2047 = vand.u32 %v1642, 4294901760
    %v2048 = vsub.f32 %v1642, %v2047
    %v2049 = vand.u32 %v2048, 4294901760
    %2050 = vmatpush1.msra.mxu0 %v2049
    %v2051 = vand.u32 %v1647, 4294901760
    %v2052 = vsub.f32 %v1647, %v2051
    %v2053 = vand.u32 %v2052, 4294901760
    %2054 = vmatprep.subr.mxu0 %v2053
    %v2055 = vand.u32 %v1646, 4294901760
    %v2056 = vsub.f32 %v1646, %v2055
    %v2057 = vand.u32 %v2056, 4294901760
    %2058 = vmatpush1.msra.mxu0 %v2057
    %v2059 = vand.u32 %v1651, 4294901760
    %v2060 = vsub.f32 %v1651, %v2059
    %v2061 = vand.u32 %v2060, 4294901760
    %2062 = vmatprep.subr.mxu0 %v2061
    %v2063 = vand.u32 %v1650, 4294901760
    %v2064 = vsub.f32 %v1650, %v2063
    %v2065 = vand.u32 %v2064, 4294901760
    %2066 = vmatpush1.msra.mxu0 %v2065
    %2067 = vmatprep.subr.mxu0 0.0
    %2068 = vmatpush1.msra.mxu0 0.0
    %2069 = vmatprep.subr.mxu0 0.0
    %2070 = vmatpush1.msra.mxu0 0.0
    %2071 = vmatprep.subr.mxu0 0.0
    %2072 = vmatpush1.msra.mxu0 0.0
    %2073 = vmatprep.subr.mxu0 0.0
    %2074 = vmatpush1.msra.mxu0 0.0
    %2075 = vmatprep.subr.mxu0 0.0
    %2076 = vmatpush1.msra.mxu0 0.0
    %2077 = vmatprep.subr.mxu0 0.0
    %2078 = vmatpush1.msra.mxu0 0.0
    %2079 = vmatprep.subr.mxu0 0.0
    %2080 = vmatpush1.msra.mxu0 0.0
    %2081 = vmatprep.subr.mxu0 0.0
    %2082 = vmatpush1.msra.mxu0 0.0
    %2083 = vmatprep.subr.mxu0 0.0
    %2084 = vmatpush1.msra.mxu0 0.0
    %2085 = vmatprep.subr.mxu0 0.0
    %2086 = vmatpush1.msra.mxu0 0.0
    %2087 = vmatprep.subr.mxu0 0.0
    %2088 = vmatpush1.msra.mxu0 0.0
    %2089 = vmatprep.subr.mxu0 0.0
    %2090 = vmatpush1.msra.mxu0 0.0
    %2091 = vmatprep.subr.mxu0 0.0
    %2092 = vmatpush1.msra.mxu0 0.0
    %2093 = vmatprep.subr.mxu0 0.0
    %2094 = vmatpush1.msra.mxu0 0.0
    %2095 = vmatprep.subr.mxu0 0.0
    %2096 = vmatpush1.msra.mxu0 0.0
    %2097 = vmatprep.subr.mxu0 0.0
    %2098 = vmatpush1.msra.mxu0 0.0
    %2099 = vmatprep.subr.mxu0 0.0
    %2100 = vmatpush1.msra.mxu0 0.0
    %2101 = vmatprep.subr.mxu0 0.0
    %2102 = vmatpush1.msra.mxu0 0.0
    %2103 = vmatprep.subr.mxu0 0.0
    %2104 = vmatpush1.msra.mxu0 0.0
    %2105 = vmatprep.subr.mxu0 0.0
    %2106 = vmatpush1.msra.mxu0 0.0
    %2107 = vmatprep.subr.mxu0 0.0
    %2108 = vmatpush1.msra.mxu0 0.0
    %2109 = vmatprep.subr.mxu0 0.0
    %2110 = vmatpush1.msra.mxu0 0.0
    %2111 = vmatprep.subr.mxu0 0.0
    %2112 = vmatpush1.msra.mxu0 0.0
    %2113 = vmatprep.subr.mxu0 0.0
    %2114 = vmatpush1.msra.mxu0 0.0
    %2115 = vmatprep.subr.mxu0 0.0
    %2116 = vmatpush1.msra.mxu0 0.0
    %2117 = vmatprep.subr.mxu0 0.0
    %2118 = vmatpush1.msra.mxu0 0.0
    %2119 = vmatprep.subr.mxu0 0.0
    %2120 = vmatpush1.msra.mxu0 0.0
    %2121 = vmatprep.subr.mxu0 0.0
    %2122 = vmatpush1.msra.mxu0 0.0
    %2123 = vmatprep.mubr.f32.mxu0 0.0
    %v2124 = vand.u32 %v1666, 4294901760
    %2125 = vmatmul.mubr.f32.gmra.mrb[0].mxu0 %v2124
    %v2126 = vpop.f32.mrb[0].mxu0
    %v2127 = vadd.f32 %v2031, %v2126
    %v2128 = vpop.f32.mrb[0].mxu0
    %v2129 = vadd.f32 %v2033, %v2128
    %2130 = vdwg.mxu0
    %v2131 = vand.u32 %v1639, 4294901760
    %2132 = vmatprep.subr.mxu0 %v2131
    %v2133 = vand.u32 %v1638, 4294901760
    %2134 = vmatpush1.msra.mxu0 %v2133
    %v2135 = vand.u32 %v1643, 4294901760
    %2136 = vmatprep.subr.mxu0 %v2135
    %v2137 = vand.u32 %v1642, 4294901760
    %2138 = vmatpush1.msra.mxu0 %v2137
    %v2139 = vand.u32 %v1647, 4294901760
    %2140 = vmatprep.subr.mxu0 %v2139
    %v2141 = vand.u32 %v1646, 4294901760
    %2142 = vmatpush1.msra.mxu0 %v2141
    %v2143 = vand.u32 %v1651, 4294901760
    %2144 = vmatprep.subr.mxu0 %v2143
    %v2145 = vand.u32 %v1650, 4294901760
    %2146 = vmatpush1.msra.mxu0 %v2145
    %2147 = vmatprep.subr.mxu0 0.0
    %2148 = vmatpush1.msra.mxu0 0.0
    %2149 = vmatprep.subr.mxu0 0.0
    %2150 = vmatpush1.msra.mxu0 0.0
    %2151 = vmatprep.subr.mxu0 0.0
    %2152 = vmatpush1.msra.mxu0 0.0
    %2153 = vmatprep.subr.mxu0 0.0
    %2154 = vmatpush1.msra.mxu0 0.0
    %2155 = vmatprep.subr.mxu0 0.0
    %2156 = vmatpush1.msra.mxu0 0.0
    %2157 = vmatprep.subr.mxu0 0.0
    %2158 = vmatpush1.msra.mxu0 0.0
    %2159 = vmatprep.subr.mxu0 0.0
    %2160 = vmatpush1.msra.mxu0 0.0
    %2161 = vmatprep.subr.mxu0 0.0
    %2162 = vmatpush1.msra.mxu0 0.0
    %2163 = vmatprep.subr.mxu0 0.0
    %2164 = vmatpush1.msra.mxu0 0.0
    %2165 = vmatprep.subr.mxu0 0.0
    %2166 = vmatpush1.msra.mxu0 0.0
    %2167 = vmatprep.subr.mxu0 0.0
    %2168 = vmatpush1.msra.mxu0 0.0
    %2169 = vmatprep.subr.mxu0 0.0
    %2170 = vmatpush1.msra.mxu0 0.0
    %2171 = vmatprep.subr.mxu0 0.0
    %2172 = vmatpush1.msra.mxu0 0.0
    %2173 = vmatprep.subr.mxu0 0.0
    %2174 = vmatpush1.msra.mxu0 0.0
    %2175 = vmatprep.subr.mxu0 0.0
    %2176 = vmatpush1.msra.mxu0 0.0
    %2177 = vmatprep.subr.mxu0 0.0
    %2178 = vmatpush1.msra.mxu0 0.0
    %2179 = vmatprep.subr.mxu0 0.0
    %2180 = vmatpush1.msra.mxu0 0.0
    %2181 = vmatprep.subr.mxu0 0.0
    %2182 = vmatpush1.msra.mxu0 0.0
    %2183 = vmatprep.subr.mxu0 0.0
    %2184 = vmatpush1.msra.mxu0 0.0
    %2185 = vmatprep.subr.mxu0 0.0
    %2186 = vmatpush1.msra.mxu0 0.0
    %2187 = vmatprep.subr.mxu0 0.0
    %2188 = vmatpush1.msra.mxu0 0.0
    %2189 = vmatprep.subr.mxu0 0.0
    %2190 = vmatpush1.msra.mxu0 0.0
    %2191 = vmatprep.subr.mxu0 0.0
    %2192 = vmatpush1.msra.mxu0 0.0
    %2193 = vmatprep.subr.mxu0 0.0
    %2194 = vmatpush1.msra.mxu0 0.0
    %2195 = vmatprep.subr.mxu0 0.0
    %2196 = vmatpush1.msra.mxu0 0.0
    %2197 = vmatprep.subr.mxu0 0.0
    %2198 = vmatpush1.msra.mxu0 0.0
    %2199 = vmatprep.subr.mxu0 0.0
    %2200 = vmatpush1.msra.mxu0 0.0
    %2201 = vmatprep.subr.mxu0 0.0
    %2202 = vmatpush1.msra.mxu0 0.0
    %2203 = vmatprep.mubr.f32.mxu0 0.0
    %v2204 = vand.u32 %v1666, 4294901760
    %2205 = vmatmul.mubr.f32.gmra.mrb[0].mxu0 %v2204
    %v2206 = vpop.f32.mrb[0].mxu0
    %v2207 = vadd.f32 %v2127, %v2206
    %v2208 = vpop.f32.mrb[0].mxu0
    %v2209 = vadd.f32 %v2129, %v2208
    %2210 = vdwg.mxu0
    %v2211 = vand.u32 %v1641, 4294901760
    %2212 = vmatprep.subr.mxu0 %v2211
    %v2213 = vand.u32 %v1640, 4294901760
    %2214 = vmatpush1.msra.mxu0 %v2213
    %v2215 = vand.u32 %v1645, 4294901760
    %2216 = vmatprep.subr.mxu0 %v2215
    %v2217 = vand.u32 %v1644, 4294901760
    %2218 = vmatpush1.msra.mxu0 %v2217
    %v2219 = vand.u32 %v1649, 4294901760
    %2220 = vmatprep.subr.mxu0 %v2219
    %v2221 = vand.u32 %v1648, 4294901760
    %2222 = vmatpush1.msra.mxu0 %v2221
    %v2223 = vand.u32 %v1653, 4294901760
    %2224 = vmatprep.subr.mxu0 %v2223
    %v2225 = vand.u32 %v1652, 4294901760
    %2226 = vmatpush1.msra.mxu0 %v2225
    %2227 = vmatprep.subr.mxu0 0.0
    %2228 = vmatpush1.msra.mxu0 0.0
    %2229 = vmatprep.subr.mxu0 0.0
    %2230 = vmatpush1.msra.mxu0 0.0
    %2231 = vmatprep.subr.mxu0 0.0
    %2232 = vmatpush1.msra.mxu0 0.0
    %2233 = vmatprep.subr.mxu0 0.0
    %2234 = vmatpush1.msra.mxu0 0.0
    %2235 = vmatprep.subr.mxu0 0.0
    %2236 = vmatpush1.msra.mxu0 0.0
    %2237 = vmatprep.subr.mxu0 0.0
    %2238 = vmatpush1.msra.mxu0 0.0
    %2239 = vmatprep.subr.mxu0 0.0
    %2240 = vmatpush1.msra.mxu0 0.0
    %2241 = vmatprep.subr.mxu0 0.0
    %2242 = vmatpush1.msra.mxu0 0.0
    %2243 = vmatprep.subr.mxu0 0.0
    %2244 = vmatpush1.msra.mxu0 0.0
    %2245 = vmatprep.subr.mxu0 0.0
    %2246 = vmatpush1.msra.mxu0 0.0
    %2247 = vmatprep.subr.mxu0 0.0
    %2248 = vmatpush1.msra.mxu0 0.0
    %2249 = vmatprep.subr.mxu0 0.0
    %2250 = vmatpush1.msra.mxu0 0.0
    %2251 = vmatprep.subr.mxu0 0.0
    %2252 = vmatpush1.msra.mxu0 0.0
    %2253 = vmatprep.subr.mxu0 0.0
    %2254 = vmatpush1.msra.mxu0 0.0
    %2255 = vmatprep.subr.mxu0 0.0
    %2256 = vmatpush1.msra.mxu0 0.0
    %2257 = vmatprep.subr.mxu0 0.0
    %2258 = vmatpush1.msra.mxu0 0.0
    %2259 = vmatprep.subr.mxu0 0.0
    %2260 = vmatpush1.msra.mxu0 0.0
    %2261 = vmatprep.subr.mxu0 0.0
    %2262 = vmatpush1.msra.mxu0 0.0
    %2263 = vmatprep.subr.mxu0 0.0
    %2264 = vmatpush1.msra.mxu0 0.0
    %2265 = vmatprep.subr.mxu0 0.0
    %2266 = vmatpush1.msra.mxu0 0.0
    %2267 = vmatprep.subr.mxu0 0.0
    %2268 = vmatpush1.msra.mxu0 0.0
    %2269 = vmatprep.subr.mxu0 0.0
    %2270 = vmatpush1.msra.mxu0 0.0
    %2271 = vmatprep.subr.mxu0 0.0
    %2272 = vmatpush1.msra.mxu0 0.0
    %2273 = vmatprep.subr.mxu0 0.0
    %2274 = vmatpush1.msra.mxu0 0.0
    %2275 = vmatprep.subr.mxu0 0.0
    %2276 = vmatpush1.msra.mxu0 0.0
    %2277 = vmatprep.subr.mxu0 0.0
    %2278 = vmatpush1.msra.mxu0 0.0
    %2279 = vmatprep.subr.mxu0 0.0
    %2280 = vmatpush1.msra.mxu0 0.0
    %2281 = vmatprep.subr.mxu0 0.0
    %2282 = vmatpush1.msra.mxu0 0.0
    %2283 = vmatprep.mubr.f32.mxu0 0.0
    %v2284 = vand.u32 %v1666, 4294901760
    %v2285 = vsub.f32 %v1666, %v2284
    %v2286 = vand.u32 %v2285, 4294901760
    %v2287 = vsub.f32 %v2285, %v2286
    %v2288 = vand.u32 %v2287, 4294901760
    %2289 = vmatmul.mubr.f32.gmra.mrb[0].mxu0 %v2288
    %v2290 = vpop.f32.mrb[0].mxu0
    %v2291 = vadd.f32 0.0, %v2290
    %v2292 = vpop.f32.mrb[0].mxu0
    %v2293 = vadd.f32 0.0, %v2292
    %2294 = vdwg.mxu0
    %v2295 = vand.u32 %v1641, 4294901760
    %v2296 = vsub.f32 %v1641, %v2295
    %v2297 = vand.u32 %v2296, 4294901760
    %v2298 = vsub.f32 %v2296, %v2297
    %v2299 = vand.u32 %v2298, 4294901760
    %2300 = vmatprep.subr.mxu0 %v2299
    %v2301 = vand.u32 %v1640, 4294901760
    %v2302 = vsub.f32 %v1640, %v2301
    %v2303 = vand.u32 %v2302, 4294901760
    %v2304 = vsub.f32 %v2302, %v2303
    %v2305 = vand.u32 %v2304, 4294901760
    %2306 = vmatpush1.msra.mxu0 %v2305
    %v2307 = vand.u32 %v1645, 4294901760
    %v2308 = vsub.f32 %v1645, %v2307
    %v2309 = vand.u32 %v2308, 4294901760
    %v2310 = vsub.f32 %v2308, %v2309
    %v2311 = vand.u32 %v2310, 4294901760
    %2312 = vmatprep.subr.mxu0 %v2311
    %v2313 = vand.u32 %v1644, 4294901760
    %v2314 = vsub.f32 %v1644, %v2313
    %v2315 = vand.u32 %v2314, 4294901760
    %v2316 = vsub.f32 %v2314, %v2315
    %v2317 = vand.u32 %v2316, 4294901760
    %2318 = vmatpush1.msra.mxu0 %v2317
    %v2319 = vand.u32 %v1649, 4294901760
    %v2320 = vsub.f32 %v1649, %v2319
    %v2321 = vand.u32 %v2320, 4294901760
    %v2322 = vsub.f32 %v2320, %v2321
    %v2323 = vand.u32 %v2322, 4294901760
    %2324 = vmatprep.subr.mxu0 %v2323
    %v2325 = vand.u32 %v1648, 4294901760
    %v2326 = vsub.f32 %v1648, %v2325
    %v2327 = vand.u32 %v2326, 4294901760
    %v2328 = vsub.f32 %v2326, %v2327
    %v2329 = vand.u32 %v2328, 4294901760
    %2330 = vmatpush1.msra.mxu0 %v2329
    %v2331 = vand.u32 %v1653, 4294901760
    %v2332 = vsub.f32 %v1653, %v2331
    %v2333 = vand.u32 %v2332, 4294901760
    %v2334 = vsub.f32 %v2332, %v2333
    %v2335 = vand.u32 %v2334, 4294901760
    %2336 = vmatprep.subr.mxu0 %v2335
    %v2337 = vand.u32 %v1652, 4294901760
    %v2338 = vsub.f32 %v1652, %v2337
    %v2339 = vand.u32 %v2338, 4294901760
    %v2340 = vsub.f32 %v2338, %v2339
    %v2341 = vand.u32 %v2340, 4294901760
    %2342 = vmatpush1.msra.mxu0 %v2341
    %2343 = vmatprep.subr.mxu0 0.0
    %2344 = vmatpush1.msra.mxu0 0.0
    %2345 = vmatprep.subr.mxu0 0.0
    %2346 = vmatpush1.msra.mxu0 0.0
    %2347 = vmatprep.subr.mxu0 0.0
    %2348 = vmatpush1.msra.mxu0 0.0
    %2349 = vmatprep.subr.mxu0 0.0
    %2350 = vmatpush1.msra.mxu0 0.0
    %2351 = vmatprep.subr.mxu0 0.0
    %2352 = vmatpush1.msra.mxu0 0.0
    %2353 = vmatprep.subr.mxu0 0.0
    %2354 = vmatpush1.msra.mxu0 0.0
    %2355 = vmatprep.subr.mxu0 0.0
    %2356 = vmatpush1.msra.mxu0 0.0
    %2357 = vmatprep.subr.mxu0 0.0
    %2358 = vmatpush1.msra.mxu0 0.0
    %2359 = vmatprep.subr.mxu0 0.0
    %2360 = vmatpush1.msra.mxu0 0.0
    %2361 = vmatprep.subr.mxu0 0.0
    %2362 = vmatpush1.msra.mxu0 0.0
    %2363 = vmatprep.subr.mxu0 0.0
    %2364 = vmatpush1.msra.mxu0 0.0
    %2365 = vmatprep.subr.mxu0 0.0
    %2366 = vmatpush1.msra.mxu0 0.0
    %2367 = vmatprep.subr.mxu0 0.0
    %2368 = vmatpush1.msra.mxu0 0.0
    %2369 = vmatprep.subr.mxu0 0.0
    %2370 = vmatpush1.msra.mxu0 0.0
    %2371 = vmatprep.subr.mxu0 0.0
    %2372 = vmatpush1.msra.mxu0 0.0
    %2373 = vmatprep.subr.mxu0 0.0
    %2374 = vmatpush1.msra.mxu0 0.0
    %2375 = vmatprep.subr.mxu0 0.0
    %2376 = vmatpush1.msra.mxu0 0.0
    %2377 = vmatprep.subr.mxu0 0.0
    %2378 = vmatpush1.msra.mxu0 0.0
    %2379 = vmatprep.subr.mxu0 0.0
    %2380 = vmatpush1.msra.mxu0 0.0
    %2381 = vmatprep.subr.mxu0 0.0
    %2382 = vmatpush1.msra.mxu0 0.0
    %2383 = vmatprep.subr.mxu0 0.0
    %2384 = vmatpush1.msra.mxu0 0.0
    %2385 = vmatprep.subr.mxu0 0.0
    %2386 = vmatpush1.msra.mxu0 0.0
    %2387 = vmatprep.subr.mxu0 0.0
    %2388 = vmatpush1.msra.mxu0 0.0
    %2389 = vmatprep.subr.mxu0 0.0
    %2390 = vmatpush1.msra.mxu0 0.0
    %2391 = vmatprep.subr.mxu0 0.0
    %2392 = vmatpush1.msra.mxu0 0.0
    %2393 = vmatprep.subr.mxu0 0.0
    %2394 = vmatpush1.msra.mxu0 0.0
    %2395 = vmatprep.subr.mxu0 0.0
    %2396 = vmatpush1.msra.mxu0 0.0
    %2397 = vmatprep.subr.mxu0 0.0
    %2398 = vmatpush1.msra.mxu0 0.0
    %2399 = vmatprep.mubr.f32.mxu0 0.0
    %v2400 = vand.u32 %v1666, 4294901760
    %2401 = vmatmul.mubr.f32.gmra.mrb[0].mxu0 %v2400
    %v2402 = vpop.f32.mrb[0].mxu0
    %v2403 = vadd.f32 %v2291, %v2402
    %v2404 = vpop.f32.mrb[0].mxu0
    %v2405 = vadd.f32 %v2293, %v2404
    %2406 = vdwg.mxu0
    %v2407 = vand.u32 %v1641, 4294901760
    %v2408 = vsub.f32 %v1641, %v2407
    %2409 = vmatprep.subr.mxu0 %v2408
    %v2410 = vand.u32 %v1640, 4294901760
    %v2411 = vsub.f32 %v1640, %v2410
    %2412 = vmatpush1.msra.mxu0 %v2411
    %v2413 = vand.u32 %v1645, 4294901760
    %v2414 = vsub.f32 %v1645, %v2413
    %2415 = vmatprep.subr.mxu0 %v2414
    %v2416 = vand.u32 %v1644, 4294901760
    %v2417 = vsub.f32 %v1644, %v2416
    %2418 = vmatpush1.msra.mxu0 %v2417
    %v2419 = vand.u32 %v1649, 4294901760
    %v2420 = vsub.f32 %v1649, %v2419
    %2421 = vmatprep.subr.mxu0 %v2420
    %v2422 = vand.u32 %v1648, 4294901760
    %v2423 = vsub.f32 %v1648, %v2422
    %2424 = vmatpush1.msra.mxu0 %v2423
    %v2425 = vand.u32 %v1653, 4294901760
    %v2426 = vsub.f32 %v1653, %v2425
    %2427 = vmatprep.subr.mxu0 %v2426
    %v2428 = vand.u32 %v1652, 4294901760
    %v2429 = vsub.f32 %v1652, %v2428
    %2430 = vmatpush1.msra.mxu0 %v2429
    %2431 = vmatprep.subr.mxu0 0.0
    %2432 = vmatpush1.msra.mxu0 0.0
    %2433 = vmatprep.subr.mxu0 0.0
    %2434 = vmatpush1.msra.mxu0 0.0
    %2435 = vmatprep.subr.mxu0 0.0
    %2436 = vmatpush1.msra.mxu0 0.0
    %2437 = vmatprep.subr.mxu0 0.0
    %2438 = vmatpush1.msra.mxu0 0.0
    %2439 = vmatprep.subr.mxu0 0.0
    %2440 = vmatpush1.msra.mxu0 0.0
    %2441 = vmatprep.subr.mxu0 0.0
    %2442 = vmatpush1.msra.mxu0 0.0
    %2443 = vmatprep.subr.mxu0 0.0
    %2444 = vmatpush1.msra.mxu0 0.0
    %2445 = vmatprep.subr.mxu0 0.0
    %2446 = vmatpush1.msra.mxu0 0.0
    %2447 = vmatprep.subr.mxu0 0.0
    %2448 = vmatpush1.msra.mxu0 0.0
    %2449 = vmatprep.subr.mxu0 0.0
    %2450 = vmatpush1.msra.mxu0 0.0
    %2451 = vmatprep.subr.mxu0 0.0
    %2452 = vmatpush1.msra.mxu0 0.0
    %2453 = vmatprep.subr.mxu0 0.0
    %2454 = vmatpush1.msra.mxu0 0.0
    %2455 = vmatprep.subr.mxu0 0.0
    %2456 = vmatpush1.msra.mxu0 0.0
    %2457 = vmatprep.subr.mxu0 0.0
    %2458 = vmatpush1.msra.mxu0 0.0
    %2459 = vmatprep.subr.mxu0 0.0
    %2460 = vmatpush1.msra.mxu0 0.0
    %2461 = vmatprep.subr.mxu0 0.0
    %2462 = vmatpush1.msra.mxu0 0.0
    %2463 = vmatprep.subr.mxu0 0.0
    %2464 = vmatpush1.msra.mxu0 0.0
    %2465 = vmatprep.subr.mxu0 0.0
    %2466 = vmatpush1.msra.mxu0 0.0
    %2467 = vmatprep.subr.mxu0 0.0
    %2468 = vmatpush1.msra.mxu0 0.0
    %2469 = vmatprep.subr.mxu0 0.0
    %2470 = vmatpush1.msra.mxu0 0.0
    %2471 = vmatprep.subr.mxu0 0.0
    %2472 = vmatpush1.msra.mxu0 0.0
    %2473 = vmatprep.subr.mxu0 0.0
    %2474 = vmatpush1.msra.mxu0 0.0
    %2475 = vmatprep.subr.mxu0 0.0
    %2476 = vmatpush1.msra.mxu0 0.0
    %2477 = vmatprep.subr.mxu0 0.0
    %2478 = vmatpush1.msra.mxu0 0.0
    %2479 = vmatprep.subr.mxu0 0.0
    %2480 = vmatpush1.msra.mxu0 0.0
    %2481 = vmatprep.subr.mxu0 0.0
    %2482 = vmatpush1.msra.mxu0 0.0
    %2483 = vmatprep.subr.mxu0 0.0
    %2484 = vmatpush1.msra.mxu0 0.0
    %2485 = vmatprep.subr.mxu0 0.0
    %2486 = vmatpush1.msra.mxu0 0.0
    %2487 = vmatprep.mubr.f32.mxu0 0.0
    %v2488 = vand.u32 %v1666, 4294901760
    %v2489 = vsub.f32 %v1666, %v2488
    %2490 = vmatmul.mubr.f32.gmra.mrb[0].mxu0 %v2489
    %v2491 = vpop.f32.mrb[0].mxu0
    %v2492 = vadd.f32 %v2403, %v2491
    %v2493 = vpop.f32.mrb[0].mxu0
    %v2494 = vadd.f32 %v2405, %v2493
    %2495 = vdwg.mxu0
    %v2496 = vand.u32 %v1641, 4294901760
    %2497 = vmatprep.subr.mxu0 %v2496
    %v2498 = vand.u32 %v1640, 4294901760
    %2499 = vmatpush1.msra.mxu0 %v2498
    %v2500 = vand.u32 %v1645, 4294901760
    %2501 = vmatprep.subr.mxu0 %v2500
    %v2502 = vand.u32 %v1644, 4294901760
    %2503 = vmatpush1.msra.mxu0 %v2502
    %v2504 = vand.u32 %v1649, 4294901760
    %2505 = vmatprep.subr.mxu0 %v2504
    %v2506 = vand.u32 %v1648, 4294901760
    %2507 = vmatpush1.msra.mxu0 %v2506
    %v2508 = vand.u32 %v1653, 4294901760
    %2509 = vmatprep.subr.mxu0 %v2508
    %v2510 = vand.u32 %v1652, 4294901760
    %2511 = vmatpush1.msra.mxu0 %v2510
    %2512 = vmatprep.subr.mxu0 0.0
    %2513 = vmatpush1.msra.mxu0 0.0
    %2514 = vmatprep.subr.mxu0 0.0
    %2515 = vmatpush1.msra.mxu0 0.0
    %2516 = vmatprep.subr.mxu0 0.0
    %2517 = vmatpush1.msra.mxu0 0.0
    %2518 = vmatprep.subr.mxu0 0.0
    %2519 = vmatpush1.msra.mxu0 0.0
    %2520 = vmatprep.subr.mxu0 0.0
    %2521 = vmatpush1.msra.mxu0 0.0
    %2522 = vmatprep.subr.mxu0 0.0
    %2523 = vmatpush1.msra.mxu0 0.0
    %2524 = vmatprep.subr.mxu0 0.0
    %2525 = vmatpush1.msra.mxu0 0.0
    %2526 = vmatprep.subr.mxu0 0.0
    %2527 = vmatpush1.msra.mxu0 0.0
    %2528 = vmatprep.subr.mxu0 0.0
    %2529 = vmatpush1.msra.mxu0 0.0
    %2530 = vmatprep.subr.mxu0 0.0
    %2531 = vmatpush1.msra.mxu0 0.0
    %2532 = vmatprep.subr.mxu0 0.0
    %2533 = vmatpush1.msra.mxu0 0.0
    %2534 = vmatprep.subr.mxu0 0.0
    %2535 = vmatpush1.msra.mxu0 0.0
    %2536 = vmatprep.subr.mxu0 0.0
    %2537 = vmatpush1.msra.mxu0 0.0
    %2538 = vmatprep.subr.mxu0 0.0
    %2539 = vmatpush1.msra.mxu0 0.0
    %2540 = vmatprep.subr.mxu0 0.0
    %2541 = vmatpush1.msra.mxu0 0.0
    %2542 = vmatprep.subr.mxu0 0.0
    %2543 = vmatpush1.msra.mxu0 0.0
    %2544 = vmatprep.subr.mxu0 0.0
    %2545 = vmatpush1.msra.mxu0 0.0
    %2546 = vmatprep.subr.mxu0 0.0
    %2547 = vmatpush1.msra.mxu0 0.0
    %2548 = vmatprep.subr.mxu0 0.0
    %2549 = vmatpush1.msra.mxu0 0.0
    %2550 = vmatprep.subr.mxu0 0.0
    %2551 = vmatpush1.msra.mxu0 0.0
    %2552 = vmatprep.subr.mxu0 0.0
    %2553 = vmatpush1.msra.mxu0 0.0
    %2554 = vmatprep.subr.mxu0 0.0
    %2555 = vmatpush1.msra.mxu0 0.0
    %2556 = vmatprep.subr.mxu0 0.0
    %2557 = vmatpush1.msra.mxu0 0.0
    %2558 = vmatprep.subr.mxu0 0.0
    %2559 = vmatpush1.msra.mxu0 0.0
    %2560 = vmatprep.subr.mxu0 0.0
    %2561 = vmatpush1.msra.mxu0 0.0
    %2562 = vmatprep.subr.mxu0 0.0
    %2563 = vmatpush1.msra.mxu0 0.0
    %2564 = vmatprep.subr.mxu0 0.0
    %2565 = vmatpush1.msra.mxu0 0.0
    %2566 = vmatprep.subr.mxu0 0.0
    %2567 = vmatpush1.msra.mxu0 0.0
    %2568 = vmatprep.mubr.f32.mxu0 0.0
    %v2569 = vand.u32 %v1666, 4294901760
    %v2570 = vsub.f32 %v1666, %v2569
    %v2571 = vand.u32 %v2570, 4294901760
    %2572 = vmatmul.mubr.f32.gmra.mrb[0].mxu0 %v2571
    %v2573 = vpop.f32.mrb[0].mxu0
    %v2574 = vadd.f32 %v2492, %v2573
    %v2575 = vpop.f32.mrb[0].mxu0
    %v2576 = vadd.f32 %v2494, %v2575
    %2577 = vdwg.mxu0
    %v2578 = vand.u32 %v1641, 4294901760
    %v2579 = vsub.f32 %v1641, %v2578
    %v2580 = vand.u32 %v2579, 4294901760
    %2581 = vmatprep.subr.mxu0 %v2580
    %v2582 = vand.u32 %v1640, 4294901760
    %v2583 = vsub.f32 %v1640, %v2582
    %v2584 = vand.u32 %v2583, 4294901760
    %2585 = vmatpush1.msra.mxu0 %v2584
    %v2586 = vand.u32 %v1645, 4294901760
    %v2587 = vsub.f32 %v1645, %v2586
    %v2588 = vand.u32 %v2587, 4294901760
    %2589 = vmatprep.subr.mxu0 %v2588
    %v2590 = vand.u32 %v1644, 4294901760
    %v2591 = vsub.f32 %v1644, %v2590
    %v2592 = vand.u32 %v2591, 4294901760
    %2593 = vmatpush1.msra.mxu0 %v2592
    %v2594 = vand.u32 %v1649, 4294901760
    %v2595 = vsub.f32 %v1649, %v2594
    %v2596 = vand.u32 %v2595, 4294901760
    %2597 = vmatprep.subr.mxu0 %v2596
    %v2598 = vand.u32 %v1648, 4294901760
    %v2599 = vsub.f32 %v1648, %v2598
    %v2600 = vand.u32 %v2599, 4294901760
    %2601 = vmatpush1.msra.mxu0 %v2600
    %v2602 = vand.u32 %v1653, 4294901760
    %v2603 = vsub.f32 %v1653, %v2602
    %v2604 = vand.u32 %v2603, 4294901760
    %2605 = vmatprep.subr.mxu0 %v2604
    %v2606 = vand.u32 %v1652, 4294901760
    %v2607 = vsub.f32 %v1652, %v2606
    %v2608 = vand.u32 %v2607, 4294901760
    %2609 = vmatpush1.msra.mxu0 %v2608
    %2610 = vmatprep.subr.mxu0 0.0
    %2611 = vmatpush1.msra.mxu0 0.0
    %2612 = vmatprep.subr.mxu0 0.0
    %2613 = vmatpush1.msra.mxu0 0.0
    %2614 = vmatprep.subr.mxu0 0.0
    %2615 = vmatpush1.msra.mxu0 0.0
    %2616 = vmatprep.subr.mxu0 0.0
    %2617 = vmatpush1.msra.mxu0 0.0
    %2618 = vmatprep.subr.mxu0 0.0
    %2619 = vmatpush1.msra.mxu0 0.0
    %2620 = vmatprep.subr.mxu0 0.0
    %2621 = vmatpush1.msra.mxu0 0.0
    %2622 = vmatprep.subr.mxu0 0.0
    %2623 = vmatpush1.msra.mxu0 0.0
    %2624 = vmatprep.subr.mxu0 0.0
    %2625 = vmatpush1.msra.mxu0 0.0
    %2626 = vmatprep.subr.mxu0 0.0
    %2627 = vmatpush1.msra.mxu0 0.0
    %2628 = vmatprep.subr.mxu0 0.0
    %2629 = vmatpush1.msra.mxu0 0.0
    %2630 = vmatprep.subr.mxu0 0.0
    %2631 = vmatpush1.msra.mxu0 0.0
    %2632 = vmatprep.subr.mxu0 0.0
    %2633 = vmatpush1.msra.mxu0 0.0
    %2634 = vmatprep.subr.mxu0 0.0
    %2635 = vmatpush1.msra.mxu0 0.0
    %2636 = vmatprep.subr.mxu0 0.0
    %2637 = vmatpush1.msra.mxu0 0.0
    %2638 = vmatprep.subr.mxu0 0.0
    %2639 = vmatpush1.msra.mxu0 0.0
    %2640 = vmatprep.subr.mxu0 0.0
    %2641 = vmatpush1.msra.mxu0 0.0
    %2642 = vmatprep.subr.mxu0 0.0
    %2643 = vmatpush1.msra.mxu0 0.0
    %2644 = vmatprep.subr.mxu0 0.0
    %2645 = vmatpush1.msra.mxu0 0.0
    %2646 = vmatprep.subr.mxu0 0.0
    %2647 = vmatpush1.msra.mxu0 0.0
    %2648 = vmatprep.subr.mxu0 0.0
    %2649 = vmatpush1.msra.mxu0 0.0
    %2650 = vmatprep.subr.mxu0 0.0
    %2651 = vmatpush1.msra.mxu0 0.0
    %2652 = vmatprep.subr.mxu0 0.0
    %2653 = vmatpush1.msra.mxu0 0.0
    %2654 = vmatprep.subr.mxu0 0.0
    %2655 = vmatpush1.msra.mxu0 0.0
    %2656 = vmatprep.subr.mxu0 0.0
    %2657 = vmatpush1.msra.mxu0 0.0
    %2658 = vmatprep.subr.mxu0 0.0
    %2659 = vmatpush1.msra.mxu0 0.0
    %2660 = vmatprep.subr.mxu0 0.0
    %2661 = vmatpush1.msra.mxu0 0.0
    %2662 = vmatprep.subr.mxu0 0.0
    %2663 = vmatpush1.msra.mxu0 0.0
    %2664 = vmatprep.subr.mxu0 0.0
    %2665 = vmatpush1.msra.mxu0 0.0
    %2666 = vmatprep.mubr.f32.mxu0 0.0
    %v2667 = vand.u32 %v1666, 4294901760
    %2668 = vmatmul.mubr.f32.gmra.mrb[0].mxu0 %v2667
    %v2669 = vpop.f32.mrb[0].mxu0
    %v2670 = vadd.f32 %v2574, %v2669
    %v2671 = vpop.f32.mrb[0].mxu0
    %v2672 = vadd.f32 %v2576, %v2671
    %2673 = vdwg.mxu0
    %v2674 = vand.u32 %v1641, 4294901760
    %2675 = vmatprep.subr.mxu0 %v2674
    %v2676 = vand.u32 %v1640, 4294901760
    %2677 = vmatpush1.msra.mxu0 %v2676
    %v2678 = vand.u32 %v1645, 4294901760
    %2679 = vmatprep.subr.mxu0 %v2678
    %v2680 = vand.u32 %v1644, 4294901760
    %2681 = vmatpush1.msra.mxu0 %v2680
    %v2682 = vand.u32 %v1649, 4294901760
    %2683 = vmatprep.subr.mxu0 %v2682
    %v2684 = vand.u32 %v1648, 4294901760
    %2685 = vmatpush1.msra.mxu0 %v2684
    %v2686 = vand.u32 %v1653, 4294901760
    %2687 = vmatprep.subr.mxu0 %v2686
    %v2688 = vand.u32 %v1652, 4294901760
    %2689 = vmatpush1.msra.mxu0 %v2688
    %2690 = vmatprep.subr.mxu0 0.0
    %2691 = vmatpush1.msra.mxu0 0.0
    %2692 = vmatprep.subr.mxu0 0.0
    %2693 = vmatpush1.msra.mxu0 0.0
    %2694 = vmatprep.subr.mxu0 0.0
    %2695 = vmatpush1.msra.mxu0 0.0
    %2696 = vmatprep.subr.mxu0 0.0
    %2697 = vmatpush1.msra.mxu0 0.0
    %2698 = vmatprep.subr.mxu0 0.0
    %2699 = vmatpush1.msra.mxu0 0.0
    %2700 = vmatprep.subr.mxu0 0.0
    %2701 = vmatpush1.msra.mxu0 0.0
    %2702 = vmatprep.subr.mxu0 0.0
    %2703 = vmatpush1.msra.mxu0 0.0
    %2704 = vmatprep.subr.mxu0 0.0
    %2705 = vmatpush1.msra.mxu0 0.0
    %2706 = vmatprep.subr.mxu0 0.0
    %2707 = vmatpush1.msra.mxu0 0.0
    %2708 = vmatprep.subr.mxu0 0.0
    %2709 = vmatpush1.msra.mxu0 0.0
    %2710 = vmatprep.subr.mxu0 0.0
    %2711 = vmatpush1.msra.mxu0 0.0
    %2712 = vmatprep.subr.mxu0 0.0
    %2713 = vmatpush1.msra.mxu0 0.0
    %2714 = vmatprep.subr.mxu0 0.0
    %2715 = vmatpush1.msra.mxu0 0.0
    %2716 = vmatprep.subr.mxu0 0.0
    %2717 = vmatpush1.msra.mxu0 0.0
    %2718 = vmatprep.subr.mxu0 0.0
    %2719 = vmatpush1.msra.mxu0 0.0
    %2720 = vmatprep.subr.mxu0 0.0
    %2721 = vmatpush1.msra.mxu0 0.0
    %2722 = vmatprep.subr.mxu0 0.0
    %2723 = vmatpush1.msra.mxu0 0.0
    %2724 = vmatprep.subr.mxu0 0.0
    %2725 = vmatpush1.msra.mxu0 0.0
    %2726 = vmatprep.subr.mxu0 0.0
    %2727 = vmatpush1.msra.mxu0 0.0
    %2728 = vmatprep.subr.mxu0 0.0
    %2729 = vmatpush1.msra.mxu0 0.0
    %2730 = vmatprep.subr.mxu0 0.0
    %2731 = vmatpush1.msra.mxu0 0.0
    %2732 = vmatprep.subr.mxu0 0.0
    %2733 = vmatpush1.msra.mxu0 0.0
    %2734 = vmatprep.subr.mxu0 0.0
    %2735 = vmatpush1.msra.mxu0 0.0
    %2736 = vmatprep.subr.mxu0 0.0
    %2737 = vmatpush1.msra.mxu0 0.0
    %2738 = vmatprep.subr.mxu0 0.0
    %2739 = vmatpush1.msra.mxu0 0.0
    %2740 = vmatprep.subr.mxu0 0.0
    %2741 = vmatpush1.msra.mxu0 0.0
    %2742 = vmatprep.subr.mxu0 0.0
    %2743 = vmatpush1.msra.mxu0 0.0
    %2744 = vmatprep.subr.mxu0 0.0
    %2745 = vmatpush1.msra.mxu0 0.0
    %2746 = vmatprep.mubr.f32.mxu0 0.0
    %v2747 = vand.u32 %v1666, 4294901760
    %2748 = vmatmul.mubr.f32.gmra.mrb[0].mxu0 %v2747
    %v2749 = vpop.f32.mrb[0].mxu0
    %v2750 = vadd.f32 %v2670, %v2749
    %v2751 = vpop.f32.mrb[0].mxu0
    %v2752 = vadd.f32 %v2672, %v2751
    %2753 = vdwg.mxu0
    %v2755 = vlaneseq
    %v2756 = vshrl.u32 %v2755, 7
    %v2757 = vsub.s32 0, %v2756
    %v2758 = vrot.slane %v1654, %v2757
    %v2759 = vlaneseq
    %v2760 = vshrl.u32 %v2759, 7
    %v2761 = vsub.s32 1, %v2760
    %v2762 = vrot.slane %v1654, %v2761
    %v2763 = vlaneseq
    %v2764 = vshrl.u32 %v2763, 7
    %v2765 = vsub.s32 2, %v2764
    %v2766 = vrot.slane %v1654, %v2765
    %v2767 = vlaneseq
    %v2768 = vshrl.u32 %v2767, 7
    %v2769 = vsub.s32 3, %v2768
    %v2770 = vrot.slane %v1654, %v2769
    %v2775 = vmul.f32 %v2207, %v2758
    %v2776 = vmul.f32 %v2209, %v2762
    %v2777 = vmul.f32 %v2750, %v2766
    %v2778 = vmul.f32 %v2752, %v2770
    %v2779 = vmul.f32 %v2775, 1.442695
    %v2780 = vpow.pop %v2779
    %v2781 = vmul.f32 %v2776, 1.442695
    %v2782 = vpow.pop %v2781
    %v2783 = vmul.f32 %v2777, 1.442695
    %v2784 = vpow.pop %v2783
    %v2785 = vmul.f32 %v2778, 1.442695
    %v2786 = vpow.pop %v2785
    %v2787 = vsub.f32 0.0, %v2775
    %v2788 = vsub.f32 0.0, %v2776
    %v2789 = vsub.f32 0.0, %v2777
    %v2790 = vsub.f32 0.0, %v2778
    %v2791 = vmul.f32 %v2787, 1.442695
    %v2792 = vpow.pop %v2791
    %v2793 = vmul.f32 %v2788, 1.442695
    %v2794 = vpow.pop %v2793
    %v2795 = vmul.f32 %v2789, 1.442695
    %v2796 = vpow.pop %v2795
    %v2797 = vmul.f32 %v2790, 1.442695
    %v2798 = vpow.pop %v2797
    %v2800 = vlaneseq
    %v2801 = vshrl.u32 %v2800, 7
    %v2802 = vsub.s32 0, %v2801
    %v2803 = vrot.slane %v1655, %v2802
    %v2804 = vlaneseq
    %v2805 = vshrl.u32 %v2804, 7
    %v2806 = vsub.s32 1, %v2805
    %v2807 = vrot.slane %v1655, %v2806
    %v2808 = vlaneseq
    %v2809 = vshrl.u32 %v2808, 7
    %v2810 = vsub.s32 2, %v2809
    %v2811 = vrot.slane %v1655, %v2810
    %v2812 = vlaneseq
    %v2813 = vshrl.u32 %v2812, 7
    %v2814 = vsub.s32 3, %v2813
    %v2815 = vrot.slane %v1655, %v2814
    %v2820 = vmul.f32 %v2207, %v2803
    %v2821 = vmul.f32 %v2209, %v2807
    %v2822 = vmul.f32 %v2750, %v2811
    %v2823 = vmul.f32 %v2752, %v2815
    %v2824 = vlaneseq
    %v2825 = vshrl.u32 %v2824, 7
    %v2826 = vsub.s32 0, %v2825
    %v2827 = vrot.slane %v1656, %v2826
    %v2828 = vlaneseq
    %v2829 = vshrl.u32 %v2828, 7
    %v2830 = vsub.s32 0, %v2829
    %v2831 = vrot.slane %v1657, %v2830
    %v2832 = vlaneseq
    %v2833 = vshrl.u32 %v2832, 7
    %v2834 = vsub.s32 0, %v2833
    %v2835 = vrot.slane %v1658, %v2834
    %v2836 = vlaneseq
    %v2837 = vshrl.u32 %v2836, 7
    %v2838 = vsub.s32 0, %v2837
    %v2839 = vrot.slane %v1659, %v2838
    %v2840 = vmul.f32 %v2792, %v2827
    %v2841 = vmul.f32 %v2794, %v2831
    %v2842 = vmul.f32 %v2796, %v2835
    %v2843 = vmul.f32 %v2798, %v2839
    %v2844 = vadd.f32 %v2820, %v2840
    %v2845 = vadd.f32 %v2821, %v2841
    %v2846 = vadd.f32 %v2822, %v2842
    %v2847 = vadd.f32 %v2823, %v2843
    %v2848 = vlaneseq
    %v2849 = vshrl.u32 %v2848, 7
    %v2850 = vsub.s32 1, %v2849
    %v2851 = vrot.slane %v1656, %v2850
    %v2852 = vlaneseq
    %v2853 = vshrl.u32 %v2852, 7
    %v2854 = vsub.s32 1, %v2853
    %v2855 = vrot.slane %v1657, %v2854
    %v2856 = vlaneseq
    %v2857 = vshrl.u32 %v2856, 7
    %v2858 = vsub.s32 1, %v2857
    %v2859 = vrot.slane %v1658, %v2858
    %v2860 = vlaneseq
    %v2861 = vshrl.u32 %v2860, 7
    %v2862 = vsub.s32 1, %v2861
    %v2863 = vrot.slane %v1659, %v2862
    %v2864 = vmul.f32 %v2792, %v2851
    %v2865 = vmul.f32 %v2794, %v2855
    %v2866 = vmul.f32 %v2796, %v2859
    %v2867 = vmul.f32 %v2798, %v2863
    %v2868 = vadd.f32 %v2844, %v2864
    %v2869 = vadd.f32 %v2845, %v2865
    %v2870 = vadd.f32 %v2846, %v2866
    %v2871 = vadd.f32 %v2847, %v2867
    %vm2872 = vcmp.ge.f32.partialorder %v2207, 0.0
    %vm2873 = vcmp.ge.f32.partialorder %v2209, 0.0
    %vm2874 = vcmp.ge.f32.partialorder %v2750, 0.0
    %vm2875 = vcmp.ge.f32.partialorder %v2752, 0.0
    %v2876 = vlaneseq
    %v2877 = vshrl.u32 %v2876, 7
    %v2878 = vsub.s32 2, %v2877
    %v2879 = vrot.slane %v1656, %v2878
    %v2880 = vlaneseq
    %v2881 = vshrl.u32 %v2880, 7
    %v2882 = vsub.s32 2, %v2881
    %v2883 = vrot.slane %v1657, %v2882
    %v2884 = vlaneseq
    %v2885 = vshrl.u32 %v2884, 7
    %v2886 = vsub.s32 2, %v2885
    %v2887 = vrot.slane %v1658, %v2886
    %v2888 = vlaneseq
    %v2889 = vshrl.u32 %v2888, 7
    %v2890 = vsub.s32 2, %v2889
    %v2891 = vrot.slane %v1659, %v2890
    %v2892 = vmul.f32 %v2792, %v2879
    %v2893 = vmul.f32 %v2794, %v2883
    %v2894 = vmul.f32 %v2796, %v2887
    %v2895 = vmul.f32 %v2798, %v2891
    %v2896 = vlaneseq
    %v2897 = vshrl.u32 %v2896, 7
    %v2898 = vsub.s32 2, %v2897
    %v2899 = vrot.slane %v1660, %v2898
    %v2900 = vlaneseq
    %v2901 = vshrl.u32 %v2900, 7
    %v2902 = vsub.s32 2, %v2901
    %v2903 = vrot.slane %v1661, %v2902
    %v2904 = vlaneseq
    %v2905 = vshrl.u32 %v2904, 7
    %v2906 = vsub.s32 2, %v2905
    %v2907 = vrot.slane %v1662, %v2906
    %v2908 = vlaneseq
    %v2909 = vshrl.u32 %v2908, 7
    %v2910 = vsub.s32 2, %v2909
    %v2911 = vrot.slane %v1663, %v2910
    %v2912 = vmul.f32 %v2780, %v2899
    %v2913 = vmul.f32 %v2782, %v2903
    %v2914 = vmul.f32 %v2784, %v2907
    %v2915 = vmul.f32 %v2786, %v2911
    %v2916 = vsel %vm2872, %v2892, %v2912
    %v2917 = vsel %vm2873, %v2893, %v2913
    %v2918 = vsel %vm2874, %v2894, %v2914
    %v2919 = vsel %vm2875, %v2895, %v2915
    %v2920 = vadd.f32 %v2868, %v2916
    %v2921 = vadd.f32 %v2869, %v2917
    %v2922 = vadd.f32 %v2870, %v2918
    %v2923 = vadd.f32 %v2871, %v2919
    %v2924 = vlaneseq
    %v2925 = vshrl.u32 %v2924, 7
    %v2926 = vsub.s32 3, %v2925
    %v2927 = vrot.slane %v1660, %v2926
    %v2928 = vlaneseq
    %v2929 = vshrl.u32 %v2928, 7
    %v2930 = vsub.s32 3, %v2929
    %v2931 = vrot.slane %v1661, %v2930
    %v2932 = vlaneseq
    %v2933 = vshrl.u32 %v2932, 7
    %v2934 = vsub.s32 3, %v2933
    %v2935 = vrot.slane %v1662, %v2934
    %v2936 = vlaneseq
    %v2937 = vshrl.u32 %v2936, 7
    %v2938 = vsub.s32 3, %v2937
    %v2939 = vrot.slane %v1663, %v2938
    %v2940 = vmul.f32 %v2780, %v2927
    %v2941 = vmul.f32 %v2782, %v2931
    %v2942 = vmul.f32 %v2784, %v2935
    %v2943 = vmul.f32 %v2786, %v2939
    %v2944 = vadd.f32 %v2920, %v2940
    %v2945 = vadd.f32 %v2921, %v2941
    %v2946 = vadd.f32 %v2922, %v2942
    %v2947 = vadd.f32 %v2923, %v2943
    %v2948 = vlaneseq
    %v2949 = vshrl.u32 %v2948, 7
    %v2950 = vsub.s32 4, %v2949
    %v2951 = vrot.slane %v1660, %v2950
    %v2952 = vlaneseq
    %v2953 = vshrl.u32 %v2952, 7
    %v2954 = vsub.s32 4, %v2953
    %v2955 = vrot.slane %v1661, %v2954
    %v2956 = vlaneseq
    %v2957 = vshrl.u32 %v2956, 7
    %v2958 = vsub.s32 4, %v2957
    %v2959 = vrot.slane %v1662, %v2958
    %v2960 = vlaneseq
    %v2961 = vshrl.u32 %v2960, 7
    %v2962 = vsub.s32 4, %v2961
    %v2963 = vrot.slane %v1663, %v2962
    %v2964 = vmul.f32 %v2780, %v2951
    %v2965 = vmul.f32 %v2782, %v2955
    %v2966 = vmul.f32 %v2784, %v2959
    %v2967 = vmul.f32 %v2786, %v2963
    %v2968 = vadd.f32 %v2944, %v2964
    %v2969 = vadd.f32 %v2945, %v2965
    %v2970 = vadd.f32 %v2946, %v2966
    %v2971 = vadd.f32 %v2947, %v2967
    %v2972 = vld [vmem:[%s25] sm:$0xff]
    %v2973 = vld [vmem:[%s25 + $0x8] sm:$0xff]
    %v2974 = vld [vmem:[%s25 + $0x10] sm:$0xff]
    %v2975 = vld [vmem:[%s25 + $0x18] sm:$0xff]
    %v2976 = vld [vmem:[%s25 + $0x20] sm:$0xff]
    %v2977 = vld [vmem:[%s25 + $0x28] sm:$0xff]
    %v2978 = vld [vmem:[%s25 + $0x30] sm:$0xff]
    %v2979 = vld [vmem:[%s25 + $0x38] sm:$0xff]
    %v2980 = vld [vmem:[%s25 + $0x40] sm:$0xff]
    %v2981 = vld [vmem:[%s25 + $0x48] sm:$0xff]
    %v2982 = vld [vmem:[%s25 + $0x50] sm:$0xff]
    %v2983 = vld [vmem:[%s25 + $0x58] sm:$0xff]
    %v2984 = vld [vmem:[%s25 + $0x60] sm:$0xff]
    %v2985 = vld [vmem:[%s25 + $0x68] sm:$0xff]
    %v2986 = vld [vmem:[%s25 + $0x70] sm:$0xff]
    %v2987 = vld [vmem:[%s25 + $0x78] sm:$0xff]
    %v2988 = vld [vmem:[%s25 + $0x80] sm:$0xff]
    %v2989 = vld [vmem:[%s25 + $0x88] sm:$0xff]
    %v2990 = vld [vmem:[%s25 + $0x90] sm:$0xff]
    %v2991 = vld [vmem:[%s25 + $0x98] sm:$0xff]
    %v2992 = vld [vmem:[%s25 + $0xa0] sm:$0xff]
    %v2993 = vld [vmem:[%s25 + $0xa8] sm:$0xff]
    %v2994 = vld [vmem:[%s25 + $0xb0] sm:$0xff]
    %v2995 = vld [vmem:[%s25 + $0xb8] sm:$0xff]
    %v2996 = vld [vmem:[%s25 + $0xc0] sm:$0xff]
    %v2997 = vld [vmem:[%s25 + $0xc8] sm:$0xff]
    %v2998 = vld [vmem:[%s25 + $0xd0] sm:$0xff]
    %v2999 = vld [vmem:[%s25 + $0xd8] sm:$0xff]
    %v3000 = vld [vmem:[%s25 + $0xe0] sm:$0xff]
    %v3001 = vld [vmem:[%s25 + $0xe8] sm:$0xff]
    %v3002 = vld [vmem:[%s25 + $0xf0] sm:$0xff]
    %v3003 = vld [vmem:[%s25 + $0xf8] sm:$0xff]
    %v3004 = vld [vmem:[%s25 + $0x100] sm:$0xff]
    %v3005 = vld [vmem:[%s25 + $0x108] sm:$0xff]
    %v3006 = vld [vmem:[%s25 + $0x110] sm:$0xff]
    %v3007 = vld [vmem:[%s25 + $0x118] sm:$0xff]
    %v3008 = vld [vmem:[%s25 + $0x120] sm:$0xff]
    %v3009 = vld [vmem:[%s25 + $0x128] sm:$0xff]
    %v3010 = vld [vmem:[%s25 + $0x130] sm:$0xff]
    %v3011 = vld [vmem:[%s25 + $0x138] sm:$0xff]
    %v3012 = vld [vmem:[%s25 + $0x140] sm:$0xff]
    %v3013 = vld [vmem:[%s25 + $0x148] sm:$0xff]
    %v3014 = vld [vmem:[%s25 + $0x150] sm:$0xff]
    %v3015 = vld [vmem:[%s25 + $0x158] sm:$0xff]
    %v3016 = vld [vmem:[%s25 + $0x160] sm:$0xff]
    %v3017 = vld [vmem:[%s25 + $0x168] sm:$0xff]
    %v3018 = vld [vmem:[%s25 + $0x170] sm:$0xff]
    %v3019 = vld [vmem:[%s25 + $0x178] sm:$0xff]
    %v3020 = vld [vmem:[%s25 + $0x180] sm:$0xff]
    %v3021 = vld [vmem:[%s25 + $0x188] sm:$0xff]
    %v3022 = vld [vmem:[%s25 + $0x190] sm:$0xff]
    %v3023 = vld [vmem:[%s25 + $0x198] sm:$0xff]
    %v3024 = vld [vmem:[%s25 + $0x1a0] sm:$0xff]
    %v3025 = vld [vmem:[%s25 + $0x1a8] sm:$0xff]
    %v3026 = vld [vmem:[%s25 + $0x1b0] sm:$0xff]
    %v3027 = vld [vmem:[%s25 + $0x1b8] sm:$0xff]
    %v3028 = vld [vmem:[%s25 + $0x1c0] sm:$0xff]
    %v3029 = vld [vmem:[%s25 + $0x1c8] sm:$0xff]
    %v3030 = vld [vmem:[%s25 + $0x1d0] sm:$0xff]
    %v3031 = vld [vmem:[%s25 + $0x1d8] sm:$0xff]
    %v3032 = vld [vmem:[%s25 + $0x1e0] sm:$0xff]
    %v3033 = vld [vmem:[%s25 + $0x1e8] sm:$0xff]
    %v3034 = vld [vmem:[%s25 + $0x1f0] sm:$0xff]
    %v3035 = vld [vmem:[%s25 + $0x1f8] sm:$0xff]
    %3036 = vmatprep.subr.mxu0 0.0
    %v3037 = vand.u32 %v2972, 4294901760
    %3038 = vmatpush1.msra.mxu0 %v3037
    %3039 = vmatprep.subr.mxu0 0.0
    %v3040 = vand.u32 %v2973, 4294901760
    %3041 = vmatpush1.msra.mxu0 %v3040
    %3042 = vmatprep.subr.mxu0 0.0
    %v3043 = vand.u32 %v2974, 4294901760
    %3044 = vmatpush1.msra.mxu0 %v3043
    %3045 = vmatprep.subr.mxu0 0.0
    %v3046 = vand.u32 %v2975, 4294901760
    %3047 = vmatpush1.msra.mxu0 %v3046
    %3048 = vmatprep.subr.mxu0 0.0
    %v3049 = vand.u32 %v2976, 4294901760
    %3050 = vmatpush1.msra.mxu0 %v3049
    %3051 = vmatprep.subr.mxu0 0.0
    %v3052 = vand.u32 %v2977, 4294901760
    %3053 = vmatpush1.msra.mxu0 %v3052
    %3054 = vmatprep.subr.mxu0 0.0
    %v3055 = vand.u32 %v2978, 4294901760
    %3056 = vmatpush1.msra.mxu0 %v3055
    %3057 = vmatprep.subr.mxu0 0.0
    %v3058 = vand.u32 %v2979, 4294901760
    %3059 = vmatpush1.msra.mxu0 %v3058
    %3060 = vmatprep.subr.mxu0 0.0
    %v3061 = vand.u32 %v2980, 4294901760
    %3062 = vmatpush1.msra.mxu0 %v3061
    %3063 = vmatprep.subr.mxu0 0.0
    %v3064 = vand.u32 %v2981, 4294901760
    %3065 = vmatpush1.msra.mxu0 %v3064
    %3066 = vmatprep.subr.mxu0 0.0
    %v3067 = vand.u32 %v2982, 4294901760
    %3068 = vmatpush1.msra.mxu0 %v3067
    %3069 = vmatprep.subr.mxu0 0.0
    %v3070 = vand.u32 %v2983, 4294901760
    %3071 = vmatpush1.msra.mxu0 %v3070
    %3072 = vmatprep.subr.mxu0 0.0
    %v3073 = vand.u32 %v2984, 4294901760
    %3074 = vmatpush1.msra.mxu0 %v3073
    %3075 = vmatprep.subr.mxu0 0.0
    %v3076 = vand.u32 %v2985, 4294901760
    %3077 = vmatpush1.msra.mxu0 %v3076
    %3078 = vmatprep.subr.mxu0 0.0
    %v3079 = vand.u32 %v2986, 4294901760
    %3080 = vmatpush1.msra.mxu0 %v3079
    %3081 = vmatprep.subr.mxu0 0.0
    %v3082 = vand.u32 %v2987, 4294901760
    %3083 = vmatpush1.msra.mxu0 %v3082
    %3084 = vmatprep.subr.mxu0 0.0
    %v3085 = vand.u32 %v2988, 4294901760
    %3086 = vmatpush1.msra.mxu0 %v3085
    %3087 = vmatprep.subr.mxu0 0.0
    %v3088 = vand.u32 %v2989, 4294901760
    %3089 = vmatpush1.msra.mxu0 %v3088
    %3090 = vmatprep.subr.mxu0 0.0
    %v3091 = vand.u32 %v2990, 4294901760
    %3092 = vmatpush1.msra.mxu0 %v3091
    %3093 = vmatprep.subr.mxu0 0.0
    %v3094 = vand.u32 %v2991, 4294901760
    %3095 = vmatpush1.msra.mxu0 %v3094
    %3096 = vmatprep.subr.mxu0 0.0
    %v3097 = vand.u32 %v2992, 4294901760
    %3098 = vmatpush1.msra.mxu0 %v3097
    %3099 = vmatprep.subr.mxu0 0.0
    %v3100 = vand.u32 %v2993, 4294901760
    %3101 = vmatpush1.msra.mxu0 %v3100
    %3102 = vmatprep.subr.mxu0 0.0
    %v3103 = vand.u32 %v2994, 4294901760
    %3104 = vmatpush1.msra.mxu0 %v3103
    %3105 = vmatprep.subr.mxu0 0.0
    %v3106 = vand.u32 %v2995, 4294901760
    %3107 = vmatpush1.msra.mxu0 %v3106
    %3108 = vmatprep.subr.mxu0 0.0
    %v3109 = vand.u32 %v2996, 4294901760
    %3110 = vmatpush1.msra.mxu0 %v3109
    %3111 = vmatprep.subr.mxu0 0.0
    %v3112 = vand.u32 %v2997, 4294901760
    %3113 = vmatpush1.msra.mxu0 %v3112
    %3114 = vmatprep.subr.mxu0 0.0
    %v3115 = vand.u32 %v2998, 4294901760
    %3116 = vmatpush1.msra.mxu0 %v3115
    %3117 = vmatprep.subr.mxu0 0.0
    %v3118 = vand.u32 %v2999, 4294901760
    %3119 = vmatpush1.msra.mxu0 %v3118
    %3120 = vmatprep.subr.mxu0 0.0
    %v3121 = vand.u32 %v3000, 4294901760
    %3122 = vmatpush1.msra.mxu0 %v3121
    %3123 = vmatprep.subr.mxu0 0.0
    %v3124 = vand.u32 %v3001, 4294901760
    %3125 = vmatpush1.msra.mxu0 %v3124
    %3126 = vmatprep.subr.mxu0 0.0
    %v3127 = vand.u32 %v3002, 4294901760
    %3128 = vmatpush1.msra.mxu0 %v3127
    %3129 = vmatprep.subr.mxu0 0.0
    %v3130 = vand.u32 %v3003, 4294901760
    %3131 = vmatpush1.msra.mxu0 %v3130
    %v3132 = vand.u32 %v2969, 4294901760
    %v3133 = vsub.f32 %v2969, %v3132
    %v3134 = vand.u32 %v3133, 4294901760
    %v3135 = vsub.f32 %v3133, %v3134
    %v3136 = vand.u32 %v3135, 4294901760
    %3137 = vmatprep.mubr.f32.mxu0 %v3136
    %v3138 = vand.u32 %v2968, 4294901760
    %v3139 = vsub.f32 %v2968, %v3138
    %v3140 = vand.u32 %v3139, 4294901760
    %v3141 = vsub.f32 %v3139, %v3140
    %v3142 = vand.u32 %v3141, 4294901760
    %3143 = vmatmul.mubr.f32.gmra.mrb[0].mxu0 %v3142
    %v3144 = vpop.f32.mrb[0].mxu0
    %v3145 = vadd.f32 0.0, %v3144
    %v3146 = vpop.f32.mrb[0].mxu0
    %3147 = vdwg.mxu0
    %3148 = vmatprep.subr.mxu0 0.0
    %v3149 = vand.u32 %v2972, 4294901760
    %v3150 = vsub.f32 %v2972, %v3149
    %v3151 = vand.u32 %v3150, 4294901760
    %v3152 = vsub.f32 %v3150, %v3151
    %v3153 = vand.u32 %v3152, 4294901760
    %3154 = vmatpush1.msra.mxu0 %v3153
    %3155 = vmatprep.subr.mxu0 0.0
    %v3156 = vand.u32 %v2973, 4294901760
    %v3157 = vsub.f32 %v2973, %v3156
    %v3158 = vand.u32 %v3157, 4294901760
    %v3159 = vsub.f32 %v3157, %v3158
    %v3160 = vand.u32 %v3159, 4294901760
    %3161 = vmatpush1.msra.mxu0 %v3160
    %3162 = vmatprep.subr.mxu0 0.0
    %v3163 = vand.u32 %v2974, 4294901760
    %v3164 = vsub.f32 %v2974, %v3163
    %v3165 = vand.u32 %v3164, 4294901760
    %v3166 = vsub.f32 %v3164, %v3165
    %v3167 = vand.u32 %v3166, 4294901760
    %3168 = vmatpush1.msra.mxu0 %v3167
    %3169 = vmatprep.subr.mxu0 0.0
    %v3170 = vand.u32 %v2975, 4294901760
    %v3171 = vsub.f32 %v2975, %v3170
    %v3172 = vand.u32 %v3171, 4294901760
    %v3173 = vsub.f32 %v3171, %v3172
    %v3174 = vand.u32 %v3173, 4294901760
    %3175 = vmatpush1.msra.mxu0 %v3174
    %3176 = vmatprep.subr.mxu0 0.0
    %v3177 = vand.u32 %v2976, 4294901760
    %v3178 = vsub.f32 %v2976, %v3177
    %v3179 = vand.u32 %v3178, 4294901760
    %v3180 = vsub.f32 %v3178, %v3179
    %v3181 = vand.u32 %v3180, 4294901760
    %3182 = vmatpush1.msra.mxu0 %v3181
    %3183 = vmatprep.subr.mxu0 0.0
    %v3184 = vand.u32 %v2977, 4294901760
    %v3185 = vsub.f32 %v2977, %v3184
    %v3186 = vand.u32 %v3185, 4294901760
    %v3187 = vsub.f32 %v3185, %v3186
    %v3188 = vand.u32 %v3187, 4294901760
    %3189 = vmatpush1.msra.mxu0 %v3188
    %3190 = vmatprep.subr.mxu0 0.0
    %v3191 = vand.u32 %v2978, 4294901760
    %v3192 = vsub.f32 %v2978, %v3191
    %v3193 = vand.u32 %v3192, 4294901760
    %v3194 = vsub.f32 %v3192, %v3193
    %v3195 = vand.u32 %v3194, 4294901760
    %3196 = vmatpush1.msra.mxu0 %v3195
    %3197 = vmatprep.subr.mxu0 0.0
    %v3198 = vand.u32 %v2979, 4294901760
    %v3199 = vsub.f32 %v2979, %v3198
    %v3200 = vand.u32 %v3199, 4294901760
    %v3201 = vsub.f32 %v3199, %v3200
    %v3202 = vand.u32 %v3201, 4294901760
    %3203 = vmatpush1.msra.mxu0 %v3202
    %3204 = vmatprep.subr.mxu0 0.0
    %v3205 = vand.u32 %v2980, 4294901760
    %v3206 = vsub.f32 %v2980, %v3205
    %v3207 = vand.u32 %v3206, 4294901760
    %v3208 = vsub.f32 %v3206, %v3207
    %v3209 = vand.u32 %v3208, 4294901760
    %3210 = vmatpush1.msra.mxu0 %v3209
    %3211 = vmatprep.subr.mxu0 0.0
    %v3212 = vand.u32 %v2981, 4294901760
    %v3213 = vsub.f32 %v2981, %v3212
    %v3214 = vand.u32 %v3213, 4294901760
    %v3215 = vsub.f32 %v3213, %v3214
    %v3216 = vand.u32 %v3215, 4294901760
    %3217 = vmatpush1.msra.mxu0 %v3216
    %3218 = vmatprep.subr.mxu0 0.0
    %v3219 = vand.u32 %v2982, 4294901760
    %v3220 = vsub.f32 %v2982, %v3219
    %v3221 = vand.u32 %v3220, 4294901760
    %v3222 = vsub.f32 %v3220, %v3221
    %v3223 = vand.u32 %v3222, 4294901760
    %3224 = vmatpush1.msra.mxu0 %v3223
    %3225 = vmatprep.subr.mxu0 0.0
    %v3226 = vand.u32 %v2983, 4294901760
    %v3227 = vsub.f32 %v2983, %v3226
    %v3228 = vand.u32 %v3227, 4294901760
    %v3229 = vsub.f32 %v3227, %v3228
    %v3230 = vand.u32 %v3229, 4294901760
    %3231 = vmatpush1.msra.mxu0 %v3230
    %3232 = vmatprep.subr.mxu0 0.0
    %v3233 = vand.u32 %v2984, 4294901760
    %v3234 = vsub.f32 %v2984, %v3233
    %v3235 = vand.u32 %v3234, 4294901760
    %v3236 = vsub.f32 %v3234, %v3235
    %v3237 = vand.u32 %v3236, 4294901760
    %3238 = vmatpush1.msra.mxu0 %v3237
    %3239 = vmatprep.subr.mxu0 0.0
    %v3240 = vand.u32 %v2985, 4294901760
    %v3241 = vsub.f32 %v2985, %v3240
    %v3242 = vand.u32 %v3241, 4294901760
    %v3243 = vsub.f32 %v3241, %v3242
    %v3244 = vand.u32 %v3243, 4294901760
    %3245 = vmatpush1.msra.mxu0 %v3244
    %3246 = vmatprep.subr.mxu0 0.0
    %v3247 = vand.u32 %v2986, 4294901760
    %v3248 = vsub.f32 %v2986, %v3247
    %v3249 = vand.u32 %v3248, 4294901760
    %v3250 = vsub.f32 %v3248, %v3249
    %v3251 = vand.u32 %v3250, 4294901760
    %3252 = vmatpush1.msra.mxu0 %v3251
    %3253 = vmatprep.subr.mxu0 0.0
    %v3254 = vand.u32 %v2987, 4294901760
    %v3255 = vsub.f32 %v2987, %v3254
    %v3256 = vand.u32 %v3255, 4294901760
    %v3257 = vsub.f32 %v3255, %v3256
    %v3258 = vand.u32 %v3257, 4294901760
    %3259 = vmatpush1.msra.mxu0 %v3258
    %3260 = vmatprep.subr.mxu0 0.0
    %v3261 = vand.u32 %v2988, 4294901760
    %v3262 = vsub.f32 %v2988, %v3261
    %v3263 = vand.u32 %v3262, 4294901760
    %v3264 = vsub.f32 %v3262, %v3263
    %v3265 = vand.u32 %v3264, 4294901760
    %3266 = vmatpush1.msra.mxu0 %v3265
    %3267 = vmatprep.subr.mxu0 0.0
    %v3268 = vand.u32 %v2989, 4294901760
    %v3269 = vsub.f32 %v2989, %v3268
    %v3270 = vand.u32 %v3269, 4294901760
    %v3271 = vsub.f32 %v3269, %v3270
    %v3272 = vand.u32 %v3271, 4294901760
    %3273 = vmatpush1.msra.mxu0 %v3272
    %3274 = vmatprep.subr.mxu0 0.0
    %v3275 = vand.u32 %v2990, 4294901760
    %v3276 = vsub.f32 %v2990, %v3275
    %v3277 = vand.u32 %v3276, 4294901760
    %v3278 = vsub.f32 %v3276, %v3277
    %v3279 = vand.u32 %v3278, 4294901760
    %3280 = vmatpush1.msra.mxu0 %v3279
    %3281 = vmatprep.subr.mxu0 0.0
    %v3282 = vand.u32 %v2991, 4294901760
    %v3283 = vsub.f32 %v2991, %v3282
    %v3284 = vand.u32 %v3283, 4294901760
    %v3285 = vsub.f32 %v3283, %v3284
    %v3286 = vand.u32 %v3285, 4294901760
    %3287 = vmatpush1.msra.mxu0 %v3286
    %3288 = vmatprep.subr.mxu0 0.0
    %v3289 = vand.u32 %v2992, 4294901760
    %v3290 = vsub.f32 %v2992, %v3289
    %v3291 = vand.u32 %v3290, 4294901760
    %v3292 = vsub.f32 %v3290, %v3291
    %v3293 = vand.u32 %v3292, 4294901760
    %3294 = vmatpush1.msra.mxu0 %v3293
    %3295 = vmatprep.subr.mxu0 0.0
    %v3296 = vand.u32 %v2993, 4294901760
    %v3297 = vsub.f32 %v2993, %v3296
    %v3298 = vand.u32 %v3297, 4294901760
    %v3299 = vsub.f32 %v3297, %v3298
    %v3300 = vand.u32 %v3299, 4294901760
    %3301 = vmatpush1.msra.mxu0 %v3300
    %3302 = vmatprep.subr.mxu0 0.0
    %v3303 = vand.u32 %v2994, 4294901760
    %v3304 = vsub.f32 %v2994, %v3303
    %v3305 = vand.u32 %v3304, 4294901760
    %v3306 = vsub.f32 %v3304, %v3305
    %v3307 = vand.u32 %v3306, 4294901760
    %3308 = vmatpush1.msra.mxu0 %v3307
    %3309 = vmatprep.subr.mxu0 0.0
    %v3310 = vand.u32 %v2995, 4294901760
    %v3311 = vsub.f32 %v2995, %v3310
    %v3312 = vand.u32 %v3311, 4294901760
    %v3313 = vsub.f32 %v3311, %v3312
    %v3314 = vand.u32 %v3313, 4294901760
    %3315 = vmatpush1.msra.mxu0 %v3314
    %3316 = vmatprep.subr.mxu0 0.0
    %v3317 = vand.u32 %v2996, 4294901760
    %v3318 = vsub.f32 %v2996, %v3317
    %v3319 = vand.u32 %v3318, 4294901760
    %v3320 = vsub.f32 %v3318, %v3319
    %v3321 = vand.u32 %v3320, 4294901760
    %3322 = vmatpush1.msra.mxu0 %v3321
    %3323 = vmatprep.subr.mxu0 0.0
    %v3324 = vand.u32 %v2997, 4294901760
    %v3325 = vsub.f32 %v2997, %v3324
    %v3326 = vand.u32 %v3325, 4294901760
    %v3327 = vsub.f32 %v3325, %v3326
    %v3328 = vand.u32 %v3327, 4294901760
    %3329 = vmatpush1.msra.mxu0 %v3328
    %3330 = vmatprep.subr.mxu0 0.0
    %v3331 = vand.u32 %v2998, 4294901760
    %v3332 = vsub.f32 %v2998, %v3331
    %v3333 = vand.u32 %v3332, 4294901760
    %v3334 = vsub.f32 %v3332, %v3333
    %v3335 = vand.u32 %v3334, 4294901760
    %3336 = vmatpush1.msra.mxu0 %v3335
    %3337 = vmatprep.subr.mxu0 0.0
    %v3338 = vand.u32 %v2999, 4294901760
    %v3339 = vsub.f32 %v2999, %v3338
    %v3340 = vand.u32 %v3339, 4294901760
    %v3341 = vsub.f32 %v3339, %v3340
    %v3342 = vand.u32 %v3341, 4294901760
    %3343 = vmatpush1.msra.mxu0 %v3342
    %3344 = vmatprep.subr.mxu0 0.0
    %v3345 = vand.u32 %v3000, 4294901760
    %v3346 = vsub.f32 %v3000, %v3345
    %v3347 = vand.u32 %v3346, 4294901760
    %v3348 = vsub.f32 %v3346, %v3347
    %v3349 = vand.u32 %v3348, 4294901760
    %3350 = vmatpush1.msra.mxu0 %v3349
    %3351 = vmatprep.subr.mxu0 0.0
    %v3352 = vand.u32 %v3001, 4294901760
    %v3353 = vsub.f32 %v3001, %v3352
    %v3354 = vand.u32 %v3353, 4294901760
    %v3355 = vsub.f32 %v3353, %v3354
    %v3356 = vand.u32 %v3355, 4294901760
    %3357 = vmatpush1.msra.mxu0 %v3356
    %3358 = vmatprep.subr.mxu0 0.0
    %v3359 = vand.u32 %v3002, 4294901760
    %v3360 = vsub.f32 %v3002, %v3359
    %v3361 = vand.u32 %v3360, 4294901760
    %v3362 = vsub.f32 %v3360, %v3361
    %v3363 = vand.u32 %v3362, 4294901760
    %3364 = vmatpush1.msra.mxu0 %v3363
    %3365 = vmatprep.subr.mxu0 0.0
    %v3366 = vand.u32 %v3003, 4294901760
    %v3367 = vsub.f32 %v3003, %v3366
    %v3368 = vand.u32 %v3367, 4294901760
    %v3369 = vsub.f32 %v3367, %v3368
    %v3370 = vand.u32 %v3369, 4294901760
    %3371 = vmatpush1.msra.mxu0 %v3370
    %v3372 = vand.u32 %v2969, 4294901760
    %3373 = vmatprep.mubr.f32.mxu0 %v3372
    %v3374 = vand.u32 %v2968, 4294901760
    %3375 = vmatmul.mubr.f32.gmra.mrb[0].mxu0 %v3374
    %v3376 = vpop.f32.mrb[0].mxu0
    %v3377 = vadd.f32 %v3145, %v3376
    %v3378 = vpop.f32.mrb[0].mxu0
    %3379 = vdwg.mxu0
    %3380 = vmatprep.subr.mxu0 0.0
    %v3381 = vand.u32 %v2972, 4294901760
    %v3382 = vsub.f32 %v2972, %v3381
    %3383 = vmatpush1.msra.mxu0 %v3382
    %3384 = vmatprep.subr.mxu0 0.0
    %v3385 = vand.u32 %v2973, 4294901760
    %v3386 = vsub.f32 %v2973, %v3385
    %3387 = vmatpush1.msra.mxu0 %v3386
    %3388 = vmatprep.subr.mxu0 0.0
    %v3389 = vand.u32 %v2974, 4294901760
    %v3390 = vsub.f32 %v2974, %v3389
    %3391 = vmatpush1.msra.mxu0 %v3390
    %3392 = vmatprep.subr.mxu0 0.0
    %v3393 = vand.u32 %v2975, 4294901760
    %v3394 = vsub.f32 %v2975, %v3393
    %3395 = vmatpush1.msra.mxu0 %v3394
    %3396 = vmatprep.subr.mxu0 0.0
    %v3397 = vand.u32 %v2976, 4294901760
    %v3398 = vsub.f32 %v2976, %v3397
    %3399 = vmatpush1.msra.mxu0 %v3398
    %3400 = vmatprep.subr.mxu0 0.0
    %v3401 = vand.u32 %v2977, 4294901760
    %v3402 = vsub.f32 %v2977, %v3401
    %3403 = vmatpush1.msra.mxu0 %v3402
    %3404 = vmatprep.subr.mxu0 0.0
    %v3405 = vand.u32 %v2978, 4294901760
    %v3406 = vsub.f32 %v2978, %v3405
    %3407 = vmatpush1.msra.mxu0 %v3406
    %3408 = vmatprep.subr.mxu0 0.0
    %v3409 = vand.u32 %v2979, 4294901760
    %v3410 = vsub.f32 %v2979, %v3409
    %3411 = vmatpush1.msra.mxu0 %v3410
    %3412 = vmatprep.subr.mxu0 0.0
    %v3413 = vand.u32 %v2980, 4294901760
    %v3414 = vsub.f32 %v2980, %v3413
    %3415 = vmatpush1.msra.mxu0 %v3414
    %3416 = vmatprep.subr.mxu0 0.0
    %v3417 = vand.u32 %v2981, 4294901760
    %v3418 = vsub.f32 %v2981, %v3417
    %3419 = vmatpush1.msra.mxu0 %v3418
    %3420 = vmatprep.subr.mxu0 0.0
    %v3421 = vand.u32 %v2982, 4294901760
    %v3422 = vsub.f32 %v2982, %v3421
    %3423 = vmatpush1.msra.mxu0 %v3422
    %3424 = vmatprep.subr.mxu0 0.0
    %v3425 = vand.u32 %v2983, 4294901760
    %v3426 = vsub.f32 %v2983, %v3425
    %3427 = vmatpush1.msra.mxu0 %v3426
    %3428 = vmatprep.subr.mxu0 0.0
    %v3429 = vand.u32 %v2984, 4294901760
    %v3430 = vsub.f32 %v2984, %v3429
    %3431 = vmatpush1.msra.mxu0 %v3430
    %3432 = vmatprep.subr.mxu0 0.0
    %v3433 = vand.u32 %v2985, 4294901760
    %v3434 = vsub.f32 %v2985, %v3433
    %3435 = vmatpush1.msra.mxu0 %v3434
    %3436 = vmatprep.subr.mxu0 0.0
    %v3437 = vand.u32 %v2986, 4294901760
    %v3438 = vsub.f32 %v2986, %v3437
    %3439 = vmatpush1.msra.mxu0 %v3438
    %3440 = vmatprep.subr.mxu0 0.0
    %v3441 = vand.u32 %v2987, 4294901760
    %v3442 = vsub.f32 %v2987, %v3441
    %3443 = vmatpush1.msra.mxu0 %v3442
    %3444 = vmatprep.subr.mxu0 0.0
    %v3445 = vand.u32 %v2988, 4294901760
    %v3446 = vsub.f32 %v2988, %v3445
    %3447 = vmatpush1.msra.mxu0 %v3446
    %3448 = vmatprep.subr.mxu0 0.0
    %v3449 = vand.u32 %v2989, 4294901760
    %v3450 = vsub.f32 %v2989, %v3449
    %3451 = vmatpush1.msra.mxu0 %v3450
    %3452 = vmatprep.subr.mxu0 0.0
    %v3453 = vand.u32 %v2990, 4294901760
    %v3454 = vsub.f32 %v2990, %v3453
    %3455 = vmatpush1.msra.mxu0 %v3454
    %3456 = vmatprep.subr.mxu0 0.0
    %v3457 = vand.u32 %v2991, 4294901760
    %v3458 = vsub.f32 %v2991, %v3457
    %3459 = vmatpush1.msra.mxu0 %v3458
    %3460 = vmatprep.subr.mxu0 0.0
    %v3461 = vand.u32 %v2992, 4294901760
    %v3462 = vsub.f32 %v2992, %v3461
    %3463 = vmatpush1.msra.mxu0 %v3462
    %3464 = vmatprep.subr.mxu0 0.0
    %v3465 = vand.u32 %v2993, 4294901760
    %v3466 = vsub.f32 %v2993, %v3465
    %3467 = vmatpush1.msra.mxu0 %v3466
    %3468 = vmatprep.subr.mxu0 0.0
    %v3469 = vand.u32 %v2994, 4294901760
    %v3470 = vsub.f32 %v2994, %v3469
    %3471 = vmatpush1.msra.mxu0 %v3470
    %3472 = vmatprep.subr.mxu0 0.0
    %v3473 = vand.u32 %v2995, 4294901760
    %v3474 = vsub.f32 %v2995, %v3473
    %3475 = vmatpush1.msra.mxu0 %v3474
    %3476 = vmatprep.subr.mxu0 0.0
    %v3477 = vand.u32 %v2996, 4294901760
    %v3478 = vsub.f32 %v2996, %v3477
    %3479 = vmatpush1.msra.mxu0 %v3478
    %3480 = vmatprep.subr.mxu0 0.0
    %v3481 = vand.u32 %v2997, 4294901760
    %v3482 = vsub.f32 %v2997, %v3481
    %3483 = vmatpush1.msra.mxu0 %v3482
    %3484 = vmatprep.subr.mxu0 0.0
    %v3485 = vand.u32 %v2998, 4294901760
    %v3486 = vsub.f32 %v2998, %v3485
    %3487 = vmatpush1.msra.mxu0 %v3486
    %3488 = vmatprep.subr.mxu0 0.0
    %v3489 = vand.u32 %v2999, 4294901760
    %v3490 = vsub.f32 %v2999, %v3489
    %3491 = vmatpush1.msra.mxu0 %v3490
    %3492 = vmatprep.subr.mxu0 0.0
    %v3493 = vand.u32 %v3000, 4294901760
    %v3494 = vsub.f32 %v3000, %v3493
    %3495 = vmatpush1.msra.mxu0 %v3494
    %3496 = vmatprep.subr.mxu0 0.0
    %v3497 = vand.u32 %v3001, 4294901760
    %v3498 = vsub.f32 %v3001, %v3497
    %3499 = vmatpush1.msra.mxu0 %v3498
    %3500 = vmatprep.subr.mxu0 0.0
    %v3501 = vand.u32 %v3002, 4294901760
    %v3502 = vsub.f32 %v3002, %v3501
    %3503 = vmatpush1.msra.mxu0 %v3502
    %3504 = vmatprep.subr.mxu0 0.0
    %v3505 = vand.u32 %v3003, 4294901760
    %v3506 = vsub.f32 %v3003, %v3505
    %3507 = vmatpush1.msra.mxu0 %v3506
    %v3508 = vand.u32 %v2969, 4294901760
    %v3509 = vsub.f32 %v2969, %v3508
    %3510 = vmatprep.mubr.f32.mxu0 %v3509
    %v3511 = vand.u32 %v2968, 4294901760
    %v3512 = vsub.f32 %v2968, %v3511
    %3513 = vmatmul.mubr.f32.gmra.mrb[0].mxu0 %v3512
    %v3514 = vpop.f32.mrb[0].mxu0
    %v3515 = vadd.f32 %v3377, %v3514
    %v3516 = vpop.f32.mrb[0].mxu0
    %3517 = vdwg.mxu0
    %3518 = vmatprep.subr.mxu0 0.0
    %v3519 = vand.u32 %v2972, 4294901760
    %3520 = vmatpush1.msra.mxu0 %v3519
    %3521 = vmatprep.subr.mxu0 0.0
    %v3522 = vand.u32 %v2973, 4294901760
    %3523 = vmatpush1.msra.mxu0 %v3522
    %3524 = vmatprep.subr.mxu0 0.0
    %v3525 = vand.u32 %v2974, 4294901760
    %3526 = vmatpush1.msra.mxu0 %v3525
    %3527 = vmatprep.subr.mxu0 0.0
    %v3528 = vand.u32 %v2975, 4294901760
    %3529 = vmatpush1.msra.mxu0 %v3528
    %3530 = vmatprep.subr.mxu0 0.0
    %v3531 = vand.u32 %v2976, 4294901760
    %3532 = vmatpush1.msra.mxu0 %v3531
    %3533 = vmatprep.subr.mxu0 0.0
    %v3534 = vand.u32 %v2977, 4294901760
    %3535 = vmatpush1.msra.mxu0 %v3534
    %3536 = vmatprep.subr.mxu0 0.0
    %v3537 = vand.u32 %v2978, 4294901760
    %3538 = vmatpush1.msra.mxu0 %v3537
    %3539 = vmatprep.subr.mxu0 0.0
    %v3540 = vand.u32 %v2979, 4294901760
    %3541 = vmatpush1.msra.mxu0 %v3540
    %3542 = vmatprep.subr.mxu0 0.0
    %v3543 = vand.u32 %v2980, 4294901760
    %3544 = vmatpush1.msra.mxu0 %v3543
    %3545 = vmatprep.subr.mxu0 0.0
    %v3546 = vand.u32 %v2981, 4294901760
    %3547 = vmatpush1.msra.mxu0 %v3546
    %3548 = vmatprep.subr.mxu0 0.0
    %v3549 = vand.u32 %v2982, 4294901760
    %3550 = vmatpush1.msra.mxu0 %v3549
    %3551 = vmatprep.subr.mxu0 0.0
    %v3552 = vand.u32 %v2983, 4294901760
    %3553 = vmatpush1.msra.mxu0 %v3552
    %3554 = vmatprep.subr.mxu0 0.0
    %v3555 = vand.u32 %v2984, 4294901760
    %3556 = vmatpush1.msra.mxu0 %v3555
    %3557 = vmatprep.subr.mxu0 0.0
    %v3558 = vand.u32 %v2985, 4294901760
    %3559 = vmatpush1.msra.mxu0 %v3558
    %3560 = vmatprep.subr.mxu0 0.0
    %v3561 = vand.u32 %v2986, 4294901760
    %3562 = vmatpush1.msra.mxu0 %v3561
    %3563 = vmatprep.subr.mxu0 0.0
    %v3564 = vand.u32 %v2987, 4294901760
    %3565 = vmatpush1.msra.mxu0 %v3564
    %3566 = vmatprep.subr.mxu0 0.0
    %v3567 = vand.u32 %v2988, 4294901760
    %3568 = vmatpush1.msra.mxu0 %v3567
    %3569 = vmatprep.subr.mxu0 0.0
    %v3570 = vand.u32 %v2989, 4294901760
    %3571 = vmatpush1.msra.mxu0 %v3570
    %3572 = vmatprep.subr.mxu0 0.0
    %v3573 = vand.u32 %v2990, 4294901760
    %3574 = vmatpush1.msra.mxu0 %v3573
    %3575 = vmatprep.subr.mxu0 0.0
    %v3576 = vand.u32 %v2991, 4294901760
    %3577 = vmatpush1.msra.mxu0 %v3576
    %3578 = vmatprep.subr.mxu0 0.0
    %v3579 = vand.u32 %v2992, 4294901760
    %3580 = vmatpush1.msra.mxu0 %v3579
    %3581 = vmatprep.subr.mxu0 0.0
    %v3582 = vand.u32 %v2993, 4294901760
    %3583 = vmatpush1.msra.mxu0 %v3582
    %3584 = vmatprep.subr.mxu0 0.0
    %v3585 = vand.u32 %v2994, 4294901760
    %3586 = vmatpush1.msra.mxu0 %v3585
    %3587 = vmatprep.subr.mxu0 0.0
    %v3588 = vand.u32 %v2995, 4294901760
    %3589 = vmatpush1.msra.mxu0 %v3588
    %3590 = vmatprep.subr.mxu0 0.0
    %v3591 = vand.u32 %v2996, 4294901760
    %3592 = vmatpush1.msra.mxu0 %v3591
    %3593 = vmatprep.subr.mxu0 0.0
    %v3594 = vand.u32 %v2997, 4294901760
    %3595 = vmatpush1.msra.mxu0 %v3594
    %3596 = vmatprep.subr.mxu0 0.0
    %v3597 = vand.u32 %v2998, 4294901760
    %3598 = vmatpush1.msra.mxu0 %v3597
    %3599 = vmatprep.subr.mxu0 0.0
    %v3600 = vand.u32 %v2999, 4294901760
    %3601 = vmatpush1.msra.mxu0 %v3600
    %3602 = vmatprep.subr.mxu0 0.0
    %v3603 = vand.u32 %v3000, 4294901760
    %3604 = vmatpush1.msra.mxu0 %v3603
    %3605 = vmatprep.subr.mxu0 0.0
    %v3606 = vand.u32 %v3001, 4294901760
    %3607 = vmatpush1.msra.mxu0 %v3606
    %3608 = vmatprep.subr.mxu0 0.0
    %v3609 = vand.u32 %v3002, 4294901760
    %3610 = vmatpush1.msra.mxu0 %v3609
    %3611 = vmatprep.subr.mxu0 0.0
    %v3612 = vand.u32 %v3003, 4294901760
    %3613 = vmatpush1.msra.mxu0 %v3612
    %v3614 = vand.u32 %v2969, 4294901760
    %v3615 = vsub.f32 %v2969, %v3614
    %v3616 = vand.u32 %v3615, 4294901760
    %3617 = vmatprep.mubr.f32.mxu0 %v3616
    %v3618 = vand.u32 %v2968, 4294901760
    %v3619 = vsub.f32 %v2968, %v3618
    %v3620 = vand.u32 %v3619, 4294901760
    %3621 = vmatmul.mubr.f32.gmra.mrb[0].mxu0 %v3620
    %v3622 = vpop.f32.mrb[0].mxu0
    %v3623 = vadd.f32 %v3515, %v3622
    %v3624 = vpop.f32.mrb[0].mxu0
    %3625 = vdwg.mxu0
    %3626 = vmatprep.subr.mxu0 0.0
    %v3627 = vand.u32 %v2972, 4294901760
    %v3628 = vsub.f32 %v2972, %v3627
    %v3629 = vand.u32 %v3628, 4294901760
    %3630 = vmatpush1.msra.mxu0 %v3629
    %3631 = vmatprep.subr.mxu0 0.0
    %v3632 = vand.u32 %v2973, 4294901760
    %v3633 = vsub.f32 %v2973, %v3632
    %v3634 = vand.u32 %v3633, 4294901760
    %3635 = vmatpush1.msra.mxu0 %v3634
    %3636 = vmatprep.subr.mxu0 0.0
    %v3637 = vand.u32 %v2974, 4294901760
    %v3638 = vsub.f32 %v2974, %v3637
    %v3639 = vand.u32 %v3638, 4294901760
    %3640 = vmatpush1.msra.mxu0 %v3639
    %3641 = vmatprep.subr.mxu0 0.0
    %v3642 = vand.u32 %v2975, 4294901760
    %v3643 = vsub.f32 %v2975, %v3642
    %v3644 = vand.u32 %v3643, 4294901760
    %3645 = vmatpush1.msra.mxu0 %v3644
    %3646 = vmatprep.subr.mxu0 0.0
    %v3647 = vand.u32 %v2976, 4294901760
    %v3648 = vsub.f32 %v2976, %v3647
    %v3649 = vand.u32 %v3648, 4294901760
    %3650 = vmatpush1.msra.mxu0 %v3649
    %3651 = vmatprep.subr.mxu0 0.0
    %v3652 = vand.u32 %v2977, 4294901760
    %v3653 = vsub.f32 %v2977, %v3652
    %v3654 = vand.u32 %v3653, 4294901760
    %3655 = vmatpush1.msra.mxu0 %v3654
    %3656 = vmatprep.subr.mxu0 0.0
    %v3657 = vand.u32 %v2978, 4294901760
    %v3658 = vsub.f32 %v2978, %v3657
    %v3659 = vand.u32 %v3658, 4294901760
    %3660 = vmatpush1.msra.mxu0 %v3659
    %3661 = vmatprep.subr.mxu0 0.0
    %v3662 = vand.u32 %v2979, 4294901760
    %v3663 = vsub.f32 %v2979, %v3662
    %v3664 = vand.u32 %v3663, 4294901760
    %3665 = vmatpush1.msra.mxu0 %v3664
    %3666 = vmatprep.subr.mxu0 0.0
    %v3667 = vand.u32 %v2980, 4294901760
    %v3668 = vsub.f32 %v2980, %v3667
    %v3669 = vand.u32 %v3668, 4294901760
    %3670 = vmatpush1.msra.mxu0 %v3669
    %3671 = vmatprep.subr.mxu0 0.0
    %v3672 = vand.u32 %v2981, 4294901760
    %v3673 = vsub.f32 %v2981, %v3672
    %v3674 = vand.u32 %v3673, 4294901760
    %3675 = vmatpush1.msra.mxu0 %v3674
    %3676 = vmatprep.subr.mxu0 0.0
    %v3677 = vand.u32 %v2982, 4294901760
    %v3678 = vsub.f32 %v2982, %v3677
    %v3679 = vand.u32 %v3678, 4294901760
    %3680 = vmatpush1.msra.mxu0 %v3679
    %3681 = vmatprep.subr.mxu0 0.0
    %v3682 = vand.u32 %v2983, 4294901760
    %v3683 = vsub.f32 %v2983, %v3682
    %v3684 = vand.u32 %v3683, 4294901760
    %3685 = vmatpush1.msra.mxu0 %v3684
    %3686 = vmatprep.subr.mxu0 0.0
    %v3687 = vand.u32 %v2984, 4294901760
    %v3688 = vsub.f32 %v2984, %v3687
    %v3689 = vand.u32 %v3688, 4294901760
    %3690 = vmatpush1.msra.mxu0 %v3689
    %3691 = vmatprep.subr.mxu0 0.0
    %v3692 = vand.u32 %v2985, 4294901760
    %v3693 = vsub.f32 %v2985, %v3692
    %v3694 = vand.u32 %v3693, 4294901760
    %3695 = vmatpush1.msra.mxu0 %v3694
    %3696 = vmatprep.subr.mxu0 0.0
    %v3697 = vand.u32 %v2986, 4294901760
    %v3698 = vsub.f32 %v2986, %v3697
    %v3699 = vand.u32 %v3698, 4294901760
    %3700 = vmatpush1.msra.mxu0 %v3699
    %3701 = vmatprep.subr.mxu0 0.0
    %v3702 = vand.u32 %v2987, 4294901760
    %v3703 = vsub.f32 %v2987, %v3702
    %v3704 = vand.u32 %v3703, 4294901760
    %3705 = vmatpush1.msra.mxu0 %v3704
    %3706 = vmatprep.subr.mxu0 0.0
    %v3707 = vand.u32 %v2988, 4294901760
    %v3708 = vsub.f32 %v2988, %v3707
    %v3709 = vand.u32 %v3708, 4294901760
    %3710 = vmatpush1.msra.mxu0 %v3709
    %3711 = vmatprep.subr.mxu0 0.0
    %v3712 = vand.u32 %v2989, 4294901760
    %v3713 = vsub.f32 %v2989, %v3712
    %v3714 = vand.u32 %v3713, 4294901760
    %3715 = vmatpush1.msra.mxu0 %v3714
    %3716 = vmatprep.subr.mxu0 0.0
    %v3717 = vand.u32 %v2990, 4294901760
    %v3718 = vsub.f32 %v2990, %v3717
    %v3719 = vand.u32 %v3718, 4294901760
    %3720 = vmatpush1.msra.mxu0 %v3719
    %3721 = vmatprep.subr.mxu0 0.0
    %v3722 = vand.u32 %v2991, 4294901760
    %v3723 = vsub.f32 %v2991, %v3722
    %v3724 = vand.u32 %v3723, 4294901760
    %3725 = vmatpush1.msra.mxu0 %v3724
    %3726 = vmatprep.subr.mxu0 0.0
    %v3727 = vand.u32 %v2992, 4294901760
    %v3728 = vsub.f32 %v2992, %v3727
    %v3729 = vand.u32 %v3728, 4294901760
    %3730 = vmatpush1.msra.mxu0 %v3729
    %3731 = vmatprep.subr.mxu0 0.0
    %v3732 = vand.u32 %v2993, 4294901760
    %v3733 = vsub.f32 %v2993, %v3732
    %v3734 = vand.u32 %v3733, 4294901760
    %3735 = vmatpush1.msra.mxu0 %v3734
    %3736 = vmatprep.subr.mxu0 0.0
    %v3737 = vand.u32 %v2994, 4294901760
    %v3738 = vsub.f32 %v2994, %v3737
    %v3739 = vand.u32 %v3738, 4294901760
    %3740 = vmatpush1.msra.mxu0 %v3739
    %3741 = vmatprep.subr.mxu0 0.0
    %v3742 = vand.u32 %v2995, 4294901760
    %v3743 = vsub.f32 %v2995, %v3742
    %v3744 = vand.u32 %v3743, 4294901760
    %3745 = vmatpush1.msra.mxu0 %v3744
    %3746 = vmatprep.subr.mxu0 0.0
    %v3747 = vand.u32 %v2996, 4294901760
    %v3748 = vsub.f32 %v2996, %v3747
    %v3749 = vand.u32 %v3748, 4294901760
    %3750 = vmatpush1.msra.mxu0 %v3749
    %3751 = vmatprep.subr.mxu0 0.0
    %v3752 = vand.u32 %v2997, 4294901760
    %v3753 = vsub.f32 %v2997, %v3752
    %v3754 = vand.u32 %v3753, 4294901760
    %3755 = vmatpush1.msra.mxu0 %v3754
    %3756 = vmatprep.subr.mxu0 0.0
    %v3757 = vand.u32 %v2998, 4294901760
    %v3758 = vsub.f32 %v2998, %v3757
    %v3759 = vand.u32 %v3758, 4294901760
    %3760 = vmatpush1.msra.mxu0 %v3759
    %3761 = vmatprep.subr.mxu0 0.0
    %v3762 = vand.u32 %v2999, 4294901760
    %v3763 = vsub.f32 %v2999, %v3762
    %v3764 = vand.u32 %v3763, 4294901760
    %3765 = vmatpush1.msra.mxu0 %v3764
    %3766 = vmatprep.subr.mxu0 0.0
    %v3767 = vand.u32 %v3000, 4294901760
    %v3768 = vsub.f32 %v3000, %v3767
    %v3769 = vand.u32 %v3768, 4294901760
    %3770 = vmatpush1.msra.mxu0 %v3769
    %3771 = vmatprep.subr.mxu0 0.0
    %v3772 = vand.u32 %v3001, 4294901760
    %v3773 = vsub.f32 %v3001, %v3772
    %v3774 = vand.u32 %v3773, 4294901760
    %3775 = vmatpush1.msra.mxu0 %v3774
    %3776 = vmatprep.subr.mxu0 0.0
    %v3777 = vand.u32 %v3002, 4294901760
    %v3778 = vsub.f32 %v3002, %v3777
    %v3779 = vand.u32 %v3778, 4294901760
    %3780 = vmatpush1.msra.mxu0 %v3779
    %3781 = vmatprep.subr.mxu0 0.0
    %v3782 = vand.u32 %v3003, 4294901760
    %v3783 = vsub.f32 %v3003, %v3782
    %v3784 = vand.u32 %v3783, 4294901760
    %3785 = vmatpush1.msra.mxu0 %v3784
    %v3786 = vand.u32 %v2969, 4294901760
    %3787 = vmatprep.mubr.f32.mxu0 %v3786
    %v3788 = vand.u32 %v2968, 4294901760
    %3789 = vmatmul.mubr.f32.gmra.mrb[0].mxu0 %v3788
    %v3790 = vpop.f32.mrb[0].mxu0
    %v3791 = vadd.f32 %v3623, %v3790
    %v3792 = vpop.f32.mrb[0].mxu0
    %3793 = vdwg.mxu0
    %3794 = vmatprep.subr.mxu0 0.0
    %v3795 = vand.u32 %v2972, 4294901760
    %3796 = vmatpush1.msra.mxu0 %v3795
    %3797 = vmatprep.subr.mxu0 0.0
    %v3798 = vand.u32 %v2973, 4294901760
    %3799 = vmatpush1.msra.mxu0 %v3798
    %3800 = vmatprep.subr.mxu0 0.0
    %v3801 = vand.u32 %v2974, 4294901760
    %3802 = vmatpush1.msra.mxu0 %v3801
    %3803 = vmatprep.subr.mxu0 0.0
    %v3804 = vand.u32 %v2975, 4294901760
    %3805 = vmatpush1.msra.mxu0 %v3804
    %3806 = vmatprep.subr.mxu0 0.0
    %v3807 = vand.u32 %v2976, 4294901760
    %3808 = vmatpush1.msra.mxu0 %v3807
    %3809 = vmatprep.subr.mxu0 0.0
    %v3810 = vand.u32 %v2977, 4294901760
    %3811 = vmatpush1.msra.mxu0 %v3810
    %3812 = vmatprep.subr.mxu0 0.0
    %v3813 = vand.u32 %v2978, 4294901760
    %3814 = vmatpush1.msra.mxu0 %v3813
    %3815 = vmatprep.subr.mxu0 0.0
    %v3816 = vand.u32 %v2979, 4294901760
    %3817 = vmatpush1.msra.mxu0 %v3816
    %3818 = vmatprep.subr.mxu0 0.0
    %v3819 = vand.u32 %v2980, 4294901760
    %3820 = vmatpush1.msra.mxu0 %v3819
    %3821 = vmatprep.subr.mxu0 0.0
    %v3822 = vand.u32 %v2981, 4294901760
    %3823 = vmatpush1.msra.mxu0 %v3822
    %3824 = vmatprep.subr.mxu0 0.0
    %v3825 = vand.u32 %v2982, 4294901760
    %3826 = vmatpush1.msra.mxu0 %v3825
    %3827 = vmatprep.subr.mxu0 0.0
    %v3828 = vand.u32 %v2983, 4294901760
    %3829 = vmatpush1.msra.mxu0 %v3828
    %3830 = vmatprep.subr.mxu0 0.0
    %v3831 = vand.u32 %v2984, 4294901760
    %3832 = vmatpush1.msra.mxu0 %v3831
    %3833 = vmatprep.subr.mxu0 0.0
    %v3834 = vand.u32 %v2985, 4294901760
    %3835 = vmatpush1.msra.mxu0 %v3834
    %3836 = vmatprep.subr.mxu0 0.0
    %v3837 = vand.u32 %v2986, 4294901760
    %3838 = vmatpush1.msra.mxu0 %v3837
    %3839 = vmatprep.subr.mxu0 0.0
    %v3840 = vand.u32 %v2987, 4294901760
    %3841 = vmatpush1.msra.mxu0 %v3840
    %3842 = vmatprep.subr.mxu0 0.0
    %v3843 = vand.u32 %v2988, 4294901760
    %3844 = vmatpush1.msra.mxu0 %v3843
    %3845 = vmatprep.subr.mxu0 0.0
    %v3846 = vand.u32 %v2989, 4294901760
    %3847 = vmatpush1.msra.mxu0 %v3846
    %3848 = vmatprep.subr.mxu0 0.0
    %v3849 = vand.u32 %v2990, 4294901760
    %3850 = vmatpush1.msra.mxu0 %v3849
    %3851 = vmatprep.subr.mxu0 0.0
    %v3852 = vand.u32 %v2991, 4294901760
    %3853 = vmatpush1.msra.mxu0 %v3852
    %3854 = vmatprep.subr.mxu0 0.0
    %v3855 = vand.u32 %v2992, 4294901760
    %3856 = vmatpush1.msra.mxu0 %v3855
    %3857 = vmatprep.subr.mxu0 0.0
    %v3858 = vand.u32 %v2993, 4294901760
    %3859 = vmatpush1.msra.mxu0 %v3858
    %3860 = vmatprep.subr.mxu0 0.0
    %v3861 = vand.u32 %v2994, 4294901760
    %3862 = vmatpush1.msra.mxu0 %v3861
    %3863 = vmatprep.subr.mxu0 0.0
    %v3864 = vand.u32 %v2995, 4294901760
    %3865 = vmatpush1.msra.mxu0 %v3864
    %3866 = vmatprep.subr.mxu0 0.0
    %v3867 = vand.u32 %v2996, 4294901760
    %3868 = vmatpush1.msra.mxu0 %v3867
    %3869 = vmatprep.subr.mxu0 0.0
    %v3870 = vand.u32 %v2997, 4294901760
    %3871 = vmatpush1.msra.mxu0 %v3870
    %3872 = vmatprep.subr.mxu0 0.0
    %v3873 = vand.u32 %v2998, 4294901760
    %3874 = vmatpush1.msra.mxu0 %v3873
    %3875 = vmatprep.subr.mxu0 0.0
    %v3876 = vand.u32 %v2999, 4294901760
    %3877 = vmatpush1.msra.mxu0 %v3876
    %3878 = vmatprep.subr.mxu0 0.0
    %v3879 = vand.u32 %v3000, 4294901760
    %3880 = vmatpush1.msra.mxu0 %v3879
    %3881 = vmatprep.subr.mxu0 0.0
    %v3882 = vand.u32 %v3001, 4294901760
    %3883 = vmatpush1.msra.mxu0 %v3882
    %3884 = vmatprep.subr.mxu0 0.0
    %v3885 = vand.u32 %v3002, 4294901760
    %3886 = vmatpush1.msra.mxu0 %v3885
    %3887 = vmatprep.subr.mxu0 0.0
    %v3888 = vand.u32 %v3003, 4294901760
    %3889 = vmatpush1.msra.mxu0 %v3888
    %v3890 = vand.u32 %v2969, 4294901760
    %3891 = vmatprep.mubr.f32.mxu0 %v3890
    %v3892 = vand.u32 %v2968, 4294901760
    %3893 = vmatmul.mubr.f32.gmra.mrb[0].mxu0 %v3892
    %v3894 = vpop.f32.mrb[0].mxu0
    %v3895 = vadd.f32 %v3791, %v3894
    %v3896 = vpop.f32.mrb[0].mxu0
    %3897 = vdwg.mxu0
    %3898 = vmatprep.subr.mxu0 0.0
    %v3899 = vand.u32 %v3004, 4294901760
    %3900 = vmatpush1.msra.mxu0 %v3899
    %3901 = vmatprep.subr.mxu0 0.0
    %v3902 = vand.u32 %v3005, 4294901760
    %3903 = vmatpush1.msra.mxu0 %v3902
    %3904 = vmatprep.subr.mxu0 0.0
    %v3905 = vand.u32 %v3006, 4294901760
    %3906 = vmatpush1.msra.mxu0 %v3905
    %3907 = vmatprep.subr.mxu0 0.0
    %v3908 = vand.u32 %v3007, 4294901760
    %3909 = vmatpush1.msra.mxu0 %v3908
    %3910 = vmatprep.subr.mxu0 0.0
    %v3911 = vand.u32 %v3008, 4294901760
    %3912 = vmatpush1.msra.mxu0 %v3911
    %3913 = vmatprep.subr.mxu0 0.0
    %v3914 = vand.u32 %v3009, 4294901760
    %3915 = vmatpush1.msra.mxu0 %v3914
    %3916 = vmatprep.subr.mxu0 0.0
    %v3917 = vand.u32 %v3010, 4294901760
    %3918 = vmatpush1.msra.mxu0 %v3917
    %3919 = vmatprep.subr.mxu0 0.0
    %v3920 = vand.u32 %v3011, 4294901760
    %3921 = vmatpush1.msra.mxu0 %v3920
    %3922 = vmatprep.subr.mxu0 0.0
    %v3923 = vand.u32 %v3012, 4294901760
    %3924 = vmatpush1.msra.mxu0 %v3923
    %3925 = vmatprep.subr.mxu0 0.0
    %v3926 = vand.u32 %v3013, 4294901760
    %3927 = vmatpush1.msra.mxu0 %v3926
    %3928 = vmatprep.subr.mxu0 0.0
    %v3929 = vand.u32 %v3014, 4294901760
    %3930 = vmatpush1.msra.mxu0 %v3929
    %3931 = vmatprep.subr.mxu0 0.0
    %v3932 = vand.u32 %v3015, 4294901760
    %3933 = vmatpush1.msra.mxu0 %v3932
    %3934 = vmatprep.subr.mxu0 0.0
    %v3935 = vand.u32 %v3016, 4294901760
    %3936 = vmatpush1.msra.mxu0 %v3935
    %3937 = vmatprep.subr.mxu0 0.0
    %v3938 = vand.u32 %v3017, 4294901760
    %3939 = vmatpush1.msra.mxu0 %v3938
    %3940 = vmatprep.subr.mxu0 0.0
    %v3941 = vand.u32 %v3018, 4294901760
    %3942 = vmatpush1.msra.mxu0 %v3941
    %3943 = vmatprep.subr.mxu0 0.0
    %v3944 = vand.u32 %v3019, 4294901760
    %3945 = vmatpush1.msra.mxu0 %v3944
    %3946 = vmatprep.subr.mxu0 0.0
    %v3947 = vand.u32 %v3020, 4294901760
    %3948 = vmatpush1.msra.mxu0 %v3947
    %3949 = vmatprep.subr.mxu0 0.0
    %v3950 = vand.u32 %v3021, 4294901760
    %3951 = vmatpush1.msra.mxu0 %v3950
    %3952 = vmatprep.subr.mxu0 0.0
    %v3953 = vand.u32 %v3022, 4294901760
    %3954 = vmatpush1.msra.mxu0 %v3953
    %3955 = vmatprep.subr.mxu0 0.0
    %v3956 = vand.u32 %v3023, 4294901760
    %3957 = vmatpush1.msra.mxu0 %v3956
    %3958 = vmatprep.subr.mxu0 0.0
    %v3959 = vand.u32 %v3024, 4294901760
    %3960 = vmatpush1.msra.mxu0 %v3959
    %3961 = vmatprep.subr.mxu0 0.0
    %v3962 = vand.u32 %v3025, 4294901760
    %3963 = vmatpush1.msra.mxu0 %v3962
    %3964 = vmatprep.subr.mxu0 0.0
    %v3965 = vand.u32 %v3026, 4294901760
    %3966 = vmatpush1.msra.mxu0 %v3965
    %3967 = vmatprep.subr.mxu0 0.0
    %v3968 = vand.u32 %v3027, 4294901760
    %3969 = vmatpush1.msra.mxu0 %v3968
    %3970 = vmatprep.subr.mxu0 0.0
    %v3971 = vand.u32 %v3028, 4294901760
    %3972 = vmatpush1.msra.mxu0 %v3971
    %3973 = vmatprep.subr.mxu0 0.0
    %v3974 = vand.u32 %v3029, 4294901760
    %3975 = vmatpush1.msra.mxu0 %v3974
    %3976 = vmatprep.subr.mxu0 0.0
    %v3977 = vand.u32 %v3030, 4294901760
    %3978 = vmatpush1.msra.mxu0 %v3977
    %3979 = vmatprep.subr.mxu0 0.0
    %v3980 = vand.u32 %v3031, 4294901760
    %3981 = vmatpush1.msra.mxu0 %v3980
    %3982 = vmatprep.subr.mxu0 0.0
    %v3983 = vand.u32 %v3032, 4294901760
    %3984 = vmatpush1.msra.mxu0 %v3983
    %3985 = vmatprep.subr.mxu0 0.0
    %v3986 = vand.u32 %v3033, 4294901760
    %3987 = vmatpush1.msra.mxu0 %v3986
    %3988 = vmatprep.subr.mxu0 0.0
    %v3989 = vand.u32 %v3034, 4294901760
    %3990 = vmatpush1.msra.mxu0 %v3989
    %3991 = vmatprep.subr.mxu0 0.0
    %v3992 = vand.u32 %v3035, 4294901760
    %3993 = vmatpush1.msra.mxu0 %v3992
    %v3994 = vand.u32 %v2971, 4294901760
    %v3995 = vsub.f32 %v2971, %v3994
    %v3996 = vand.u32 %v3995, 4294901760
    %v3997 = vsub.f32 %v3995, %v3996
    %v3998 = vand.u32 %v3997, 4294901760
    %3999 = vmatprep.mubr.f32.mxu0 %v3998
    %v4000 = vand.u32 %v2970, 4294901760
    %v4001 = vsub.f32 %v2970, %v4000
    %v4002 = vand.u32 %v4001, 4294901760
    %v4003 = vsub.f32 %v4001, %v4002
    %v4004 = vand.u32 %v4003, 4294901760
    %4005 = vmatmul.mubr.f32.gmra.mrb[0].mxu0 %v4004
    %v4006 = vpop.f32.mrb[0].mxu0
    %v4007 = vadd.f32 %v3895, %v4006
    %v4008 = vpop.f32.mrb[0].mxu0
    %4009 = vdwg.mxu0
    %4010 = vmatprep.subr.mxu0 0.0
    %v4011 = vand.u32 %v3004, 4294901760
    %v4012 = vsub.f32 %v3004, %v4011
    %v4013 = vand.u32 %v4012, 4294901760
    %v4014 = vsub.f32 %v4012, %v4013
    %v4015 = vand.u32 %v4014, 4294901760
    %4016 = vmatpush1.msra.mxu0 %v4015
    %4017 = vmatprep.subr.mxu0 0.0
    %v4018 = vand.u32 %v3005, 4294901760
    %v4019 = vsub.f32 %v3005, %v4018
    %v4020 = vand.u32 %v4019, 4294901760
    %v4021 = vsub.f32 %v4019, %v4020
    %v4022 = vand.u32 %v4021, 4294901760
    %4023 = vmatpush1.msra.mxu0 %v4022
    %4024 = vmatprep.subr.mxu0 0.0
    %v4025 = vand.u32 %v3006, 4294901760
    %v4026 = vsub.f32 %v3006, %v4025
    %v4027 = vand.u32 %v4026, 4294901760
    %v4028 = vsub.f32 %v4026, %v4027
    %v4029 = vand.u32 %v4028, 4294901760
    %4030 = vmatpush1.msra.mxu0 %v4029
    %4031 = vmatprep.subr.mxu0 0.0
    %v4032 = vand.u32 %v3007, 4294901760
    %v4033 = vsub.f32 %v3007, %v4032
    %v4034 = vand.u32 %v4033, 4294901760
    %v4035 = vsub.f32 %v4033, %v4034
    %v4036 = vand.u32 %v4035, 4294901760
    %4037 = vmatpush1.msra.mxu0 %v4036
    %4038 = vmatprep.subr.mxu0 0.0
    %v4039 = vand.u32 %v3008, 4294901760
    %v4040 = vsub.f32 %v3008, %v4039
    %v4041 = vand.u32 %v4040, 4294901760
    %v4042 = vsub.f32 %v4040, %v4041
    %v4043 = vand.u32 %v4042, 4294901760
    %4044 = vmatpush1.msra.mxu0 %v4043
    %4045 = vmatprep.subr.mxu0 0.0
    %v4046 = vand.u32 %v3009, 4294901760
    %v4047 = vsub.f32 %v3009, %v4046
    %v4048 = vand.u32 %v4047, 4294901760
    %v4049 = vsub.f32 %v4047, %v4048
    %v4050 = vand.u32 %v4049, 4294901760
    %4051 = vmatpush1.msra.mxu0 %v4050
    %4052 = vmatprep.subr.mxu0 0.0
    %v4053 = vand.u32 %v3010, 4294901760
    %v4054 = vsub.f32 %v3010, %v4053
    %v4055 = vand.u32 %v4054, 4294901760
    %v4056 = vsub.f32 %v4054, %v4055
    %v4057 = vand.u32 %v4056, 4294901760
    %4058 = vmatpush1.msra.mxu0 %v4057
    %4059 = vmatprep.subr.mxu0 0.0
    %v4060 = vand.u32 %v3011, 4294901760
    %v4061 = vsub.f32 %v3011, %v4060
    %v4062 = vand.u32 %v4061, 4294901760
    %v4063 = vsub.f32 %v4061, %v4062
    %v4064 = vand.u32 %v4063, 4294901760
    %4065 = vmatpush1.msra.mxu0 %v4064
    %4066 = vmatprep.subr.mxu0 0.0
    %v4067 = vand.u32 %v3012, 4294901760
    %v4068 = vsub.f32 %v3012, %v4067
    %v4069 = vand.u32 %v4068, 4294901760
    %v4070 = vsub.f32 %v4068, %v4069
    %v4071 = vand.u32 %v4070, 4294901760
    %4072 = vmatpush1.msra.mxu0 %v4071
    %4073 = vmatprep.subr.mxu0 0.0
    %v4074 = vand.u32 %v3013, 4294901760
    %v4075 = vsub.f32 %v3013, %v4074
    %v4076 = vand.u32 %v4075, 4294901760
    %v4077 = vsub.f32 %v4075, %v4076
    %v4078 = vand.u32 %v4077, 4294901760
    %4079 = vmatpush1.msra.mxu0 %v4078
    %4080 = vmatprep.subr.mxu0 0.0
    %v4081 = vand.u32 %v3014, 4294901760
    %v4082 = vsub.f32 %v3014, %v4081
    %v4083 = vand.u32 %v4082, 4294901760
    %v4084 = vsub.f32 %v4082, %v4083
    %v4085 = vand.u32 %v4084, 4294901760
    %4086 = vmatpush1.msra.mxu0 %v4085
    %4087 = vmatprep.subr.mxu0 0.0
    %v4088 = vand.u32 %v3015, 4294901760
    %v4089 = vsub.f32 %v3015, %v4088
    %v4090 = vand.u32 %v4089, 4294901760
    %v4091 = vsub.f32 %v4089, %v4090
    %v4092 = vand.u32 %v4091, 4294901760
    %4093 = vmatpush1.msra.mxu0 %v4092
    %4094 = vmatprep.subr.mxu0 0.0
    %v4095 = vand.u32 %v3016, 4294901760
    %v4096 = vsub.f32 %v3016, %v4095
    %v4097 = vand.u32 %v4096, 4294901760
    %v4098 = vsub.f32 %v4096, %v4097
    %v4099 = vand.u32 %v4098, 4294901760
    %4100 = vmatpush1.msra.mxu0 %v4099
    %4101 = vmatprep.subr.mxu0 0.0
    %v4102 = vand.u32 %v3017, 4294901760
    %v4103 = vsub.f32 %v3017, %v4102
    %v4104 = vand.u32 %v4103, 4294901760
    %v4105 = vsub.f32 %v4103, %v4104
    %v4106 = vand.u32 %v4105, 4294901760
    %4107 = vmatpush1.msra.mxu0 %v4106
    %4108 = vmatprep.subr.mxu0 0.0
    %v4109 = vand.u32 %v3018, 4294901760
    %v4110 = vsub.f32 %v3018, %v4109
    %v4111 = vand.u32 %v4110, 4294901760
    %v4112 = vsub.f32 %v4110, %v4111
    %v4113 = vand.u32 %v4112, 4294901760
    %4114 = vmatpush1.msra.mxu0 %v4113
    %4115 = vmatprep.subr.mxu0 0.0
    %v4116 = vand.u32 %v3019, 4294901760
    %v4117 = vsub.f32 %v3019, %v4116
    %v4118 = vand.u32 %v4117, 4294901760
    %v4119 = vsub.f32 %v4117, %v4118
    %v4120 = vand.u32 %v4119, 4294901760
    %4121 = vmatpush1.msra.mxu0 %v4120
    %4122 = vmatprep.subr.mxu0 0.0
    %v4123 = vand.u32 %v3020, 4294901760
    %v4124 = vsub.f32 %v3020, %v4123
    %v4125 = vand.u32 %v4124, 4294901760
    %v4126 = vsub.f32 %v4124, %v4125
    %v4127 = vand.u32 %v4126, 4294901760
    %4128 = vmatpush1.msra.mxu0 %v4127
    %4129 = vmatprep.subr.mxu0 0.0
    %v4130 = vand.u32 %v3021, 4294901760
    %v4131 = vsub.f32 %v3021, %v4130
    %v4132 = vand.u32 %v4131, 4294901760
    %v4133 = vsub.f32 %v4131, %v4132
    %v4134 = vand.u32 %v4133, 4294901760
    %4135 = vmatpush1.msra.mxu0 %v4134
    %4136 = vmatprep.subr.mxu0 0.0
    %v4137 = vand.u32 %v3022, 4294901760
    %v4138 = vsub.f32 %v3022, %v4137
    %v4139 = vand.u32 %v4138, 4294901760
    %v4140 = vsub.f32 %v4138, %v4139
    %v4141 = vand.u32 %v4140, 4294901760
    %4142 = vmatpush1.msra.mxu0 %v4141
    %4143 = vmatprep.subr.mxu0 0.0
    %v4144 = vand.u32 %v3023, 4294901760
    %v4145 = vsub.f32 %v3023, %v4144
    %v4146 = vand.u32 %v4145, 4294901760
    %v4147 = vsub.f32 %v4145, %v4146
    %v4148 = vand.u32 %v4147, 4294901760
    %4149 = vmatpush1.msra.mxu0 %v4148
    %4150 = vmatprep.subr.mxu0 0.0
    %v4151 = vand.u32 %v3024, 4294901760
    %v4152 = vsub.f32 %v3024, %v4151
    %v4153 = vand.u32 %v4152, 4294901760
    %v4154 = vsub.f32 %v4152, %v4153
    %v4155 = vand.u32 %v4154, 4294901760
    %4156 = vmatpush1.msra.mxu0 %v4155
    %4157 = vmatprep.subr.mxu0 0.0
    %v4158 = vand.u32 %v3025, 4294901760
    %v4159 = vsub.f32 %v3025, %v4158
    %v4160 = vand.u32 %v4159, 4294901760
    %v4161 = vsub.f32 %v4159, %v4160
    %v4162 = vand.u32 %v4161, 4294901760
    %4163 = vmatpush1.msra.mxu0 %v4162
    %4164 = vmatprep.subr.mxu0 0.0
    %v4165 = vand.u32 %v3026, 4294901760
    %v4166 = vsub.f32 %v3026, %v4165
    %v4167 = vand.u32 %v4166, 4294901760
    %v4168 = vsub.f32 %v4166, %v4167
    %v4169 = vand.u32 %v4168, 4294901760
    %4170 = vmatpush1.msra.mxu0 %v4169
    %4171 = vmatprep.subr.mxu0 0.0
    %v4172 = vand.u32 %v3027, 4294901760
    %v4173 = vsub.f32 %v3027, %v4172
    %v4174 = vand.u32 %v4173, 4294901760
    %v4175 = vsub.f32 %v4173, %v4174
    %v4176 = vand.u32 %v4175, 4294901760
    %4177 = vmatpush1.msra.mxu0 %v4176
    %4178 = vmatprep.subr.mxu0 0.0
    %v4179 = vand.u32 %v3028, 4294901760
    %v4180 = vsub.f32 %v3028, %v4179
    %v4181 = vand.u32 %v4180, 4294901760
    %v4182 = vsub.f32 %v4180, %v4181
    %v4183 = vand.u32 %v4182, 4294901760
    %4184 = vmatpush1.msra.mxu0 %v4183
    %4185 = vmatprep.subr.mxu0 0.0
    %v4186 = vand.u32 %v3029, 4294901760
    %v4187 = vsub.f32 %v3029, %v4186
    %v4188 = vand.u32 %v4187, 4294901760
    %v4189 = vsub.f32 %v4187, %v4188
    %v4190 = vand.u32 %v4189, 4294901760
    %4191 = vmatpush1.msra.mxu0 %v4190
    %4192 = vmatprep.subr.mxu0 0.0
    %v4193 = vand.u32 %v3030, 4294901760
    %v4194 = vsub.f32 %v3030, %v4193
    %v4195 = vand.u32 %v4194, 4294901760
    %v4196 = vsub.f32 %v4194, %v4195
    %v4197 = vand.u32 %v4196, 4294901760
    %4198 = vmatpush1.msra.mxu0 %v4197
    %4199 = vmatprep.subr.mxu0 0.0
    %v4200 = vand.u32 %v3031, 4294901760
    %v4201 = vsub.f32 %v3031, %v4200
    %v4202 = vand.u32 %v4201, 4294901760
    %v4203 = vsub.f32 %v4201, %v4202
    %v4204 = vand.u32 %v4203, 4294901760
    %4205 = vmatpush1.msra.mxu0 %v4204
    %4206 = vmatprep.subr.mxu0 0.0
    %v4207 = vand.u32 %v3032, 4294901760
    %v4208 = vsub.f32 %v3032, %v4207
    %v4209 = vand.u32 %v4208, 4294901760
    %v4210 = vsub.f32 %v4208, %v4209
    %v4211 = vand.u32 %v4210, 4294901760
    %4212 = vmatpush1.msra.mxu0 %v4211
    %4213 = vmatprep.subr.mxu0 0.0
    %v4214 = vand.u32 %v3033, 4294901760
    %v4215 = vsub.f32 %v3033, %v4214
    %v4216 = vand.u32 %v4215, 4294901760
    %v4217 = vsub.f32 %v4215, %v4216
    %v4218 = vand.u32 %v4217, 4294901760
    %4219 = vmatpush1.msra.mxu0 %v4218
    %4220 = vmatprep.subr.mxu0 0.0
    %v4221 = vand.u32 %v3034, 4294901760
    %v4222 = vsub.f32 %v3034, %v4221
    %v4223 = vand.u32 %v4222, 4294901760
    %v4224 = vsub.f32 %v4222, %v4223
    %v4225 = vand.u32 %v4224, 4294901760
    %4226 = vmatpush1.msra.mxu0 %v4225
    %4227 = vmatprep.subr.mxu0 0.0
    %v4228 = vand.u32 %v3035, 4294901760
    %v4229 = vsub.f32 %v3035, %v4228
    %v4230 = vand.u32 %v4229, 4294901760
    %v4231 = vsub.f32 %v4229, %v4230
    %v4232 = vand.u32 %v4231, 4294901760
    %4233 = vmatpush1.msra.mxu0 %v4232
    %v4234 = vand.u32 %v2971, 4294901760
    %4235 = vmatprep.mubr.f32.mxu0 %v4234
    %v4236 = vand.u32 %v2970, 4294901760
    %4237 = vmatmul.mubr.f32.gmra.mrb[0].mxu0 %v4236
    %v4238 = vpop.f32.mrb[0].mxu0
    %v4239 = vadd.f32 %v4007, %v4238
    %v4240 = vpop.f32.mrb[0].mxu0
    %4241 = vdwg.mxu0
    %4242 = vmatprep.subr.mxu0 0.0
    %v4243 = vand.u32 %v3004, 4294901760
    %v4244 = vsub.f32 %v3004, %v4243
    %4245 = vmatpush1.msra.mxu0 %v4244
    %4246 = vmatprep.subr.mxu0 0.0
    %v4247 = vand.u32 %v3005, 4294901760
    %v4248 = vsub.f32 %v3005, %v4247
    %4249 = vmatpush1.msra.mxu0 %v4248
    %4250 = vmatprep.subr.mxu0 0.0
    %v4251 = vand.u32 %v3006, 4294901760
    %v4252 = vsub.f32 %v3006, %v4251
    %4253 = vmatpush1.msra.mxu0 %v4252
    %4254 = vmatprep.subr.mxu0 0.0
    %v4255 = vand.u32 %v3007, 4294901760
    %v4256 = vsub.f32 %v3007, %v4255
    %4257 = vmatpush1.msra.mxu0 %v4256
    %4258 = vmatprep.subr.mxu0 0.0
    %v4259 = vand.u32 %v3008, 4294901760
    %v4260 = vsub.f32 %v3008, %v4259
    %4261 = vmatpush1.msra.mxu0 %v4260
    %4262 = vmatprep.subr.mxu0 0.0
    %v4263 = vand.u32 %v3009, 4294901760
    %v4264 = vsub.f32 %v3009, %v4263
    %4265 = vmatpush1.msra.mxu0 %v4264
    %4266 = vmatprep.subr.mxu0 0.0
    %v4267 = vand.u32 %v3010, 4294901760
    %v4268 = vsub.f32 %v3010, %v4267
    %4269 = vmatpush1.msra.mxu0 %v4268
    %4270 = vmatprep.subr.mxu0 0.0
    %v4271 = vand.u32 %v3011, 4294901760
    %v4272 = vsub.f32 %v3011, %v4271
    %4273 = vmatpush1.msra.mxu0 %v4272
    %4274 = vmatprep.subr.mxu0 0.0
    %v4275 = vand.u32 %v3012, 4294901760
    %v4276 = vsub.f32 %v3012, %v4275
    %4277 = vmatpush1.msra.mxu0 %v4276
    %4278 = vmatprep.subr.mxu0 0.0
    %v4279 = vand.u32 %v3013, 4294901760
    %v4280 = vsub.f32 %v3013, %v4279
    %4281 = vmatpush1.msra.mxu0 %v4280
    %4282 = vmatprep.subr.mxu0 0.0
    %v4283 = vand.u32 %v3014, 4294901760
    %v4284 = vsub.f32 %v3014, %v4283
    %4285 = vmatpush1.msra.mxu0 %v4284
    %4286 = vmatprep.subr.mxu0 0.0
    %v4287 = vand.u32 %v3015, 4294901760
    %v4288 = vsub.f32 %v3015, %v4287
    %4289 = vmatpush1.msra.mxu0 %v4288
    %4290 = vmatprep.subr.mxu0 0.0
    %v4291 = vand.u32 %v3016, 4294901760
    %v4292 = vsub.f32 %v3016, %v4291
    %4293 = vmatpush1.msra.mxu0 %v4292
    %4294 = vmatprep.subr.mxu0 0.0
    %v4295 = vand.u32 %v3017, 4294901760
    %v4296 = vsub.f32 %v3017, %v4295
    %4297 = vmatpush1.msra.mxu0 %v4296
    %4298 = vmatprep.subr.mxu0 0.0
    %v4299 = vand.u32 %v3018, 4294901760
    %v4300 = vsub.f32 %v3018, %v4299
    %4301 = vmatpush1.msra.mxu0 %v4300
    %4302 = vmatprep.subr.mxu0 0.0
    %v4303 = vand.u32 %v3019, 4294901760
    %v4304 = vsub.f32 %v3019, %v4303
    %4305 = vmatpush1.msra.mxu0 %v4304
    %4306 = vmatprep.subr.mxu0 0.0
    %v4307 = vand.u32 %v3020, 4294901760
    %v4308 = vsub.f32 %v3020, %v4307
    %4309 = vmatpush1.msra.mxu0 %v4308
    %4310 = vmatprep.subr.mxu0 0.0
    %v4311 = vand.u32 %v3021, 4294901760
    %v4312 = vsub.f32 %v3021, %v4311
    %4313 = vmatpush1.msra.mxu0 %v4312
    %4314 = vmatprep.subr.mxu0 0.0
    %v4315 = vand.u32 %v3022, 4294901760
    %v4316 = vsub.f32 %v3022, %v4315
    %4317 = vmatpush1.msra.mxu0 %v4316
    %4318 = vmatprep.subr.mxu0 0.0
    %v4319 = vand.u32 %v3023, 4294901760
    %v4320 = vsub.f32 %v3023, %v4319
    %4321 = vmatpush1.msra.mxu0 %v4320
    %4322 = vmatprep.subr.mxu0 0.0
    %v4323 = vand.u32 %v3024, 4294901760
    %v4324 = vsub.f32 %v3024, %v4323
    %4325 = vmatpush1.msra.mxu0 %v4324
    %4326 = vmatprep.subr.mxu0 0.0
    %v4327 = vand.u32 %v3025, 4294901760
    %v4328 = vsub.f32 %v3025, %v4327
    %4329 = vmatpush1.msra.mxu0 %v4328
    %4330 = vmatprep.subr.mxu0 0.0
    %v4331 = vand.u32 %v3026, 4294901760
    %v4332 = vsub.f32 %v3026, %v4331
    %4333 = vmatpush1.msra.mxu0 %v4332
    %4334 = vmatprep.subr.mxu0 0.0
    %v4335 = vand.u32 %v3027, 4294901760
    %v4336 = vsub.f32 %v3027, %v4335
    %4337 = vmatpush1.msra.mxu0 %v4336
    %4338 = vmatprep.subr.mxu0 0.0
    %v4339 = vand.u32 %v3028, 4294901760
    %v4340 = vsub.f32 %v3028, %v4339
    %4341 = vmatpush1.msra.mxu0 %v4340
    %4342 = vmatprep.subr.mxu0 0.0
    %v4343 = vand.u32 %v3029, 4294901760
    %v4344 = vsub.f32 %v3029, %v4343
    %4345 = vmatpush1.msra.mxu0 %v4344
    %4346 = vmatprep.subr.mxu0 0.0
    %v4347 = vand.u32 %v3030, 4294901760
    %v4348 = vsub.f32 %v3030, %v4347
    %4349 = vmatpush1.msra.mxu0 %v4348
    %4350 = vmatprep.subr.mxu0 0.0
    %v4351 = vand.u32 %v3031, 4294901760
    %v4352 = vsub.f32 %v3031, %v4351
    %4353 = vmatpush1.msra.mxu0 %v4352
    %4354 = vmatprep.subr.mxu0 0.0
    %v4355 = vand.u32 %v3032, 4294901760
    %v4356 = vsub.f32 %v3032, %v4355
    %4357 = vmatpush1.msra.mxu0 %v4356
    %4358 = vmatprep.subr.mxu0 0.0
    %v4359 = vand.u32 %v3033, 4294901760
    %v4360 = vsub.f32 %v3033, %v4359
    %4361 = vmatpush1.msra.mxu0 %v4360
    %4362 = vmatprep.subr.mxu0 0.0
    %v4363 = vand.u32 %v3034, 4294901760
    %v4364 = vsub.f32 %v3034, %v4363
    %4365 = vmatpush1.msra.mxu0 %v4364
    %4366 = vmatprep.subr.mxu0 0.0
    %v4367 = vand.u32 %v3035, 4294901760
    %v4368 = vsub.f32 %v3035, %v4367
    %4369 = vmatpush1.msra.mxu0 %v4368
    %v4370 = vand.u32 %v2971, 4294901760
    %v4371 = vsub.f32 %v2971, %v4370
    %4372 = vmatprep.mubr.f32.mxu0 %v4371
    %v4373 = vand.u32 %v2970, 4294901760
    %v4374 = vsub.f32 %v2970, %v4373
    %4375 = vmatmul.mubr.f32.gmra.mrb[0].mxu0 %v4374
    %v4376 = vpop.f32.mrb[0].mxu0
    %v4377 = vadd.f32 %v4239, %v4376
    %v4378 = vpop.f32.mrb[0].mxu0
    %4379 = vdwg.mxu0
    %4380 = vmatprep.subr.mxu0 0.0
    %v4381 = vand.u32 %v3004, 4294901760
    %4382 = vmatpush1.msra.mxu0 %v4381
    %4383 = vmatprep.subr.mxu0 0.0
    %v4384 = vand.u32 %v3005, 4294901760
    %4385 = vmatpush1.msra.mxu0 %v4384
    %4386 = vmatprep.subr.mxu0 0.0
    %v4387 = vand.u32 %v3006, 4294901760
    %4388 = vmatpush1.msra.mxu0 %v4387
    %4389 = vmatprep.subr.mxu0 0.0
    %v4390 = vand.u32 %v3007, 4294901760
    %4391 = vmatpush1.msra.mxu0 %v4390
    %4392 = vmatprep.subr.mxu0 0.0
    %v4393 = vand.u32 %v3008, 4294901760
    %4394 = vmatpush1.msra.mxu0 %v4393
    %4395 = vmatprep.subr.mxu0 0.0
    %v4396 = vand.u32 %v3009, 4294901760
    %4397 = vmatpush1.msra.mxu0 %v4396
    %4398 = vmatprep.subr.mxu0 0.0
    %v4399 = vand.u32 %v3010, 4294901760
    %4400 = vmatpush1.msra.mxu0 %v4399
    %4401 = vmatprep.subr.mxu0 0.0
    %v4402 = vand.u32 %v3011, 4294901760
    %4403 = vmatpush1.msra.mxu0 %v4402
    %4404 = vmatprep.subr.mxu0 0.0
    %v4405 = vand.u32 %v3012, 4294901760
    %4406 = vmatpush1.msra.mxu0 %v4405
    %4407 = vmatprep.subr.mxu0 0.0
    %v4408 = vand.u32 %v3013, 4294901760
    %4409 = vmatpush1.msra.mxu0 %v4408
    %4410 = vmatprep.subr.mxu0 0.0
    %v4411 = vand.u32 %v3014, 4294901760
    %4412 = vmatpush1.msra.mxu0 %v4411
    %4413 = vmatprep.subr.mxu0 0.0
    %v4414 = vand.u32 %v3015, 4294901760
    %4415 = vmatpush1.msra.mxu0 %v4414
    %4416 = vmatprep.subr.mxu0 0.0
    %v4417 = vand.u32 %v3016, 4294901760
    %4418 = vmatpush1.msra.mxu0 %v4417
    %4419 = vmatprep.subr.mxu0 0.0
    %v4420 = vand.u32 %v3017, 4294901760
    %4421 = vmatpush1.msra.mxu0 %v4420
    %4422 = vmatprep.subr.mxu0 0.0
    %v4423 = vand.u32 %v3018, 4294901760
    %4424 = vmatpush1.msra.mxu0 %v4423
    %4425 = vmatprep.subr.mxu0 0.0
    %v4426 = vand.u32 %v3019, 4294901760
    %4427 = vmatpush1.msra.mxu0 %v4426
    %4428 = vmatprep.subr.mxu0 0.0
    %v4429 = vand.u32 %v3020, 4294901760
    %4430 = vmatpush1.msra.mxu0 %v4429
    %4431 = vmatprep.subr.mxu0 0.0
    %v4432 = vand.u32 %v3021, 4294901760
    %4433 = vmatpush1.msra.mxu0 %v4432
    %4434 = vmatprep.subr.mxu0 0.0
    %v4435 = vand.u32 %v3022, 4294901760
    %4436 = vmatpush1.msra.mxu0 %v4435
    %4437 = vmatprep.subr.mxu0 0.0
    %v4438 = vand.u32 %v3023, 4294901760
    %4439 = vmatpush1.msra.mxu0 %v4438
    %4440 = vmatprep.subr.mxu0 0.0
    %v4441 = vand.u32 %v3024, 4294901760
    %4442 = vmatpush1.msra.mxu0 %v4441
    %4443 = vmatprep.subr.mxu0 0.0
    %v4444 = vand.u32 %v3025, 4294901760
    %4445 = vmatpush1.msra.mxu0 %v4444
    %4446 = vmatprep.subr.mxu0 0.0
    %v4447 = vand.u32 %v3026, 4294901760
    %4448 = vmatpush1.msra.mxu0 %v4447
    %4449 = vmatprep.subr.mxu0 0.0
    %v4450 = vand.u32 %v3027, 4294901760
    %4451 = vmatpush1.msra.mxu0 %v4450
    %4452 = vmatprep.subr.mxu0 0.0
    %v4453 = vand.u32 %v3028, 4294901760
    %4454 = vmatpush1.msra.mxu0 %v4453
    %4455 = vmatprep.subr.mxu0 0.0
    %v4456 = vand.u32 %v3029, 4294901760
    %4457 = vmatpush1.msra.mxu0 %v4456
    %4458 = vmatprep.subr.mxu0 0.0
    %v4459 = vand.u32 %v3030, 4294901760
    %4460 = vmatpush1.msra.mxu0 %v4459
    %4461 = vmatprep.subr.mxu0 0.0
    %v4462 = vand.u32 %v3031, 4294901760
    %4463 = vmatpush1.msra.mxu0 %v4462
    %4464 = vmatprep.subr.mxu0 0.0
    %v4465 = vand.u32 %v3032, 4294901760
    %4466 = vmatpush1.msra.mxu0 %v4465
    %4467 = vmatprep.subr.mxu0 0.0
    %v4468 = vand.u32 %v3033, 4294901760
    %4469 = vmatpush1.msra.mxu0 %v4468
    %4470 = vmatprep.subr.mxu0 0.0
    %v4471 = vand.u32 %v3034, 4294901760
    %4472 = vmatpush1.msra.mxu0 %v4471
    %4473 = vmatprep.subr.mxu0 0.0
    %v4474 = vand.u32 %v3035, 4294901760
    %4475 = vmatpush1.msra.mxu0 %v4474
    %v4476 = vand.u32 %v2971, 4294901760
    %v4477 = vsub.f32 %v2971, %v4476
    %v4478 = vand.u32 %v4477, 4294901760
    %4479 = vmatprep.mubr.f32.mxu0 %v4478
    %v4480 = vand.u32 %v2970, 4294901760
    %v4481 = vsub.f32 %v2970, %v4480
    %v4482 = vand.u32 %v4481, 4294901760
    %4483 = vmatmul.mubr.f32.gmra.mrb[0].mxu0 %v4482
    %v4484 = vpop.f32.mrb[0].mxu0
    %v4485 = vadd.f32 %v4377, %v4484
    %v4486 = vpop.f32.mrb[0].mxu0
    %4487 = vdwg.mxu0
    %4488 = vmatprep.subr.mxu0 0.0
    %v4489 = vand.u32 %v3004, 4294901760
    %v4490 = vsub.f32 %v3004, %v4489
    %v4491 = vand.u32 %v4490, 4294901760
    %4492 = vmatpush1.msra.mxu0 %v4491
    %4493 = vmatprep.subr.mxu0 0.0
    %v4494 = vand.u32 %v3005, 4294901760
    %v4495 = vsub.f32 %v3005, %v4494
    %v4496 = vand.u32 %v4495, 4294901760
    %4497 = vmatpush1.msra.mxu0 %v4496
    %4498 = vmatprep.subr.mxu0 0.0
    %v4499 = vand.u32 %v3006, 4294901760
    %v4500 = vsub.f32 %v3006, %v4499
    %v4501 = vand.u32 %v4500, 4294901760
    %4502 = vmatpush1.msra.mxu0 %v4501
    %4503 = vmatprep.subr.mxu0 0.0
    %v4504 = vand.u32 %v3007, 4294901760
    %v4505 = vsub.f32 %v3007, %v4504
    %v4506 = vand.u32 %v4505, 4294901760
    %4507 = vmatpush1.msra.mxu0 %v4506
    %4508 = vmatprep.subr.mxu0 0.0
    %v4509 = vand.u32 %v3008, 4294901760
    %v4510 = vsub.f32 %v3008, %v4509
    %v4511 = vand.u32 %v4510, 4294901760
    %4512 = vmatpush1.msra.mxu0 %v4511
    %4513 = vmatprep.subr.mxu0 0.0
    %v4514 = vand.u32 %v3009, 4294901760
    %v4515 = vsub.f32 %v3009, %v4514
    %v4516 = vand.u32 %v4515, 4294901760
    %4517 = vmatpush1.msra.mxu0 %v4516
    %4518 = vmatprep.subr.mxu0 0.0
    %v4519 = vand.u32 %v3010, 4294901760
    %v4520 = vsub.f32 %v3010, %v4519
    %v4521 = vand.u32 %v4520, 4294901760
    %4522 = vmatpush1.msra.mxu0 %v4521
    %4523 = vmatprep.subr.mxu0 0.0
    %v4524 = vand.u32 %v3011, 4294901760
    %v4525 = vsub.f32 %v3011, %v4524
    %v4526 = vand.u32 %v4525, 4294901760
    %4527 = vmatpush1.msra.mxu0 %v4526
    %4528 = vmatprep.subr.mxu0 0.0
    %v4529 = vand.u32 %v3012, 4294901760
    %v4530 = vsub.f32 %v3012, %v4529
    %v4531 = vand.u32 %v4530, 4294901760
    %4532 = vmatpush1.msra.mxu0 %v4531
    %4533 = vmatprep.subr.mxu0 0.0
    %v4534 = vand.u32 %v3013, 4294901760
    %v4535 = vsub.f32 %v3013, %v4534
    %v4536 = vand.u32 %v4535, 4294901760
    %4537 = vmatpush1.msra.mxu0 %v4536
    %4538 = vmatprep.subr.mxu0 0.0
    %v4539 = vand.u32 %v3014, 4294901760
    %v4540 = vsub.f32 %v3014, %v4539
    %v4541 = vand.u32 %v4540, 4294901760
    %4542 = vmatpush1.msra.mxu0 %v4541
    %4543 = vmatprep.subr.mxu0 0.0
    %v4544 = vand.u32 %v3015, 4294901760
    %v4545 = vsub.f32 %v3015, %v4544
    %v4546 = vand.u32 %v4545, 4294901760
    %4547 = vmatpush1.msra.mxu0 %v4546
    %4548 = vmatprep.subr.mxu0 0.0
    %v4549 = vand.u32 %v3016, 4294901760
    %v4550 = vsub.f32 %v3016, %v4549
    %v4551 = vand.u32 %v4550, 4294901760
    %4552 = vmatpush1.msra.mxu0 %v4551
    %4553 = vmatprep.subr.mxu0 0.0
    %v4554 = vand.u32 %v3017, 4294901760
    %v4555 = vsub.f32 %v3017, %v4554
    %v4556 = vand.u32 %v4555, 4294901760
    %4557 = vmatpush1.msra.mxu0 %v4556
    %4558 = vmatprep.subr.mxu0 0.0
    %v4559 = vand.u32 %v3018, 4294901760
    %v4560 = vsub.f32 %v3018, %v4559
    %v4561 = vand.u32 %v4560, 4294901760
    %4562 = vmatpush1.msra.mxu0 %v4561
    %4563 = vmatprep.subr.mxu0 0.0
    %v4564 = vand.u32 %v3019, 4294901760
    %v4565 = vsub.f32 %v3019, %v4564
    %v4566 = vand.u32 %v4565, 4294901760
    %4567 = vmatpush1.msra.mxu0 %v4566
    %4568 = vmatprep.subr.mxu0 0.0
    %v4569 = vand.u32 %v3020, 4294901760
    %v4570 = vsub.f32 %v3020, %v4569
    %v4571 = vand.u32 %v4570, 4294901760
    %4572 = vmatpush1.msra.mxu0 %v4571
    %4573 = vmatprep.subr.mxu0 0.0
    %v4574 = vand.u32 %v3021, 4294901760
    %v4575 = vsub.f32 %v3021, %v4574
    %v4576 = vand.u32 %v4575, 4294901760
    %4577 = vmatpush1.msra.mxu0 %v4576
    %4578 = vmatprep.subr.mxu0 0.0
    %v4579 = vand.u32 %v3022, 4294901760
    %v4580 = vsub.f32 %v3022, %v4579
    %v4581 = vand.u32 %v4580, 4294901760
    %4582 = vmatpush1.msra.mxu0 %v4581
    %4583 = vmatprep.subr.mxu0 0.0
    %v4584 = vand.u32 %v3023, 4294901760
    %v4585 = vsub.f32 %v3023, %v4584
    %v4586 = vand.u32 %v4585, 4294901760
    %4587 = vmatpush1.msra.mxu0 %v4586
    %4588 = vmatprep.subr.mxu0 0.0
    %v4589 = vand.u32 %v3024, 4294901760
    %v4590 = vsub.f32 %v3024, %v4589
    %v4591 = vand.u32 %v4590, 4294901760
    %4592 = vmatpush1.msra.mxu0 %v4591
    %4593 = vmatprep.subr.mxu0 0.0
    %v4594 = vand.u32 %v3025, 4294901760
    %v4595 = vsub.f32 %v3025, %v4594
    %v4596 = vand.u32 %v4595, 4294901760
    %4597 = vmatpush1.msra.mxu0 %v4596
    %4598 = vmatprep.subr.mxu0 0.0
    %v4599 = vand.u32 %v3026, 4294901760
    %v4600 = vsub.f32 %v3026, %v4599
    %v4601 = vand.u32 %v4600, 4294901760
    %4602 = vmatpush1.msra.mxu0 %v4601
    %4603 = vmatprep.subr.mxu0 0.0
    %v4604 = vand.u32 %v3027, 4294901760
    %v4605 = vsub.f32 %v3027, %v4604
    %v4606 = vand.u32 %v4605, 4294901760
    %4607 = vmatpush1.msra.mxu0 %v4606
    %4608 = vmatprep.subr.mxu0 0.0
    %v4609 = vand.u32 %v3028, 4294901760
    %v4610 = vsub.f32 %v3028, %v4609
    %v4611 = vand.u32 %v4610, 4294901760
    %4612 = vmatpush1.msra.mxu0 %v4611
    %4613 = vmatprep.subr.mxu0 0.0
    %v4614 = vand.u32 %v3029, 4294901760
    %v4615 = vsub.f32 %v3029, %v4614
    %v4616 = vand.u32 %v4615, 4294901760
    %4617 = vmatpush1.msra.mxu0 %v4616
    %4618 = vmatprep.subr.mxu0 0.0
    %v4619 = vand.u32 %v3030, 4294901760
    %v4620 = vsub.f32 %v3030, %v4619
    %v4621 = vand.u32 %v4620, 4294901760
    %4622 = vmatpush1.msra.mxu0 %v4621
    %4623 = vmatprep.subr.mxu0 0.0
    %v4624 = vand.u32 %v3031, 4294901760
    %v4625 = vsub.f32 %v3031, %v4624
    %v4626 = vand.u32 %v4625, 4294901760
    %4627 = vmatpush1.msra.mxu0 %v4626
    %4628 = vmatprep.subr.mxu0 0.0
    %v4629 = vand.u32 %v3032, 4294901760
    %v4630 = vsub.f32 %v3032, %v4629
    %v4631 = vand.u32 %v4630, 4294901760
    %4632 = vmatpush1.msra.mxu0 %v4631
    %4633 = vmatprep.subr.mxu0 0.0
    %v4634 = vand.u32 %v3033, 4294901760
    %v4635 = vsub.f32 %v3033, %v4634
    %v4636 = vand.u32 %v4635, 4294901760
    %4637 = vmatpush1.msra.mxu0 %v4636
    %4638 = vmatprep.subr.mxu0 0.0
    %v4639 = vand.u32 %v3034, 4294901760
    %v4640 = vsub.f32 %v3034, %v4639
    %v4641 = vand.u32 %v4640, 4294901760
    %4642 = vmatpush1.msra.mxu0 %v4641
    %4643 = vmatprep.subr.mxu0 0.0
    %v4644 = vand.u32 %v3035, 4294901760
    %v4645 = vsub.f32 %v3035, %v4644
    %v4646 = vand.u32 %v4645, 4294901760
    %4647 = vmatpush1.msra.mxu0 %v4646
    %v4648 = vand.u32 %v2971, 4294901760
    %4649 = vmatprep.mubr.f32.mxu0 %v4648
    %v4650 = vand.u32 %v2970, 4294901760
    %4651 = vmatmul.mubr.f32.gmra.mrb[0].mxu0 %v4650
    %v4652 = vpop.f32.mrb[0].mxu0
    %v4653 = vadd.f32 %v4485, %v4652
    %v4654 = vpop.f32.mrb[0].mxu0
    %4655 = vdwg.mxu0
    %4656 = vmatprep.subr.mxu0 0.0
    %v4657 = vand.u32 %v3004, 4294901760
    %4658 = vmatpush1.msra.mxu0 %v4657
    %4659 = vmatprep.subr.mxu0 0.0
    %v4660 = vand.u32 %v3005, 4294901760
    %4661 = vmatpush1.msra.mxu0 %v4660
    %4662 = vmatprep.subr.mxu0 0.0
    %v4663 = vand.u32 %v3006, 4294901760
    %4664 = vmatpush1.msra.mxu0 %v4663
    %4665 = vmatprep.subr.mxu0 0.0
    %v4666 = vand.u32 %v3007, 4294901760
    %4667 = vmatpush1.msra.mxu0 %v4666
    %4668 = vmatprep.subr.mxu0 0.0
    %v4669 = vand.u32 %v3008, 4294901760
    %4670 = vmatpush1.msra.mxu0 %v4669
    %4671 = vmatprep.subr.mxu0 0.0
    %v4672 = vand.u32 %v3009, 4294901760
    %4673 = vmatpush1.msra.mxu0 %v4672
    %4674 = vmatprep.subr.mxu0 0.0
    %v4675 = vand.u32 %v3010, 4294901760
    %4676 = vmatpush1.msra.mxu0 %v4675
    %4677 = vmatprep.subr.mxu0 0.0
    %v4678 = vand.u32 %v3011, 4294901760
    %4679 = vmatpush1.msra.mxu0 %v4678
    %4680 = vmatprep.subr.mxu0 0.0
    %v4681 = vand.u32 %v3012, 4294901760
    %4682 = vmatpush1.msra.mxu0 %v4681
    %4683 = vmatprep.subr.mxu0 0.0
    %v4684 = vand.u32 %v3013, 4294901760
    %4685 = vmatpush1.msra.mxu0 %v4684
    %4686 = vmatprep.subr.mxu0 0.0
    %v4687 = vand.u32 %v3014, 4294901760
    %4688 = vmatpush1.msra.mxu0 %v4687
    %4689 = vmatprep.subr.mxu0 0.0
    %v4690 = vand.u32 %v3015, 4294901760
    %4691 = vmatpush1.msra.mxu0 %v4690
    %4692 = vmatprep.subr.mxu0 0.0
    %v4693 = vand.u32 %v3016, 4294901760
    %4694 = vmatpush1.msra.mxu0 %v4693
    %4695 = vmatprep.subr.mxu0 0.0
    %v4696 = vand.u32 %v3017, 4294901760
    %4697 = vmatpush1.msra.mxu0 %v4696
    %4698 = vmatprep.subr.mxu0 0.0
    %v4699 = vand.u32 %v3018, 4294901760
    %4700 = vmatpush1.msra.mxu0 %v4699
    %4701 = vmatprep.subr.mxu0 0.0
    %v4702 = vand.u32 %v3019, 4294901760
    %4703 = vmatpush1.msra.mxu0 %v4702
    %4704 = vmatprep.subr.mxu0 0.0
    %v4705 = vand.u32 %v3020, 4294901760
    %4706 = vmatpush1.msra.mxu0 %v4705
    %4707 = vmatprep.subr.mxu0 0.0
    %v4708 = vand.u32 %v3021, 4294901760
    %4709 = vmatpush1.msra.mxu0 %v4708
    %4710 = vmatprep.subr.mxu0 0.0
    %v4711 = vand.u32 %v3022, 4294901760
    %4712 = vmatpush1.msra.mxu0 %v4711
    %4713 = vmatprep.subr.mxu0 0.0
    %v4714 = vand.u32 %v3023, 4294901760
    %4715 = vmatpush1.msra.mxu0 %v4714
    %4716 = vmatprep.subr.mxu0 0.0
    %v4717 = vand.u32 %v3024, 4294901760
    %4718 = vmatpush1.msra.mxu0 %v4717
    %4719 = vmatprep.subr.mxu0 0.0
    %v4720 = vand.u32 %v3025, 4294901760
    %4721 = vmatpush1.msra.mxu0 %v4720
    %4722 = vmatprep.subr.mxu0 0.0
    %v4723 = vand.u32 %v3026, 4294901760
    %4724 = vmatpush1.msra.mxu0 %v4723
    %4725 = vmatprep.subr.mxu0 0.0
    %v4726 = vand.u32 %v3027, 4294901760
    %4727 = vmatpush1.msra.mxu0 %v4726
    %4728 = vmatprep.subr.mxu0 0.0
    %v4729 = vand.u32 %v3028, 4294901760
    %4730 = vmatpush1.msra.mxu0 %v4729
    %4731 = vmatprep.subr.mxu0 0.0
    %v4732 = vand.u32 %v3029, 4294901760
    %4733 = vmatpush1.msra.mxu0 %v4732
    %4734 = vmatprep.subr.mxu0 0.0
    %v4735 = vand.u32 %v3030, 4294901760
    %4736 = vmatpush1.msra.mxu0 %v4735
    %4737 = vmatprep.subr.mxu0 0.0
    %v4738 = vand.u32 %v3031, 4294901760
    %4739 = vmatpush1.msra.mxu0 %v4738
    %4740 = vmatprep.subr.mxu0 0.0
    %v4741 = vand.u32 %v3032, 4294901760
    %4742 = vmatpush1.msra.mxu0 %v4741
    %4743 = vmatprep.subr.mxu0 0.0
    %v4744 = vand.u32 %v3033, 4294901760
    %4745 = vmatpush1.msra.mxu0 %v4744
    %4746 = vmatprep.subr.mxu0 0.0
    %v4747 = vand.u32 %v3034, 4294901760
    %4748 = vmatpush1.msra.mxu0 %v4747
    %4749 = vmatprep.subr.mxu0 0.0
    %v4750 = vand.u32 %v3035, 4294901760
    %4751 = vmatpush1.msra.mxu0 %v4750
    %v4752 = vand.u32 %v2971, 4294901760
    %4753 = vmatprep.mubr.f32.mxu0 %v4752
    %v4754 = vand.u32 %v2970, 4294901760
    %4755 = vmatmul.mubr.f32.gmra.mrb[0].mxu0 %v4754
    %v4756 = vpop.f32.mrb[0].mxu0
    %v4757 = vadd.f32 %v4653, %v4756
    %v4758 = vpop.f32.mrb[0].mxu0
    %4759 = vdwg.mxu0
    %v4760 = vmul.f32 %v4757, 0.5
    %v4761 = vmul.f32 %v4757, 0.70710677
    %v4762 = vand.u32 2147483647, %v4761
    %v4763 = vmul.f32 %v4762, 0.3275911
    %v4764 = vadd.f32 %v4763, 1.0
    %v4765 = vrcp.pop %v4764
    %v4766 = vmul.f32 1.0, %v4765
    %v4767 = vmul.f32 %v4766, 1.0614054
    %v4768 = vadd.f32 %v4767, -1.4531521
    %v4769 = vmul.f32 %v4766, %v4768
    %v4770 = vadd.f32 %v4769, 1.4214138
    %v4771 = vmul.f32 %v4766, %v4770
    %v4772 = vadd.f32 %v4771, -0.28449672
    %v4773 = vmul.f32 %v4766, %v4772
    %v4774 = vadd.f32 %v4773, 0.2548296
    %v4775 = vmul.f32 %v4766, %v4774
    %v4776 = vmul.f32 %v4762, %v4762
    %v4777 = vsub.f32 0.0, %v4776
    %v4778 = vmul.f32 %v4777, 1.442695
    %v4779 = vpow.pop %v4778
    %v4780 = vmul.f32 %v4775, %v4779
    %v4781 = vsub.f32 1.0, %v4780
    %vm4782 = vcmp.ge.f32.partialorder %v4761, 0.0
    %v4783 = vsub.f32 0.0, %v4781
    %v4784 = vsel %vm4782, %v4781, %v4783
    %v4785 = vadd.f32 %v4784, 1.0
    %v4786 = vmul.f32 %v4760, %v4785
    %vm4787 = vcmask 130048
    %4788 = vst.msk [vmem:[#allocation6] sm:$0xff] %vm4787, %v4757
    %4789 = vst.msk [vmem:[#allocation7] sm:$0xff] %vm4787, %v4786
    %v4790 = vld [vmem:[%s27] sm:$0xff]
    %v4791 = vld [vmem:[%s27 + $0x8] sm:$0xff]
    %v4792 = vld [vmem:[%s29] sm:$0x1]
    %v4793 = vld [vmem:[%s31] sm:$0x1]
    %v4794 = vld [vmem:[%s33] sm:$0x1f]
    %v4795 = vld [vmem:[%s35] sm:$0x1f]
    %v4796 = vtanh.pop %v4786
    %v4798 = vsel %vm4787, %v4796, 0
    %4800 = vmatprep.subr.mxu0 0.0
    %v4801 = vand.u32 %v4790, 4294901760
    %4802 = vmatpush1.msra.mxu0 %v4801
    %4803 = vmatprep.subr.mxu0 0.0
    %v4804 = vand.u32 %v4791, 4294901760
    %4805 = vmatpush1.msra.mxu0 %v4804
    %4806 = vmatprep.subr.mxu0 0.0
    %4807 = vmatpush1.msra.mxu0 0.0
    %4808 = vmatprep.subr.mxu0 0.0
    %4809 = vmatpush1.msra.mxu0 0.0
    %4810 = vmatprep.subr.mxu0 0.0
    %4811 = vmatpush1.msra.mxu0 0.0
    %4812 = vmatprep.subr.mxu0 0.0
    %4813 = vmatpush1.msra.mxu0 0.0
    %4814 = vmatprep.subr.mxu0 0.0
    %4815 = vmatpush1.msra.mxu0 0.0
    %4816 = vmatprep.subr.mxu0 0.0
    %4817 = vmatpush1.msra.mxu0 0.0
    %4818 = vmatprep.subr.mxu0 0.0
    %4819 = vmatpush1.msra.mxu0 0.0
    %4820 = vmatprep.subr.mxu0 0.0
    %4821 = vmatpush1.msra.mxu0 0.0
    %4822 = vmatprep.subr.mxu0 0.0
    %4823 = vmatpush1.msra.mxu0 0.0
    %4824 = vmatprep.subr.mxu0 0.0
    %4825 = vmatpush1.msra.mxu0 0.0
    %4826 = vmatprep.subr.mxu0 0.0
    %4827 = vmatpush1.msra.mxu0 0.0
    %4828 = vmatprep.subr.mxu0 0.0
    %4829 = vmatpush1.msra.mxu0 0.0
    %4830 = vmatprep.subr.mxu0 0.0
    %4831 = vmatpush1.msra.mxu0 0.0
    %4832 = vmatprep.subr.mxu0 0.0
    %4833 = vmatpush1.msra.mxu0 0.0
    %4834 = vmatprep.subr.mxu0 0.0
    %4835 = vmatpush1.msra.mxu0 0.0
    %4836 = vmatprep.subr.mxu0 0.0
    %4837 = vmatpush1.msra.mxu0 0.0
    %4838 = vmatprep.subr.mxu0 0.0
    %4839 = vmatpush1.msra.mxu0 0.0
    %4840 = vmatprep.subr.mxu0 0.0
    %4841 = vmatpush1.msra.mxu0 0.0
    %4842 = vmatprep.subr.mxu0 0.0
    %4843 = vmatpush1.msra.mxu0 0.0
    %4844 = vmatprep.subr.mxu0 0.0
    %4845 = vmatpush1.msra.mxu0 0.0
    %4846 = vmatprep.subr.mxu0 0.0
    %4847 = vmatpush1.msra.mxu0 0.0
    %4848 = vmatprep.subr.mxu0 0.0
    %4849 = vmatpush1.msra.mxu0 0.0
    %4850 = vmatprep.subr.mxu0 0.0
    %4851 = vmatpush1.msra.mxu0 0.0
    %4852 = vmatprep.subr.mxu0 0.0
    %4853 = vmatpush1.msra.mxu0 0.0
    %4854 = vmatprep.subr.mxu0 0.0
    %4855 = vmatpush1.msra.mxu0 0.0
    %4856 = vmatprep.subr.mxu0 0.0
    %4857 = vmatpush1.msra.mxu0 0.0
    %4858 = vmatprep.subr.mxu0 0.0
    %4859 = vmatpush1.msra.mxu0 0.0
    %4860 = vmatprep.subr.mxu0 0.0
    %4861 = vmatpush1.msra.mxu0 0.0
    %4862 = vmatprep.subr.mxu0 0.0
    %4863 = vmatpush1.msra.mxu0 0.0
    %4864 = vmatprep.subr.mxu0 0.0
    %4865 = vmatpush1.msra.mxu0 0.0
    %4866 = vmatprep.mubr.f32.mxu0 0.0
    %v4867 = vand.u32 %v4798, 4294901760
    %v4868 = vsub.f32 %v4798, %v4867
    %v4869 = vand.u32 %v4868, 4294901760
    %v4870 = vsub.f32 %v4868, %v4869
    %v4871 = vand.u32 %v4870, 4294901760
    %4872 = vmatmul.mubr.f32.gmra.mrb[0].mxu0 %v4871
    %v4873 = vpop.f32.mrb[0].mxu0
    %v4874 = vadd.f32 0.0, %v4873
    %v4875 = vpop.f32.mrb[0].mxu0
    %4876 = vdwg.mxu0
    %4877 = vmatprep.subr.mxu0 0.0
    %v4878 = vand.u32 %v4790, 4294901760
    %v4879 = vsub.f32 %v4790, %v4878
    %v4880 = vand.u32 %v4879, 4294901760
    %v4881 = vsub.f32 %v4879, %v4880
    %v4882 = vand.u32 %v4881, 4294901760
    %4883 = vmatpush1.msra.mxu0 %v4882
    %4884 = vmatprep.subr.mxu0 0.0
    %v4885 = vand.u32 %v4791, 4294901760
    %v4886 = vsub.f32 %v4791, %v4885
    %v4887 = vand.u32 %v4886, 4294901760
    %v4888 = vsub.f32 %v4886, %v4887
    %v4889 = vand.u32 %v4888, 4294901760
    %4890 = vmatpush1.msra.mxu0 %v4889
    %4891 = vmatprep.subr.mxu0 0.0
    %4892 = vmatpush1.msra.mxu0 0.0
    %4893 = vmatprep.subr.mxu0 0.0
    %4894 = vmatpush1.msra.mxu0 0.0
    %4895 = vmatprep.subr.mxu0 0.0
    %4896 = vmatpush1.msra.mxu0 0.0
    %4897 = vmatprep.subr.mxu0 0.0
    %4898 = vmatpush1.msra.mxu0 0.0
    %4899 = vmatprep.subr.mxu0 0.0
    %4900 = vmatpush1.msra.mxu0 0.0
    %4901 = vmatprep.subr.mxu0 0.0
    %4902 = vmatpush1.msra.mxu0 0.0
    %4903 = vmatprep.subr.mxu0 0.0
    %4904 = vmatpush1.msra.mxu0 0.0
    %4905 = vmatprep.subr.mxu0 0.0
    %4906 = vmatpush1.msra.mxu0 0.0
    %4907 = vmatprep.subr.mxu0 0.0
    %4908 = vmatpush1.msra.mxu0 0.0
    %4909 = vmatprep.subr.mxu0 0.0
    %4910 = vmatpush1.msra.mxu0 0.0
    %4911 = vmatprep.subr.mxu0 0.0
    %4912 = vmatpush1.msra.mxu0 0.0
    %4913 = vmatprep.subr.mxu0 0.0
    %4914 = vmatpush1.msra.mxu0 0.0
    %4915 = vmatprep.subr.mxu0 0.0
    %4916 = vmatpush1.msra.mxu0 0.0
    %4917 = vmatprep.subr.mxu0 0.0
    %4918 = vmatpush1.msra.mxu0 0.0
    %4919 = vmatprep.subr.mxu0 0.0
    %4920 = vmatpush1.msra.mxu0 0.0
    %4921 = vmatprep.subr.mxu0 0.0
    %4922 = vmatpush1.msra.mxu0 0.0
    %4923 = vmatprep.subr.mxu0 0.0
    %4924 = vmatpush1.msra.mxu0 0.0
    %4925 = vmatprep.subr.mxu0 0.0
    %4926 = vmatpush1.msra.mxu0 0.0
    %4927 = vmatprep.subr.mxu0 0.0
    %4928 = vmatpush1.msra.mxu0 0.0
    %4929 = vmatprep.subr.mxu0 0.0
    %4930 = vmatpush1.msra.mxu0 0.0
    %4931 = vmatprep.subr.mxu0 0.0
    %4932 = vmatpush1.msra.mxu0 0.0
    %4933 = vmatprep.subr.mxu0 0.0
    %4934 = vmatpush1.msra.mxu0 0.0
    %4935 = vmatprep.subr.mxu0 0.0
    %4936 = vmatpush1.msra.mxu0 0.0
    %4937 = vmatprep.subr.mxu0 0.0
    %4938 = vmatpush1.msra.mxu0 0.0
    %4939 = vmatprep.subr.mxu0 0.0
    %4940 = vmatpush1.msra.mxu0 0.0
    %4941 = vmatprep.subr.mxu0 0.0
    %4942 = vmatpush1.msra.mxu0 0.0
    %4943 = vmatprep.subr.mxu0 0.0
    %4944 = vmatpush1.msra.mxu0 0.0
    %4945 = vmatprep.subr.mxu0 0.0
    %4946 = vmatpush1.msra.mxu0 0.0
    %4947 = vmatprep.subr.mxu0 0.0
    %4948 = vmatpush1.msra.mxu0 0.0
    %4949 = vmatprep.subr.mxu0 0.0
    %4950 = vmatpush1.msra.mxu0 0.0
    %4951 = vmatprep.mubr.f32.mxu0 0.0
    %v4952 = vand.u32 %v4798, 4294901760
    %4953 = vmatmul.mubr.f32.gmra.mrb[0].mxu0 %v4952
    %v4954 = vpop.f32.mrb[0].mxu0
    %v4955 = vadd.f32 %v4874, %v4954
    %v4956 = vpop.f32.mrb[0].mxu0
    %4957 = vdwg.mxu0
    %4958 = vmatprep.subr.mxu0 0.0
    %v4959 = vand.u32 %v4790, 4294901760
    %v4960 = vsub.f32 %v4790, %v4959
    %4961 = vmatpush1.msra.mxu0 %v4960
    %4962 = vmatprep.subr.mxu0 0.0
    %v4963 = vand.u32 %v4791, 4294901760
    %v4964 = vsub.f32 %v4791, %v4963
    %4965 = vmatpush1.msra.mxu0 %v4964
    %4966 = vmatprep.subr.mxu0 0.0
    %4967 = vmatpush1.msra.mxu0 0.0
    %4968 = vmatprep.subr.mxu0 0.0
    %4969 = vmatpush1.msra.mxu0 0.0
    %4970 = vmatprep.subr.mxu0 0.0
    %4971 = vmatpush1.msra.mxu0 0.0
    %4972 = vmatprep.subr.mxu0 0.0
    %4973 = vmatpush1.msra.mxu0 0.0
    %4974 = vmatprep.subr.mxu0 0.0
    %4975 = vmatpush1.msra.mxu0 0.0
    %4976 = vmatprep.subr.mxu0 0.0
    %4977 = vmatpush1.msra.mxu0 0.0
    %4978 = vmatprep.subr.mxu0 0.0
    %4979 = vmatpush1.msra.mxu0 0.0
    %4980 = vmatprep.subr.mxu0 0.0
    %4981 = vmatpush1.msra.mxu0 0.0
    %4982 = vmatprep.subr.mxu0 0.0
    %4983 = vmatpush1.msra.mxu0 0.0
    %4984 = vmatprep.subr.mxu0 0.0
    %4985 = vmatpush1.msra.mxu0 0.0
    %4986 = vmatprep.subr.mxu0 0.0
    %4987 = vmatpush1.msra.mxu0 0.0
    %4988 = vmatprep.subr.mxu0 0.0
    %4989 = vmatpush1.msra.mxu0 0.0
    %4990 = vmatprep.subr.mxu0 0.0
    %4991 = vmatpush1.msra.mxu0 0.0
    %4992 = vmatprep.subr.mxu0 0.0
    %4993 = vmatpush1.msra.mxu0 0.0
    %4994 = vmatprep.subr.mxu0 0.0
    %4995 = vmatpush1.msra.mxu0 0.0
    %4996 = vmatprep.subr.mxu0 0.0
    %4997 = vmatpush1.msra.mxu0 0.0
    %4998 = vmatprep.subr.mxu0 0.0
    %4999 = vmatpush1.msra.mxu0 0.0
    %5000 = vmatprep.subr.mxu0 0.0
    %5001 = vmatpush1.msra.mxu0 0.0
    %5002 = vmatprep.subr.mxu0 0.0
    %5003 = vmatpush1.msra.mxu0 0.0
    %5004 = vmatprep.subr.mxu0 0.0
    %5005 = vmatpush1.msra.mxu0 0.0
    %5006 = vmatprep.subr.mxu0 0.0
    %5007 = vmatpush1.msra.mxu0 0.0
    %5008 = vmatprep.subr.mxu0 0.0
    %5009 = vmatpush1.msra.mxu0 0.0
    %5010 = vmatprep.subr.mxu0 0.0
    %5011 = vmatpush1.msra.mxu0 0.0
    %5012 = vmatprep.subr.mxu0 0.0
    %5013 = vmatpush1.msra.mxu0 0.0
    %5014 = vmatprep.subr.mxu0 0.0
    %5015 = vmatpush1.msra.mxu0 0.0
    %5016 = vmatprep.subr.mxu0 0.0
    %5017 = vmatpush1.msra.mxu0 0.0
    %5018 = vmatprep.subr.mxu0 0.0
    %5019 = vmatpush1.msra.mxu0 0.0
    %5020 = vmatprep.subr.mxu0 0.0
    %5021 = vmatpush1.msra.mxu0 0.0
    %5022 = vmatprep.subr.mxu0 0.0
    %5023 = vmatpush1.msra.mxu0 0.0
    %5024 = vmatprep.subr.mxu0 0.0
    %5025 = vmatpush1.msra.mxu0 0.0
    %5026 = vmatprep.mubr.f32.mxu0 0.0
    %v5027 = vand.u32 %v4798, 4294901760
    %v5028 = vsub.f32 %v4798, %v5027
    %5029 = vmatmul.mubr.f32.gmra.mrb[0].mxu0 %v5028
    %v5030 = vpop.f32.mrb[0].mxu0
    %v5031 = vadd.f32 %v4955, %v5030
    %v5032 = vpop.f32.mrb[0].mxu0
    %5033 = vdwg.mxu0
    %5034 = vmatprep.subr.mxu0 0.0
    %v5035 = vand.u32 %v4790, 4294901760
    %5036 = vmatpush1.msra.mxu0 %v5035
    %5037 = vmatprep.subr.mxu0 0.0
    %v5038 = vand.u32 %v4791, 4294901760
    %5039 = vmatpush1.msra.mxu0 %v5038
    %5040 = vmatprep.subr.mxu0 0.0
    %5041 = vmatpush1.msra.mxu0 0.0
    %5042 = vmatprep.subr.mxu0 0.0
    %5043 = vmatpush1.msra.mxu0 0.0
    %5044 = vmatprep.subr.mxu0 0.0
    %5045 = vmatpush1.msra.mxu0 0.0
    %5046 = vmatprep.subr.mxu0 0.0
    %5047 = vmatpush1.msra.mxu0 0.0
    %5048 = vmatprep.subr.mxu0 0.0
    %5049 = vmatpush1.msra.mxu0 0.0
    %5050 = vmatprep.subr.mxu0 0.0
    %5051 = vmatpush1.msra.mxu0 0.0
    %5052 = vmatprep.subr.mxu0 0.0
    %5053 = vmatpush1.msra.mxu0 0.0
    %5054 = vmatprep.subr.mxu0 0.0
    %5055 = vmatpush1.msra.mxu0 0.0
    %5056 = vmatprep.subr.mxu0 0.0
    %5057 = vmatpush1.msra.mxu0 0.0
    %5058 = vmatprep.subr.mxu0 0.0
    %5059 = vmatpush1.msra.mxu0 0.0
    %5060 = vmatprep.subr.mxu0 0.0
    %5061 = vmatpush1.msra.mxu0 0.0
    %5062 = vmatprep.subr.mxu0 0.0
    %5063 = vmatpush1.msra.mxu0 0.0
    %5064 = vmatprep.subr.mxu0 0.0
    %5065 = vmatpush1.msra.mxu0 0.0
    %5066 = vmatprep.subr.mxu0 0.0
    %5067 = vmatpush1.msra.mxu0 0.0
    %5068 = vmatprep.subr.mxu0 0.0
    %5069 = vmatpush1.msra.mxu0 0.0
    %5070 = vmatprep.subr.mxu0 0.0
    %5071 = vmatpush1.msra.mxu0 0.0
    %5072 = vmatprep.subr.mxu0 0.0
    %5073 = vmatpush1.msra.mxu0 0.0
    %5074 = vmatprep.subr.mxu0 0.0
    %5075 = vmatpush1.msra.mxu0 0.0
    %5076 = vmatprep.subr.mxu0 0.0
    %5077 = vmatpush1.msra.mxu0 0.0
    %5078 = vmatprep.subr.mxu0 0.0
    %5079 = vmatpush1.msra.mxu0 0.0
    %5080 = vmatprep.subr.mxu0 0.0
    %5081 = vmatpush1.msra.mxu0 0.0
    %5082 = vmatprep.subr.mxu0 0.0
    %5083 = vmatpush1.msra.mxu0 0.0
    %5084 = vmatprep.subr.mxu0 0.0
    %5085 = vmatpush1.msra.mxu0 0.0
    %5086 = vmatprep.subr.mxu0 0.0
    %5087 = vmatpush1.msra.mxu0 0.0
    %5088 = vmatprep.subr.mxu0 0.0
    %5089 = vmatpush1.msra.mxu0 0.0
    %5090 = vmatprep.subr.mxu0 0.0
    %5091 = vmatpush1.msra.mxu0 0.0
    %5092 = vmatprep.subr.mxu0 0.0
    %5093 = vmatpush1.msra.mxu0 0.0
    %5094 = vmatprep.subr.mxu0 0.0
    %5095 = vmatpush1.msra.mxu0 0.0
    %5096 = vmatprep.subr.mxu0 0.0
    %5097 = vmatpush1.msra.mxu0 0.0
    %5098 = vmatprep.subr.mxu0 0.0
    %5099 = vmatpush1.msra.mxu0 0.0
    %5100 = vmatprep.mubr.f32.mxu0 0.0
    %v5101 = vand.u32 %v4798, 4294901760
    %v5102 = vsub.f32 %v4798, %v5101
    %v5103 = vand.u32 %v5102, 4294901760
    %5104 = vmatmul.mubr.f32.gmra.mrb[0].mxu0 %v5103
    %v5105 = vpop.f32.mrb[0].mxu0
    %v5106 = vadd.f32 %v5031, %v5105
    %v5107 = vpop.f32.mrb[0].mxu0
    %5108 = vdwg.mxu0
    %5109 = vmatprep.subr.mxu0 0.0
    %v5110 = vand.u32 %v4790, 4294901760
    %v5111 = vsub.f32 %v4790, %v5110
    %v5112 = vand.u32 %v5111, 4294901760
    %5113 = vmatpush1.msra.mxu0 %v5112
    %5114 = vmatprep.subr.mxu0 0.0
    %v5115 = vand.u32 %v4791, 4294901760
    %v5116 = vsub.f32 %v4791, %v5115
    %v5117 = vand.u32 %v5116, 4294901760
    %5118 = vmatpush1.msra.mxu0 %v5117
    %5119 = vmatprep.subr.mxu0 0.0
    %5120 = vmatpush1.msra.mxu0 0.0
    %5121 = vmatprep.subr.mxu0 0.0
    %5122 = vmatpush1.msra.mxu0 0.0
    %5123 = vmatprep.subr.mxu0 0.0
    %5124 = vmatpush1.msra.mxu0 0.0
    %5125 = vmatprep.subr.mxu0 0.0
    %5126 = vmatpush1.msra.mxu0 0.0
    %5127 = vmatprep.subr.mxu0 0.0
    %5128 = vmatpush1.msra.mxu0 0.0
    %5129 = vmatprep.subr.mxu0 0.0
    %5130 = vmatpush1.msra.mxu0 0.0
    %5131 = vmatprep.subr.mxu0 0.0
    %5132 = vmatpush1.msra.mxu0 0.0
    %5133 = vmatprep.subr.mxu0 0.0
    %5134 = vmatpush1.msra.mxu0 0.0
    %5135 = vmatprep.subr.mxu0 0.0
    %5136 = vmatpush1.msra.mxu0 0.0
    %5137 = vmatprep.subr.mxu0 0.0
    %5138 = vmatpush1.msra.mxu0 0.0
    %5139 = vmatprep.subr.mxu0 0.0
    %5140 = vmatpush1.msra.mxu0 0.0
    %5141 = vmatprep.subr.mxu0 0.0
    %5142 = vmatpush1.msra.mxu0 0.0
    %5143 = vmatprep.subr.mxu0 0.0
    %5144 = vmatpush1.msra.mxu0 0.0
    %5145 = vmatprep.subr.mxu0 0.0
    %5146 = vmatpush1.msra.mxu0 0.0
    %5147 = vmatprep.subr.mxu0 0.0
    %5148 = vmatpush1.msra.mxu0 0.0
    %5149 = vmatprep.subr.mxu0 0.0
    %5150 = vmatpush1.msra.mxu0 0.0
    %5151 = vmatprep.subr.mxu0 0.0
    %5152 = vmatpush1.msra.mxu0 0.0
    %5153 = vmatprep.subr.mxu0 0.0
    %5154 = vmatpush1.msra.mxu0 0.0
    %5155 = vmatprep.subr.mxu0 0.0
    %5156 = vmatpush1.msra.mxu0 0.0
    %5157 = vmatprep.subr.mxu0 0.0
    %5158 = vmatpush1.msra.mxu0 0.0
    %5159 = vmatprep.subr.mxu0 0.0
    %5160 = vmatpush1.msra.mxu0 0.0
    %5161 = vmatprep.subr.mxu0 0.0
    %5162 = vmatpush1.msra.mxu0 0.0
    %5163 = vmatprep.subr.mxu0 0.0
    %5164 = vmatpush1.msra.mxu0 0.0
    %5165 = vmatprep.subr.mxu0 0.0
    %5166 = vmatpush1.msra.mxu0 0.0
    %5167 = vmatprep.subr.mxu0 0.0
    %5168 = vmatpush1.msra.mxu0 0.0
    %5169 = vmatprep.subr.mxu0 0.0
    %5170 = vmatpush1.msra.mxu0 0.0
    %5171 = vmatprep.subr.mxu0 0.0
    %5172 = vmatpush1.msra.mxu0 0.0
    %5173 = vmatprep.subr.mxu0 0.0
    %5174 = vmatpush1.msra.mxu0 0.0
    %5175 = vmatprep.subr.mxu0 0.0
    %5176 = vmatpush1.msra.mxu0 0.0
    %5177 = vmatprep.subr.mxu0 0.0
    %5178 = vmatpush1.msra.mxu0 0.0
    %5179 = vmatprep.mubr.f32.mxu0 0.0
    %v5180 = vand.u32 %v4798, 4294901760
    %5181 = vmatmul.mubr.f32.gmra.mrb[0].mxu0 %v5180
    %v5182 = vpop.f32.mrb[0].mxu0
    %v5183 = vadd.f32 %v5106, %v5182
    %v5184 = vpop.f32.mrb[0].mxu0
    %5185 = vdwg.mxu0
    %5186 = vmatprep.subr.mxu0 0.0
    %v5187 = vand.u32 %v4790, 4294901760
    %5188 = vmatpush1.msra.mxu0 %v5187
    %5189 = vmatprep.subr.mxu0 0.0
    %v5190 = vand.u32 %v4791, 4294901760
    %5191 = vmatpush1.msra.mxu0 %v5190
    %5192 = vmatprep.subr.mxu0 0.0
    %5193 = vmatpush1.msra.mxu0 0.0
    %5194 = vmatprep.subr.mxu0 0.0
    %5195 = vmatpush1.msra.mxu0 0.0
    %5196 = vmatprep.subr.mxu0 0.0
    %5197 = vmatpush1.msra.mxu0 0.0
    %5198 = vmatprep.subr.mxu0 0.0
    %5199 = vmatpush1.msra.mxu0 0.0
    %5200 = vmatprep.subr.mxu0 0.0
    %5201 = vmatpush1.msra.mxu0 0.0
    %5202 = vmatprep.subr.mxu0 0.0
    %5203 = vmatpush1.msra.mxu0 0.0
    %5204 = vmatprep.subr.mxu0 0.0
    %5205 = vmatpush1.msra.mxu0 0.0
    %5206 = vmatprep.subr.mxu0 0.0
    %5207 = vmatpush1.msra.mxu0 0.0
    %5208 = vmatprep.subr.mxu0 0.0
    %5209 = vmatpush1.msra.mxu0 0.0
    %5210 = vmatprep.subr.mxu0 0.0
    %5211 = vmatpush1.msra.mxu0 0.0
    %5212 = vmatprep.subr.mxu0 0.0
    %5213 = vmatpush1.msra.mxu0 0.0
    %5214 = vmatprep.subr.mxu0 0.0
    %5215 = vmatpush1.msra.mxu0 0.0
    %5216 = vmatprep.subr.mxu0 0.0
    %5217 = vmatpush1.msra.mxu0 0.0
    %5218 = vmatprep.subr.mxu0 0.0
    %5219 = vmatpush1.msra.mxu0 0.0
    %5220 = vmatprep.subr.mxu0 0.0
    %5221 = vmatpush1.msra.mxu0 0.0
    %5222 = vmatprep.subr.mxu0 0.0
    %5223 = vmatpush1.msra.mxu0 0.0
    %5224 = vmatprep.subr.mxu0 0.0
    %5225 = vmatpush1.msra.mxu0 0.0
    %5226 = vmatprep.subr.mxu0 0.0
    %5227 = vmatpush1.msra.mxu0 0.0
    %5228 = vmatprep.subr.mxu0 0.0
    %5229 = vmatpush1.msra.mxu0 0.0
    %5230 = vmatprep.subr.mxu0 0.0
    %5231 = vmatpush1.msra.mxu0 0.0
    %5232 = vmatprep.subr.mxu0 0.0
    %5233 = vmatpush1.msra.mxu0 0.0
    %5234 = vmatprep.subr.mxu0 0.0
    %5235 = vmatpush1.msra.mxu0 0.0
    %5236 = vmatprep.subr.mxu0 0.0
    %5237 = vmatpush1.msra.mxu0 0.0
    %5238 = vmatprep.subr.mxu0 0.0
    %5239 = vmatpush1.msra.mxu0 0.0
    %5240 = vmatprep.subr.mxu0 0.0
    %5241 = vmatpush1.msra.mxu0 0.0
    %5242 = vmatprep.subr.mxu0 0.0
    %5243 = vmatpush1.msra.mxu0 0.0
    %5244 = vmatprep.subr.mxu0 0.0
    %5245 = vmatpush1.msra.mxu0 0.0
    %5246 = vmatprep.subr.mxu0 0.0
    %5247 = vmatpush1.msra.mxu0 0.0
    %5248 = vmatprep.subr.mxu0 0.0
    %5249 = vmatpush1.msra.mxu0 0.0
    %5250 = vmatprep.subr.mxu0 0.0
    %5251 = vmatpush1.msra.mxu0 0.0
    %5252 = vmatprep.mubr.f32.mxu0 0.0
    %v5253 = vand.u32 %v4798, 4294901760
    %5254 = vmatmul.mubr.f32.gmra.mrb[0].mxu0 %v5253
    %v5255 = vpop.f32.mrb[0].mxu0
    %v5256 = vadd.f32 %v5183, %v5255
    %v5257 = vpop.f32.mrb[0].mxu0
    %5258 = vdwg.mxu0
    %v5260 = vlaneseq
    %v5261 = vshrl.u32 %v5260, 7
    %v5262 = vsub.s32 0, %v5261
    %v5263 = vrot.slane %v4792, %v5262
    %v5265 = vmul.f32 %v5256, %v5263
    %v5266 = vmul.f32 %v5265, 1.442695
    %v5267 = vpow.pop %v5266
    %v5268 = vsub.f32 0.0, %v5265
    %v5269 = vmul.f32 %v5268, 1.442695
    %v5270 = vpow.pop %v5269
    %v5272 = vlaneseq
    %v5273 = vshrl.u32 %v5272, 7
    %v5274 = vsub.s32 0, %v5273
    %v5275 = vrot.slane %v4793, %v5274
    %v5277 = vmul.f32 %v5256, %v5275
    %v5278 = vlaneseq
    %v5279 = vshrl.u32 %v5278, 7
    %v5280 = vsub.s32 0, %v5279
    %v5281 = vrot.slane %v4794, %v5280
    %v5282 = vmul.f32 %v5270, %v5281
    %v5283 = vadd.f32 %v5277, %v5282
    %v5284 = vlaneseq
    %v5285 = vshrl.u32 %v5284, 7
    %v5286 = vsub.s32 1, %v5285
    %v5287 = vrot.slane %v4794, %v5286
    %v5288 = vmul.f32 %v5270, %v5287
    %v5289 = vadd.f32 %v5283, %v5288
    %vm5290 = vcmp.ge.f32.partialorder %v5256, 0.0
    %v5291 = vlaneseq
    %v5292 = vshrl.u32 %v5291, 7
    %v5293 = vsub.s32 2, %v5292
    %v5294 = vrot.slane %v4794, %v5293
    %v5295 = vmul.f32 %v5270, %v5294
    %v5296 = vlaneseq
    %v5297 = vshrl.u32 %v5296, 7
    %v5298 = vsub.s32 2, %v5297
    %v5299 = vrot.slane %v4795, %v5298
    %v5300 = vmul.f32 %v5267, %v5299
    %v5301 = vsel %vm5290, %v5295, %v5300
    %v5302 = vadd.f32 %v5289, %v5301
    %v5303 = vlaneseq
    %v5304 = vshrl.u32 %v5303, 7
    %v5305 = vsub.s32 3, %v5304
    %v5306 = vrot.slane %v4795, %v5305
    %v5307 = vmul.f32 %v5267, %v5306
    %v5308 = vadd.f32 %v5302, %v5307
    %v5309 = vlaneseq
    %v5310 = vshrl.u32 %v5309, 7
    %v5311 = vsub.s32 4, %v5310
    %v5312 = vrot.slane %v4795, %v5311
    %v5313 = vmul.f32 %v5267, %v5312
    %v5314 = vadd.f32 %v5308, %v5313
    %v5315 = vld [vmem:[%s37] sm:$0xff]
    %v5316 = vld [vmem:[%s37 + $0x8] sm:$0xff]
    %v5317 = vld [vmem:[%s37 + $0x10] sm:$0xff]
    %v5318 = vld [vmem:[%s37 + $0x18] sm:$0xff]
    %v5319 = vld [vmem:[%s37 + $0x20] sm:$0xff]
    %v5320 = vld [vmem:[%s37 + $0x28] sm:$0xff]
    %v5321 = vld [vmem:[%s37 + $0x30] sm:$0xff]
    %v5322 = vld [vmem:[%s37 + $0x38] sm:$0xff]
    %v5323 = vld [vmem:[%s37 + $0x40] sm:$0xff]
    %v5324 = vld [vmem:[%s37 + $0x48] sm:$0xff]
    %v5325 = vld [vmem:[%s37 + $0x50] sm:$0xff]
    %v5326 = vld [vmem:[%s37 + $0x58] sm:$0xff]
    %v5327 = vld [vmem:[%s37 + $0x60] sm:$0xff]
    %v5328 = vld [vmem:[%s37 + $0x68] sm:$0xff]
    %v5329 = vld [vmem:[%s37 + $0x70] sm:$0xff]
    %v5330 = vld [vmem:[%s37 + $0x78] sm:$0xff]
    %5331 = vmatprep.subr.mxu0 0.0
    %v5332 = vand.u32 %v5315, 4294901760
    %5333 = vmatpush1.msra.mxu0 %v5332
    %5334 = vmatprep.subr.mxu0 0.0
    %v5335 = vand.u32 %v5316, 4294901760
    %5336 = vmatpush1.msra.mxu0 %v5335
    %5337 = vmatprep.subr.mxu0 0.0
    %v5338 = vand.u32 %v5317, 4294901760
    %5339 = vmatpush1.msra.mxu0 %v5338
    %5340 = vmatprep.subr.mxu0 0.0
    %v5341 = vand.u32 %v5318, 4294901760
    %5342 = vmatpush1.msra.mxu0 %v5341
    %5343 = vmatprep.subr.mxu0 0.0
    %v5344 = vand.u32 %v5319, 4294901760
    %5345 = vmatpush1.msra.mxu0 %v5344
    %5346 = vmatprep.subr.mxu0 0.0
    %v5347 = vand.u32 %v5320, 4294901760
    %5348 = vmatpush1.msra.mxu0 %v5347
    %5349 = vmatprep.subr.mxu0 0.0
    %v5350 = vand.u32 %v5321, 4294901760
    %5351 = vmatpush1.msra.mxu0 %v5350
    %5352 = vmatprep.subr.mxu0 0.0
    %v5353 = vand.u32 %v5322, 4294901760
    %5354 = vmatpush1.msra.mxu0 %v5353
    %5355 = vmatprep.subr.mxu0 0.0
    %v5356 = vand.u32 %v5323, 4294901760
    %5357 = vmatpush1.msra.mxu0 %v5356
    %5358 = vmatprep.subr.mxu0 0.0
    %v5359 = vand.u32 %v5324, 4294901760
    %5360 = vmatpush1.msra.mxu0 %v5359
    %5361 = vmatprep.subr.mxu0 0.0
    %v5362 = vand.u32 %v5325, 4294901760
    %5363 = vmatpush1.msra.mxu0 %v5362
    %5364 = vmatprep.subr.mxu0 0.0
    %v5365 = vand.u32 %v5326, 4294901760
    %5366 = vmatpush1.msra.mxu0 %v5365
    %5367 = vmatprep.subr.mxu0 0.0
    %v5368 = vand.u32 %v5327, 4294901760
    %5369 = vmatpush1.msra.mxu0 %v5368
    %5370 = vmatprep.subr.mxu0 0.0
    %v5371 = vand.u32 %v5328, 4294901760
    %5372 = vmatpush1.msra.mxu0 %v5371
    %5373 = vmatprep.subr.mxu0 0.0
    %v5374 = vand.u32 %v5329, 4294901760
    %5375 = vmatpush1.msra.mxu0 %v5374
    %5376 = vmatprep.subr.mxu0 0.0
    %v5377 = vand.u32 %v5330, 4294901760
    %5378 = vmatpush1.msra.mxu0 %v5377
    %5379 = vmatprep.subr.mxu0 0.0
    %5380 = vmatpush1.msra.mxu0 0.0
    %5381 = vmatprep.subr.mxu0 0.0
    %5382 = vmatpush1.msra.mxu0 0.0
    %5383 = vmatprep.subr.mxu0 0.0
    %5384 = vmatpush1.msra.mxu0 0.0
    %5385 = vmatprep.subr.mxu0 0.0
    %5386 = vmatpush1.msra.mxu0 0.0
    %5387 = vmatprep.subr.mxu0 0.0
    %5388 = vmatpush1.msra.mxu0 0.0
    %5389 = vmatprep.subr.mxu0 0.0
    %5390 = vmatpush1.msra.mxu0 0.0
    %5391 = vmatprep.subr.mxu0 0.0
    %5392 = vmatpush1.msra.mxu0 0.0
    %5393 = vmatprep.subr.mxu0 0.0
    %5394 = vmatpush1.msra.mxu0 0.0
    %5395 = vmatprep.subr.mxu0 0.0
    %5396 = vmatpush1.msra.mxu0 0.0
    %5397 = vmatprep.subr.mxu0 0.0
    %5398 = vmatpush1.msra.mxu0 0.0
    %5399 = vmatprep.subr.mxu0 0.0
    %5400 = vmatpush1.msra.mxu0 0.0
    %5401 = vmatprep.subr.mxu0 0.0
    %5402 = vmatpush1.msra.mxu0 0.0
    %5403 = vmatprep.subr.mxu0 0.0
    %5404 = vmatpush1.msra.mxu0 0.0
    %5405 = vmatprep.subr.mxu0 0.0
    %5406 = vmatpush1.msra.mxu0 0.0
    %5407 = vmatprep.subr.mxu0 0.0
    %5408 = vmatpush1.msra.mxu0 0.0
    %5409 = vmatprep.subr.mxu0 0.0
    %5410 = vmatpush1.msra.mxu0 0.0
    %5411 = vmatprep.mubr.f32.mxu0 0.0
    %v5412 = vand.u32 %v5314, 4294901760
    %v5413 = vsub.f32 %v5314, %v5412
    %v5414 = vand.u32 %v5413, 4294901760
    %v5415 = vsub.f32 %v5413, %v5414
    %v5416 = vand.u32 %v5415, 4294901760
    %5417 = vmatmul.mubr.f32.gmra.mrb[0].mxu0 %v5416
    %v5418 = vpop.f32.mrb[0].mxu0
    %v5419 = vadd.f32 0.0, %v5418
    %v5420 = vpop.f32.mrb[0].mxu0
    %5421 = vdwg.mxu0
    %5422 = vmatprep.subr.mxu0 0.0
    %v5423 = vand.u32 %v5315, 4294901760
    %v5424 = vsub.f32 %v5315, %v5423
    %v5425 = vand.u32 %v5424, 4294901760
    %v5426 = vsub.f32 %v5424, %v5425
    %v5427 = vand.u32 %v5426, 4294901760
    %5428 = vmatpush1.msra.mxu0 %v5427
    %5429 = vmatprep.subr.mxu0 0.0
    %v5430 = vand.u32 %v5316, 4294901760
    %v5431 = vsub.f32 %v5316, %v5430
    %v5432 = vand.u32 %v5431, 4294901760
    %v5433 = vsub.f32 %v5431, %v5432
    %v5434 = vand.u32 %v5433, 4294901760
    %5435 = vmatpush1.msra.mxu0 %v5434
    %5436 = vmatprep.subr.mxu0 0.0
    %v5437 = vand.u32 %v5317, 4294901760
    %v5438 = vsub.f32 %v5317, %v5437
    %v5439 = vand.u32 %v5438, 4294901760
    %v5440 = vsub.f32 %v5438, %v5439
    %v5441 = vand.u32 %v5440, 4294901760
    %5442 = vmatpush1.msra.mxu0 %v5441
    %5443 = vmatprep.subr.mxu0 0.0
    %v5444 = vand.u32 %v5318, 4294901760
    %v5445 = vsub.f32 %v5318, %v5444
    %v5446 = vand.u32 %v5445, 4294901760
    %v5447 = vsub.f32 %v5445, %v5446
    %v5448 = vand.u32 %v5447, 4294901760
    %5449 = vmatpush1.msra.mxu0 %v5448
    %5450 = vmatprep.subr.mxu0 0.0
    %v5451 = vand.u32 %v5319, 4294901760
    %v5452 = vsub.f32 %v5319, %v5451
    %v5453 = vand.u32 %v5452, 4294901760
    %v5454 = vsub.f32 %v5452, %v5453
    %v5455 = vand.u32 %v5454, 4294901760
    %5456 = vmatpush1.msra.mxu0 %v5455
    %5457 = vmatprep.subr.mxu0 0.0
    %v5458 = vand.u32 %v5320, 4294901760
    %v5459 = vsub.f32 %v5320, %v5458
    %v5460 = vand.u32 %v5459, 4294901760
    %v5461 = vsub.f32 %v5459, %v5460
    %v5462 = vand.u32 %v5461, 4294901760
    %5463 = vmatpush1.msra.mxu0 %v5462
    %5464 = vmatprep.subr.mxu0 0.0
    %v5465 = vand.u32 %v5321, 4294901760
    %v5466 = vsub.f32 %v5321, %v5465
    %v5467 = vand.u32 %v5466, 4294901760
    %v5468 = vsub.f32 %v5466, %v5467
    %v5469 = vand.u32 %v5468, 4294901760
    %5470 = vmatpush1.msra.mxu0 %v5469
    %5471 = vmatprep.subr.mxu0 0.0
    %v5472 = vand.u32 %v5322, 4294901760
    %v5473 = vsub.f32 %v5322, %v5472
    %v5474 = vand.u32 %v5473, 4294901760
    %v5475 = vsub.f32 %v5473, %v5474
    %v5476 = vand.u32 %v5475, 4294901760
    %5477 = vmatpush1.msra.mxu0 %v5476
    %5478 = vmatprep.subr.mxu0 0.0
    %v5479 = vand.u32 %v5323, 4294901760
    %v5480 = vsub.f32 %v5323, %v5479
    %v5481 = vand.u32 %v5480, 4294901760
    %v5482 = vsub.f32 %v5480, %v5481
    %v5483 = vand.u32 %v5482, 4294901760
    %5484 = vmatpush1.msra.mxu0 %v5483
    %5485 = vmatprep.subr.mxu0 0.0
    %v5486 = vand.u32 %v5324, 4294901760
    %v5487 = vsub.f32 %v5324, %v5486
    %v5488 = vand.u32 %v5487, 4294901760
    %v5489 = vsub.f32 %v5487, %v5488
    %v5490 = vand.u32 %v5489, 4294901760
    %5491 = vmatpush1.msra.mxu0 %v5490
    %5492 = vmatprep.subr.mxu0 0.0
    %v5493 = vand.u32 %v5325, 4294901760
    %v5494 = vsub.f32 %v5325, %v5493
    %v5495 = vand.u32 %v5494, 4294901760
    %v5496 = vsub.f32 %v5494, %v5495
    %v5497 = vand.u32 %v5496, 4294901760
    %5498 = vmatpush1.msra.mxu0 %v5497
    %5499 = vmatprep.subr.mxu0 0.0
    %v5500 = vand.u32 %v5326, 4294901760
    %v5501 = vsub.f32 %v5326, %v5500
    %v5502 = vand.u32 %v5501, 4294901760
    %v5503 = vsub.f32 %v5501, %v5502
    %v5504 = vand.u32 %v5503, 4294901760
    %5505 = vmatpush1.msra.mxu0 %v5504
    %5506 = vmatprep.subr.mxu0 0.0
    %v5507 = vand.u32 %v5327, 4294901760
    %v5508 = vsub.f32 %v5327, %v5507
    %v5509 = vand.u32 %v5508, 4294901760
    %v5510 = vsub.f32 %v5508, %v5509
    %v5511 = vand.u32 %v5510, 4294901760
    %5512 = vmatpush1.msra.mxu0 %v5511
    %5513 = vmatprep.subr.mxu0 0.0
    %v5514 = vand.u32 %v5328, 4294901760
    %v5515 = vsub.f32 %v5328, %v5514
    %v5516 = vand.u32 %v5515, 4294901760
    %v5517 = vsub.f32 %v5515, %v5516
    %v5518 = vand.u32 %v5517, 4294901760
    %5519 = vmatpush1.msra.mxu0 %v5518
    %5520 = vmatprep.subr.mxu0 0.0
    %v5521 = vand.u32 %v5329, 4294901760
    %v5522 = vsub.f32 %v5329, %v5521
    %v5523 = vand.u32 %v5522, 4294901760
    %v5524 = vsub.f32 %v5522, %v5523
    %v5525 = vand.u32 %v5524, 4294901760
    %5526 = vmatpush1.msra.mxu0 %v5525
    %5527 = vmatprep.subr.mxu0 0.0
    %v5528 = vand.u32 %v5330, 4294901760
    %v5529 = vsub.f32 %v5330, %v5528
    %v5530 = vand.u32 %v5529, 4294901760
    %v5531 = vsub.f32 %v5529, %v5530
    %v5532 = vand.u32 %v5531, 4294901760
    %5533 = vmatpush1.msra.mxu0 %v5532
    %5534 = vmatprep.subr.mxu0 0.0
    %5535 = vmatpush1.msra.mxu0 0.0
    %5536 = vmatprep.subr.mxu0 0.0
    %5537 = vmatpush1.msra.mxu0 0.0
    %5538 = vmatprep.subr.mxu0 0.0
    %5539 = vmatpush1.msra.mxu0 0.0
    %5540 = vmatprep.subr.mxu0 0.0
    %5541 = vmatpush1.msra.mxu0 0.0
    %5542 = vmatprep.subr.mxu0 0.0
    %5543 = vmatpush1.msra.mxu0 0.0
    %5544 = vmatprep.subr.mxu0 0.0
    %5545 = vmatpush1.msra.mxu0 0.0
    %5546 = vmatprep.subr.mxu0 0.0
    %5547 = vmatpush1.msra.mxu0 0.0
    %5548 = vmatprep.subr.mxu0 0.0
    %5549 = vmatpush1.msra.mxu0 0.0
    %5550 = vmatprep.subr.mxu0 0.0
    %5551 = vmatpush1.msra.mxu0 0.0
    %5552 = vmatprep.subr.mxu0 0.0
    %5553 = vmatpush1.msra.mxu0 0.0
    %5554 = vmatprep.subr.mxu0 0.0
    %5555 = vmatpush1.msra.mxu0 0.0
    %5556 = vmatprep.subr.mxu0 0.0
    %5557 = vmatpush1.msra.mxu0 0.0
    %5558 = vmatprep.subr.mxu0 0.0
    %5559 = vmatpush1.msra.mxu0 0.0
    %5560 = vmatprep.subr.mxu0 0.0
    %5561 = vmatpush1.msra.mxu0 0.0
    %5562 = vmatprep.subr.mxu0 0.0
    %5563 = vmatpush1.msra.mxu0 0.0
    %5564 = vmatprep.subr.mxu0 0.0
    %5565 = vmatpush1.msra.mxu0 0.0
    %5566 = vmatprep.mubr.f32.mxu0 0.0
    %v5567 = vand.u32 %v5314, 4294901760
    %5568 = vmatmul.mubr.f32.gmra.mrb[0].mxu0 %v5567
    %v5569 = vpop.f32.mrb[0].mxu0
    %v5570 = vadd.f32 %v5419, %v5569
    %v5571 = vpop.f32.mrb[0].mxu0
    %5572 = vdwg.mxu0
    %5573 = vmatprep.subr.mxu0 0.0
    %v5574 = vand.u32 %v5315, 4294901760
    %v5575 = vsub.f32 %v5315, %v5574
    %5576 = vmatpush1.msra.mxu0 %v5575
    %5577 = vmatprep.subr.mxu0 0.0
    %v5578 = vand.u32 %v5316, 4294901760
    %v5579 = vsub.f32 %v5316, %v5578
    %5580 = vmatpush1.msra.mxu0 %v5579
    %5581 = vmatprep.subr.mxu0 0.0
    %v5582 = vand.u32 %v5317, 4294901760
    %v5583 = vsub.f32 %v5317, %v5582
    %5584 = vmatpush1.msra.mxu0 %v5583
    %5585 = vmatprep.subr.mxu0 0.0
    %v5586 = vand.u32 %v5318, 4294901760
    %v5587 = vsub.f32 %v5318, %v5586
    %5588 = vmatpush1.msra.mxu0 %v5587
    %5589 = vmatprep.subr.mxu0 0.0
    %v5590 = vand.u32 %v5319, 4294901760
    %v5591 = vsub.f32 %v5319, %v5590
    %5592 = vmatpush1.msra.mxu0 %v5591
    %5593 = vmatprep.subr.mxu0 0.0
    %v5594 = vand.u32 %v5320, 4294901760
    %v5595 = vsub.f32 %v5320, %v5594
    %5596 = vmatpush1.msra.mxu0 %v5595
    %5597 = vmatprep.subr.mxu0 0.0
    %v5598 = vand.u32 %v5321, 4294901760
    %v5599 = vsub.f32 %v5321, %v5598
    %5600 = vmatpush1.msra.mxu0 %v5599
    %5601 = vmatprep.subr.mxu0 0.0
    %v5602 = vand.u32 %v5322, 4294901760
    %v5603 = vsub.f32 %v5322, %v5602
    %5604 = vmatpush1.msra.mxu0 %v5603
    %5605 = vmatprep.subr.mxu0 0.0
    %v5606 = vand.u32 %v5323, 4294901760
    %v5607 = vsub.f32 %v5323, %v5606
    %5608 = vmatpush1.msra.mxu0 %v5607
    %5609 = vmatprep.subr.mxu0 0.0
    %v5610 = vand.u32 %v5324, 4294901760
    %v5611 = vsub.f32 %v5324, %v5610
    %5612 = vmatpush1.msra.mxu0 %v5611
    %5613 = vmatprep.subr.mxu0 0.0
    %v5614 = vand.u32 %v5325, 4294901760
    %v5615 = vsub.f32 %v5325, %v5614
    %5616 = vmatpush1.msra.mxu0 %v5615
    %5617 = vmatprep.subr.mxu0 0.0
    %v5618 = vand.u32 %v5326, 4294901760
    %v5619 = vsub.f32 %v5326, %v5618
    %5620 = vmatpush1.msra.mxu0 %v5619
    %5621 = vmatprep.subr.mxu0 0.0
    %v5622 = vand.u32 %v5327, 4294901760
    %v5623 = vsub.f32 %v5327, %v5622
    %5624 = vmatpush1.msra.mxu0 %v5623
    %5625 = vmatprep.subr.mxu0 0.0
    %v5626 = vand.u32 %v5328, 4294901760
    %v5627 = vsub.f32 %v5328, %v5626
    %5628 = vmatpush1.msra.mxu0 %v5627
    %5629 = vmatprep.subr.mxu0 0.0
    %v5630 = vand.u32 %v5329, 4294901760
    %v5631 = vsub.f32 %v5329, %v5630
    %5632 = vmatpush1.msra.mxu0 %v5631
    %5633 = vmatprep.subr.mxu0 0.0
    %v5634 = vand.u32 %v5330, 4294901760
    %v5635 = vsub.f32 %v5330, %v5634
    %5636 = vmatpush1.msra.mxu0 %v5635
    %5637 = vmatprep.subr.mxu0 0.0
    %5638 = vmatpush1.msra.mxu0 0.0
    %5639 = vmatprep.subr.mxu0 0.0
    %5640 = vmatpush1.msra.mxu0 0.0
    %5641 = vmatprep.subr.mxu0 0.0
    %5642 = vmatpush1.msra.mxu0 0.0
    %5643 = vmatprep.subr.mxu0 0.0
    %5644 = vmatpush1.msra.mxu0 0.0
    %5645 = vmatprep.subr.mxu0 0.0
    %5646 = vmatpush1.msra.mxu0 0.0
    %5647 = vmatprep.subr.mxu0 0.0
    %5648 = vmatpush1.msra.mxu0 0.0
    %5649 = vmatprep.subr.mxu0 0.0
    %5650 = vmatpush1.msra.mxu0 0.0
    %5651 = vmatprep.subr.mxu0 0.0
    %5652 = vmatpush1.msra.mxu0 0.0
    %5653 = vmatprep.subr.mxu0 0.0
    %5654 = vmatpush1.msra.mxu0 0.0
    %5655 = vmatprep.subr.mxu0 0.0
    %5656 = vmatpush1.msra.mxu0 0.0
    %5657 = vmatprep.subr.mxu0 0.0
    %5658 = vmatpush1.msra.mxu0 0.0
    %5659 = vmatprep.subr.mxu0 0.0
    %5660 = vmatpush1.msra.mxu0 0.0
    %5661 = vmatprep.subr.mxu0 0.0
    %5662 = vmatpush1.msra.mxu0 0.0
    %5663 = vmatprep.subr.mxu0 0.0
    %5664 = vmatpush1.msra.mxu0 0.0
    %5665 = vmatprep.subr.mxu0 0.0
    %5666 = vmatpush1.msra.mxu0 0.0
    %5667 = vmatprep.subr.mxu0 0.0
    %5668 = vmatpush1.msra.mxu0 0.0
    %5669 = vmatprep.mubr.f32.mxu0 0.0
    %v5670 = vand.u32 %v5314, 4294901760
    %v5671 = vsub.f32 %v5314, %v5670
    %5672 = vmatmul.mubr.f32.gmra.mrb[0].mxu0 %v5671
    %v5673 = vpop.f32.mrb[0].mxu0
    %v5674 = vadd.f32 %v5570, %v5673
    %v5675 = vpop.f32.mrb[0].mxu0
    %5676 = vdwg.mxu0
    %5677 = vmatprep.subr.mxu0 0.0
    %v5678 = vand.u32 %v5315, 4294901760
    %5679 = vmatpush1.msra.mxu0 %v5678
    %5680 = vmatprep.subr.mxu0 0.0
    %v5681 = vand.u32 %v5316, 4294901760
    %5682 = vmatpush1.msra.mxu0 %v5681
    %5683 = vmatprep.subr.mxu0 0.0
    %v5684 = vand.u32 %v5317, 4294901760
    %5685 = vmatpush1.msra.mxu0 %v5684
    %5686 = vmatprep.subr.mxu0 0.0
    %v5687 = vand.u32 %v5318, 4294901760
    %5688 = vmatpush1.msra.mxu0 %v5687
    %5689 = vmatprep.subr.mxu0 0.0
    %v5690 = vand.u32 %v5319, 4294901760
    %5691 = vmatpush1.msra.mxu0 %v5690
    %5692 = vmatprep.subr.mxu0 0.0
    %v5693 = vand.u32 %v5320, 4294901760
    %5694 = vmatpush1.msra.mxu0 %v5693
    %5695 = vmatprep.subr.mxu0 0.0
    %v5696 = vand.u32 %v5321, 4294901760
    %5697 = vmatpush1.msra.mxu0 %v5696
    %5698 = vmatprep.subr.mxu0 0.0
    %v5699 = vand.u32 %v5322, 4294901760
    %5700 = vmatpush1.msra.mxu0 %v5699
    %5701 = vmatprep.subr.mxu0 0.0
    %v5702 = vand.u32 %v5323, 4294901760
    %5703 = vmatpush1.msra.mxu0 %v5702
    %5704 = vmatprep.subr.mxu0 0.0
    %v5705 = vand.u32 %v5324, 4294901760
    %5706 = vmatpush1.msra.mxu0 %v5705
    %5707 = vmatprep.subr.mxu0 0.0
    %v5708 = vand.u32 %v5325, 4294901760
    %5709 = vmatpush1.msra.mxu0 %v5708
    %5710 = vmatprep.subr.mxu0 0.0
    %v5711 = vand.u32 %v5326, 4294901760
    %5712 = vmatpush1.msra.mxu0 %v5711
    %5713 = vmatprep.subr.mxu0 0.0
    %v5714 = vand.u32 %v5327, 4294901760
    %5715 = vmatpush1.msra.mxu0 %v5714
    %5716 = vmatprep.subr.mxu0 0.0
    %v5717 = vand.u32 %v5328, 4294901760
    %5718 = vmatpush1.msra.mxu0 %v5717
    %5719 = vmatprep.subr.mxu0 0.0
    %v5720 = vand.u32 %v5329, 4294901760
    %5721 = vmatpush1.msra.mxu0 %v5720
    %5722 = vmatprep.subr.mxu0 0.0
    %v5723 = vand.u32 %v5330, 4294901760
    %5724 = vmatpush1.msra.mxu0 %v5723
    %5725 = vmatprep.subr.mxu0 0.0
    %5726 = vmatpush1.msra.mxu0 0.0
    %5727 = vmatprep.subr.mxu0 0.0
    %5728 = vmatpush1.msra.mxu0 0.0
    %5729 = vmatprep.subr.mxu0 0.0
    %5730 = vmatpush1.msra.mxu0 0.0
    %5731 = vmatprep.subr.mxu0 0.0
    %5732 = vmatpush1.msra.mxu0 0.0
    %5733 = vmatprep.subr.mxu0 0.0
    %5734 = vmatpush1.msra.mxu0 0.0
    %5735 = vmatprep.subr.mxu0 0.0
    %5736 = vmatpush1.msra.mxu0 0.0
    %5737 = vmatprep.subr.mxu0 0.0
    %5738 = vmatpush1.msra.mxu0 0.0
    %5739 = vmatprep.subr.mxu0 0.0
    %5740 = vmatpush1.msra.mxu0 0.0
    %5741 = vmatprep.subr.mxu0 0.0
    %5742 = vmatpush1.msra.mxu0 0.0
    %5743 = vmatprep.subr.mxu0 0.0
    %5744 = vmatpush1.msra.mxu0 0.0
    %5745 = vmatprep.subr.mxu0 0.0
    %5746 = vmatpush1.msra.mxu0 0.0
    %5747 = vmatprep.subr.mxu0 0.0
    %5748 = vmatpush1.msra.mxu0 0.0
    %5749 = vmatprep.subr.mxu0 0.0
    %5750 = vmatpush1.msra.mxu0 0.0
    %5751 = vmatprep.subr.mxu0 0.0
    %5752 = vmatpush1.msra.mxu0 0.0
    %5753 = vmatprep.subr.mxu0 0.0
    %5754 = vmatpush1.msra.mxu0 0.0
    %5755 = vmatprep.subr.mxu0 0.0
    %5756 = vmatpush1.msra.mxu0 0.0
    %5757 = vmatprep.mubr.f32.mxu0 0.0
    %v5758 = vand.u32 %v5314, 4294901760
    %v5759 = vsub.f32 %v5314, %v5758
    %v5760 = vand.u32 %v5759, 4294901760
    %5761 = vmatmul.mubr.f32.gmra.mrb[0].mxu0 %v5760
    %v5762 = vpop.f32.mrb[0].mxu0
    %v5763 = vadd.f32 %v5674, %v5762
    %v5764 = vpop.f32.mrb[0].mxu0
    %5765 = vdwg.mxu0
    %5766 = vmatprep.subr.mxu0 0.0
    %v5767 = vand.u32 %v5315, 4294901760
    %v5768 = vsub.f32 %v5315, %v5767
    %v5769 = vand.u32 %v5768, 4294901760
    %5770 = vmatpush1.msra.mxu0 %v5769
    %5771 = vmatprep.subr.mxu0 0.0
    %v5772 = vand.u32 %v5316, 4294901760
    %v5773 = vsub.f32 %v5316, %v5772
    %v5774 = vand.u32 %v5773, 4294901760
    %5775 = vmatpush1.msra.mxu0 %v5774
    %5776 = vmatprep.subr.mxu0 0.0
    %v5777 = vand.u32 %v5317, 4294901760
    %v5778 = vsub.f32 %v5317, %v5777
    %v5779 = vand.u32 %v5778, 4294901760
    %5780 = vmatpush1.msra.mxu0 %v5779
    %5781 = vmatprep.subr.mxu0 0.0
    %v5782 = vand.u32 %v5318, 4294901760
    %v5783 = vsub.f32 %v5318, %v5782
    %v5784 = vand.u32 %v5783, 4294901760
    %5785 = vmatpush1.msra.mxu0 %v5784
    %5786 = vmatprep.subr.mxu0 0.0
    %v5787 = vand.u32 %v5319, 4294901760
    %v5788 = vsub.f32 %v5319, %v5787
    %v5789 = vand.u32 %v5788, 4294901760
    %5790 = vmatpush1.msra.mxu0 %v5789
    %5791 = vmatprep.subr.mxu0 0.0
    %v5792 = vand.u32 %v5320, 4294901760
    %v5793 = vsub.f32 %v5320, %v5792
    %v5794 = vand.u32 %v5793, 4294901760
    %5795 = vmatpush1.msra.mxu0 %v5794
    %5796 = vmatprep.subr.mxu0 0.0
    %v5797 = vand.u32 %v5321, 4294901760
    %v5798 = vsub.f32 %v5321, %v5797
    %v5799 = vand.u32 %v5798, 4294901760
    %5800 = vmatpush1.msra.mxu0 %v5799
    %5801 = vmatprep.subr.mxu0 0.0
    %v5802 = vand.u32 %v5322, 4294901760
    %v5803 = vsub.f32 %v5322, %v5802
    %v5804 = vand.u32 %v5803, 4294901760
    %5805 = vmatpush1.msra.mxu0 %v5804
    %5806 = vmatprep.subr.mxu0 0.0
    %v5807 = vand.u32 %v5323, 4294901760
    %v5808 = vsub.f32 %v5323, %v5807
    %v5809 = vand.u32 %v5808, 4294901760
    %5810 = vmatpush1.msra.mxu0 %v5809
    %5811 = vmatprep.subr.mxu0 0.0
    %v5812 = vand.u32 %v5324, 4294901760
    %v5813 = vsub.f32 %v5324, %v5812
    %v5814 = vand.u32 %v5813, 4294901760
    %5815 = vmatpush1.msra.mxu0 %v5814
    %5816 = vmatprep.subr.mxu0 0.0
    %v5817 = vand.u32 %v5325, 4294901760
    %v5818 = vsub.f32 %v5325, %v5817
    %v5819 = vand.u32 %v5818, 4294901760
    %5820 = vmatpush1.msra.mxu0 %v5819
    %5821 = vmatprep.subr.mxu0 0.0
    %v5822 = vand.u32 %v5326, 4294901760
    %v5823 = vsub.f32 %v5326, %v5822
    %v5824 = vand.u32 %v5823, 4294901760
    %5825 = vmatpush1.msra.mxu0 %v5824
    %5826 = vmatprep.subr.mxu0 0.0
    %v5827 = vand.u32 %v5327, 4294901760
    %v5828 = vsub.f32 %v5327, %v5827
    %v5829 = vand.u32 %v5828, 4294901760
    %5830 = vmatpush1.msra.mxu0 %v5829
    %5831 = vmatprep.subr.mxu0 0.0
    %v5832 = vand.u32 %v5328, 4294901760
    %v5833 = vsub.f32 %v5328, %v5832
    %v5834 = vand.u32 %v5833, 4294901760
    %5835 = vmatpush1.msra.mxu0 %v5834
    %5836 = vmatprep.subr.mxu0 0.0
    %v5837 = vand.u32 %v5329, 4294901760
    %v5838 = vsub.f32 %v5329, %v5837
    %v5839 = vand.u32 %v5838, 4294901760
    %5840 = vmatpush1.msra.mxu0 %v5839
    %5841 = vmatprep.subr.mxu0 0.0
    %v5842 = vand.u32 %v5330, 4294901760
    %v5843 = vsub.f32 %v5330, %v5842
    %v5844 = vand.u32 %v5843, 4294901760
    %5845 = vmatpush1.msra.mxu0 %v5844
    %5846 = vmatprep.subr.mxu0 0.0
    %5847 = vmatpush1.msra.mxu0 0.0
    %5848 = vmatprep.subr.mxu0 0.0
    %5849 = vmatpush1.msra.mxu0 0.0
    %5850 = vmatprep.subr.mxu0 0.0
    %5851 = vmatpush1.msra.mxu0 0.0
    %5852 = vmatprep.subr.mxu0 0.0
    %5853 = vmatpush1.msra.mxu0 0.0
    %5854 = vmatprep.subr.mxu0 0.0
    %5855 = vmatpush1.msra.mxu0 0.0
    %5856 = vmatprep.subr.mxu0 0.0
    %5857 = vmatpush1.msra.mxu0 0.0
    %5858 = vmatprep.subr.mxu0 0.0
    %5859 = vmatpush1.msra.mxu0 0.0
    %5860 = vmatprep.subr.mxu0 0.0
    %5861 = vmatpush1.msra.mxu0 0.0
    %5862 = vmatprep.subr.mxu0 0.0
    %5863 = vmatpush1.msra.mxu0 0.0
    %5864 = vmatprep.subr.mxu0 0.0
    %5865 = vmatpush1.msra.mxu0 0.0
    %5866 = vmatprep.subr.mxu0 0.0
    %5867 = vmatpush1.msra.mxu0 0.0
    %5868 = vmatprep.subr.mxu0 0.0
    %5869 = vmatpush1.msra.mxu0 0.0
    %5870 = vmatprep.subr.mxu0 0.0
    %5871 = vmatpush1.msra.mxu0 0.0
    %5872 = vmatprep.subr.mxu0 0.0
    %5873 = vmatpush1.msra.mxu0 0.0
    %5874 = vmatprep.subr.mxu0 0.0
    %5875 = vmatpush1.msra.mxu0 0.0
    %5876 = vmatprep.subr.mxu0 0.0
    %5877 = vmatpush1.msra.mxu0 0.0
    %5878 = vmatprep.mubr.f32.mxu0 0.0
    %v5879 = vand.u32 %v5314, 4294901760
    %5880 = vmatmul.mubr.f32.gmra.mrb[0].mxu0 %v5879
    %v5881 = vpop.f32.mrb[0].mxu0
    %v5882 = vadd.f32 %v5763, %v5881
    %v5883 = vpop.f32.mrb[0].mxu0
    %5884 = vdwg.mxu0
    %5885 = vmatprep.subr.mxu0 0.0
    %v5886 = vand.u32 %v5315, 4294901760
    %5887 = vmatpush1.msra.mxu0 %v5886
    %5888 = vmatprep.subr.mxu0 0.0
    %v5889 = vand.u32 %v5316, 4294901760
    %5890 = vmatpush1.msra.mxu0 %v5889
    %5891 = vmatprep.subr.mxu0 0.0
    %v5892 = vand.u32 %v5317, 4294901760
    %5893 = vmatpush1.msra.mxu0 %v5892
    %5894 = vmatprep.subr.mxu0 0.0
    %v5895 = vand.u32 %v5318, 4294901760
    %5896 = vmatpush1.msra.mxu0 %v5895
    %5897 = vmatprep.subr.mxu0 0.0
    %v5898 = vand.u32 %v5319, 4294901760
    %5899 = vmatpush1.msra.mxu0 %v5898
    %5900 = vmatprep.subr.mxu0 0.0
    %v5901 = vand.u32 %v5320, 4294901760
    %5902 = vmatpush1.msra.mxu0 %v5901
    %5903 = vmatprep.subr.mxu0 0.0
    %v5904 = vand.u32 %v5321, 4294901760
    %5905 = vmatpush1.msra.mxu0 %v5904
    %5906 = vmatprep.subr.mxu0 0.0
    %v5907 = vand.u32 %v5322, 4294901760
    %5908 = vmatpush1.msra.mxu0 %v5907
    %5909 = vmatprep.subr.mxu0 0.0
    %v5910 = vand.u32 %v5323, 4294901760
    %5911 = vmatpush1.msra.mxu0 %v5910
    %5912 = vmatprep.subr.mxu0 0.0
    %v5913 = vand.u32 %v5324, 4294901760
    %5914 = vmatpush1.msra.mxu0 %v5913
    %5915 = vmatprep.subr.mxu0 0.0
    %v5916 = vand.u32 %v5325, 4294901760
    %5917 = vmatpush1.msra.mxu0 %v5916
    %5918 = vmatprep.subr.mxu0 0.0
    %v5919 = vand.u32 %v5326, 4294901760
    %5920 = vmatpush1.msra.mxu0 %v5919
    %5921 = vmatprep.subr.mxu0 0.0
    %v5922 = vand.u32 %v5327, 4294901760
    %5923 = vmatpush1.msra.mxu0 %v5922
    %5924 = vmatprep.subr.mxu0 0.0
    %v5925 = vand.u32 %v5328, 4294901760
    %5926 = vmatpush1.msra.mxu0 %v5925
    %5927 = vmatprep.subr.mxu0 0.0
    %v5928 = vand.u32 %v5329, 4294901760
    %5929 = vmatpush1.msra.mxu0 %v5928
    %5930 = vmatprep.subr.mxu0 0.0
    %v5931 = vand.u32 %v5330, 4294901760
    %5932 = vmatpush1.msra.mxu0 %v5931
    %5933 = vmatprep.subr.mxu0 0.0
    %5934 = vmatpush1.msra.mxu0 0.0
    %5935 = vmatprep.subr.mxu0 0.0
    %5936 = vmatpush1.msra.mxu0 0.0
    %5937 = vmatprep.subr.mxu0 0.0
    %5938 = vmatpush1.msra.mxu0 0.0
    %5939 = vmatprep.subr.mxu0 0.0
    %5940 = vmatpush1.msra.mxu0 0.0
    %5941 = vmatprep.subr.mxu0 0.0
    %5942 = vmatpush1.msra.mxu0 0.0
    %5943 = vmatprep.subr.mxu0 0.0
    %5944 = vmatpush1.msra.mxu0 0.0
    %5945 = vmatprep.subr.mxu0 0.0
    %5946 = vmatpush1.msra.mxu0 0.0
    %5947 = vmatprep.subr.mxu0 0.0
    %5948 = vmatpush1.msra.mxu0 0.0
    %5949 = vmatprep.subr.mxu0 0.0
    %5950 = vmatpush1.msra.mxu0 0.0
    %5951 = vmatprep.subr.mxu0 0.0
    %5952 = vmatpush1.msra.mxu0 0.0
    %5953 = vmatprep.subr.mxu0 0.0
    %5954 = vmatpush1.msra.mxu0 0.0
    %5955 = vmatprep.subr.mxu0 0.0
    %5956 = vmatpush1.msra.mxu0 0.0
    %5957 = vmatprep.subr.mxu0 0.0
    %5958 = vmatpush1.msra.mxu0 0.0
    %5959 = vmatprep.subr.mxu0 0.0
    %5960 = vmatpush1.msra.mxu0 0.0
    %5961 = vmatprep.subr.mxu0 0.0
    %5962 = vmatpush1.msra.mxu0 0.0
    %5963 = vmatprep.subr.mxu0 0.0
    %5964 = vmatpush1.msra.mxu0 0.0
    %5965 = vmatprep.mubr.f32.mxu0 0.0
    %v5966 = vand.u32 %v5314, 4294901760
    %5967 = vmatmul.mubr.f32.gmra.mrb[0].mxu0 %v5966
    %v5968 = vpop.f32.mrb[0].mxu0
    %v5969 = vadd.f32 %v5882, %v5968
    %v5970 = vpop.f32.mrb[0].mxu0
    %5971 = vdwg.mxu0
    %v5972 = vmul.f32 %v5969, 0.5
    %v5973 = vmul.f32 %v5969, 0.70710677
    %v5974 = vand.u32 2147483647, %v5973
    %v5975 = vmul.f32 %v5974, 0.3275911
    %v5976 = vadd.f32 %v5975, 1.0
    %v5977 = vrcp.pop %v5976
    %v5978 = vmul.f32 1.0, %v5977
    %v5979 = vmul.f32 %v5978, 1.0614054
    %v5980 = vadd.f32 %v5979, -1.4531521
    %v5981 = vmul.f32 %v5978, %v5980
    %v5982 = vadd.f32 %v5981, 1.4214138
    %v5983 = vmul.f32 %v5978, %v5982
    %v5984 = vadd.f32 %v5983, -0.28449672
    %v5985 = vmul.f32 %v5978, %v5984
    %v5986 = vadd.f32 %v5985, 0.2548296
    %v5987 = vmul.f32 %v5978, %v5986
    %v5988 = vmul.f32 %v5974, %v5974
    %v5989 = vsub.f32 0.0, %v5988
    %v5990 = vmul.f32 %v5989, 1.442695
    %v5991 = vpow.pop %v5990
    %v5992 = vmul.f32 %v5987, %v5991
    %v5993 = vsub.f32 1.0, %v5992
    %vm5994 = vcmp.ge.f32.partialorder %v5973, 0.0
    %v5995 = vsub.f32 0.0, %v5993
    %v5996 = vsel %vm5994, %v5993, %v5995
    %v5997 = vadd.f32 %v5996, 1.0
    %v5998 = vmul.f32 %v5972, %v5997
    %5999 = vst.msk [vmem:[#allocation9] sm:$0xff] %vm135, %v5969
    %6000 = vst.msk [vmem:[#allocation10] sm:$0xff] %vm135, %v5998
    %v6001 = vld [vmem:[%s41] sm:$0x1]
    %v6002 = vld [vmem:[%s43] sm:$0x1]
    %v6003 = vld [vmem:[%s45] sm:$0x1f]
    %v6004 = vld [vmem:[%s47] sm:$0x1f]
    %v6005 = vtanh.pop %v5998
    %v6007 = vlaneseq
    %v6008 = vshrl.u32 %v6007, 7
    %v6009 = vsub.s32 0, %v6008
    %v6010 = vrot.slane %v6001, %v6009
    %v6012 = vmul.f32 %v6005, %v6010
    %v6013 = vmul.f32 %v6012, 1.442695
    %v6014 = vpow.pop %v6013
    %v6015 = vsub.f32 0.0, %v6012
    %v6016 = vmul.f32 %v6015, 1.442695
    %v6017 = vpow.pop %v6016
    %v6019 = vlaneseq
    %v6020 = vshrl.u32 %v6019, 7
    %v6021 = vsub.s32 0, %v6020
    %v6022 = vrot.slane %v6002, %v6021
    %v6024 = vmul.f32 %v6005, %v6022
    %v6025 = vlaneseq
    %v6026 = vshrl.u32 %v6025, 7
    %v6027 = vsub.s32 0, %v6026
    %v6028 = vrot.slane %v6003, %v6027
    %v6029 = vmul.f32 %v6017, %v6028
    %v6030 = vadd.f32 %v6024, %v6029
    %v6031 = vlaneseq
    %v6032 = vshrl.u32 %v6031, 7
    %v6033 = vsub.s32 1, %v6032
    %v6034 = vrot.slane %v6003, %v6033
    %v6035 = vmul.f32 %v6017, %v6034
    %v6036 = vadd.f32 %v6030, %v6035
    %vm6037 = vcmp.ge.f32.partialorder %v6005, 0.0
    %v6038 = vlaneseq
    %v6039 = vshrl.u32 %v6038, 7
    %v6040 = vsub.s32 2, %v6039
    %v6041 = vrot.slane %v6003, %v6040
    %v6042 = vmul.f32 %v6017, %v6041
    %v6043 = vlaneseq
    %v6044 = vshrl.u32 %v6043, 7
    %v6045 = vsub.s32 2, %v6044
    %v6046 = vrot.slane %v6004, %v6045
    %v6047 = vmul.f32 %v6014, %v6046
    %v6048 = vsel %vm6037, %v6042, %v6047
    %v6049 = vadd.f32 %v6036, %v6048
    %v6050 = vlaneseq
    %v6051 = vshrl.u32 %v6050, 7
    %v6052 = vsub.s32 3, %v6051
    %v6053 = vrot.slane %v6004, %v6052
    %v6054 = vmul.f32 %v6014, %v6053
    %v6055 = vadd.f32 %v6049, %v6054
    %v6056 = vlaneseq
    %v6057 = vshrl.u32 %v6056, 7
    %v6058 = vsub.s32 4, %v6057
    %v6059 = vrot.slane %v6004, %v6058
    %v6060 = vmul.f32 %v6014, %v6059
    %v6061 = vadd.f32 %v6055, %v6060
    %v6062 = vsel %vm135, %v6061, 0.0
    %6063 = vadd.xlane.f32.xlu0 %v6062
    %v6064 = vpop.xlane.xlu0 %6063
    %v6065 = vtanh.pop %v6064
    %vm6066 = vcmask 7168
    %6067 = vst.msk [vmem:[%s63] sm:$0xff] %vm6066, %v6064
    %6068 = vst.msk [vmem:[%s65] sm:$0xff] %vm6066, %v6065
    // Predicated region
    $region102: #{tpu_custom_call.1} parent=1 // pred_check
      _
    $region103: #{tpu_custom_call.1} parent=1 // pred_check_branch
      %6070 = sbr.rel (0) target = $region105
    $region104: #{tpu_custom_call.1} parent=1 // pred_region
      %s6072 = ssub.s32 128, 128
      %6073 = vsyncadd [#allocation3], %s6072
      %s6075 = sshll.u32 [#allocation2], 4
      %s6076 = int_to_ptr.vmem [resolvable:$true] %s6075
      %6078 = dma.vmem_to_hbm [thread:$0]  %s6076, 128, %s51, [#allocation3]
    $region105: #{tpu_custom_call.1} parent=1 // pred_fallthru
      _
    // Predicated region
    $region106: #{tpu_custom_call.1} parent=1 // pred_check
      _
    $region107: #{tpu_custom_call.1} parent=1 // pred_check_branch
      %6080 = sbr.rel (0) target = $region109
    $region108: #{tpu_custom_call.1} parent=1 // pred_region
      %s6082 = ssub.s32 128, 128
      %6083 = vsyncadd [#allocation5], %s6082
      %s6085 = sshll.u32 [#allocation4], 4
      %s6086 = int_to_ptr.vmem [resolvable:$true] %s6085
      %6088 = dma.vmem_to_hbm [thread:$0]  %s6086, 128, %s53, [#allocation5]
    $region109: #{tpu_custom_call.1} parent=1 // pred_fallthru
      _
    // Predicated region
    $region110: #{tpu_custom_call.1} parent=1 // pred_check
      _
    $region111: #{tpu_custom_call.1} parent=1 // pred_check_branch
      %6090 = sbr.rel (0) target = $region113
    $region112: #{tpu_custom_call.1} parent=1 // pred_region
      %s6092 = ssub.s32 128, 128
      %6093 = vsyncadd [#allocation5], %s6092
      %s6095 = sshll.u32 [#allocation6], 4
      %s6096 = int_to_ptr.vmem [resolvable:$true] %s6095
      %6098 = dma.vmem_to_hbm [thread:$0]  %s6096, 128, %s55, [#allocation5]
    $region113: #{tpu_custom_call.1} parent=1 // pred_fallthru
      _
    // Predicated region
    $region114: #{tpu_custom_call.1} parent=1 // pred_check
      _
    $region115: #{tpu_custom_call.1} parent=1 // pred_check_branch
      %6100 = sbr.rel (0) target = $region117
    $region116: #{tpu_custom_call.1} parent=1 // pred_region
      %s6102 = ssub.s32 128, 128
      %6103 = vsyncadd [#allocation8], %s6102
      %s6105 = sshll.u32 [#allocation7], 4
      %s6106 = int_to_ptr.vmem [resolvable:$true] %s6105
      %6108 = dma.vmem_to_hbm [thread:$0]  %s6106, 128, %s57, [#allocation8]
    $region117: #{tpu_custom_call.1} parent=1 // pred_fallthru
      _
    // Predicated region
    $region118: #{tpu_custom_call.1} parent=1 // pred_check
      _
    $region119: #{tpu_custom_call.1} parent=1 // pred_check_branch
      %6110 = sbr.rel (0) target = $region121
    $region120: #{tpu_custom_call.1} parent=1 // pred_region
      %s6112 = ssub.s32 128, 128
      %6113 = vsyncadd [#allocation8], %s6112
      %s6115 = sshll.u32 [#allocation9], 4
      %s6116 = int_to_ptr.vmem [resolvable:$true] %s6115
      %6118 = dma.vmem_to_hbm [thread:$0]  %s6116, 128, %s59, [#allocation8]
    $region121: #{tpu_custom_call.1} parent=1 // pred_fallthru
      _
    // Predicated region
    $region122: #{tpu_custom_call.1} parent=1 // pred_check
      _
    $region123: #{tpu_custom_call.1} parent=1 // pred_check_branch
      %6120 = sbr.rel (0) target = $region125
    $region124: #{tpu_custom_call.1} parent=1 // pred_region
      %s6122 = ssub.s32 128, 128
      %6123 = vsyncadd [#allocation11], %s6122
      %s6125 = sshll.u32 [#allocation10], 4
      %s6126 = int_to_ptr.vmem [resolvable:$true] %s6125
      %6128 = dma.vmem_to_hbm [thread:$0]  %s6126, 128, %s61, [#allocation11]
    $region125: #{tpu_custom_call.1} parent=1 // pred_fallthru
      _
    // Predicated region
    $region126: #{tpu_custom_call.1} parent=1 // pred_check
      _
    $region127: #{tpu_custom_call.1} parent=1 // pred_check_branch
      %6130 = sbr.rel (0) target = $region129
    $region128: #{tpu_custom_call.1} parent=1 // pred_region
      _
    $region129: #{tpu_custom_call.1} parent=1 // pred_fallthru
      _
    // Predicated region
    $region130: #{tpu_custom_call.1} parent=1 // pred_check
      _
    $region131: #{tpu_custom_call.1} parent=1 // pred_check_branch
      %6132 = sbr.rel (0) target = $region133
    $region132: #{tpu_custom_call.1} parent=1 // pred_region
      _
    $region133: #{tpu_custom_call.1} parent=1 // pred_fallthru
      _
    // Predicated region
    $region134: #{tpu_custom_call.1} parent=1 // pred_check
      _
    $region135: #{tpu_custom_call.1} parent=1 // pred_check_branch
      %6134 = sbr.rel (0) target = $region137
    $region136: #{tpu_custom_call.1} parent=1 // pred_region
      %6135 = dma.done [#allocation3], 128
    $region137: #{tpu_custom_call.1} parent=1 // pred_fallthru
      _
    // Predicated region
    $region138: #{tpu_custom_call.1} parent=1 // pred_check
      _
    $region139: #{tpu_custom_call.1} parent=1 // pred_check_branch
      %6137 = sbr.rel (0) target = $region141
    $region140: #{tpu_custom_call.1} parent=1 // pred_region
      %6138 = dma.done [#allocation5], 128
    $region141: #{tpu_custom_call.1} parent=1 // pred_fallthru
      _
    // Predicated region
    $region142: #{tpu_custom_call.1} parent=1 // pred_check
      _
    $region143: #{tpu_custom_call.1} parent=1 // pred_check_branch
      %6140 = sbr.rel (0) target = $region145
    $region144: #{tpu_custom_call.1} parent=1 // pred_region
      %6141 = dma.done [#allocation5], 128
    $region145: #{tpu_custom_call.1} parent=1 // pred_fallthru
      _
    // Predicated region
    $region146: #{tpu_custom_call.1} parent=1 // pred_check
      _
    $region147: #{tpu_custom_call.1} parent=1 // pred_check_branch
      %6143 = sbr.rel (0) target = $region149
    $region148: #{tpu_custom_call.1} parent=1 // pred_region
      %6144 = dma.done [#allocation8], 128
    $region149: #{tpu_custom_call.1} parent=1 // pred_fallthru
      _
    // Predicated region
    $region150: #{tpu_custom_call.1} parent=1 // pred_check
      _
    $region151: #{tpu_custom_call.1} parent=1 // pred_check_branch
      %6146 = sbr.rel (0) target = $region153
    $region152: #{tpu_custom_call.1} parent=1 // pred_region
      %6147 = dma.done [#allocation8], 128
    $region153: #{tpu_custom_call.1} parent=1 // pred_fallthru
      _
    // Predicated region
    $region154: #{tpu_custom_call.1} parent=1 // pred_check
      _
    $region155: #{tpu_custom_call.1} parent=1 // pred_check_branch
      %6149 = sbr.rel (0) target = $region157
    $region156: #{tpu_custom_call.1} parent=1 // pred_region
      %6150 = dma.done [#allocation11], 128
    $region157: #{tpu_custom_call.1} parent=1 // pred_fallthru
      _
    // Predicated region
    $region158: #{tpu_custom_call.1} parent=1 // pred_check
      _
    $region159: #{tpu_custom_call.1} parent=1 // pred_check_branch
      %6152 = sbr.rel (0) target = $region161
    $region160: #{tpu_custom_call.1} parent=1 // pred_region
      _
    $region161: #{tpu_custom_call.1} parent=1 // pred_fallthru
      _
    // Predicated region
    $region162: #{tpu_custom_call.1} parent=1 // pred_check
      _
    $region163: #{tpu_custom_call.1} parent=1 // pred_check_branch
      %6154 = sbr.rel (0) target = $region165
    $region164: #{tpu_custom_call.1} parent=1 // pred_region
      _
    $region165: #{tpu_custom_call.1} parent=1 // pred_fallthru
      _
    %6155 = vsyncpa [#allocation3], 1
    %6156 = vsyncpa [#allocation5], 1
    %6157 = vsyncpa [#allocation8], 1
    %6158 = vsyncpa [#allocation11], 1

</llo_original>
